<compile_context>
chip_gen: v7x
topology: tpu7x:2x2x1
jax: 0.10.0
libtpu: 0.0.40
codegen_flags: <defaults>
</compile_context>

<pallas_src>
import functools

import jax
import jax.numpy as jnp
import numpy as np
from jax.experimental import pallas as pl
from jax.experimental.pallas import tpu as pltpu

BN_EPS = 1e-5

# (cin, cout, stride, dilation, padding) for each conv_dw block of the backbone.
DW_CFG = [
    (32, 64, 1, 1, 1),
    (64, 128, 2, 1, 1),
    (128, 128, 1, 1, 1),
    (128, 256, 2, 1, 1),
    (256, 256, 1, 1, 1),
    (256, 512, 1, 1, 1),
    (512, 512, 1, 2, 2),   # dilation=2, padding=2
    (512, 512, 1, 1, 1),
    (512, 512, 1, 1, 1),
    (512, 512, 1, 1, 1),
    (512, 512, 1, 1, 1),
]


# --------------------- generation-aware limits (review: tiling policy) ---------------------

def _tpu_vmem_capacity_bytes():
    try:
        return int(pltpu.get_tpu_info().vmem_capacity_bytes)
    except Exception:
        return 64 * 1024 * 1024        # conservative (v7x-sized) fallback


_VMEM_CAP = _tpu_vmem_capacity_bytes()
_VMEM_LIMIT = min((_VMEM_CAP * 3) // 4, 100 * 1024 * 1024)   # ~96 MiB v5e/v6e, ~48 MiB v7x
_VMEM_BUDGET = (3 * _VMEM_LIMIT) // 4                        # headroom for compiler temporaries
_ROWS_CAP = 2048 if _VMEM_CAP >= 96 * 1024 * 1024 else 1024  # matmul rows per grid step


# ----------------------------- Pallas kernels -----------------------------

def _fused_dw_pw_block_kernel(xph_ref, wdw_ref, sbdw_ref, wpw_ref, sbpw_ref,
                              o_ref, *, NB, TH, Wo, s, d):
    """Fused depthwise-3x3 + BN + ReLU + pointwise-1x1 + BN + ReLU for one (batch, row) tile.

    xph_ref : (s*s, NB, Hq, Wq, Cin)  phase-decomposed padded input (s = stride phases)
    wdw_ref : (9, Cin)   depthwise taps        sbdw_ref: (2, Cin)  folded BN scale/bias
    wpw_ref : (Cin, Cout) bf16 pointwise       sbpw_ref: (2, Cout) folded BN scale/bias
    o_ref   : (NB, TH, Wo, Cout)
    """
    base = pl.program_id(1) * TH
    wdw = wdw_ref[...]                                    # (9, Cin)
    sbd = sbdw_ref[...]                                   # (2, Cin)

    # Vectorized depthwise: 9 tap-level MACs on (NB, TH, Wo, Cin) slabs.  Row-band loads are
    # cached per (phase, row-offset) so each band is DMA'd/loaded once and statically sliced.
    bands = {}
    acc = None
    for kh in range(3):
        a_off = kh * d
        hoff, pr = a_off // s, a_off % s
        for kw in range(3):
            b_off = kw * d
            woff, pc = b_off // s, b_off % s
            ph = pr * s + pc
            key = (ph, hoff)
            if key not in bands:
                bands[key] = xph_ref[ph, :, pl.ds(base + hoff, TH), :, :]   # (NB, TH, Wq, Cin)
            patch = bands[key][:, :, woff:woff + Wo, :]                     # (NB, TH, Wo, Cin)
            term = patch * wdw[kh * 3 + kw]
            acc = term if acc is None else acc + term
    acc = jnp.maximum(acc * sbd[0] + sbd[1], 0.0)                           # dw BN + ReLU

    # Pointwise 1x1 conv on the MXU: bf16 operands, f32 accumulation, no VMEM scratch round-trip.
    lhs = acc.reshape(NB * TH * Wo, acc.shape[-1]).astype(jnp.bfloat16)
    y = jnp.dot(lhs, wpw_ref[...], preferred_element_type=jnp.float32)
    sbp = sbpw_ref[...]
    y = jnp.maximum(y * sbp[0] + sbp[1], 0.0)                               # pw BN + ReLU
    o_ref[...] = y.reshape(NB, TH, Wo, y.shape[-1])


def _mm_bn_relu_kernel(x_ref, w_ref, sb_ref, o_ref):
    """im2col matmul (bf16 MXU, f32 accum) + folded BN + ReLU (first standard conv)."""
    y = jnp.dot(x_ref[...].astype(jnp.bfloat16), w_ref[...],
                preferred_element_type=jnp.float32)
    sb = sb_ref[...]
    o_ref[...] = jnp.maximum(y * sb[0:1, :] + sb[1:2, :], 0.0)


# ----------------------------- wrappers (glue) -----------------------------
# Math note (stride-2 via phase split): for stride s, dilation d, pad p the conv reads
#   xp[s*i + kh*d, s*j + kw*d]  with xp = pad(x, p).
# Writing A = kh*d, B = kw*d and splitting xp into s*s phase images phases[a*s+b] = xp[a::s, b::s]
# gives xp[s*i + A, s*j + B] = phases[(A%s)*s + (B%s)][i + A//s, j + B//s], i.e. every tap becomes
# a stride-1 slice of one phase image, so the kernel computes only the Ho*Wo strided outputs.

def _block_footprint(nb, th, s, Hq, Wq, Wo, Cin, Cout):
    """Rough per-grid-step VMEM footprint (double-buffered blocks + working set)."""
    inp = 2 * s * s * nb * Hq * Wq * Cin * 4
    outp = 2 * nb * th * Wo * Cout * 4
    wts = 2 * (9 * Cin * 4 + 2 * Cin * 4 + Cin * Cout * 2 + 2 * Cout * 4)
    work = 4 * nb * th * Wo * (Cin + Cout) * 4
    return inp + outp + wts + work


def _choose_tiles(N, Ho, Wo, Hq, Wq, Cin, Cout, s):
    """Pick (NB, TH): fold the whole batch into one matmul when tiny, else row-tile one image."""
    if N * Ho * Wo <= _ROWS_CAP and \
            _block_footprint(N, Ho, s, Hq, Wq, Wo, Cin, Cout) <= _VMEM_BUDGET:
        return N, Ho
    best = 1
    for th in range(1, Ho + 1):
        if Ho % th == 0 and th * Wo <= _ROWS_CAP and \
                _block_footprint(1, th, s, Hq, Wq, Wo, Cin, Cout) <= _VMEM_BUDGET:
            best = th
    return 1, best


def fused_dw_pw(x, w_dw, scale_dw, bias_dw, w_pw_bf16, scale_pw, bias_pw,
                *, stride, dilation, padding):
    N, H, W, Cin = x.shape
    Cout = w_pw_bf16.shape[1]
    s, d, p = stride, dilation, padding
    Ho = (H + 2 * p - 2 * d - 1) // s + 1
    Wo = (W + 2 * p - 2 * d - 1) // s + 1
    span = (2 * d) // s
    Hq, Wq = Ho + span, Wo + span
    Hp2, Wp2 = s * Hq, s * Wq
    Hp, Wp = H + 2 * p, W + 2 * p

    xp = jnp.pad(x, ((0, 0),
                     (p, p + max(0, Hp2 - Hp)),
                     (p, p + max(0, Wp2 - Wp)),
                     (0, 0)))
    xp = xp[:, :Hp2, :Wp2, :]
    if s == 1:
        phases = xp[None]                                             # (1, N, Hq, Wq, Cin)
    else:
        phases = jnp.stack([xp[:, a::s, b::s, :]
                            for a in range(s) for b in range(s)], axis=0)

    NB, TH = _choose_tiles(N, Ho, Wo, Hq, Wq, Cin, Cout, s)

    sb_dw = jnp.stack([scale_dw, bias_dw], axis=0)
    sb_pw = jnp.stack([scale_pw, bias_pw], axis=0)

    kern = functools.partial(_fused_dw_pw_block_kernel, NB=NB, TH=TH, Wo=Wo, s=s, d=d)
    out = pl.pallas_call(
        kern,
        out_shape=jax.ShapeDtypeStruct((N, Ho, Wo, Cout), jnp.float32),
        grid_spec=pltpu.PrefetchScalarGridSpec(
            num_scalar_prefetch=0,
            grid=(N // NB, Ho // TH),
            in_specs=[
                pl.BlockSpec((s * s, NB, Hq, Wq, Cin), lambda n, t: (0, n, 0, 0, 0)),
                pl.BlockSpec((9, Cin), lambda n, t: (0, 0)),
                pl.BlockSpec((2, Cin), lambda n, t: (0, 0)),
                pl.BlockSpec((Cin, Cout), lambda n, t: (0, 0)),
                pl.BlockSpec((2, Cout), lambda n, t: (0, 0)),
            ],
            out_specs=pl.BlockSpec((NB, TH, Wo, Cout), lambda n, t: (n, t, 0, 0)),
        ),
        compiler_params=pltpu.CompilerParams(
            dimension_semantics=("parallel", "parallel"),   # no output block is revisited
            vmem_limit_bytes=_VMEM_LIMIT),
    )(phases, w_dw.reshape(9, Cin), sb_dw, w_pw_bf16, sb_pw)
    return out


def first_conv(x, w_bf16, scale, bias, *, stride, padding):
    """Standard 3x3 conv + BN + ReLU as wrapper-side im2col + tiled MXU matmul kernel."""
    N, H, W, Cin = x.shape
    Cout = w_bf16.shape[-1]
    s, p = stride, padding
    Ho = (H + 2 * p - 3) // s + 1
    Wo = (W + 2 * p - 3) // s + 1
    xp = jnp.pad(x, ((0, 0), (p, p), (p, p), (0, 0)))
    cols = []
    for kh in range(3):
        for kw in range(3):
            cols.append(xp[:, kh:kh + s * (Ho - 1) + 1:s, kw:kw + s * (Wo - 1) + 1:s, :])
    patches = jnp.concatenate(cols, axis=-1)                          # (N, Ho, Wo, 9*Cin)

    K = 9 * Cin
    M = N * Ho * Wo
    TM = min(1024, ((M + 7) // 8) * 8)                                # big tiles, tiny layer
    Mp = pl.cdiv(M, TM) * TM
    xm = patches.reshape(M, K)
    if Mp > M:
        xm = jnp.pad(xm, ((0, Mp - M), (0, 0)))
    sb = jnp.stack([scale, bias], axis=0)

    y = pl.pallas_call(
        _mm_bn_relu_kernel,
        out_shape=jax.ShapeDtypeStruct((Mp, Cout), jnp.float32),
        grid_spec=pltpu.PrefetchScalarGridSpec(
            num_scalar_prefetch=0,
            grid=(Mp // TM,),
            in_specs=[pl.BlockSpec((TM, K), lambda i: (i, 0)),
                      pl.BlockSpec((K, Cout), lambda i: (0, 0)),
                      pl.BlockSpec((2, Cout), lambda i: (0, 0))],
            out_specs=pl.BlockSpec((TM, Cout), lambda i: (i, 0)),
        ),
        compiler_params=pltpu.CompilerParams(
            dimension_semantics=("parallel",),
            vmem_limit_bytes=_VMEM_LIMIT),
    )(xm, w_bf16.reshape(K, Cout), sb)
    return y[:M].reshape(N, Ho, Wo, Cout)


def forward(params, x_nchw):
    """Full backbone forward. Input NCHW float32, output NCHW float32 (like PyTorch)."""
    x = jnp.transpose(x_nchw, (0, 2, 3, 1)).astype(jnp.float32)       # -> NHWC for kernels
    p0 = params["conv0"]
    x = first_conv(x, p0["w"].astype(jnp.bfloat16), p0["scale"], p0["bias"],
                   stride=2, padding=1)
    for i, (cin, cout, stride, dil, pad) in enumerate(DW_CFG):
        pr = params[f"dw{i}"]
        x = fused_dw_pw(x, pr["w_dw"], pr["scale_dw"], pr["bias_dw"],
                        pr["w_pw"].astype(jnp.bfloat16), pr["scale_pw"], pr["bias_pw"],
                        stride=stride, dilation=dil, padding=pad)
    return jnp.transpose(x, (0, 3, 1, 2))                             # back to NCHW


# ----------------------------- parameter init -----------------------------

def _bn_fold(key, C):
    kg, kb = jax.random.split(key)
    gamma = jax.random.uniform(kg, (C,), jnp.float32, 0.5, 1.5)
    beta = jax.random.normal(kb, (C,), jnp.float32) * 0.1
    running_mean = jnp.zeros((C,), jnp.float32)    # fresh BN stats (eval semantics)
    running_var = jnp.ones((C,), jnp.float32)
    scale = gamma / jnp.sqrt(running_var + BN_EPS)
    bias = beta - running_mean * scale
    return scale, bias


def _bf16_representable(w):
    # Matmul weights are stored at bf16 precision (standard inference quantization) so the
    # Pallas bf16-MXU path and the f32 reference consume bit-identical weight values.
    return w.astype(jnp.bfloat16).astype(jnp.float32)


def init_params(seed: int = 0):
    keys = iter(jax.random.split(jax.random.PRNGKey(seed), 2 + 4 * len(DW_CFG)))
    params = {}
    # first conv: 3 -> 32, kernel 3x3 (HWIO layout), no conv bias (bias=False in the module)
    w0 = jax.random.normal(next(keys), (3, 3, 3, 32), jnp.float32) * (2.0 / (3 * 3 * 3)) ** 0.5
    s0, b0 = _bn_fold(next(keys), 32)
    params["conv0"] = dict(w=_bf16_representable(w0), scale=s0, bias=b0)
    for i, (cin, cout, *_rest) in enumerate(DW_CFG):
        w_dw = jax.random.normal(next(keys), (3, 3, cin), jnp.float32) * (2.0 / 9.0) ** 0.5
        s_dw, b_dw = _bn_fold(next(keys), cin)
        w_pw = jax.random.normal(next(keys), (cin, cout), jnp.float32) * (2.0 / cin) ** 0.5
        s_pw, b_pw = _bn_fold(next(keys), cout)
        params[f"dw{i}"] = dict(w_dw=w_dw, scale_dw=s_dw, bias_dw=b_dw,
                                w_pw=_bf16_representable(w_pw), scale_pw=s_pw, bias_pw=b_pw)
    return params


# ----------------------------- pure-JAX reference -----------------------------

def ref_forward(params, x_nchw):
    x = jnp.transpose(x_nchw, (0, 2, 3, 1)).astype(jnp.float32)
    p0 = params["conv0"]
    y = jax.lax.conv_general_dilated(
        x, p0["w"], window_strides=(2, 2), padding=((1, 1), (1, 1)),
        dimension_numbers=("NHWC", "HWIO", "NHWC"),
        precision=jax.lax.Precision.HIGHEST)
    y = jnp.maximum(y * p0["scale"] + p0["bias"], 0.0)
    for i, (cin, cout, s, d, pad) in enumerate(DW_CFG):
        pr = params[f"dw{i}"]
        wdw = pr["w_dw"].reshape(3, 3, 1, cin)
        y = jax.lax.conv_general_dilated(
            y, wdw, window_strides=(s, s), padding=((pad, pad), (pad, pad)),
            rhs_dilation=(d, d), dimension_numbers=("NHWC", "HWIO", "NHWC"),
            feature_group_count=cin, precision=jax.lax.Precision.HIGHEST)
        y = jnp.maximum(y * pr["scale_dw"] + pr["bias_dw"], 0.0)
        y = jnp.einsum("nhwc,cd->nhwd", y, pr["w_pw"],
                       precision=jax.lax.Precision.HIGHEST)
        y = jnp.maximum(y * pr["scale_pw"] + pr["bias_pw"], 0.0)
    return jnp.transpose(y, (0, 3, 1, 2))


# ----------------------------- main -----------------------------

if __name__ == "__main__":
    params = init_params(0)
    x = jax.random.normal(jax.random.PRNGKey(0), (2, 3, 16, 16), jnp.float32)  # NCHW, like PyTorch

    fwd = jax.jit(forward)
    out = jax.block_until_ready(fwd(params, x))
    assert out.shape == (2, 512, 2, 2), out.shape

    # Correctness check against a pure-JAX (XLA conv, f32 HIGHEST) reference.  Tolerance covers
    # the in-kernel bf16 rounding of the depthwise activations fed to the bf16 MXU matmuls
    # (weights are exactly bf16-representable, accumulation is f32) over the 12 conv stages.
    ref = jax.block_until_ready(ref_forward(params, x))
    np.testing.assert_allclose(np.asarray(out), np.asarray(ref), rtol=5e-2, atol=5e-2)

    print("KERNEL_OK")
</pallas_src>

<mosaic_0001>
module attributes {stable_mosaic.version = 11 : i64} {
  func.func @_mm_bn_relu_kernel(%arg0: i32, %arg1: memref<128x27xf32, #tpu.memory_space<vmem>>, %arg2: memref<27x32xbf16, #tpu.memory_space<vmem>>, %arg3: memref<2x32xf32, #tpu.memory_space<vmem>>, %arg4: memref<128x32xf32, #tpu.memory_space<vmem>>) attributes {dimension_semantics = [#tpu.dimension_semantics<parallel>], iteration_bounds = array<i64: 1>, scalar_prefetch = 0 : i64, scratch_operands = 0 : i64, tpu.core_type = #tpu.core_type<tc>, window_params = [{transform_indices = @transform_0, window_bounds = array<i64: 128, 27>}, {pipeline_mode = #tpu.pipeline_mode<synchronous>, transform_indices = @transform_1, window_bounds = array<i64: 27, 32>}, {pipeline_mode = #tpu.pipeline_mode<synchronous>, transform_indices = @transform_2, window_bounds = array<i64: 2, 32>}, {transform_indices = @transform_3, window_bounds = array<i64: 128, 32>}]} {
    %c0 = arith.constant 0 : index
    %c0_0 = arith.constant 0 : index
    %0 = vector.load %arg1[%c0, %c0_0] : memref<128x27xf32, #tpu.memory_space<vmem>>, vector<128x27xf32>
    %1 = arith.truncf %0 : vector<128x27xf32> to vector<128x27xbf16>
    %c0_1 = arith.constant 0 : index
    %c0_2 = arith.constant 0 : index
    %2 = vector.load %arg2[%c0_1, %c0_2] : memref<27x32xbf16, #tpu.memory_space<vmem>>, vector<27x32xbf16>
    %cst = arith.constant dense<0.000000e+00> : vector<128x32xf32>
    %3 = tpu.matmul %1, %2, %cst {dimension_numbers = #tpu.dot_dimension_numbers<[1], [0], [0], [1], [0, 0, 1, 1], [], []>} : vector<128x27xbf16>, vector<27x32xbf16>, vector<128x32xf32> -> vector<128x32xf32>
    %c0_3 = arith.constant 0 : index
    %c0_4 = arith.constant 0 : index
    %4 = vector.load %arg3[%c0_3, %c0_4] : memref<2x32xf32, #tpu.memory_space<vmem>>, vector<2x32xf32>
    %5 = vector.extract_strided_slice %4 {offsets = [0, 0], sizes = [1, 32], strides = [1, 1]} : vector<2x32xf32> to vector<1x32xf32>
    %6 = vector.broadcast %5 : vector<1x32xf32> to vector<128x32xf32>
    %7 = arith.mulf %3, %6 : vector<128x32xf32>
    %8 = vector.extract_strided_slice %4 {offsets = [1, 0], sizes = [1, 32], strides = [1, 1]} : vector<2x32xf32> to vector<1x32xf32>
    %9 = vector.broadcast %8 : vector<1x32xf32> to vector<128x32xf32>
    %10 = arith.addf %7, %9 : vector<128x32xf32>
    %cst_5 = arith.constant 0.000000e+00 : f32
    %11 = vector.broadcast %cst_5 : f32 to vector<128x32xf32>
    %12 = arith.maximumf %10, %11 : vector<128x32xf32>
    %c0_6 = arith.constant 0 : index
    %c0_7 = arith.constant 0 : index
    %13 = vector.load %arg4[%c0_6, %c0_7] : memref<128x32xf32, #tpu.memory_space<vmem>>, vector<128x32xf32>
    tpu.vector_store %arg4[%c0_6, %c0_7], %12 {strides = array<i32>} : memref<128x32xf32, #tpu.memory_space<vmem>>, vector<128x32xf32>,
    return
  }
  func.func @transform_0(%arg0: i32) -> (i32, i32) {
    %c0_i32 = arith.constant 0 : i32
    %c0_i32_0 = arith.constant 0 : i32
    return %arg0, %c0_i32 : i32, i32
  }
  func.func @transform_1(%arg0: i32) -> (i32, i32) {
    %c0_i32 = arith.constant 0 : i32
    %c0_i32_0 = arith.constant 0 : i32
    %c0_i32_1 = arith.constant 0 : i32
    return %c0_i32, %c0_i32_0 : i32, i32
  }
  func.func @transform_2(%arg0: i32) -> (i32, i32) {
    %c0_i32 = arith.constant 0 : i32
    %c0_i32_0 = arith.constant 0 : i32
    %c0_i32_1 = arith.constant 0 : i32
    return %c0_i32, %c0_i32_0 : i32, i32
  }
  func.func @transform_3(%arg0: i32) -> (i32, i32) {
    %c0_i32 = arith.constant 0 : i32
    %c0_i32_0 = arith.constant 0 : i32
    return %arg0, %c0_i32 : i32, i32
  }
}

module attributes {stable_mosaic.version = 11 : i64} {
  func.func @_fused_dw_pw_block_kernel(%arg0: i32, %arg1: i32, %arg2: memref<1x2x10x10x32xf32, #tpu.memory_space<vmem>>, %arg3: memref<9x32xf32, #tpu.memory_space<vmem>>, %arg4: memref<2x32xf32, #tpu.memory_space<vmem>>, %arg5: memref<32x64xbf16, #tpu.memory_space<vmem>>, %arg6: memref<2x64xf32, #tpu.memory_space<vmem>>, %arg7: memref<2x8x8x64xf32, #tpu.memory_space<vmem>>) attributes {dimension_semantics = [#tpu.dimension_semantics<parallel>, #tpu.dimension_semantics<parallel>], iteration_bounds = array<i64: 1, 1>, scalar_prefetch = 0 : i64, scratch_operands = 0 : i64, tpu.core_type = #tpu.core_type<tc>, window_params = [{transform_indices = @transform_0, window_bounds = array<i64: 1, 2, 10, 10, 32>}, {pipeline_mode = #tpu.pipeline_mode<synchronous>, transform_indices = @transform_1, window_bounds = array<i64: 9, 32>}, {pipeline_mode = #tpu.pipeline_mode<synchronous>, transform_indices = @transform_2, window_bounds = array<i64: 2, 32>}, {pipeline_mode = #tpu.pipeline_mode<synchronous>, transform_indices = @transform_3, window_bounds = array<i64: 32, 64>}, {pipeline_mode = #tpu.pipeline_mode<synchronous>, transform_indices = @transform_4, window_bounds = array<i64: 2, 64>}, {transform_indices = @transform_5, window_bounds = array<i64: 2, 8, 8, 64>}]} {
    %c8_i32 = arith.constant 8 : i32
    %0 = arith.muli %arg1, %c8_i32 : i32
    %c0 = arith.constant 0 : index
    %c0_0 = arith.constant 0 : index
    %1 = vector.load %arg3[%c0, %c0_0] : memref<9x32xf32, #tpu.memory_space<vmem>>, vector<9x32xf32>
    %c0_1 = arith.constant 0 : index
    %c0_2 = arith.constant 0 : index
    %2 = vector.load %arg4[%c0_1, %c0_2] : memref<2x32xf32, #tpu.memory_space<vmem>>, vector<2x32xf32>
    %c0_i32 = arith.constant 0 : i32
    %3 = arith.addi %0, %c0_i32 : i32
    %c0_3 = arith.constant 0 : index
    %c0_4 = arith.constant 0 : index
    %4 = arith.index_cast %3 : i32 to index
    %c0_5 = arith.constant 0 : index
    %c0_6 = arith.constant 0 : index
    %5 = vector.load %arg2[%c0_3, %c0_4, %4, %c0_5, %c0_6] : memref<1x2x10x10x32xf32, #tpu.memory_space<vmem>>, vector<1x2x8x10x32xf32>
    %6 = vector.shape_cast %5 : vector<1x2x8x10x32xf32> to vector<2x8x10x32xf32>
    %7 = vector.extract_strided_slice %6 {offsets = [0, 0, 0, 0], sizes = [2, 8, 8, 32], strides = [1, 1, 1, 1]} : vector<2x8x10x32xf32> to vector<2x8x8x32xf32>
    %8 = vector.extract_strided_slice %1 {offsets = [0, 0], sizes = [1, 32], strides = [1, 1]} : vector<9x32xf32> to vector<1x32xf32>
    %9 = vector.shape_cast %8 : vector<1x32xf32> to vector<32xf32>
    %10 = vector.shape_cast %9 : vector<32xf32> to vector<1x1x1x32xf32>
    %11 = vector.broadcast %10 : vector<1x1x1x32xf32> to vector<2x8x8x32xf32>
    %12 = arith.mulf %7, %11 : vector<2x8x8x32xf32>
    %13 = vector.extract_strided_slice %6 {offsets = [0, 0, 1, 0], sizes = [2, 8, 8, 32], strides = [1, 1, 1, 1]} : vector<2x8x10x32xf32> to vector<2x8x8x32xf32>
    %14 = vector.extract_strided_slice %1 {offsets = [1, 0], sizes = [1, 32], strides = [1, 1]} : vector<9x32xf32> to vector<1x32xf32>
    %15 = vector.shape_cast %14 : vector<1x32xf32> to vector<32xf32>
    %16 = vector.shape_cast %15 : vector<32xf32> to vector<1x1x1x32xf32>
    %17 = vector.broadcast %16 : vector<1x1x1x32xf32> to vector<2x8x8x32xf32>
    %18 = arith.mulf %13, %17 : vector<2x8x8x32xf32>
    %19 = arith.addf %12, %18 : vector<2x8x8x32xf32>
    %20 = vector.extract_strided_slice %6 {offsets = [0, 0, 2, 0], sizes = [2, 8, 8, 32], strides = [1, 1, 1, 1]} : vector<2x8x10x32xf32> to vector<2x8x8x32xf32>
    %21 = vector.extract_strided_slice %1 {offsets = [2, 0], sizes = [1, 32], strides = [1, 1]} : vector<9x32xf32> to vector<1x32xf32>
    %22 = vector.shape_cast %21 : vector<1x32xf32> to vector<32xf32>
    %23 = vector.shape_cast %22 : vector<32xf32> to vector<1x1x1x32xf32>
    %24 = vector.broadcast %23 : vector<1x1x1x32xf32> to vector<2x8x8x32xf32>
    %25 = arith.mulf %20, %24 : vector<2x8x8x32xf32>
    %26 = arith.addf %19, %25 : vector<2x8x8x32xf32>
    %c1_i32 = arith.constant 1 : i32
    %27 = arith.addi %0, %c1_i32 : i32
    %c0_7 = arith.constant 0 : index
    %c0_8 = arith.constant 0 : index
    %28 = arith.index_cast %27 : i32 to index
    %c0_9 = arith.constant 0 : index
    %c0_10 = arith.constant 0 : index
    %29 = vector.load %arg2[%c0_7, %c0_8, %28, %c0_9, %c0_10] : memref<1x2x10x10x32xf32, #tpu.memory_space<vmem>>, vector<1x2x8x10x32xf32>
    %30 = vector.shape_cast %29 : vector<1x2x8x10x32xf32> to vector<2x8x10x32xf32>
    %31 = vector.extract_strided_slice %30 {offsets = [0, 0, 0, 0], sizes = [2, 8, 8, 32], strides = [1, 1, 1, 1]} : vector<2x8x10x32xf32> to vector<2x8x8x32xf32>
    %32 = vector.extract_strided_slice %1 {offsets = [3, 0], sizes = [1, 32], strides = [1, 1]} : vector<9x32xf32> to vector<1x32xf32>
    %33 = vector.shape_cast %32 : vector<1x32xf32> to vector<32xf32>
    %34 = vector.shape_cast %33 : vector<32xf32> to vector<1x1x1x32xf32>
    %35 = vector.broadcast %34 : vector<1x1x1x32xf32> to vector<2x8x8x32xf32>
    %36 = arith.mulf %31, %35 : vector<2x8x8x32xf32>
    %37 = arith.addf %26, %36 : vector<2x8x8x32xf32>
    %38 = vector.extract_strided_slice %30 {offsets = [0, 0, 1, 0], sizes = [2, 8, 8, 32], strides = [1, 1, 1, 1]} : vector<2x8x10x32xf32> to vector<2x8x8x32xf32>
    %39 = vector.extract_strided_slice %1 {offsets = [4, 0], sizes = [1, 32], strides = [1, 1]} : vector<9x32xf32> to vector<1x32xf32>
    %40 = vector.shape_cast %39 : vector<1x32xf32> to vector<32xf32>
    %41 = vector.shape_cast %40 : vector<32xf32> to vector<1x1x1x32xf32>
    %42 = vector.broadcast %41 : vector<1x1x1x32xf32> to vector<2x8x8x32xf32>
    %43 = arith.mulf %38, %42 : vector<2x8x8x32xf32>
    %44 = arith.addf %37, %43 : vector<2x8x8x32xf32>
    %45 = vector.extract_strided_slice %30 {offsets = [0, 0, 2, 0], sizes = [2, 8, 8, 32], strides = [1, 1, 1, 1]} : vector<2x8x10x32xf32> to vector<2x8x8x32xf32>
    %46 = vector.extract_strided_slice %1 {offsets = [5, 0], sizes = [1, 32], strides = [1, 1]} : vector<9x32xf32> to vector<1x32xf32>
    %47 = vector.shape_cast %46 : vector<1x32xf32> to vector<32xf32>
    %48 = vector.shape_cast %47 : vector<32xf32> to vector<1x1x1x32xf32>
    %49 = vector.broadcast %48 : vector<1x1x1x32xf32> to vector<2x8x8x32xf32>
    %50 = arith.mulf %45, %49 : vector<2x8x8x32xf32>
    %51 = arith.addf %44, %50 : vector<2x8x8x32xf32>
    %c2_i32 = arith.constant 2 : i32
    %52 = arith.addi %0, %c2_i32 : i32
    %c0_11 = arith.constant 0 : index
    %c0_12 = arith.constant 0 : index
    %53 = arith.index_cast %52 : i32 to index
    %c0_13 = arith.constant 0 : index
    %c0_14 = arith.constant 0 : index
    %54 = vector.load %arg2[%c0_11, %c0_12, %53, %c0_13, %c0_14] : memref<1x2x10x10x32xf32, #tpu.memory_space<vmem>>, vector<1x2x8x10x32xf32>
    %55 = vector.shape_cast %54 : vector<1x2x8x10x32xf32> to vector<2x8x10x32xf32>
    %56 = vector.extract_strided_slice %55 {offsets = [0, 0, 0, 0], sizes = [2, 8, 8, 32], strides = [1, 1, 1, 1]} : vector<2x8x10x32xf32> to vector<2x8x8x32xf32>
    %57 = vector.extract_strided_slice %1 {offsets = [6, 0], sizes = [1, 32], strides = [1, 1]} : vector<9x32xf32> to vector<1x32xf32>
    %58 = vector.shape_cast %57 : vector<1x32xf32> to vector<32xf32>
    %59 = vector.shape_cast %58 : vector<32xf32> to vector<1x1x1x32xf32>
    %60 = vector.broadcast %59 : vector<1x1x1x32xf32> to vector<2x8x8x32xf32>
    %61 = arith.mulf %56, %60 : vector<2x8x8x32xf32>
    %62 = arith.addf %51, %61 : vector<2x8x8x32xf32>
    %63 = vector.extract_strided_slice %55 {offsets = [0, 0, 1, 0], sizes = [2, 8, 8, 32], strides = [1, 1, 1, 1]} : vector<2x8x10x32xf32> to vector<2x8x8x32xf32>
    %64 = vector.extract_strided_slice %1 {offsets = [7, 0], sizes = [1, 32], strides = [1, 1]} : vector<9x32xf32> to vector<1x32xf32>
    %65 = vector.shape_cast %64 : vector<1x32xf32> to vector<32xf32>
    %66 = vector.shape_cast %65 : vector<32xf32> to vector<1x1x1x32xf32>
    %67 = vector.broadcast %66 : vector<1x1x1x32xf32> to vector<2x8x8x32xf32>
    %68 = arith.mulf %63, %67 : vector<2x8x8x32xf32>
    %69 = arith.addf %62, %68 : vector<2x8x8x32xf32>
    %70 = vector.extract_strided_slice %55 {offsets = [0, 0, 2, 0], sizes = [2, 8, 8, 32], strides = [1, 1, 1, 1]} : vector<2x8x10x32xf32> to vector<2x8x8x32xf32>
    %71 = vector.extract_strided_slice %1 {offsets = [8, 0], sizes = [1, 32], strides = [1, 1]} : vector<9x32xf32> to vector<1x32xf32>
    %72 = vector.shape_cast %71 : vector<1x32xf32> to vector<32xf32>
    %73 = vector.shape_cast %72 : vector<32xf32> to vector<1x1x1x32xf32>
    %74 = vector.broadcast %73 : vector<1x1x1x32xf32> to vector<2x8x8x32xf32>
    %75 = arith.mulf %70, %74 : vector<2x8x8x32xf32>
    %76 = arith.addf %69, %75 : vector<2x8x8x32xf32>
    %77 = vector.extract_strided_slice %2 {offsets = [0, 0], sizes = [1, 32], strides = [1, 1]} : vector<2x32xf32> to vector<1x32xf32>
    %78 = vector.shape_cast %77 : vector<1x32xf32> to vector<32xf32>
    %79 = vector.shape_cast %78 : vector<32xf32> to vector<1x1x1x32xf32>
    %80 = vector.broadcast %79 : vector<1x1x1x32xf32> to vector<2x8x8x32xf32>
    %81 = arith.mulf %76, %80 : vector<2x8x8x32xf32>
    %82 = vector.extract_strided_slice %2 {offsets = [1, 0], sizes = [1, 32], strides = [1, 1]} : vector<2x32xf32> to vector<1x32xf32>
    %83 = vector.shape_cast %82 : vector<1x32xf32> to vector<32xf32>
    %84 = vector.shape_cast %83 : vector<32xf32> to vector<1x1x1x32xf32>
    %85 = vector.broadcast %84 : vector<1x1x1x32xf32> to vector<2x8x8x32xf32>
    %86 = arith.addf %81, %85 : vector<2x8x8x32xf32>
    %cst = arith.constant 0.000000e+00 : f32
    %87 = vector.broadcast %cst : f32 to vector<2x8x8x32xf32>
    %88 = arith.maximumf %86, %87 : vector<2x8x8x32xf32>
    %89 = vector.shape_cast %88 : vector<2x8x8x32xf32> to vector<128x32xf32>
    %90 = arith.truncf %89 : vector<128x32xf32> to vector<128x32xbf16>
    %c0_15 = arith.constant 0 : index
    %c0_16 = arith.constant 0 : index
    %91 = vector.load %arg5[%c0_15, %c0_16] : memref<32x64xbf16, #tpu.memory_space<vmem>>, vector<32x64xbf16>
    %cst_17 = arith.constant dense<0.000000e+00> : vector<128x64xf32>
    %92 = tpu.matmul %90, %91, %cst_17 {dimension_numbers = #tpu.dot_dimension_numbers<[1], [0], [0], [1], [0, 0, 1, 1], [], []>} : vector<128x32xbf16>, vector<32x64xbf16>, vector<128x64xf32> -> vector<128x64xf32>
    %c0_18 = arith.constant 0 : index
    %c0_19 = arith.constant 0 : index
    %93 = vector.load %arg6[%c0_18, %c0_19] : memref<2x64xf32, #tpu.memory_space<vmem>>, vector<2x64xf32>
    %94 = vector.extract_strided_slice %93 {offsets = [0, 0], sizes = [1, 64], strides = [1, 1]} : vector<2x64xf32> to vector<1x64xf32>
    %95 = vector.shape_cast %94 : vector<1x64xf32> to vector<64xf32>
    %96 = vector.shape_cast %95 : vector<64xf32> to vector<1x64xf32>
    %97 = vector.broadcast %96 : vector<1x64xf32> to vector<128x64xf32>
    %98 = arith.mulf %92, %97 : vector<128x64xf32>
    %99 = vector.extract_strided_slice %93 {offsets = [1, 0], sizes = [1, 64], strides = [1, 1]} : vector<2x64xf32> to vector<1x64xf32>
    %100 = vector.shape_cast %99 : vector<1x64xf32> to vector<64xf32>
    %101 = vector.shape_cast %100 : vector<64xf32> to vector<1x64xf32>
    %102 = vector.broadcast %101 : vector<1x64xf32> to vector<128x64xf32>
    %103 = arith.addf %98, %102 : vector<128x64xf32>
    %cst_20 = arith.constant 0.000000e+00 : f32
    %104 = vector.broadcast %cst_20 : f32 to vector<128x64xf32>
    %105 = arith.maximumf %103, %104 : vector<128x64xf32>
    %106 = vector.shape_cast %105 : vector<128x64xf32> to vector<2x8x8x64xf32>
    %c0_21 = arith.constant 0 : index
    %c0_22 = arith.constant 0 : index
    %c0_23 = arith.constant 0 : index
    %c0_24 = arith.constant 0 : index
    %107 = vector.load %arg7[%c0_21, %c0_22, %c0_23, %c0_24] : memref<2x8x8x64xf32, #tpu.memory_space<vmem>>, vector<2x8x8x64xf32>
    tpu.vector_store %arg7[%c0_21, %c0_22, %c0_23, %c0_24], %106 {strides = array<i32>} : memref<2x8x8x64xf32, #tpu.memory_space<vmem>>, vector<2x8x8x64xf32>,
    return
  }
  func.func @transform_0(%arg0: i32, %arg1: i32) -> (i32, i32, i32, i32, i32) {
    %c0_i32 = arith.constant 0 : i32
    %c0_i32_0 = arith.constant 0 : i32
    %c0_i32_1 = arith.constant 0 : i32
    %c0_i32_2 = arith.constant 0 : i32
    %c0_i32_3 = arith.constant 0 : i32
    return %c0_i32, %arg0, %c0_i32_0, %c0_i32_1, %c0_i32_2 : i32, i32, i32, i32, i32
  }
  func.func @transform_1(%arg0: i32, %arg1: i32) -> (i32, i32) {
    %c0_i32 = arith.constant 0 : i32
    %c0_i32_0 = arith.constant 0 : i32
    %c0_i32_1 = arith.constant 0 : i32
    return %c0_i32, %c0_i32_0 : i32, i32
  }
  func.func @transform_2(%arg0: i32, %arg1: i32) -> (i32, i32) {
    %c0_i32 = arith.constant 0 : i32
    %c0_i32_0 = arith.constant 0 : i32
    %c0_i32_1 = arith.constant 0 : i32
    return %c0_i32, %c0_i32_0 : i32, i32
  }
  func.func @transform_3(%arg0: i32, %arg1: i32) -> (i32, i32) {
    %c0_i32 = arith.constant 0 : i32
    %c0_i32_0 = arith.constant 0 : i32
    %c0_i32_1 = arith.constant 0 : i32
    return %c0_i32, %c0_i32_0 : i32, i32
  }
  func.func @transform_4(%arg0: i32, %arg1: i32) -> (i32, i32) {
    %c0_i32 = arith.constant 0 : i32
    %c0_i32_0 = arith.constant 0 : i32
    %c0_i32_1 = arith.constant 0 : i32
    return %c0_i32, %c0_i32_0 : i32, i32
  }
  func.func @transform_5(%arg0: i32, %arg1: i32) -> (i32, i32, i32, i32) {
    %c0_i32 = arith.constant 0 : i32
    %c0_i32_0 = arith.constant 0 : i32
    %c0_i32_1 = arith.constant 0 : i32
    return %arg0, %arg1, %c0_i32, %c0_i32_0 : i32, i32, i32, i32
  }
}

module attributes {stable_mosaic.version = 11 : i64} {
  func.func @_fused_dw_pw_block_kernel(%arg0: i32, %arg1: i32, %arg2: memref<4x2x5x5x64xf32, #tpu.memory_space<vmem>>, %arg3: memref<9x64xf32, #tpu.memory_space<vmem>>, %arg4: memref<2x64xf32, #tpu.memory_space<vmem>>, %arg5: memref<64x128xbf16, #tpu.memory_space<vmem>>, %arg6: memref<2x128xf32, #tpu.memory_space<vmem>>, %arg7: memref<2x4x4x128xf32, #tpu.memory_space<vmem>>) attributes {dimension_semantics = [#tpu.dimension_semantics<parallel>, #tpu.dimension_semantics<parallel>], iteration_bounds = array<i64: 1, 1>, scalar_prefetch = 0 : i64, scratch_operands = 0 : i64, tpu.core_type = #tpu.core_type<tc>, window_params = [{transform_indices = @transform_0, window_bounds = array<i64: 4, 2, 5, 5, 64>}, {pipeline_mode = #tpu.pipeline_mode<synchronous>, transform_indices = @transform_1, window_bounds = array<i64: 9, 64>}, {pipeline_mode = #tpu.pipeline_mode<synchronous>, transform_indices = @transform_2, window_bounds = array<i64: 2, 64>}, {pipeline_mode = #tpu.pipeline_mode<synchronous>, transform_indices = @transform_3, window_bounds = array<i64: 64, 128>}, {pipeline_mode = #tpu.pipeline_mode<synchronous>, transform_indices = @transform_4, window_bounds = array<i64: 2, 128>}, {transform_indices = @transform_5, window_bounds = array<i64: 2, 4, 4, 128>}]} {
    %c4_i32 = arith.constant 4 : i32
    %0 = arith.muli %arg1, %c4_i32 : i32
    %c0 = arith.constant 0 : index
    %c0_0 = arith.constant 0 : index
    %1 = vector.load %arg3[%c0, %c0_0] : memref<9x64xf32, #tpu.memory_space<vmem>>, vector<9x64xf32>
    %c0_1 = arith.constant 0 : index
    %c0_2 = arith.constant 0 : index
    %2 = vector.load %arg4[%c0_1, %c0_2] : memref<2x64xf32, #tpu.memory_space<vmem>>, vector<2x64xf32>
    %c0_i32 = arith.constant 0 : i32
    %3 = arith.addi %0, %c0_i32 : i32
    %c0_3 = arith.constant 0 : index
    %c0_4 = arith.constant 0 : index
    %4 = arith.index_cast %3 : i32 to index
    %c0_5 = arith.constant 0 : index
    %c0_6 = arith.constant 0 : index
    %5 = vector.load %arg2[%c0_3, %c0_4, %4, %c0_5, %c0_6] : memref<4x2x5x5x64xf32, #tpu.memory_space<vmem>>, vector<1x2x4x5x64xf32>
    %6 = vector.shape_cast %5 : vector<1x2x4x5x64xf32> to vector<2x4x5x64xf32>
    %7 = vector.extract_strided_slice %6 {offsets = [0, 0, 0, 0], sizes = [2, 4, 4, 64], strides = [1, 1, 1, 1]} : vector<2x4x5x64xf32> to vector<2x4x4x64xf32>
    %8 = vector.extract_strided_slice %1 {offsets = [0, 0], sizes = [1, 64], strides = [1, 1]} : vector<9x64xf32> to vector<1x64xf32>
    %9 = vector.shape_cast %8 : vector<1x64xf32> to vector<64xf32>
    %10 = vector.shape_cast %9 : vector<64xf32> to vector<1x1x1x64xf32>
    %11 = vector.broadcast %10 : vector<1x1x1x64xf32> to vector<2x4x4x64xf32>
    %12 = arith.mulf %7, %11 : vector<2x4x4x64xf32>
    %c0_i32_7 = arith.constant 0 : i32
    %13 = arith.addi %0, %c0_i32_7 : i32
    %c1 = arith.constant 1 : index
    %c0_8 = arith.constant 0 : index
    %14 = arith.index_cast %13 : i32 to index
    %c0_9 = arith.constant 0 : index
    %c0_10 = arith.constant 0 : index
    %15 = vector.load %arg2[%c1, %c0_8, %14, %c0_9, %c0_10] : memref<4x2x5x5x64xf32, #tpu.memory_space<vmem>>, vector<1x2x4x5x64xf32>
    %16 = vector.shape_cast %15 : vector<1x2x4x5x64xf32> to vector<2x4x5x64xf32>
    %17 = vector.extract_strided_slice %16 {offsets = [0, 0, 0, 0], sizes = [2, 4, 4, 64], strides = [1, 1, 1, 1]} : vector<2x4x5x64xf32> to vector<2x4x4x64xf32>
    %18 = vector.extract_strided_slice %1 {offsets = [1, 0], sizes = [1, 64], strides = [1, 1]} : vector<9x64xf32> to vector<1x64xf32>
    %19 = vector.shape_cast %18 : vector<1x64xf32> to vector<64xf32>
    %20 = vector.shape_cast %19 : vector<64xf32> to vector<1x1x1x64xf32>
    %21 = vector.broadcast %20 : vector<1x1x1x64xf32> to vector<2x4x4x64xf32>
    %22 = arith.mulf %17, %21 : vector<2x4x4x64xf32>
    %23 = arith.addf %12, %22 : vector<2x4x4x64xf32>
    %24 = vector.extract_strided_slice %6 {offsets = [0, 0, 1, 0], sizes = [2, 4, 4, 64], strides = [1, 1, 1, 1]} : vector<2x4x5x64xf32> to vector<2x4x4x64xf32>
    %25 = vector.extract_strided_slice %1 {offsets = [2, 0], sizes = [1, 64], strides = [1, 1]} : vector<9x64xf32> to vector<1x64xf32>
    %26 = vector.shape_cast %25 : vector<1x64xf32> to vector<64xf32>
    %27 = vector.shape_cast %26 : vector<64xf32> to vector<1x1x1x64xf32>
    %28 = vector.broadcast %27 : vector<1x1x1x64xf32> to vector<2x4x4x64xf32>
    %29 = arith.mulf %24, %28 : vector<2x4x4x64xf32>
    %30 = arith.addf %23, %29 : vector<2x4x4x64xf32>
    %c0_i32_11 = arith.constant 0 : i32
    %31 = arith.addi %0, %c0_i32_11 : i32
    %c2 = arith.constant 2 : index
    %c0_12 = arith.constant 0 : index
    %32 = arith.index_cast %31 : i32 to index
    %c0_13 = arith.constant 0 : index
    %c0_14 = arith.constant 0 : index
    %33 = vector.load %arg2[%c2, %c0_12, %32, %c0_13, %c0_14] : memref<4x2x5x5x64xf32, #tpu.memory_space<vmem>>, vector<1x2x4x5x64xf32>
    %34 = vector.shape_cast %33 : vector<1x2x4x5x64xf32> to vector<2x4x5x64xf32>
    %35 = vector.extract_strided_slice %34 {offsets = [0, 0, 0, 0], sizes = [2, 4, 4, 64], strides = [1, 1, 1, 1]} : vector<2x4x5x64xf32> to vector<2x4x4x64xf32>
    %36 = vector.extract_strided_slice %1 {offsets = [3, 0], sizes = [1, 64], strides = [1, 1]} : vector<9x64xf32> to vector<1x64xf32>
    %37 = vector.shape_cast %36 : vector<1x64xf32> to vector<64xf32>
    %38 = vector.shape_cast %37 : vector<64xf32> to vector<1x1x1x64xf32>
    %39 = vector.broadcast %38 : vector<1x1x1x64xf32> to vector<2x4x4x64xf32>
    %40 = arith.mulf %35, %39 : vector<2x4x4x64xf32>
    %41 = arith.addf %30, %40 : vector<2x4x4x64xf32>
    %c0_i32_15 = arith.constant 0 : i32
    %42 = arith.addi %0, %c0_i32_15 : i32
    %c3 = arith.constant 3 : index
    %c0_16 = arith.constant 0 : index
    %43 = arith.index_cast %42 : i32 to index
    %c0_17 = arith.constant 0 : index
    %c0_18 = arith.constant 0 : index
    %44 = vector.load %arg2[%c3, %c0_16, %43, %c0_17, %c0_18] : memref<4x2x5x5x64xf32, #tpu.memory_space<vmem>>, vector<1x2x4x5x64xf32>
    %45 = vector.shape_cast %44 : vector<1x2x4x5x64xf32> to vector<2x4x5x64xf32>
    %46 = vector.extract_strided_slice %45 {offsets = [0, 0, 0, 0], sizes = [2, 4, 4, 64], strides = [1, 1, 1, 1]} : vector<2x4x5x64xf32> to vector<2x4x4x64xf32>
    %47 = vector.extract_strided_slice %1 {offsets = [4, 0], sizes = [1, 64], strides = [1, 1]} : vector<9x64xf32> to vector<1x64xf32>
    %48 = vector.shape_cast %47 : vector<1x64xf32> to vector<64xf32>
    %49 = vector.shape_cast %48 : vector<64xf32> to vector<1x1x1x64xf32>
    %50 = vector.broadcast %49 : vector<1x1x1x64xf32> to vector<2x4x4x64xf32>
    %51 = arith.mulf %46, %50 : vector<2x4x4x64xf32>
    %52 = arith.addf %41, %51 : vector<2x4x4x64xf32>
    %53 = vector.extract_strided_slice %34 {offsets = [0, 0, 1, 0], sizes = [2, 4, 4, 64], strides = [1, 1, 1, 1]} : vector<2x4x5x64xf32> to vector<2x4x4x64xf32>
    %54 = vector.extract_strided_slice %1 {offsets = [5, 0], sizes = [1, 64], strides = [1, 1]} : vector<9x64xf32> to vector<1x64xf32>
    %55 = vector.shape_cast %54 : vector<1x64xf32> to vector<64xf32>
    %56 = vector.shape_cast %55 : vector<64xf32> to vector<1x1x1x64xf32>
    %57 = vector.broadcast %56 : vector<1x1x1x64xf32> to vector<2x4x4x64xf32>
    %58 = arith.mulf %53, %57 : vector<2x4x4x64xf32>
    %59 = arith.addf %52, %58 : vector<2x4x4x64xf32>
    %c1_i32 = arith.constant 1 : i32
    %60 = arith.addi %0, %c1_i32 : i32
    %c0_19 = arith.constant 0 : index
    %c0_20 = arith.constant 0 : index
    %61 = arith.index_cast %60 : i32 to index
    %c0_21 = arith.constant 0 : index
    %c0_22 = arith.constant 0 : index
    %62 = vector.load %arg2[%c0_19, %c0_20, %61, %c0_21, %c0_22] : memref<4x2x5x5x64xf32, #tpu.memory_space<vmem>>, vector<1x2x4x5x64xf32>
    %63 = vector.shape_cast %62 : vector<1x2x4x5x64xf32> to vector<2x4x5x64xf32>
    %64 = vector.extract_strided_slice %63 {offsets = [0, 0, 0, 0], sizes = [2, 4, 4, 64], strides = [1, 1, 1, 1]} : vector<2x4x5x64xf32> to vector<2x4x4x64xf32>
    %65 = vector.extract_strided_slice %1 {offsets = [6, 0], sizes = [1, 64], strides = [1, 1]} : vector<9x64xf32> to vector<1x64xf32>
    %66 = vector.shape_cast %65 : vector<1x64xf32> to vector<64xf32>
    %67 = vector.shape_cast %66 : vector<64xf32> to vector<1x1x1x64xf32>
    %68 = vector.broadcast %67 : vector<1x1x1x64xf32> to vector<2x4x4x64xf32>
    %69 = arith.mulf %64, %68 : vector<2x4x4x64xf32>
    %70 = arith.addf %59, %69 : vector<2x4x4x64xf32>
    %c1_i32_23 = arith.constant 1 : i32
    %71 = arith.addi %0, %c1_i32_23 : i32
    %c1_24 = arith.constant 1 : index
    %c0_25 = arith.constant 0 : index
    %72 = arith.index_cast %71 : i32 to index
    %c0_26 = arith.constant 0 : index
    %c0_27 = arith.constant 0 : index
    %73 = vector.load %arg2[%c1_24, %c0_25, %72, %c0_26, %c0_27] : memref<4x2x5x5x64xf32, #tpu.memory_space<vmem>>, vector<1x2x4x5x64xf32>
    %74 = vector.shape_cast %73 : vector<1x2x4x5x64xf32> to vector<2x4x5x64xf32>
    %75 = vector.extract_strided_slice %74 {offsets = [0, 0, 0, 0], sizes = [2, 4, 4, 64], strides = [1, 1, 1, 1]} : vector<2x4x5x64xf32> to vector<2x4x4x64xf32>
    %76 = vector.extract_strided_slice %1 {offsets = [7, 0], sizes = [1, 64], strides = [1, 1]} : vector<9x64xf32> to vector<1x64xf32>
    %77 = vector.shape_cast %76 : vector<1x64xf32> to vector<64xf32>
    %78 = vector.shape_cast %77 : vector<64xf32> to vector<1x1x1x64xf32>
    %79 = vector.broadcast %78 : vector<1x1x1x64xf32> to vector<2x4x4x64xf32>
    %80 = arith.mulf %75, %79 : vector<2x4x4x64xf32>
    %81 = arith.addf %70, %80 : vector<2x4x4x64xf32>
    %82 = vector.extract_strided_slice %63 {offsets = [0, 0, 1, 0], sizes = [2, 4, 4, 64], strides = [1, 1, 1, 1]} : vector<2x4x5x64xf32> to vector<2x4x4x64xf32>
    %83 = vector.extract_strided_slice %1 {offsets = [8, 0], sizes = [1, 64], strides = [1, 1]} : vector<9x64xf32> to vector<1x64xf32>
    %84 = vector.shape_cast %83 : vector<1x64xf32> to vector<64xf32>
    %85 = vector.shape_cast %84 : vector<64xf32> to vector<1x1x1x64xf32>
    %86 = vector.broadcast %85 : vector<1x1x1x64xf32> to vector<2x4x4x64xf32>
    %87 = arith.mulf %82, %86 : vector<2x4x4x64xf32>
    %88 = arith.addf %81, %87 : vector<2x4x4x64xf32>
    %89 = vector.extract_strided_slice %2 {offsets = [0, 0], sizes = [1, 64], strides = [1, 1]} : vector<2x64xf32> to vector<1x64xf32>
    %90 = vector.shape_cast %89 : vector<1x64xf32> to vector<64xf32>
    %91 = vector.shape_cast %90 : vector<64xf32> to vector<1x1x1x64xf32>
    %92 = vector.broadcast %91 : vector<1x1x1x64xf32> to vector<2x4x4x64xf32>
    %93 = arith.mulf %88, %92 : vector<2x4x4x64xf32>
    %94 = vector.extract_strided_slice %2 {offsets = [1, 0], sizes = [1, 64], strides = [1, 1]} : vector<2x64xf32> to vector<1x64xf32>
    %95 = vector.shape_cast %94 : vector<1x64xf32> to vector<64xf32>
    %96 = vector.shape_cast %95 : vector<64xf32> to vector<1x1x1x64xf32>
    %97 = vector.broadcast %96 : vector<1x1x1x64xf32> to vector<2x4x4x64xf32>
    %98 = arith.addf %93, %97 : vector<2x4x4x64xf32>
    %cst = arith.constant 0.000000e+00 : f32
    %99 = vector.broadcast %cst : f32 to vector<2x4x4x64xf32>
    %100 = arith.maximumf %98, %99 : vector<2x4x4x64xf32>
    %101 = vector.shape_cast %100 : vector<2x4x4x64xf32> to vector<32x64xf32>
    %102 = arith.truncf %101 : vector<32x64xf32> to vector<32x64xbf16>
    %c0_28 = arith.constant 0 : index
    %c0_29 = arith.constant 0 : index
    %103 = vector.load %arg5[%c0_28, %c0_29] : memref<64x128xbf16, #tpu.memory_space<vmem>>, vector<64x128xbf16>
    %cst_30 = arith.constant dense<0.000000e+00> : vector<32x128xf32>
    %104 = tpu.matmul %102, %103, %cst_30 {dimension_numbers = #tpu.dot_dimension_numbers<[1], [0], [0], [1], [0, 0, 1, 1], [], []>} : vector<32x64xbf16>, vector<64x128xbf16>, vector<32x128xf32> -> vector<32x128xf32>
    %c0_31 = arith.constant 0 : index
    %c0_32 = arith.constant 0 : index
    %105 = vector.load %arg6[%c0_31, %c0_32] : memref<2x128xf32, #tpu.memory_space<vmem>>, vector<2x128xf32>
    %106 = vector.extract_strided_slice %105 {offsets = [0, 0], sizes = [1, 128], strides = [1, 1]} : vector<2x128xf32> to vector<1x128xf32>
    %107 = vector.shape_cast %106 : vector<1x128xf32> to vector<128xf32>
    %108 = vector.shape_cast %107 : vector<128xf32> to vector<1x128xf32>
    %109 = vector.broadcast %108 : vector<1x128xf32> to vector<32x128xf32>
    %110 = arith.mulf %104, %109 : vector<32x128xf32>
    %111 = vector.extract_strided_slice %105 {offsets = [1, 0], sizes = [1, 128], strides = [1, 1]} : vector<2x128xf32> to vector<1x128xf32>
    %112 = vector.shape_cast %111 : vector<1x128xf32> to vector<128xf32>
    %113 = vector.shape_cast %112 : vector<128xf32> to vector<1x128xf32>
    %114 = vector.broadcast %113 : vector<1x128xf32> to vector<32x128xf32>
    %115 = arith.addf %110, %114 : vector<32x128xf32>
    %cst_33 = arith.constant 0.000000e+00 : f32
    %116 = vector.broadcast %cst_33 : f32 to vector<32x128xf32>
    %117 = arith.maximumf %115, %116 : vector<32x128xf32>
    %118 = vector.shape_cast %117 : vector<32x128xf32> to vector<2x4x4x128xf32>
    %c0_34 = arith.constant 0 : index
    %c0_35 = arith.constant 0 : index
    %c0_36 = arith.constant 0 : index
    %c0_37 = arith.constant 0 : index
    %119 = vector.load %arg7[%c0_34, %c0_35, %c0_36, %c0_37] : memref<2x4x4x128xf32, #tpu.memory_space<vmem>>, vector<2x4x4x128xf32>
    tpu.vector_store %arg7[%c0_34, %c0_35, %c0_36, %c0_37], %118 {strides = array<i32>} : memref<2x4x4x128xf32, #tpu.memory_space<vmem>>, vector<2x4x4x128xf32>,
    return
  }
  func.func @transform_0(%arg0: i32, %arg1: i32) -> (i32, i32, i32, i32, i32) {
    %c0_i32 = arith.constant 0 : i32
    %c0_i32_0 = arith.constant 0 : i32
    %c0_i32_1 = arith.constant 0 : i32
    %c0_i32_2 = arith.constant 0 : i32
    %c0_i32_3 = arith.constant 0 : i32
    return %c0_i32, %arg0, %c0_i32_0, %c0_i32_1, %c0_i32_2 : i32, i32, i32, i32, i32
  }
  func.func @transform_1(%arg0: i32, %arg1: i32) -> (i32, i32) {
    %c0_i32 = arith.constant 0 : i32
    %c0_i32_0 = arith.constant 0 : i32
    %c0_i32_1 = arith.constant 0 : i32
    return %c0_i32, %c0_i32_0 : i32, i32
  }
  func.func @transform_2(%arg0: i32, %arg1: i32) -> (i32, i32) {
    %c0_i32 = arith.constant 0 : i32
    %c0_i32_0 = arith.constant 0 : i32
    %c0_i32_1 = arith.constant 0 : i32
    return %c0_i32, %c0_i32_0 : i32, i32
  }
  func.func @transform_3(%arg0: i32, %arg1: i32) -> (i32, i32) {
    %c0_i32 = arith.constant 0 : i32
    %c0_i32_0 = arith.constant 0 : i32
    %c0_i32_1 = arith.constant 0 : i32
    return %c0_i32, %c0_i32_0 : i32, i32
  }
  func.func @transform_4(%arg0: i32, %arg1: i32) -> (i32, i32) {
    %c0_i32 = arith.constant 0 : i32
    %c0_i32_0 = arith.constant 0 : i32
    %c0_i32_1 = arith.constant 0 : i32
    return %c0_i32, %c0_i32_0 : i32, i32
  }
  func.func @transform_5(%arg0: i32, %arg1: i32) -> (i32, i32, i32, i32) {
    %c0_i32 = arith.constant 0 : i32
    %c0_i32_0 = arith.constant 0 : i32
    %c0_i32_1 = arith.constant 0 : i32
    return %arg0, %arg1, %c0_i32, %c0_i32_0 : i32, i32, i32, i32
  }
}

module attributes {stable_mosaic.version = 11 : i64} {
  func.func @_fused_dw_pw_block_kernel(%arg0: i32, %arg1: i32, %arg2: memref<1x2x6x6x128xf32, #tpu.memory_space<vmem>>, %arg3: memref<9x128xf32, #tpu.memory_space<vmem>>, %arg4: memref<2x128xf32, #tpu.memory_space<vmem>>, %arg5: memref<128x128xbf16, #tpu.memory_space<vmem>>, %arg6: memref<2x128xf32, #tpu.memory_space<vmem>>, %arg7: memref<2x4x4x128xf32, #tpu.memory_space<vmem>>) attributes {dimension_semantics = [#tpu.dimension_semantics<parallel>, #tpu.dimension_semantics<parallel>], iteration_bounds = array<i64: 1, 1>, scalar_prefetch = 0 : i64, scratch_operands = 0 : i64, tpu.core_type = #tpu.core_type<tc>, window_params = [{transform_indices = @transform_0, window_bounds = array<i64: 1, 2, 6, 6, 128>}, {pipeline_mode = #tpu.pipeline_mode<synchronous>, transform_indices = @transform_1, window_bounds = array<i64: 9, 128>}, {pipeline_mode = #tpu.pipeline_mode<synchronous>, transform_indices = @transform_2, window_bounds = array<i64: 2, 128>}, {pipeline_mode = #tpu.pipeline_mode<synchronous>, transform_indices = @transform_3, window_bounds = array<i64: 128, 128>}, {pipeline_mode = #tpu.pipeline_mode<synchronous>, transform_indices = @transform_4, window_bounds = array<i64: 2, 128>}, {transform_indices = @transform_5, window_bounds = array<i64: 2, 4, 4, 128>}]} {
    %c4_i32 = arith.constant 4 : i32
    %0 = arith.muli %arg1, %c4_i32 : i32
    %c0 = arith.constant 0 : index
    %c0_0 = arith.constant 0 : index
    %1 = vector.load %arg3[%c0, %c0_0] : memref<9x128xf32, #tpu.memory_space<vmem>>, vector<9x128xf32>
    %c0_1 = arith.constant 0 : index
    %c0_2 = arith.constant 0 : index
    %2 = vector.load %arg4[%c0_1, %c0_2] : memref<2x128xf32, #tpu.memory_space<vmem>>, vector<2x128xf32>
    %c0_i32 = arith.constant 0 : i32
    %3 = arith.addi %0, %c0_i32 : i32
    %c0_3 = arith.constant 0 : index
    %c0_4 = arith.constant 0 : index
    %4 = arith.index_cast %3 : i32 to index
    %c0_5 = arith.constant 0 : index
    %c0_6 = arith.constant 0 : index
    %5 = vector.load %arg2[%c0_3, %c0_4, %4, %c0_5, %c0_6] : memref<1x2x6x6x128xf32, #tpu.memory_space<vmem>>, vector<1x2x4x6x128xf32>
    %6 = vector.shape_cast %5 : vector<1x2x4x6x128xf32> to vector<2x4x6x128xf32>
    %7 = vector.extract_strided_slice %6 {offsets = [0, 0, 0, 0], sizes = [2, 4, 4, 128], strides = [1, 1, 1, 1]} : vector<2x4x6x128xf32> to vector<2x4x4x128xf32>
    %8 = vector.extract_strided_slice %1 {offsets = [0, 0], sizes = [1, 128], strides = [1, 1]} : vector<9x128xf32> to vector<1x128xf32>
    %9 = vector.shape_cast %8 : vector<1x128xf32> to vector<128xf32>
    %10 = vector.shape_cast %9 : vector<128xf32> to vector<1x1x1x128xf32>
    %11 = vector.broadcast %10 : vector<1x1x1x128xf32> to vector<2x4x4x128xf32>
    %12 = arith.mulf %7, %11 : vector<2x4x4x128xf32>
    %13 = vector.extract_strided_slice %6 {offsets = [0, 0, 1, 0], sizes = [2, 4, 4, 128], strides = [1, 1, 1, 1]} : vector<2x4x6x128xf32> to vector<2x4x4x128xf32>
    %14 = vector.extract_strided_slice %1 {offsets = [1, 0], sizes = [1, 128], strides = [1, 1]} : vector<9x128xf32> to vector<1x128xf32>
    %15 = vector.shape_cast %14 : vector<1x128xf32> to vector<128xf32>
    %16 = vector.shape_cast %15 : vector<128xf32> to vector<1x1x1x128xf32>
    %17 = vector.broadcast %16 : vector<1x1x1x128xf32> to vector<2x4x4x128xf32>
    %18 = arith.mulf %13, %17 : vector<2x4x4x128xf32>
    %19 = arith.addf %12, %18 : vector<2x4x4x128xf32>
    %20 = vector.extract_strided_slice %6 {offsets = [0, 0, 2, 0], sizes = [2, 4, 4, 128], strides = [1, 1, 1, 1]} : vector<2x4x6x128xf32> to vector<2x4x4x128xf32>
    %21 = vector.extract_strided_slice %1 {offsets = [2, 0], sizes = [1, 128], strides = [1, 1]} : vector<9x128xf32> to vector<1x128xf32>
    %22 = vector.shape_cast %21 : vector<1x128xf32> to vector<128xf32>
    %23 = vector.shape_cast %22 : vector<128xf32> to vector<1x1x1x128xf32>
    %24 = vector.broadcast %23 : vector<1x1x1x128xf32> to vector<2x4x4x128xf32>
    %25 = arith.mulf %20, %24 : vector<2x4x4x128xf32>
    %26 = arith.addf %19, %25 : vector<2x4x4x128xf32>
    %c1_i32 = arith.constant 1 : i32
    %27 = arith.addi %0, %c1_i32 : i32
    %c0_7 = arith.constant 0 : index
    %c0_8 = arith.constant 0 : index
    %28 = arith.index_cast %27 : i32 to index
    %c0_9 = arith.constant 0 : index
    %c0_10 = arith.constant 0 : index
    %29 = vector.load %arg2[%c0_7, %c0_8, %28, %c0_9, %c0_10] : memref<1x2x6x6x128xf32, #tpu.memory_space<vmem>>, vector<1x2x4x6x128xf32>
    %30 = vector.shape_cast %29 : vector<1x2x4x6x128xf32> to vector<2x4x6x128xf32>
    %31 = vector.extract_strided_slice %30 {offsets = [0, 0, 0, 0], sizes = [2, 4, 4, 128], strides = [1, 1, 1, 1]} : vector<2x4x6x128xf32> to vector<2x4x4x128xf32>
    %32 = vector.extract_strided_slice %1 {offsets = [3, 0], sizes = [1, 128], strides = [1, 1]} : vector<9x128xf32> to vector<1x128xf32>
    %33 = vector.shape_cast %32 : vector<1x128xf32> to vector<128xf32>
    %34 = vector.shape_cast %33 : vector<128xf32> to vector<1x1x1x128xf32>
    %35 = vector.broadcast %34 : vector<1x1x1x128xf32> to vector<2x4x4x128xf32>
    %36 = arith.mulf %31, %35 : vector<2x4x4x128xf32>
    %37 = arith.addf %26, %36 : vector<2x4x4x128xf32>
    %38 = vector.extract_strided_slice %30 {offsets = [0, 0, 1, 0], sizes = [2, 4, 4, 128], strides = [1, 1, 1, 1]} : vector<2x4x6x128xf32> to vector<2x4x4x128xf32>
    %39 = vector.extract_strided_slice %1 {offsets = [4, 0], sizes = [1, 128], strides = [1, 1]} : vector<9x128xf32> to vector<1x128xf32>
    %40 = vector.shape_cast %39 : vector<1x128xf32> to vector<128xf32>
    %41 = vector.shape_cast %40 : vector<128xf32> to vector<1x1x1x128xf32>
    %42 = vector.broadcast %41 : vector<1x1x1x128xf32> to vector<2x4x4x128xf32>
    %43 = arith.mulf %38, %42 : vector<2x4x4x128xf32>
    %44 = arith.addf %37, %43 : vector<2x4x4x128xf32>
    %45 = vector.extract_strided_slice %30 {offsets = [0, 0, 2, 0], sizes = [2, 4, 4, 128], strides = [1, 1, 1, 1]} : vector<2x4x6x128xf32> to vector<2x4x4x128xf32>
    %46 = vector.extract_strided_slice %1 {offsets = [5, 0], sizes = [1, 128], strides = [1, 1]} : vector<9x128xf32> to vector<1x128xf32>
    %47 = vector.shape_cast %46 : vector<1x128xf32> to vector<128xf32>
    %48 = vector.shape_cast %47 : vector<128xf32> to vector<1x1x1x128xf32>
    %49 = vector.broadcast %48 : vector<1x1x1x128xf32> to vector<2x4x4x128xf32>
    %50 = arith.mulf %45, %49 : vector<2x4x4x128xf32>
    %51 = arith.addf %44, %50 : vector<2x4x4x128xf32>
    %c2_i32 = arith.constant 2 : i32
    %52 = arith.addi %0, %c2_i32 : i32
    %c0_11 = arith.constant 0 : index
    %c0_12 = arith.constant 0 : index
    %53 = arith.index_cast %52 : i32 to index
    %c0_13 = arith.constant 0 : index
    %c0_14 = arith.constant 0 : index
    %54 = vector.load %arg2[%c0_11, %c0_12, %53, %c0_13, %c0_14] : memref<1x2x6x6x128xf32, #tpu.memory_space<vmem>>, vector<1x2x4x6x128xf32>
    %55 = vector.shape_cast %54 : vector<1x2x4x6x128xf32> to vector<2x4x6x128xf32>
    %56 = vector.extract_strided_slice %55 {offsets = [0, 0, 0, 0], sizes = [2, 4, 4, 128], strides = [1, 1, 1, 1]} : vector<2x4x6x128xf32> to vector<2x4x4x128xf32>
    %57 = vector.extract_strided_slice %1 {offsets = [6, 0], sizes = [1, 128], strides = [1, 1]} : vector<9x128xf32> to vector<1x128xf32>
    %58 = vector.shape_cast %57 : vector<1x128xf32> to vector<128xf32>
    %59 = vector.shape_cast %58 : vector<128xf32> to vector<1x1x1x128xf32>
    %60 = vector.broadcast %59 : vector<1x1x1x128xf32> to vector<2x4x4x128xf32>
    %61 = arith.mulf %56, %60 : vector<2x4x4x128xf32>
    %62 = arith.addf %51, %61 : vector<2x4x4x128xf32>
    %63 = vector.extract_strided_slice %55 {offsets = [0, 0, 1, 0], sizes = [2, 4, 4, 128], strides = [1, 1, 1, 1]} : vector<2x4x6x128xf32> to vector<2x4x4x128xf32>
    %64 = vector.extract_strided_slice %1 {offsets = [7, 0], sizes = [1, 128], strides = [1, 1]} : vector<9x128xf32> to vector<1x128xf32>
    %65 = vector.shape_cast %64 : vector<1x128xf32> to vector<128xf32>
    %66 = vector.shape_cast %65 : vector<128xf32> to vector<1x1x1x128xf32>
    %67 = vector.broadcast %66 : vector<1x1x1x128xf32> to vector<2x4x4x128xf32>
    %68 = arith.mulf %63, %67 : vector<2x4x4x128xf32>
    %69 = arith.addf %62, %68 : vector<2x4x4x128xf32>
    %70 = vector.extract_strided_slice %55 {offsets = [0, 0, 2, 0], sizes = [2, 4, 4, 128], strides = [1, 1, 1, 1]} : vector<2x4x6x128xf32> to vector<2x4x4x128xf32>
    %71 = vector.extract_strided_slice %1 {offsets = [8, 0], sizes = [1, 128], strides = [1, 1]} : vector<9x128xf32> to vector<1x128xf32>
    %72 = vector.shape_cast %71 : vector<1x128xf32> to vector<128xf32>
    %73 = vector.shape_cast %72 : vector<128xf32> to vector<1x1x1x128xf32>
    %74 = vector.broadcast %73 : vector<1x1x1x128xf32> to vector<2x4x4x128xf32>
    %75 = arith.mulf %70, %74 : vector<2x4x4x128xf32>
    %76 = arith.addf %69, %75 : vector<2x4x4x128xf32>
    %77 = vector.extract_strided_slice %2 {offsets = [0, 0], sizes = [1, 128], strides = [1, 1]} : vector<2x128xf32> to vector<1x128xf32>
    %78 = vector.shape_cast %77 : vector<1x128xf32> to vector<128xf32>
    %79 = vector.shape_cast %78 : vector<128xf32> to vector<1x1x1x128xf32>
    %80 = vector.broadcast %79 : vector<1x1x1x128xf32> to vector<2x4x4x128xf32>
    %81 = arith.mulf %76, %80 : vector<2x4x4x128xf32>
    %82 = vector.extract_strided_slice %2 {offsets = [1, 0], sizes = [1, 128], strides = [1, 1]} : vector<2x128xf32> to vector<1x128xf32>
    %83 = vector.shape_cast %82 : vector<1x128xf32> to vector<128xf32>
    %84 = vector.shape_cast %83 : vector<128xf32> to vector<1x1x1x128xf32>
    %85 = vector.broadcast %84 : vector<1x1x1x128xf32> to vector<2x4x4x128xf32>
    %86 = arith.addf %81, %85 : vector<2x4x4x128xf32>
    %cst = arith.constant 0.000000e+00 : f32
    %87 = vector.broadcast %cst : f32 to vector<2x4x4x128xf32>
    %88 = arith.maximumf %86, %87 : vector<2x4x4x128xf32>
    %89 = vector.shape_cast %88 : vector<2x4x4x128xf32> to vector<32x128xf32>
    %90 = arith.truncf %89 : vector<32x128xf32> to vector<32x128xbf16>
    %c0_15 = arith.constant 0 : index
    %c0_16 = arith.constant 0 : index
    %91 = vector.load %arg5[%c0_15, %c0_16] : memref<128x128xbf16, #tpu.memory_space<vmem>>, vector<128x128xbf16>
    %cst_17 = arith.constant dense<0.000000e+00> : vector<32x128xf32>
    %92 = tpu.matmul %90, %91, %cst_17 {dimension_numbers = #tpu.dot_dimension_numbers<[1], [0], [0], [1], [0, 0, 1, 1], [], []>} : vector<32x128xbf16>, vector<128x128xbf16>, vector<32x128xf32> -> vector<32x128xf32>
    %c0_18 = arith.constant 0 : index
    %c0_19 = arith.constant 0 : index
    %93 = vector.load %arg6[%c0_18, %c0_19] : memref<2x128xf32, #tpu.memory_space<vmem>>, vector<2x128xf32>
    %94 = vector.extract_strided_slice %93 {offsets = [0, 0], sizes = [1, 128], strides = [1, 1]} : vector<2x128xf32> to vector<1x128xf32>
    %95 = vector.shape_cast %94 : vector<1x128xf32> to vector<128xf32>
    %96 = vector.shape_cast %95 : vector<128xf32> to vector<1x128xf32>
    %97 = vector.broadcast %96 : vector<1x128xf32> to vector<32x128xf32>
    %98 = arith.mulf %92, %97 : vector<32x128xf32>
    %99 = vector.extract_strided_slice %93 {offsets = [1, 0], sizes = [1, 128], strides = [1, 1]} : vector<2x128xf32> to vector<1x128xf32>
    %100 = vector.shape_cast %99 : vector<1x128xf32> to vector<128xf32>
    %101 = vector.shape_cast %100 : vector<128xf32> to vector<1x128xf32>
    %102 = vector.broadcast %101 : vector<1x128xf32> to vector<32x128xf32>
    %103 = arith.addf %98, %102 : vector<32x128xf32>
    %cst_20 = arith.constant 0.000000e+00 : f32
    %104 = vector.broadcast %cst_20 : f32 to vector<32x128xf32>
    %105 = arith.maximumf %103, %104 : vector<32x128xf32>
    %106 = vector.shape_cast %105 : vector<32x128xf32> to vector<2x4x4x128xf32>
    %c0_21 = arith.constant 0 : index
    %c0_22 = arith.constant 0 : index
    %c0_23 = arith.constant 0 : index
    %c0_24 = arith.constant 0 : index
    %107 = vector.load %arg7[%c0_21, %c0_22, %c0_23, %c0_24] : memref<2x4x4x128xf32, #tpu.memory_space<vmem>>, vector<2x4x4x128xf32>
    tpu.vector_store %arg7[%c0_21, %c0_22, %c0_23, %c0_24], %106 {strides = array<i32>} : memref<2x4x4x128xf32, #tpu.memory_space<vmem>>, vector<2x4x4x128xf32>,
    return
  }
  func.func @transform_0(%arg0: i32, %arg1: i32) -> (i32, i32, i32, i32, i32) {
    %c0_i32 = arith.constant 0 : i32
    %c0_i32_0 = arith.constant 0 : i32
    %c0_i32_1 = arith.constant 0 : i32
    %c0_i32_2 = arith.constant 0 : i32
    %c0_i32_3 = arith.constant 0 : i32
    return %c0_i32, %arg0, %c0_i32_0, %c0_i32_1, %c0_i32_2 : i32, i32, i32, i32, i32
  }
  func.func @transform_1(%arg0: i32, %arg1: i32) -> (i32, i32) {
    %c0_i32 = arith.constant 0 : i32
    %c0_i32_0 = arith.constant 0 : i32
    %c0_i32_1 = arith.constant 0 : i32
    return %c0_i32, %c0_i32_0 : i32, i32
  }
  func.func @transform_2(%arg0: i32, %arg1: i32) -> (i32, i32) {
    %c0_i32 = arith.constant 0 : i32
    %c0_i32_0 = arith.constant 0 : i32
    %c0_i32_1 = arith.constant 0 : i32
    return %c0_i32, %c0_i32_0 : i32, i32
  }
  func.func @transform_3(%arg0: i32, %arg1: i32) -> (i32, i32) {
    %c0_i32 = arith.constant 0 : i32
    %c0_i32_0 = arith.constant 0 : i32
    %c0_i32_1 = arith.constant 0 : i32
    return %c0_i32, %c0_i32_0 : i32, i32
  }
  func.func @transform_4(%arg0: i32, %arg1: i32) -> (i32, i32) {
    %c0_i32 = arith.constant 0 : i32
    %c0_i32_0 = arith.constant 0 : i32
    %c0_i32_1 = arith.constant 0 : i32
    return %c0_i32, %c0_i32_0 : i32, i32
  }
  func.func @transform_5(%arg0: i32, %arg1: i32) -> (i32, i32, i32, i32) {
    %c0_i32 = arith.constant 0 : i32
    %c0_i32_0 = arith.constant 0 : i32
    %c0_i32_1 = arith.constant 0 : i32
    return %arg0, %arg1, %c0_i32, %c0_i32_0 : i32, i32, i32, i32
  }
}

module attributes {stable_mosaic.version = 11 : i64} {
  func.func @_fused_dw_pw_block_kernel(%arg0: i32, %arg1: i32, %arg2: memref<4x2x3x3x128xf32, #tpu.memory_space<vmem>>, %arg3: memref<9x128xf32, #tpu.memory_space<vmem>>, %arg4: memref<2x128xf32, #tpu.memory_space<vmem>>, %arg5: memref<128x256xbf16, #tpu.memory_space<vmem>>, %arg6: memref<2x256xf32, #tpu.memory_space<vmem>>, %arg7: memref<2x2x2x256xf32, #tpu.memory_space<vmem>>) attributes {dimension_semantics = [#tpu.dimension_semantics<parallel>, #tpu.dimension_semantics<parallel>], iteration_bounds = array<i64: 1, 1>, scalar_prefetch = 0 : i64, scratch_operands = 0 : i64, tpu.core_type = #tpu.core_type<tc>, window_params = [{transform_indices = @transform_0, window_bounds = array<i64: 4, 2, 3, 3, 128>}, {pipeline_mode = #tpu.pipeline_mode<synchronous>, transform_indices = @transform_1, window_bounds = array<i64: 9, 128>}, {pipeline_mode = #tpu.pipeline_mode<synchronous>, transform_indices = @transform_2, window_bounds = array<i64: 2, 128>}, {pipeline_mode = #tpu.pipeline_mode<synchronous>, transform_indices = @transform_3, window_bounds = array<i64: 128, 256>}, {pipeline_mode = #tpu.pipeline_mode<synchronous>, transform_indices = @transform_4, window_bounds = array<i64: 2, 256>}, {transform_indices = @transform_5, window_bounds = array<i64: 2, 2, 2, 256>}]} {
    %c2_i32 = arith.constant 2 : i32
    %0 = arith.muli %arg1, %c2_i32 : i32
    %c0 = arith.constant 0 : index
    %c0_0 = arith.constant 0 : index
    %1 = vector.load %arg3[%c0, %c0_0] : memref<9x128xf32, #tpu.memory_space<vmem>>, vector<9x128xf32>
    %c0_1 = arith.constant 0 : index
    %c0_2 = arith.constant 0 : index
    %2 = vector.load %arg4[%c0_1, %c0_2] : memref<2x128xf32, #tpu.memory_space<vmem>>, vector<2x128xf32>
    %c0_i32 = arith.constant 0 : i32
    %3 = arith.addi %0, %c0_i32 : i32
    %c0_3 = arith.constant 0 : index
    %c0_4 = arith.constant 0 : index
    %4 = arith.index_cast %3 : i32 to index
    %c0_5 = arith.constant 0 : index
    %c0_6 = arith.constant 0 : index
    %5 = vector.load %arg2[%c0_3, %c0_4, %4, %c0_5, %c0_6] : memref<4x2x3x3x128xf32, #tpu.memory_space<vmem>>, vector<1x2x2x3x128xf32>
    %6 = vector.shape_cast %5 : vector<1x2x2x3x128xf32> to vector<2x2x3x128xf32>
    %7 = vector.extract_strided_slice %6 {offsets = [0, 0, 0, 0], sizes = [2, 2, 2, 128], strides = [1, 1, 1, 1]} : vector<2x2x3x128xf32> to vector<2x2x2x128xf32>
    %8 = vector.extract_strided_slice %1 {offsets = [0, 0], sizes = [1, 128], strides = [1, 1]} : vector<9x128xf32> to vector<1x128xf32>
    %9 = vector.shape_cast %8 : vector<1x128xf32> to vector<128xf32>
    %10 = vector.shape_cast %9 : vector<128xf32> to vector<1x1x1x128xf32>
    %11 = vector.broadcast %10 : vector<1x1x1x128xf32> to vector<2x2x2x128xf32>
    %12 = arith.mulf %7, %11 : vector<2x2x2x128xf32>
    %c0_i32_7 = arith.constant 0 : i32
    %13 = arith.addi %0, %c0_i32_7 : i32
    %c1 = arith.constant 1 : index
    %c0_8 = arith.constant 0 : index
    %14 = arith.index_cast %13 : i32 to index
    %c0_9 = arith.constant 0 : index
    %c0_10 = arith.constant 0 : index
    %15 = vector.load %arg2[%c1, %c0_8, %14, %c0_9, %c0_10] : memref<4x2x3x3x128xf32, #tpu.memory_space<vmem>>, vector<1x2x2x3x128xf32>
    %16 = vector.shape_cast %15 : vector<1x2x2x3x128xf32> to vector<2x2x3x128xf32>
    %17 = vector.extract_strided_slice %16 {offsets = [0, 0, 0, 0], sizes = [2, 2, 2, 128], strides = [1, 1, 1, 1]} : vector<2x2x3x128xf32> to vector<2x2x2x128xf32>
    %18 = vector.extract_strided_slice %1 {offsets = [1, 0], sizes = [1, 128], strides = [1, 1]} : vector<9x128xf32> to vector<1x128xf32>
    %19 = vector.shape_cast %18 : vector<1x128xf32> to vector<128xf32>
    %20 = vector.shape_cast %19 : vector<128xf32> to vector<1x1x1x128xf32>
    %21 = vector.broadcast %20 : vector<1x1x1x128xf32> to vector<2x2x2x128xf32>
    %22 = arith.mulf %17, %21 : vector<2x2x2x128xf32>
    %23 = arith.addf %12, %22 : vector<2x2x2x128xf32>
    %24 = vector.extract_strided_slice %6 {offsets = [0, 0, 1, 0], sizes = [2, 2, 2, 128], strides = [1, 1, 1, 1]} : vector<2x2x3x128xf32> to vector<2x2x2x128xf32>
    %25 = vector.extract_strided_slice %1 {offsets = [2, 0], sizes = [1, 128], strides = [1, 1]} : vector<9x128xf32> to vector<1x128xf32>
    %26 = vector.shape_cast %25 : vector<1x128xf32> to vector<128xf32>
    %27 = vector.shape_cast %26 : vector<128xf32> to vector<1x1x1x128xf32>
    %28 = vector.broadcast %27 : vector<1x1x1x128xf32> to vector<2x2x2x128xf32>
    %29 = arith.mulf %24, %28 : vector<2x2x2x128xf32>
    %30 = arith.addf %23, %29 : vector<2x2x2x128xf32>
    %c0_i32_11 = arith.constant 0 : i32
    %31 = arith.addi %0, %c0_i32_11 : i32
    %c2 = arith.constant 2 : index
    %c0_12 = arith.constant 0 : index
    %32 = arith.index_cast %31 : i32 to index
    %c0_13 = arith.constant 0 : index
    %c0_14 = arith.constant 0 : index
    %33 = vector.load %arg2[%c2, %c0_12, %32, %c0_13, %c0_14] : memref<4x2x3x3x128xf32, #tpu.memory_space<vmem>>, vector<1x2x2x3x128xf32>
    %34 = vector.shape_cast %33 : vector<1x2x2x3x128xf32> to vector<2x2x3x128xf32>
    %35 = vector.extract_strided_slice %34 {offsets = [0, 0, 0, 0], sizes = [2, 2, 2, 128], strides = [1, 1, 1, 1]} : vector<2x2x3x128xf32> to vector<2x2x2x128xf32>
    %36 = vector.extract_strided_slice %1 {offsets = [3, 0], sizes = [1, 128], strides = [1, 1]} : vector<9x128xf32> to vector<1x128xf32>
    %37 = vector.shape_cast %36 : vector<1x128xf32> to vector<128xf32>
    %38 = vector.shape_cast %37 : vector<128xf32> to vector<1x1x1x128xf32>
    %39 = vector.broadcast %38 : vector<1x1x1x128xf32> to vector<2x2x2x128xf32>
    %40 = arith.mulf %35, %39 : vector<2x2x2x128xf32>
    %41 = arith.addf %30, %40 : vector<2x2x2x128xf32>
    %c0_i32_15 = arith.constant 0 : i32
    %42 = arith.addi %0, %c0_i32_15 : i32
    %c3 = arith.constant 3 : index
    %c0_16 = arith.constant 0 : index
    %43 = arith.index_cast %42 : i32 to index
    %c0_17 = arith.constant 0 : index
    %c0_18 = arith.constant 0 : index
    %44 = vector.load %arg2[%c3, %c0_16, %43, %c0_17, %c0_18] : memref<4x2x3x3x128xf32, #tpu.memory_space<vmem>>, vector<1x2x2x3x128xf32>
    %45 = vector.shape_cast %44 : vector<1x2x2x3x128xf32> to vector<2x2x3x128xf32>
    %46 = vector.extract_strided_slice %45 {offsets = [0, 0, 0, 0], sizes = [2, 2, 2, 128], strides = [1, 1, 1, 1]} : vector<2x2x3x128xf32> to vector<2x2x2x128xf32>
    %47 = vector.extract_strided_slice %1 {offsets = [4, 0], sizes = [1, 128], strides = [1, 1]} : vector<9x128xf32> to vector<1x128xf32>
    %48 = vector.shape_cast %47 : vector<1x128xf32> to vector<128xf32>
    %49 = vector.shape_cast %48 : vector<128xf32> to vector<1x1x1x128xf32>
    %50 = vector.broadcast %49 : vector<1x1x1x128xf32> to vector<2x2x2x128xf32>
    %51 = arith.mulf %46, %50 : vector<2x2x2x128xf32>
    %52 = arith.addf %41, %51 : vector<2x2x2x128xf32>
    %53 = vector.extract_strided_slice %34 {offsets = [0, 0, 1, 0], sizes = [2, 2, 2, 128], strides = [1, 1, 1, 1]} : vector<2x2x3x128xf32> to vector<2x2x2x128xf32>
    %54 = vector.extract_strided_slice %1 {offsets = [5, 0], sizes = [1, 128], strides = [1, 1]} : vector<9x128xf32> to vector<1x128xf32>
    %55 = vector.shape_cast %54 : vector<1x128xf32> to vector<128xf32>
    %56 = vector.shape_cast %55 : vector<128xf32> to vector<1x1x1x128xf32>
    %57 = vector.broadcast %56 : vector<1x1x1x128xf32> to vector<2x2x2x128xf32>
    %58 = arith.mulf %53, %57 : vector<2x2x2x128xf32>
    %59 = arith.addf %52, %58 : vector<2x2x2x128xf32>
    %c1_i32 = arith.constant 1 : i32
    %60 = arith.addi %0, %c1_i32 : i32
    %c0_19 = arith.constant 0 : index
    %c0_20 = arith.constant 0 : index
    %61 = arith.index_cast %60 : i32 to index
    %c0_21 = arith.constant 0 : index
    %c0_22 = arith.constant 0 : index
    %62 = vector.load %arg2[%c0_19, %c0_20, %61, %c0_21, %c0_22] : memref<4x2x3x3x128xf32, #tpu.memory_space<vmem>>, vector<1x2x2x3x128xf32>
    %63 = vector.shape_cast %62 : vector<1x2x2x3x128xf32> to vector<2x2x3x128xf32>
    %64 = vector.extract_strided_slice %63 {offsets = [0, 0, 0, 0], sizes = [2, 2, 2, 128], strides = [1, 1, 1, 1]} : vector<2x2x3x128xf32> to vector<2x2x2x128xf32>
    %65 = vector.extract_strided_slice %1 {offsets = [6, 0], sizes = [1, 128], strides = [1, 1]} : vector<9x128xf32> to vector<1x128xf32>
    %66 = vector.shape_cast %65 : vector<1x128xf32> to vector<128xf32>
    %67 = vector.shape_cast %66 : vector<128xf32> to vector<1x1x1x128xf32>
    %68 = vector.broadcast %67 : vector<1x1x1x128xf32> to vector<2x2x2x128xf32>
    %69 = arith.mulf %64, %68 : vector<2x2x2x128xf32>
    %70 = arith.addf %59, %69 : vector<2x2x2x128xf32>
    %c1_i32_23 = arith.constant 1 : i32
    %71 = arith.addi %0, %c1_i32_23 : i32
    %c1_24 = arith.constant 1 : index
    %c0_25 = arith.constant 0 : index
    %72 = arith.index_cast %71 : i32 to index
    %c0_26 = arith.constant 0 : index
    %c0_27 = arith.constant 0 : index
    %73 = vector.load %arg2[%c1_24, %c0_25, %72, %c0_26, %c0_27] : memref<4x2x3x3x128xf32, #tpu.memory_space<vmem>>, vector<1x2x2x3x128xf32>
    %74 = vector.shape_cast %73 : vector<1x2x2x3x128xf32> to vector<2x2x3x128xf32>
    %75 = vector.extract_strided_slice %74 {offsets = [0, 0, 0, 0], sizes = [2, 2, 2, 128], strides = [1, 1, 1, 1]} : vector<2x2x3x128xf32> to vector<2x2x2x128xf32>
    %76 = vector.extract_strided_slice %1 {offsets = [7, 0], sizes = [1, 128], strides = [1, 1]} : vector<9x128xf32> to vector<1x128xf32>
    %77 = vector.shape_cast %76 : vector<1x128xf32> to vector<128xf32>
    %78 = vector.shape_cast %77 : vector<128xf32> to vector<1x1x1x128xf32>
    %79 = vector.broadcast %78 : vector<1x1x1x128xf32> to vector<2x2x2x128xf32>
    %80 = arith.mulf %75, %79 : vector<2x2x2x128xf32>
    %81 = arith.addf %70, %80 : vector<2x2x2x128xf32>
    %82 = vector.extract_strided_slice %63 {offsets = [0, 0, 1, 0], sizes = [2, 2, 2, 128], strides = [1, 1, 1, 1]} : vector<2x2x3x128xf32> to vector<2x2x2x128xf32>
    %83 = vector.extract_strided_slice %1 {offsets = [8, 0], sizes = [1, 128], strides = [1, 1]} : vector<9x128xf32> to vector<1x128xf32>
    %84 = vector.shape_cast %83 : vector<1x128xf32> to vector<128xf32>
    %85 = vector.shape_cast %84 : vector<128xf32> to vector<1x1x1x128xf32>
    %86 = vector.broadcast %85 : vector<1x1x1x128xf32> to vector<2x2x2x128xf32>
    %87 = arith.mulf %82, %86 : vector<2x2x2x128xf32>
    %88 = arith.addf %81, %87 : vector<2x2x2x128xf32>
    %89 = vector.extract_strided_slice %2 {offsets = [0, 0], sizes = [1, 128], strides = [1, 1]} : vector<2x128xf32> to vector<1x128xf32>
    %90 = vector.shape_cast %89 : vector<1x128xf32> to vector<128xf32>
    %91 = vector.shape_cast %90 : vector<128xf32> to vector<1x1x1x128xf32>
    %92 = vector.broadcast %91 : vector<1x1x1x128xf32> to vector<2x2x2x128xf32>
    %93 = arith.mulf %88, %92 : vector<2x2x2x128xf32>
    %94 = vector.extract_strided_slice %2 {offsets = [1, 0], sizes = [1, 128], strides = [1, 1]} : vector<2x128xf32> to vector<1x128xf32>
    %95 = vector.shape_cast %94 : vector<1x128xf32> to vector<128xf32>
    %96 = vector.shape_cast %95 : vector<128xf32> to vector<1x1x1x128xf32>
    %97 = vector.broadcast %96 : vector<1x1x1x128xf32> to vector<2x2x2x128xf32>
    %98 = arith.addf %93, %97 : vector<2x2x2x128xf32>
    %cst = arith.constant 0.000000e+00 : f32
    %99 = vector.broadcast %cst : f32 to vector<2x2x2x128xf32>
    %100 = arith.maximumf %98, %99 : vector<2x2x2x128xf32>
    %101 = vector.shape_cast %100 : vector<2x2x2x128xf32> to vector<8x128xf32>
    %102 = arith.truncf %101 : vector<8x128xf32> to vector<8x128xbf16>
    %c0_28 = arith.constant 0 : index
    %c0_29 = arith.constant 0 : index
    %103 = vector.load %arg5[%c0_28, %c0_29] : memref<128x256xbf16, #tpu.memory_space<vmem>>, vector<128x256xbf16>
    %cst_30 = arith.constant dense<0.000000e+00> : vector<8x256xf32>
    %104 = tpu.matmul %102, %103, %cst_30 {dimension_numbers = #tpu.dot_dimension_numbers<[1], [0], [0], [1], [0, 0, 1, 1], [], []>} : vector<8x128xbf16>, vector<128x256xbf16>, vector<8x256xf32> -> vector<8x256xf32>
    %c0_31 = arith.constant 0 : index
    %c0_32 = arith.constant 0 : index
    %105 = vector.load %arg6[%c0_31, %c0_32] : memref<2x256xf32, #tpu.memory_space<vmem>>, vector<2x256xf32>
    %106 = vector.extract_strided_slice %105 {offsets = [0, 0], sizes = [1, 256], strides = [1, 1]} : vector<2x256xf32> to vector<1x256xf32>
    %107 = vector.shape_cast %106 : vector<1x256xf32> to vector<256xf32>
    %108 = vector.shape_cast %107 : vector<256xf32> to vector<1x256xf32>
    %109 = vector.broadcast %108 : vector<1x256xf32> to vector<8x256xf32>
    %110 = arith.mulf %104, %109 : vector<8x256xf32>
    %111 = vector.extract_strided_slice %105 {offsets = [1, 0], sizes = [1, 256], strides = [1, 1]} : vector<2x256xf32> to vector<1x256xf32>
    %112 = vector.shape_cast %111 : vector<1x256xf32> to vector<256xf32>
    %113 = vector.shape_cast %112 : vector<256xf32> to vector<1x256xf32>
    %114 = vector.broadcast %113 : vector<1x256xf32> to vector<8x256xf32>
    %115 = arith.addf %110, %114 : vector<8x256xf32>
    %cst_33 = arith.constant 0.000000e+00 : f32
    %116 = vector.broadcast %cst_33 : f32 to vector<8x256xf32>
    %117 = arith.maximumf %115, %116 : vector<8x256xf32>
    %118 = vector.shape_cast %117 : vector<8x256xf32> to vector<2x2x2x256xf32>
    %c0_34 = arith.constant 0 : index
    %c0_35 = arith.constant 0 : index
    %c0_36 = arith.constant 0 : index
    %c0_37 = arith.constant 0 : index
    %119 = vector.load %arg7[%c0_34, %c0_35, %c0_36, %c0_37] : memref<2x2x2x256xf32, #tpu.memory_space<vmem>>, vector<2x2x2x256xf32>
    tpu.vector_store %arg7[%c0_34, %c0_35, %c0_36, %c0_37], %118 {strides = array<i32>} : memref<2x2x2x256xf32, #tpu.memory_space<vmem>>, vector<2x2x2x256xf32>,
    return
  }
  func.func @transform_0(%arg0: i32, %arg1: i32) -> (i32, i32, i32, i32, i32) {
    %c0_i32 = arith.constant 0 : i32
    %c0_i32_0 = arith.constant 0 : i32
    %c0_i32_1 = arith.constant 0 : i32
    %c0_i32_2 = arith.constant 0 : i32
    %c0_i32_3 = arith.constant 0 : i32
    return %c0_i32, %arg0, %c0_i32_0, %c0_i32_1, %c0_i32_2 : i32, i32, i32, i32, i32
  }
  func.func @transform_1(%arg0: i32, %arg1: i32) -> (i32, i32) {
    %c0_i32 = arith.constant 0 : i32
    %c0_i32_0 = arith.constant 0 : i32
    %c0_i32_1 = arith.constant 0 : i32
    return %c0_i32, %c0_i32_0 : i32, i32
  }
  func.func @transform_2(%arg0: i32, %arg1: i32) -> (i32, i32) {
    %c0_i32 = arith.constant 0 : i32
    %c0_i32_0 = arith.constant 0 : i32
    %c0_i32_1 = arith.constant 0 : i32
    return %c0_i32, %c0_i32_0 : i32, i32
  }
  func.func @transform_3(%arg0: i32, %arg1: i32) -> (i32, i32) {
    %c0_i32 = arith.constant 0 : i32
    %c0_i32_0 = arith.constant 0 : i32
    %c0_i32_1 = arith.constant 0 : i32
    return %c0_i32, %c0_i32_0 : i32, i32
  }
  func.func @transform_4(%arg0: i32, %arg1: i32) -> (i32, i32) {
    %c0_i32 = arith.constant 0 : i32
    %c0_i32_0 = arith.constant 0 : i32
    %c0_i32_1 = arith.constant 0 : i32
    return %c0_i32, %c0_i32_0 : i32, i32
  }
  func.func @transform_5(%arg0: i32, %arg1: i32) -> (i32, i32, i32, i32) {
    %c0_i32 = arith.constant 0 : i32
    %c0_i32_0 = arith.constant 0 : i32
    %c0_i32_1 = arith.constant 0 : i32
    return %arg0, %arg1, %c0_i32, %c0_i32_0 : i32, i32, i32, i32
  }
}

module attributes {stable_mosaic.version = 11 : i64} {
  func.func @_fused_dw_pw_block_kernel(%arg0: i32, %arg1: i32, %arg2: memref<1x2x4x4x256xf32, #tpu.memory_space<vmem>>, %arg3: memref<9x256xf32, #tpu.memory_space<vmem>>, %arg4: memref<2x256xf32, #tpu.memory_space<vmem>>, %arg5: memref<256x256xbf16, #tpu.memory_space<vmem>>, %arg6: memref<2x256xf32, #tpu.memory_space<vmem>>, %arg7: memref<2x2x2x256xf32, #tpu.memory_space<vmem>>) attributes {dimension_semantics = [#tpu.dimension_semantics<parallel>, #tpu.dimension_semantics<parallel>], iteration_bounds = array<i64: 1, 1>, scalar_prefetch = 0 : i64, scratch_operands = 0 : i64, tpu.core_type = #tpu.core_type<tc>, window_params = [{transform_indices = @transform_0, window_bounds = array<i64: 1, 2, 4, 4, 256>}, {pipeline_mode = #tpu.pipeline_mode<synchronous>, transform_indices = @transform_1, window_bounds = array<i64: 9, 256>}, {pipeline_mode = #tpu.pipeline_mode<synchronous>, transform_indices = @transform_2, window_bounds = array<i64: 2, 256>}, {pipeline_mode = #tpu.pipeline_mode<synchronous>, transform_indices = @transform_3, window_bounds = array<i64: 256, 256>}, {pipeline_mode = #tpu.pipeline_mode<synchronous>, transform_indices = @transform_4, window_bounds = array<i64: 2, 256>}, {transform_indices = @transform_5, window_bounds = array<i64: 2, 2, 2, 256>}]} {
    %c2_i32 = arith.constant 2 : i32
    %0 = arith.muli %arg1, %c2_i32 : i32
    %c0 = arith.constant 0 : index
    %c0_0 = arith.constant 0 : index
    %1 = vector.load %arg3[%c0, %c0_0] : memref<9x256xf32, #tpu.memory_space<vmem>>, vector<9x256xf32>
    %c0_1 = arith.constant 0 : index
    %c0_2 = arith.constant 0 : index
    %2 = vector.load %arg4[%c0_1, %c0_2] : memref<2x256xf32, #tpu.memory_space<vmem>>, vector<2x256xf32>
    %c0_i32 = arith.constant 0 : i32
    %3 = arith.addi %0, %c0_i32 : i32
    %c0_3 = arith.constant 0 : index
    %c0_4 = arith.constant 0 : index
    %4 = arith.index_cast %3 : i32 to index
    %c0_5 = arith.constant 0 : index
    %c0_6 = arith.constant 0 : index
    %5 = vector.load %arg2[%c0_3, %c0_4, %4, %c0_5, %c0_6] : memref<1x2x4x4x256xf32, #tpu.memory_space<vmem>>, vector<1x2x2x4x256xf32>
    %6 = vector.shape_cast %5 : vector<1x2x2x4x256xf32> to vector<2x2x4x256xf32>
    %7 = vector.extract_strided_slice %6 {offsets = [0, 0, 0, 0], sizes = [2, 2, 2, 256], strides = [1, 1, 1, 1]} : vector<2x2x4x256xf32> to vector<2x2x2x256xf32>
    %8 = vector.extract_strided_slice %1 {offsets = [0, 0], sizes = [1, 256], strides = [1, 1]} : vector<9x256xf32> to vector<1x256xf32>
    %9 = vector.shape_cast %8 : vector<1x256xf32> to vector<256xf32>
    %10 = vector.shape_cast %9 : vector<256xf32> to vector<1x1x1x256xf32>
    %11 = vector.broadcast %10 : vector<1x1x1x256xf32> to vector<2x2x2x256xf32>
    %12 = arith.mulf %7, %11 : vector<2x2x2x256xf32>
    %13 = vector.extract_strided_slice %6 {offsets = [0, 0, 1, 0], sizes = [2, 2, 2, 256], strides = [1, 1, 1, 1]} : vector<2x2x4x256xf32> to vector<2x2x2x256xf32>
    %14 = vector.extract_strided_slice %1 {offsets = [1, 0], sizes = [1, 256], strides = [1, 1]} : vector<9x256xf32> to vector<1x256xf32>
    %15 = vector.shape_cast %14 : vector<1x256xf32> to vector<256xf32>
    %16 = vector.shape_cast %15 : vector<256xf32> to vector<1x1x1x256xf32>
    %17 = vector.broadcast %16 : vector<1x1x1x256xf32> to vector<2x2x2x256xf32>
    %18 = arith.mulf %13, %17 : vector<2x2x2x256xf32>
    %19 = arith.addf %12, %18 : vector<2x2x2x256xf32>
    %20 = vector.extract_strided_slice %6 {offsets = [0, 0, 2, 0], sizes = [2, 2, 2, 256], strides = [1, 1, 1, 1]} : vector<2x2x4x256xf32> to vector<2x2x2x256xf32>
    %21 = vector.extract_strided_slice %1 {offsets = [2, 0], sizes = [1, 256], strides = [1, 1]} : vector<9x256xf32> to vector<1x256xf32>
    %22 = vector.shape_cast %21 : vector<1x256xf32> to vector<256xf32>
    %23 = vector.shape_cast %22 : vector<256xf32> to vector<1x1x1x256xf32>
    %24 = vector.broadcast %23 : vector<1x1x1x256xf32> to vector<2x2x2x256xf32>
    %25 = arith.mulf %20, %24 : vector<2x2x2x256xf32>
    %26 = arith.addf %19, %25 : vector<2x2x2x256xf32>
    %c1_i32 = arith.constant 1 : i32
    %27 = arith.addi %0, %c1_i32 : i32
    %c0_7 = arith.constant 0 : index
    %c0_8 = arith.constant 0 : index
    %28 = arith.index_cast %27 : i32 to index
    %c0_9 = arith.constant 0 : index
    %c0_10 = arith.constant 0 : index
    %29 = vector.load %arg2[%c0_7, %c0_8, %28, %c0_9, %c0_10] : memref<1x2x4x4x256xf32, #tpu.memory_space<vmem>>, vector<1x2x2x4x256xf32>
    %30 = vector.shape_cast %29 : vector<1x2x2x4x256xf32> to vector<2x2x4x256xf32>
    %31 = vector.extract_strided_slice %30 {offsets = [0, 0, 0, 0], sizes = [2, 2, 2, 256], strides = [1, 1, 1, 1]} : vector<2x2x4x256xf32> to vector<2x2x2x256xf32>
    %32 = vector.extract_strided_slice %1 {offsets = [3, 0], sizes = [1, 256], strides = [1, 1]} : vector<9x256xf32> to vector<1x256xf32>
    %33 = vector.shape_cast %32 : vector<1x256xf32> to vector<256xf32>
    %34 = vector.shape_cast %33 : vector<256xf32> to vector<1x1x1x256xf32>
    %35 = vector.broadcast %34 : vector<1x1x1x256xf32> to vector<2x2x2x256xf32>
    %36 = arith.mulf %31, %35 : vector<2x2x2x256xf32>
    %37 = arith.addf %26, %36 : vector<2x2x2x256xf32>
    %38 = vector.extract_strided_slice %30 {offsets = [0, 0, 1, 0], sizes = [2, 2, 2, 256], strides = [1, 1, 1, 1]} : vector<2x2x4x256xf32> to vector<2x2x2x256xf32>
    %39 = vector.extract_strided_slice %1 {offsets = [4, 0], sizes = [1, 256], strides = [1, 1]} : vector<9x256xf32> to vector<1x256xf32>
    %40 = vector.shape_cast %39 : vector<1x256xf32> to vector<256xf32>
    %41 = vector.shape_cast %40 : vector<256xf32> to vector<1x1x1x256xf32>
    %42 = vector.broadcast %41 : vector<1x1x1x256xf32> to vector<2x2x2x256xf32>
    %43 = arith.mulf %38, %42 : vector<2x2x2x256xf32>
    %44 = arith.addf %37, %43 : vector<2x2x2x256xf32>
    %45 = vector.extract_strided_slice %30 {offsets = [0, 0, 2, 0], sizes = [2, 2, 2, 256], strides = [1, 1, 1, 1]} : vector<2x2x4x256xf32> to vector<2x2x2x256xf32>
    %46 = vector.extract_strided_slice %1 {offsets = [5, 0], sizes = [1, 256], strides = [1, 1]} : vector<9x256xf32> to vector<1x256xf32>
    %47 = vector.shape_cast %46 : vector<1x256xf32> to vector<256xf32>
    %48 = vector.shape_cast %47 : vector<256xf32> to vector<1x1x1x256xf32>
    %49 = vector.broadcast %48 : vector<1x1x1x256xf32> to vector<2x2x2x256xf32>
    %50 = arith.mulf %45, %49 : vector<2x2x2x256xf32>
    %51 = arith.addf %44, %50 : vector<2x2x2x256xf32>
    %c2_i32_11 = arith.constant 2 : i32
    %52 = arith.addi %0, %c2_i32_11 : i32
    %c0_12 = arith.constant 0 : index
    %c0_13 = arith.constant 0 : index
    %53 = arith.index_cast %52 : i32 to index
    %c0_14 = arith.constant 0 : index
    %c0_15 = arith.constant 0 : index
    %54 = vector.load %arg2[%c0_12, %c0_13, %53, %c0_14, %c0_15] : memref<1x2x4x4x256xf32, #tpu.memory_space<vmem>>, vector<1x2x2x4x256xf32>
    %55 = vector.shape_cast %54 : vector<1x2x2x4x256xf32> to vector<2x2x4x256xf32>
    %56 = vector.extract_strided_slice %55 {offsets = [0, 0, 0, 0], sizes = [2, 2, 2, 256], strides = [1, 1, 1, 1]} : vector<2x2x4x256xf32> to vector<2x2x2x256xf32>
    %57 = vector.extract_strided_slice %1 {offsets = [6, 0], sizes = [1, 256], strides = [1, 1]} : vector<9x256xf32> to vector<1x256xf32>
    %58 = vector.shape_cast %57 : vector<1x256xf32> to vector<256xf32>
    %59 = vector.shape_cast %58 : vector<256xf32> to vector<1x1x1x256xf32>
    %60 = vector.broadcast %59 : vector<1x1x1x256xf32> to vector<2x2x2x256xf32>
    %61 = arith.mulf %56, %60 : vector<2x2x2x256xf32>
    %62 = arith.addf %51, %61 : vector<2x2x2x256xf32>
    %63 = vector.extract_strided_slice %55 {offsets = [0, 0, 1, 0], sizes = [2, 2, 2, 256], strides = [1, 1, 1, 1]} : vector<2x2x4x256xf32> to vector<2x2x2x256xf32>
    %64 = vector.extract_strided_slice %1 {offsets = [7, 0], sizes = [1, 256], strides = [1, 1]} : vector<9x256xf32> to vector<1x256xf32>
    %65 = vector.shape_cast %64 : vector<1x256xf32> to vector<256xf32>
    %66 = vector.shape_cast %65 : vector<256xf32> to vector<1x1x1x256xf32>
    %67 = vector.broadcast %66 : vector<1x1x1x256xf32> to vector<2x2x2x256xf32>
    %68 = arith.mulf %63, %67 : vector<2x2x2x256xf32>
    %69 = arith.addf %62, %68 : vector<2x2x2x256xf32>
    %70 = vector.extract_strided_slice %55 {offsets = [0, 0, 2, 0], sizes = [2, 2, 2, 256], strides = [1, 1, 1, 1]} : vector<2x2x4x256xf32> to vector<2x2x2x256xf32>
    %71 = vector.extract_strided_slice %1 {offsets = [8, 0], sizes = [1, 256], strides = [1, 1]} : vector<9x256xf32> to vector<1x256xf32>
    %72 = vector.shape_cast %71 : vector<1x256xf32> to vector<256xf32>
    %73 = vector.shape_cast %72 : vector<256xf32> to vector<1x1x1x256xf32>
    %74 = vector.broadcast %73 : vector<1x1x1x256xf32> to vector<2x2x2x256xf32>
    %75 = arith.mulf %70, %74 : vector<2x2x2x256xf32>
    %76 = arith.addf %69, %75 : vector<2x2x2x256xf32>
    %77 = vector.extract_strided_slice %2 {offsets = [0, 0], sizes = [1, 256], strides = [1, 1]} : vector<2x256xf32> to vector<1x256xf32>
    %78 = vector.shape_cast %77 : vector<1x256xf32> to vector<256xf32>
    %79 = vector.shape_cast %78 : vector<256xf32> to vector<1x1x1x256xf32>
    %80 = vector.broadcast %79 : vector<1x1x1x256xf32> to vector<2x2x2x256xf32>
    %81 = arith.mulf %76, %80 : vector<2x2x2x256xf32>
    %82 = vector.extract_strided_slice %2 {offsets = [1, 0], sizes = [1, 256], strides = [1, 1]} : vector<2x256xf32> to vector<1x256xf32>
    %83 = vector.shape_cast %82 : vector<1x256xf32> to vector<256xf32>
    %84 = vector.shape_cast %83 : vector<256xf32> to vector<1x1x1x256xf32>
    %85 = vector.broadcast %84 : vector<1x1x1x256xf32> to vector<2x2x2x256xf32>
    %86 = arith.addf %81, %85 : vector<2x2x2x256xf32>
    %cst = arith.constant 0.000000e+00 : f32
    %87 = vector.broadcast %cst : f32 to vector<2x2x2x256xf32>
    %88 = arith.maximumf %86, %87 : vector<2x2x2x256xf32>
    %89 = vector.shape_cast %88 : vector<2x2x2x256xf32> to vector<8x256xf32>
    %90 = arith.truncf %89 : vector<8x256xf32> to vector<8x256xbf16>
    %c0_16 = arith.constant 0 : index
    %c0_17 = arith.constant 0 : index
    %91 = vector.load %arg5[%c0_16, %c0_17] : memref<256x256xbf16, #tpu.memory_space<vmem>>, vector<256x256xbf16>
    %cst_18 = arith.constant dense<0.000000e+00> : vector<8x256xf32>
    %92 = tpu.matmul %90, %91, %cst_18 {dimension_numbers = #tpu.dot_dimension_numbers<[1], [0], [0], [1], [0, 0, 1, 1], [], []>} : vector<8x256xbf16>, vector<256x256xbf16>, vector<8x256xf32> -> vector<8x256xf32>
    %c0_19 = arith.constant 0 : index
    %c0_20 = arith.constant 0 : index
    %93 = vector.load %arg6[%c0_19, %c0_20] : memref<2x256xf32, #tpu.memory_space<vmem>>, vector<2x256xf32>
    %94 = vector.extract_strided_slice %93 {offsets = [0, 0], sizes = [1, 256], strides = [1, 1]} : vector<2x256xf32> to vector<1x256xf32>
    %95 = vector.shape_cast %94 : vector<1x256xf32> to vector<256xf32>
    %96 = vector.shape_cast %95 : vector<256xf32> to vector<1x256xf32>
    %97 = vector.broadcast %96 : vector<1x256xf32> to vector<8x256xf32>
    %98 = arith.mulf %92, %97 : vector<8x256xf32>
    %99 = vector.extract_strided_slice %93 {offsets = [1, 0], sizes = [1, 256], strides = [1, 1]} : vector<2x256xf32> to vector<1x256xf32>
    %100 = vector.shape_cast %99 : vector<1x256xf32> to vector<256xf32>
    %101 = vector.shape_cast %100 : vector<256xf32> to vector<1x256xf32>
    %102 = vector.broadcast %101 : vector<1x256xf32> to vector<8x256xf32>
    %103 = arith.addf %98, %102 : vector<8x256xf32>
    %cst_21 = arith.constant 0.000000e+00 : f32
    %104 = vector.broadcast %cst_21 : f32 to vector<8x256xf32>
    %105 = arith.maximumf %103, %104 : vector<8x256xf32>
    %106 = vector.shape_cast %105 : vector<8x256xf32> to vector<2x2x2x256xf32>
    %c0_22 = arith.constant 0 : index
    %c0_23 = arith.constant 0 : index
    %c0_24 = arith.constant 0 : index
    %c0_25 = arith.constant 0 : index
    %107 = vector.load %arg7[%c0_22, %c0_23, %c0_24, %c0_25] : memref<2x2x2x256xf32, #tpu.memory_space<vmem>>, vector<2x2x2x256xf32>
    tpu.vector_store %arg7[%c0_22, %c0_23, %c0_24, %c0_25], %106 {strides = array<i32>} : memref<2x2x2x256xf32, #tpu.memory_space<vmem>>, vector<2x2x2x256xf32>,
    return
  }
  func.func @transform_0(%arg0: i32, %arg1: i32) -> (i32, i32, i32, i32, i32) {
    %c0_i32 = arith.constant 0 : i32
    %c0_i32_0 = arith.constant 0 : i32
    %c0_i32_1 = arith.constant 0 : i32
    %c0_i32_2 = arith.constant 0 : i32
    %c0_i32_3 = arith.constant 0 : i32
    return %c0_i32, %arg0, %c0_i32_0, %c0_i32_1, %c0_i32_2 : i32, i32, i32, i32, i32
  }
  func.func @transform_1(%arg0: i32, %arg1: i32) -> (i32, i32) {
    %c0_i32 = arith.constant 0 : i32
    %c0_i32_0 = arith.constant 0 : i32
    %c0_i32_1 = arith.constant 0 : i32
    return %c0_i32, %c0_i32_0 : i32, i32
  }
  func.func @transform_2(%arg0: i32, %arg1: i32) -> (i32, i32) {
    %c0_i32 = arith.constant 0 : i32
    %c0_i32_0 = arith.constant 0 : i32
    %c0_i32_1 = arith.constant 0 : i32
    return %c0_i32, %c0_i32_0 : i32, i32
  }
  func.func @transform_3(%arg0: i32, %arg1: i32) -> (i32, i32) {
    %c0_i32 = arith.constant 0 : i32
    %c0_i32_0 = arith.constant 0 : i32
    %c0_i32_1 = arith.constant 0 : i32
    return %c0_i32, %c0_i32_0 : i32, i32
  }
  func.func @transform_4(%arg0: i32, %arg1: i32) -> (i32, i32) {
    %c0_i32 = arith.constant 0 : i32
    %c0_i32_0 = arith.constant 0 : i32
    %c0_i32_1 = arith.constant 0 : i32
    return %c0_i32, %c0_i32_0 : i32, i32
  }
  func.func @transform_5(%arg0: i32, %arg1: i32) -> (i32, i32, i32, i32) {
    %c0_i32 = arith.constant 0 : i32
    %c0_i32_0 = arith.constant 0 : i32
    %c0_i32_1 = arith.constant 0 : i32
    return %arg0, %arg1, %c0_i32, %c0_i32_0 : i32, i32, i32, i32
  }
}

module attributes {stable_mosaic.version = 11 : i64} {
  func.func @_fused_dw_pw_block_kernel(%arg0: i32, %arg1: i32, %arg2: memref<1x2x4x4x256xf32, #tpu.memory_space<vmem>>, %arg3: memref<9x256xf32, #tpu.memory_space<vmem>>, %arg4: memref<2x256xf32, #tpu.memory_space<vmem>>, %arg5: memref<256x512xbf16, #tpu.memory_space<vmem>>, %arg6: memref<2x512xf32, #tpu.memory_space<vmem>>, %arg7: memref<2x2x2x512xf32, #tpu.memory_space<vmem>>) attributes {dimension_semantics = [#tpu.dimension_semantics<parallel>, #tpu.dimension_semantics<parallel>], iteration_bounds = array<i64: 1, 1>, scalar_prefetch = 0 : i64, scratch_operands = 0 : i64, tpu.core_type = #tpu.core_type<tc>, window_params = [{transform_indices = @transform_0, window_bounds = array<i64: 1, 2, 4, 4, 256>}, {pipeline_mode = #tpu.pipeline_mode<synchronous>, transform_indices = @transform_1, window_bounds = array<i64: 9, 256>}, {pipeline_mode = #tpu.pipeline_mode<synchronous>, transform_indices = @transform_2, window_bounds = array<i64: 2, 256>}, {pipeline_mode = #tpu.pipeline_mode<synchronous>, transform_indices = @transform_3, window_bounds = array<i64: 256, 512>}, {pipeline_mode = #tpu.pipeline_mode<synchronous>, transform_indices = @transform_4, window_bounds = array<i64: 2, 512>}, {transform_indices = @transform_5, window_bounds = array<i64: 2, 2, 2, 512>}]} {
    %c2_i32 = arith.constant 2 : i32
    %0 = arith.muli %arg1, %c2_i32 : i32
    %c0 = arith.constant 0 : index
    %c0_0 = arith.constant 0 : index
    %1 = vector.load %arg3[%c0, %c0_0] : memref<9x256xf32, #tpu.memory_space<vmem>>, vector<9x256xf32>
    %c0_1 = arith.constant 0 : index
    %c0_2 = arith.constant 0 : index
    %2 = vector.load %arg4[%c0_1, %c0_2] : memref<2x256xf32, #tpu.memory_space<vmem>>, vector<2x256xf32>
    %c0_i32 = arith.constant 0 : i32
    %3 = arith.addi %0, %c0_i32 : i32
    %c0_3 = arith.constant 0 : index
    %c0_4 = arith.constant 0 : index
    %4 = arith.index_cast %3 : i32 to index
    %c0_5 = arith.constant 0 : index
    %c0_6 = arith.constant 0 : index
    %5 = vector.load %arg2[%c0_3, %c0_4, %4, %c0_5, %c0_6] : memref<1x2x4x4x256xf32, #tpu.memory_space<vmem>>, vector<1x2x2x4x256xf32>
    %6 = vector.shape_cast %5 : vector<1x2x2x4x256xf32> to vector<2x2x4x256xf32>
    %7 = vector.extract_strided_slice %6 {offsets = [0, 0, 0, 0], sizes = [2, 2, 2, 256], strides = [1, 1, 1, 1]} : vector<2x2x4x256xf32> to vector<2x2x2x256xf32>
    %8 = vector.extract_strided_slice %1 {offsets = [0, 0], sizes = [1, 256], strides = [1, 1]} : vector<9x256xf32> to vector<1x256xf32>
    %9 = vector.shape_cast %8 : vector<1x256xf32> to vector<256xf32>
    %10 = vector.shape_cast %9 : vector<256xf32> to vector<1x1x1x256xf32>
    %11 = vector.broadcast %10 : vector<1x1x1x256xf32> to vector<2x2x2x256xf32>
    %12 = arith.mulf %7, %11 : vector<2x2x2x256xf32>
    %13 = vector.extract_strided_slice %6 {offsets = [0, 0, 1, 0], sizes = [2, 2, 2, 256], strides = [1, 1, 1, 1]} : vector<2x2x4x256xf32> to vector<2x2x2x256xf32>
    %14 = vector.extract_strided_slice %1 {offsets = [1, 0], sizes = [1, 256], strides = [1, 1]} : vector<9x256xf32> to vector<1x256xf32>
    %15 = vector.shape_cast %14 : vector<1x256xf32> to vector<256xf32>
    %16 = vector.shape_cast %15 : vector<256xf32> to vector<1x1x1x256xf32>
    %17 = vector.broadcast %16 : vector<1x1x1x256xf32> to vector<2x2x2x256xf32>
    %18 = arith.mulf %13, %17 : vector<2x2x2x256xf32>
    %19 = arith.addf %12, %18 : vector<2x2x2x256xf32>
    %20 = vector.extract_strided_slice %6 {offsets = [0, 0, 2, 0], sizes = [2, 2, 2, 256], strides = [1, 1, 1, 1]} : vector<2x2x4x256xf32> to vector<2x2x2x256xf32>
    %21 = vector.extract_strided_slice %1 {offsets = [2, 0], sizes = [1, 256], strides = [1, 1]} : vector<9x256xf32> to vector<1x256xf32>
    %22 = vector.shape_cast %21 : vector<1x256xf32> to vector<256xf32>
    %23 = vector.shape_cast %22 : vector<256xf32> to vector<1x1x1x256xf32>
    %24 = vector.broadcast %23 : vector<1x1x1x256xf32> to vector<2x2x2x256xf32>
    %25 = arith.mulf %20, %24 : vector<2x2x2x256xf32>
    %26 = arith.addf %19, %25 : vector<2x2x2x256xf32>
    %c1_i32 = arith.constant 1 : i32
    %27 = arith.addi %0, %c1_i32 : i32
    %c0_7 = arith.constant 0 : index
    %c0_8 = arith.constant 0 : index
    %28 = arith.index_cast %27 : i32 to index
    %c0_9 = arith.constant 0 : index
    %c0_10 = arith.constant 0 : index
    %29 = vector.load %arg2[%c0_7, %c0_8, %28, %c0_9, %c0_10] : memref<1x2x4x4x256xf32, #tpu.memory_space<vmem>>, vector<1x2x2x4x256xf32>
    %30 = vector.shape_cast %29 : vector<1x2x2x4x256xf32> to vector<2x2x4x256xf32>
    %31 = vector.extract_strided_slice %30 {offsets = [0, 0, 0, 0], sizes = [2, 2, 2, 256], strides = [1, 1, 1, 1]} : vector<2x2x4x256xf32> to vector<2x2x2x256xf32>
    %32 = vector.extract_strided_slice %1 {offsets = [3, 0], sizes = [1, 256], strides = [1, 1]} : vector<9x256xf32> to vector<1x256xf32>
    %33 = vector.shape_cast %32 : vector<1x256xf32> to vector<256xf32>
    %34 = vector.shape_cast %33 : vector<256xf32> to vector<1x1x1x256xf32>
    %35 = vector.broadcast %34 : vector<1x1x1x256xf32> to vector<2x2x2x256xf32>
    %36 = arith.mulf %31, %35 : vector<2x2x2x256xf32>
    %37 = arith.addf %26, %36 : vector<2x2x2x256xf32>
    %38 = vector.extract_strided_slice %30 {offsets = [0, 0, 1, 0], sizes = [2, 2, 2, 256], strides = [1, 1, 1, 1]} : vector<2x2x4x256xf32> to vector<2x2x2x256xf32>
    %39 = vector.extract_strided_slice %1 {offsets = [4, 0], sizes = [1, 256], strides = [1, 1]} : vector<9x256xf32> to vector<1x256xf32>
    %40 = vector.shape_cast %39 : vector<1x256xf32> to vector<256xf32>
    %41 = vector.shape_cast %40 : vector<256xf32> to vector<1x1x1x256xf32>
    %42 = vector.broadcast %41 : vector<1x1x1x256xf32> to vector<2x2x2x256xf32>
    %43 = arith.mulf %38, %42 : vector<2x2x2x256xf32>
    %44 = arith.addf %37, %43 : vector<2x2x2x256xf32>
    %45 = vector.extract_strided_slice %30 {offsets = [0, 0, 2, 0], sizes = [2, 2, 2, 256], strides = [1, 1, 1, 1]} : vector<2x2x4x256xf32> to vector<2x2x2x256xf32>
    %46 = vector.extract_strided_slice %1 {offsets = [5, 0], sizes = [1, 256], strides = [1, 1]} : vector<9x256xf32> to vector<1x256xf32>
    %47 = vector.shape_cast %46 : vector<1x256xf32> to vector<256xf32>
    %48 = vector.shape_cast %47 : vector<256xf32> to vector<1x1x1x256xf32>
    %49 = vector.broadcast %48 : vector<1x1x1x256xf32> to vector<2x2x2x256xf32>
    %50 = arith.mulf %45, %49 : vector<2x2x2x256xf32>
    %51 = arith.addf %44, %50 : vector<2x2x2x256xf32>
    %c2_i32_11 = arith.constant 2 : i32
    %52 = arith.addi %0, %c2_i32_11 : i32
    %c0_12 = arith.constant 0 : index
    %c0_13 = arith.constant 0 : index
    %53 = arith.index_cast %52 : i32 to index
    %c0_14 = arith.constant 0 : index
    %c0_15 = arith.constant 0 : index
    %54 = vector.load %arg2[%c0_12, %c0_13, %53, %c0_14, %c0_15] : memref<1x2x4x4x256xf32, #tpu.memory_space<vmem>>, vector<1x2x2x4x256xf32>
    %55 = vector.shape_cast %54 : vector<1x2x2x4x256xf32> to vector<2x2x4x256xf32>
    %56 = vector.extract_strided_slice %55 {offsets = [0, 0, 0, 0], sizes = [2, 2, 2, 256], strides = [1, 1, 1, 1]} : vector<2x2x4x256xf32> to vector<2x2x2x256xf32>
    %57 = vector.extract_strided_slice %1 {offsets = [6, 0], sizes = [1, 256], strides = [1, 1]} : vector<9x256xf32> to vector<1x256xf32>
    %58 = vector.shape_cast %57 : vector<1x256xf32> to vector<256xf32>
    %59 = vector.shape_cast %58 : vector<256xf32> to vector<1x1x1x256xf32>
    %60 = vector.broadcast %59 : vector<1x1x1x256xf32> to vector<2x2x2x256xf32>
    %61 = arith.mulf %56, %60 : vector<2x2x2x256xf32>
    %62 = arith.addf %51, %61 : vector<2x2x2x256xf32>
    %63 = vector.extract_strided_slice %55 {offsets = [0, 0, 1, 0], sizes = [2, 2, 2, 256], strides = [1, 1, 1, 1]} : vector<2x2x4x256xf32> to vector<2x2x2x256xf32>
    %64 = vector.extract_strided_slice %1 {offsets = [7, 0], sizes = [1, 256], strides = [1, 1]} : vector<9x256xf32> to vector<1x256xf32>
    %65 = vector.shape_cast %64 : vector<1x256xf32> to vector<256xf32>
    %66 = vector.shape_cast %65 : vector<256xf32> to vector<1x1x1x256xf32>
    %67 = vector.broadcast %66 : vector<1x1x1x256xf32> to vector<2x2x2x256xf32>
    %68 = arith.mulf %63, %67 : vector<2x2x2x256xf32>
    %69 = arith.addf %62, %68 : vector<2x2x2x256xf32>
    %70 = vector.extract_strided_slice %55 {offsets = [0, 0, 2, 0], sizes = [2, 2, 2, 256], strides = [1, 1, 1, 1]} : vector<2x2x4x256xf32> to vector<2x2x2x256xf32>
    %71 = vector.extract_strided_slice %1 {offsets = [8, 0], sizes = [1, 256], strides = [1, 1]} : vector<9x256xf32> to vector<1x256xf32>
    %72 = vector.shape_cast %71 : vector<1x256xf32> to vector<256xf32>
    %73 = vector.shape_cast %72 : vector<256xf32> to vector<1x1x1x256xf32>
    %74 = vector.broadcast %73 : vector<1x1x1x256xf32> to vector<2x2x2x256xf32>
    %75 = arith.mulf %70, %74 : vector<2x2x2x256xf32>
    %76 = arith.addf %69, %75 : vector<2x2x2x256xf32>
    %77 = vector.extract_strided_slice %2 {offsets = [0, 0], sizes = [1, 256], strides = [1, 1]} : vector<2x256xf32> to vector<1x256xf32>
    %78 = vector.shape_cast %77 : vector<1x256xf32> to vector<256xf32>
    %79 = vector.shape_cast %78 : vector<256xf32> to vector<1x1x1x256xf32>
    %80 = vector.broadcast %79 : vector<1x1x1x256xf32> to vector<2x2x2x256xf32>
    %81 = arith.mulf %76, %80 : vector<2x2x2x256xf32>
    %82 = vector.extract_strided_slice %2 {offsets = [1, 0], sizes = [1, 256], strides = [1, 1]} : vector<2x256xf32> to vector<1x256xf32>
    %83 = vector.shape_cast %82 : vector<1x256xf32> to vector<256xf32>
    %84 = vector.shape_cast %83 : vector<256xf32> to vector<1x1x1x256xf32>
    %85 = vector.broadcast %84 : vector<1x1x1x256xf32> to vector<2x2x2x256xf32>
    %86 = arith.addf %81, %85 : vector<2x2x2x256xf32>
    %cst = arith.constant 0.000000e+00 : f32
    %87 = vector.broadcast %cst : f32 to vector<2x2x2x256xf32>
    %88 = arith.maximumf %86, %87 : vector<2x2x2x256xf32>
    %89 = vector.shape_cast %88 : vector<2x2x2x256xf32> to vector<8x256xf32>
    %90 = arith.truncf %89 : vector<8x256xf32> to vector<8x256xbf16>
    %c0_16 = arith.constant 0 : index
    %c0_17 = arith.constant 0 : index
    %91 = vector.load %arg5[%c0_16, %c0_17] : memref<256x512xbf16, #tpu.memory_space<vmem>>, vector<256x512xbf16>
    %cst_18 = arith.constant dense<0.000000e+00> : vector<8x512xf32>
    %92 = tpu.matmul %90, %91, %cst_18 {dimension_numbers = #tpu.dot_dimension_numbers<[1], [0], [0], [1], [0, 0, 1, 1], [], []>} : vector<8x256xbf16>, vector<256x512xbf16>, vector<8x512xf32> -> vector<8x512xf32>
    %c0_19 = arith.constant 0 : index
    %c0_20 = arith.constant 0 : index
    %93 = vector.load %arg6[%c0_19, %c0_20] : memref<2x512xf32, #tpu.memory_space<vmem>>, vector<2x512xf32>
    %94 = vector.extract_strided_slice %93 {offsets = [0, 0], sizes = [1, 512], strides = [1, 1]} : vector<2x512xf32> to vector<1x512xf32>
    %95 = vector.shape_cast %94 : vector<1x512xf32> to vector<512xf32>
    %96 = vector.shape_cast %95 : vector<512xf32> to vector<1x512xf32>
    %97 = vector.broadcast %96 : vector<1x512xf32> to vector<8x512xf32>
    %98 = arith.mulf %92, %97 : vector<8x512xf32>
    %99 = vector.extract_strided_slice %93 {offsets = [1, 0], sizes = [1, 512], strides = [1, 1]} : vector<2x512xf32> to vector<1x512xf32>
    %100 = vector.shape_cast %99 : vector<1x512xf32> to vector<512xf32>
    %101 = vector.shape_cast %100 : vector<512xf32> to vector<1x512xf32>
    %102 = vector.broadcast %101 : vector<1x512xf32> to vector<8x512xf32>
    %103 = arith.addf %98, %102 : vector<8x512xf32>
    %cst_21 = arith.constant 0.000000e+00 : f32
    %104 = vector.broadcast %cst_21 : f32 to vector<8x512xf32>
    %105 = arith.maximumf %103, %104 : vector<8x512xf32>
    %106 = vector.shape_cast %105 : vector<8x512xf32> to vector<2x2x2x512xf32>
    %c0_22 = arith.constant 0 : index
    %c0_23 = arith.constant 0 : index
    %c0_24 = arith.constant 0 : index
    %c0_25 = arith.constant 0 : index
    %107 = vector.load %arg7[%c0_22, %c0_23, %c0_24, %c0_25] : memref<2x2x2x512xf32, #tpu.memory_space<vmem>>, vector<2x2x2x512xf32>
    tpu.vector_store %arg7[%c0_22, %c0_23, %c0_24, %c0_25], %106 {strides = array<i32>} : memref<2x2x2x512xf32, #tpu.memory_space<vmem>>, vector<2x2x2x512xf32>,
    return
  }
  func.func @transform_0(%arg0: i32, %arg1: i32) -> (i32, i32, i32, i32, i32) {
    %c0_i32 = arith.constant 0 : i32
    %c0_i32_0 = arith.constant 0 : i32
    %c0_i32_1 = arith.constant 0 : i32
    %c0_i32_2 = arith.constant 0 : i32
    %c0_i32_3 = arith.constant 0 : i32
    return %c0_i32, %arg0, %c0_i32_0, %c0_i32_1, %c0_i32_2 : i32, i32, i32, i32, i32
  }
  func.func @transform_1(%arg0: i32, %arg1: i32) -> (i32, i32) {
    %c0_i32 = arith.constant 0 : i32
    %c0_i32_0 = arith.constant 0 : i32
    %c0_i32_1 = arith.constant 0 : i32
    return %c0_i32, %c0_i32_0 : i32, i32
  }
  func.func @transform_2(%arg0: i32, %arg1: i32) -> (i32, i32) {
    %c0_i32 = arith.constant 0 : i32
    %c0_i32_0 = arith.constant 0 : i32
    %c0_i32_1 = arith.constant 0 : i32
    return %c0_i32, %c0_i32_0 : i32, i32
  }
  func.func @transform_3(%arg0: i32, %arg1: i32) -> (i32, i32) {
    %c0_i32 = arith.constant 0 : i32
    %c0_i32_0 = arith.constant 0 : i32
    %c0_i32_1 = arith.constant 0 : i32
    return %c0_i32, %c0_i32_0 : i32, i32
  }
  func.func @transform_4(%arg0: i32, %arg1: i32) -> (i32, i32) {
    %c0_i32 = arith.constant 0 : i32
    %c0_i32_0 = arith.constant 0 : i32
    %c0_i32_1 = arith.constant 0 : i32
    return %c0_i32, %c0_i32_0 : i32, i32
  }
  func.func @transform_5(%arg0: i32, %arg1: i32) -> (i32, i32, i32, i32) {
    %c0_i32 = arith.constant 0 : i32
    %c0_i32_0 = arith.constant 0 : i32
    %c0_i32_1 = arith.constant 0 : i32
    return %arg0, %arg1, %c0_i32, %c0_i32_0 : i32, i32, i32, i32
  }
}

module attributes {stable_mosaic.version = 11 : i64} {
  func.func @_fused_dw_pw_block_kernel(%arg0: i32, %arg1: i32, %arg2: memref<1x2x6x6x512xf32, #tpu.memory_space<vmem>>, %arg3: memref<9x512xf32, #tpu.memory_space<vmem>>, %arg4: memref<2x512xf32, #tpu.memory_space<vmem>>, %arg5: memref<512x512xbf16, #tpu.memory_space<vmem>>, %arg6: memref<2x512xf32, #tpu.memory_space<vmem>>, %arg7: memref<2x2x2x512xf32, #tpu.memory_space<vmem>>) attributes {dimension_semantics = [#tpu.dimension_semantics<parallel>, #tpu.dimension_semantics<parallel>], iteration_bounds = array<i64: 1, 1>, scalar_prefetch = 0 : i64, scratch_operands = 0 : i64, tpu.core_type = #tpu.core_type<tc>, window_params = [{transform_indices = @transform_0, window_bounds = array<i64: 1, 2, 6, 6, 512>}, {pipeline_mode = #tpu.pipeline_mode<synchronous>, transform_indices = @transform_1, window_bounds = array<i64: 9, 512>}, {pipeline_mode = #tpu.pipeline_mode<synchronous>, transform_indices = @transform_2, window_bounds = array<i64: 2, 512>}, {pipeline_mode = #tpu.pipeline_mode<synchronous>, transform_indices = @transform_3, window_bounds = array<i64: 512, 512>}, {pipeline_mode = #tpu.pipeline_mode<synchronous>, transform_indices = @transform_4, window_bounds = array<i64: 2, 512>}, {transform_indices = @transform_5, window_bounds = array<i64: 2, 2, 2, 512>}]} {
    %c2_i32 = arith.constant 2 : i32
    %0 = arith.muli %arg1, %c2_i32 : i32
    %c0 = arith.constant 0 : index
    %c0_0 = arith.constant 0 : index
    %1 = vector.load %arg3[%c0, %c0_0] : memref<9x512xf32, #tpu.memory_space<vmem>>, vector<9x512xf32>
    %c0_1 = arith.constant 0 : index
    %c0_2 = arith.constant 0 : index
    %2 = vector.load %arg4[%c0_1, %c0_2] : memref<2x512xf32, #tpu.memory_space<vmem>>, vector<2x512xf32>
    %c0_i32 = arith.constant 0 : i32
    %3 = arith.addi %0, %c0_i32 : i32
    %c0_3 = arith.constant 0 : index
    %c0_4 = arith.constant 0 : index
    %4 = arith.index_cast %3 : i32 to index
    %c0_5 = arith.constant 0 : index
    %c0_6 = arith.constant 0 : index
    %5 = vector.load %arg2[%c0_3, %c0_4, %4, %c0_5, %c0_6] : memref<1x2x6x6x512xf32, #tpu.memory_space<vmem>>, vector<1x2x2x6x512xf32>
    %6 = vector.shape_cast %5 : vector<1x2x2x6x512xf32> to vector<2x2x6x512xf32>
    %7 = vector.extract_strided_slice %6 {offsets = [0, 0, 0, 0], sizes = [2, 2, 2, 512], strides = [1, 1, 1, 1]} : vector<2x2x6x512xf32> to vector<2x2x2x512xf32>
    %8 = vector.extract_strided_slice %1 {offsets = [0, 0], sizes = [1, 512], strides = [1, 1]} : vector<9x512xf32> to vector<1x512xf32>
    %9 = vector.shape_cast %8 : vector<1x512xf32> to vector<512xf32>
    %10 = vector.shape_cast %9 : vector<512xf32> to vector<1x1x1x512xf32>
    %11 = vector.broadcast %10 : vector<1x1x1x512xf32> to vector<2x2x2x512xf32>
    %12 = arith.mulf %7, %11 : vector<2x2x2x512xf32>
    %13 = vector.extract_strided_slice %6 {offsets = [0, 0, 2, 0], sizes = [2, 2, 2, 512], strides = [1, 1, 1, 1]} : vector<2x2x6x512xf32> to vector<2x2x2x512xf32>
    %14 = vector.extract_strided_slice %1 {offsets = [1, 0], sizes = [1, 512], strides = [1, 1]} : vector<9x512xf32> to vector<1x512xf32>
    %15 = vector.shape_cast %14 : vector<1x512xf32> to vector<512xf32>
    %16 = vector.shape_cast %15 : vector<512xf32> to vector<1x1x1x512xf32>
    %17 = vector.broadcast %16 : vector<1x1x1x512xf32> to vector<2x2x2x512xf32>
    %18 = arith.mulf %13, %17 : vector<2x2x2x512xf32>
    %19 = arith.addf %12, %18 : vector<2x2x2x512xf32>
    %20 = vector.extract_strided_slice %6 {offsets = [0, 0, 4, 0], sizes = [2, 2, 2, 512], strides = [1, 1, 1, 1]} : vector<2x2x6x512xf32> to vector<2x2x2x512xf32>
    %21 = vector.extract_strided_slice %1 {offsets = [2, 0], sizes = [1, 512], strides = [1, 1]} : vector<9x512xf32> to vector<1x512xf32>
    %22 = vector.shape_cast %21 : vector<1x512xf32> to vector<512xf32>
    %23 = vector.shape_cast %22 : vector<512xf32> to vector<1x1x1x512xf32>
    %24 = vector.broadcast %23 : vector<1x1x1x512xf32> to vector<2x2x2x512xf32>
    %25 = arith.mulf %20, %24 : vector<2x2x2x512xf32>
    %26 = arith.addf %19, %25 : vector<2x2x2x512xf32>
    %c2_i32_7 = arith.constant 2 : i32
    %27 = arith.addi %0, %c2_i32_7 : i32
    %c0_8 = arith.constant 0 : index
    %c0_9 = arith.constant 0 : index
    %28 = arith.index_cast %27 : i32 to index
    %c0_10 = arith.constant 0 : index
    %c0_11 = arith.constant 0 : index
    %29 = vector.load %arg2[%c0_8, %c0_9, %28, %c0_10, %c0_11] : memref<1x2x6x6x512xf32, #tpu.memory_space<vmem>>, vector<1x2x2x6x512xf32>
    %30 = vector.shape_cast %29 : vector<1x2x2x6x512xf32> to vector<2x2x6x512xf32>
    %31 = vector.extract_strided_slice %30 {offsets = [0, 0, 0, 0], sizes = [2, 2, 2, 512], strides = [1, 1, 1, 1]} : vector<2x2x6x512xf32> to vector<2x2x2x512xf32>
    %32 = vector.extract_strided_slice %1 {offsets = [3, 0], sizes = [1, 512], strides = [1, 1]} : vector<9x512xf32> to vector<1x512xf32>
    %33 = vector.shape_cast %32 : vector<1x512xf32> to vector<512xf32>
    %34 = vector.shape_cast %33 : vector<512xf32> to vector<1x1x1x512xf32>
    %35 = vector.broadcast %34 : vector<1x1x1x512xf32> to vector<2x2x2x512xf32>
    %36 = arith.mulf %31, %35 : vector<2x2x2x512xf32>
    %37 = arith.addf %26, %36 : vector<2x2x2x512xf32>
    %38 = vector.extract_strided_slice %30 {offsets = [0, 0, 2, 0], sizes = [2, 2, 2, 512], strides = [1, 1, 1, 1]} : vector<2x2x6x512xf32> to vector<2x2x2x512xf32>
    %39 = vector.extract_strided_slice %1 {offsets = [4, 0], sizes = [1, 512], strides = [1, 1]} : vector<9x512xf32> to vector<1x512xf32>
    %40 = vector.shape_cast %39 : vector<1x512xf32> to vector<512xf32>
    %41 = vector.shape_cast %40 : vector<512xf32> to vector<1x1x1x512xf32>
    %42 = vector.broadcast %41 : vector<1x1x1x512xf32> to vector<2x2x2x512xf32>
    %43 = arith.mulf %38, %42 : vector<2x2x2x512xf32>
    %44 = arith.addf %37, %43 : vector<2x2x2x512xf32>
    %45 = vector.extract_strided_slice %30 {offsets = [0, 0, 4, 0], sizes = [2, 2, 2, 512], strides = [1, 1, 1, 1]} : vector<2x2x6x512xf32> to vector<2x2x2x512xf32>
    %46 = vector.extract_strided_slice %1 {offsets = [5, 0], sizes = [1, 512], strides = [1, 1]} : vector<9x512xf32> to vector<1x512xf32>
    %47 = vector.shape_cast %46 : vector<1x512xf32> to vector<512xf32>
    %48 = vector.shape_cast %47 : vector<512xf32> to vector<1x1x1x512xf32>
    %49 = vector.broadcast %48 : vector<1x1x1x512xf32> to vector<2x2x2x512xf32>
    %50 = arith.mulf %45, %49 : vector<2x2x2x512xf32>
    %51 = arith.addf %44, %50 : vector<2x2x2x512xf32>
    %c4_i32 = arith.constant 4 : i32
    %52 = arith.addi %0, %c4_i32 : i32
    %c0_12 = arith.constant 0 : index
    %c0_13 = arith.constant 0 : index
    %53 = arith.index_cast %52 : i32 to index
    %c0_14 = arith.constant 0 : index
    %c0_15 = arith.constant 0 : index
    %54 = vector.load %arg2[%c0_12, %c0_13, %53, %c0_14, %c0_15] : memref<1x2x6x6x512xf32, #tpu.memory_space<vmem>>, vector<1x2x2x6x512xf32>
    %55 = vector.shape_cast %54 : vector<1x2x2x6x512xf32> to vector<2x2x6x512xf32>
    %56 = vector.extract_strided_slice %55 {offsets = [0, 0, 0, 0], sizes = [2, 2, 2, 512], strides = [1, 1, 1, 1]} : vector<2x2x6x512xf32> to vector<2x2x2x512xf32>
    %57 = vector.extract_strided_slice %1 {offsets = [6, 0], sizes = [1, 512], strides = [1, 1]} : vector<9x512xf32> to vector<1x512xf32>
    %58 = vector.shape_cast %57 : vector<1x512xf32> to vector<512xf32>
    %59 = vector.shape_cast %58 : vector<512xf32> to vector<1x1x1x512xf32>
    %60 = vector.broadcast %59 : vector<1x1x1x512xf32> to vector<2x2x2x512xf32>
    %61 = arith.mulf %56, %60 : vector<2x2x2x512xf32>
    %62 = arith.addf %51, %61 : vector<2x2x2x512xf32>
    %63 = vector.extract_strided_slice %55 {offsets = [0, 0, 2, 0], sizes = [2, 2, 2, 512], strides = [1, 1, 1, 1]} : vector<2x2x6x512xf32> to vector<2x2x2x512xf32>
    %64 = vector.extract_strided_slice %1 {offsets = [7, 0], sizes = [1, 512], strides = [1, 1]} : vector<9x512xf32> to vector<1x512xf32>
    %65 = vector.shape_cast %64 : vector<1x512xf32> to vector<512xf32>
    %66 = vector.shape_cast %65 : vector<512xf32> to vector<1x1x1x512xf32>
    %67 = vector.broadcast %66 : vector<1x1x1x512xf32> to vector<2x2x2x512xf32>
    %68 = arith.mulf %63, %67 : vector<2x2x2x512xf32>
    %69 = arith.addf %62, %68 : vector<2x2x2x512xf32>
    %70 = vector.extract_strided_slice %55 {offsets = [0, 0, 4, 0], sizes = [2, 2, 2, 512], strides = [1, 1, 1, 1]} : vector<2x2x6x512xf32> to vector<2x2x2x512xf32>
    %71 = vector.extract_strided_slice %1 {offsets = [8, 0], sizes = [1, 512], strides = [1, 1]} : vector<9x512xf32> to vector<1x512xf32>
    %72 = vector.shape_cast %71 : vector<1x512xf32> to vector<512xf32>
    %73 = vector.shape_cast %72 : vector<512xf32> to vector<1x1x1x512xf32>
    %74 = vector.broadcast %73 : vector<1x1x1x512xf32> to vector<2x2x2x512xf32>
    %75 = arith.mulf %70, %74 : vector<2x2x2x512xf32>
    %76 = arith.addf %69, %75 : vector<2x2x2x512xf32>
    %77 = vector.extract_strided_slice %2 {offsets = [0, 0], sizes = [1, 512], strides = [1, 1]} : vector<2x512xf32> to vector<1x512xf32>
    %78 = vector.shape_cast %77 : vector<1x512xf32> to vector<512xf32>
    %79 = vector.shape_cast %78 : vector<512xf32> to vector<1x1x1x512xf32>
    %80 = vector.broadcast %79 : vector<1x1x1x512xf32> to vector<2x2x2x512xf32>
    %81 = arith.mulf %76, %80 : vector<2x2x2x512xf32>
    %82 = vector.extract_strided_slice %2 {offsets = [1, 0], sizes = [1, 512], strides = [1, 1]} : vector<2x512xf32> to vector<1x512xf32>
    %83 = vector.shape_cast %82 : vector<1x512xf32> to vector<512xf32>
    %84 = vector.shape_cast %83 : vector<512xf32> to vector<1x1x1x512xf32>
    %85 = vector.broadcast %84 : vector<1x1x1x512xf32> to vector<2x2x2x512xf32>
    %86 = arith.addf %81, %85 : vector<2x2x2x512xf32>
    %cst = arith.constant 0.000000e+00 : f32
    %87 = vector.broadcast %cst : f32 to vector<2x2x2x512xf32>
    %88 = arith.maximumf %86, %87 : vector<2x2x2x512xf32>
    %89 = vector.shape_cast %88 : vector<2x2x2x512xf32> to vector<8x512xf32>
    %90 = arith.truncf %89 : vector<8x512xf32> to vector<8x512xbf16>
    %c0_16 = arith.constant 0 : index
    %c0_17 = arith.constant 0 : index
    %91 = vector.load %arg5[%c0_16, %c0_17] : memref<512x512xbf16, #tpu.memory_space<vmem>>, vector<512x512xbf16>
    %cst_18 = arith.constant dense<0.000000e+00> : vector<8x512xf32>
    %92 = tpu.matmul %90, %91, %cst_18 {dimension_numbers = #tpu.dot_dimension_numbers<[1], [0], [0], [1], [0, 0, 1, 1], [], []>} : vector<8x512xbf16>, vector<512x512xbf16>, vector<8x512xf32> -> vector<8x512xf32>
    %c0_19 = arith.constant 0 : index
    %c0_20 = arith.constant 0 : index
    %93 = vector.load %arg6[%c0_19, %c0_20] : memref<2x512xf32, #tpu.memory_space<vmem>>, vector<2x512xf32>
    %94 = vector.extract_strided_slice %93 {offsets = [0, 0], sizes = [1, 512], strides = [1, 1]} : vector<2x512xf32> to vector<1x512xf32>
    %95 = vector.shape_cast %94 : vector<1x512xf32> to vector<512xf32>
    %96 = vector.shape_cast %95 : vector<512xf32> to vector<1x512xf32>
    %97 = vector.broadcast %96 : vector<1x512xf32> to vector<8x512xf32>
    %98 = arith.mulf %92, %97 : vector<8x512xf32>
    %99 = vector.extract_strided_slice %93 {offsets = [1, 0], sizes = [1, 512], strides = [1, 1]} : vector<2x512xf32> to vector<1x512xf32>
    %100 = vector.shape_cast %99 : vector<1x512xf32> to vector<512xf32>
    %101 = vector.shape_cast %100 : vector<512xf32> to vector<1x512xf32>
    %102 = vector.broadcast %101 : vector<1x512xf32> to vector<8x512xf32>
    %103 = arith.addf %98, %102 : vector<8x512xf32>
    %cst_21 = arith.constant 0.000000e+00 : f32
    %104 = vector.broadcast %cst_21 : f32 to vector<8x512xf32>
    %105 = arith.maximumf %103, %104 : vector<8x512xf32>
    %106 = vector.shape_cast %105 : vector<8x512xf32> to vector<2x2x2x512xf32>
    %c0_22 = arith.constant 0 : index
    %c0_23 = arith.constant 0 : index
    %c0_24 = arith.constant 0 : index
    %c0_25 = arith.constant 0 : index
    %107 = vector.load %arg7[%c0_22, %c0_23, %c0_24, %c0_25] : memref<2x2x2x512xf32, #tpu.memory_space<vmem>>, vector<2x2x2x512xf32>
    tpu.vector_store %arg7[%c0_22, %c0_23, %c0_24, %c0_25], %106 {strides = array<i32>} : memref<2x2x2x512xf32, #tpu.memory_space<vmem>>, vector<2x2x2x512xf32>,
    return
  }
  func.func @transform_0(%arg0: i32, %arg1: i32) -> (i32, i32, i32, i32, i32) {
    %c0_i32 = arith.constant 0 : i32
    %c0_i32_0 = arith.constant 0 : i32
    %c0_i32_1 = arith.constant 0 : i32
    %c0_i32_2 = arith.constant 0 : i32
    %c0_i32_3 = arith.constant 0 : i32
    return %c0_i32, %arg0, %c0_i32_0, %c0_i32_1, %c0_i32_2 : i32, i32, i32, i32, i32
  }
  func.func @transform_1(%arg0: i32, %arg1: i32) -> (i32, i32) {
    %c0_i32 = arith.constant 0 : i32
    %c0_i32_0 = arith.constant 0 : i32
    %c0_i32_1 = arith.constant 0 : i32
    return %c0_i32, %c0_i32_0 : i32, i32
  }
  func.func @transform_2(%arg0: i32, %arg1: i32) -> (i32, i32) {
    %c0_i32 = arith.constant 0 : i32
    %c0_i32_0 = arith.constant 0 : i32
    %c0_i32_1 = arith.constant 0 : i32
    return %c0_i32, %c0_i32_0 : i32, i32
  }
  func.func @transform_3(%arg0: i32, %arg1: i32) -> (i32, i32) {
    %c0_i32 = arith.constant 0 : i32
    %c0_i32_0 = arith.constant 0 : i32
    %c0_i32_1 = arith.constant 0 : i32
    return %c0_i32, %c0_i32_0 : i32, i32
  }
  func.func @transform_4(%arg0: i32, %arg1: i32) -> (i32, i32) {
    %c0_i32 = arith.constant 0 : i32
    %c0_i32_0 = arith.constant 0 : i32
    %c0_i32_1 = arith.constant 0 : i32
    return %c0_i32, %c0_i32_0 : i32, i32
  }
  func.func @transform_5(%arg0: i32, %arg1: i32) -> (i32, i32, i32, i32) {
    %c0_i32 = arith.constant 0 : i32
    %c0_i32_0 = arith.constant 0 : i32
    %c0_i32_1 = arith.constant 0 : i32
    return %arg0, %arg1, %c0_i32, %c0_i32_0 : i32, i32, i32, i32
  }
}

module attributes {stable_mosaic.version = 11 : i64} {
  func.func @_fused_dw_pw_block_kernel(%arg0: i32, %arg1: i32, %arg2: memref<1x2x4x4x512xf32, #tpu.memory_space<vmem>>, %arg3: memref<9x512xf32, #tpu.memory_space<vmem>>, %arg4: memref<2x512xf32, #tpu.memory_space<vmem>>, %arg5: memref<512x512xbf16, #tpu.memory_space<vmem>>, %arg6: memref<2x512xf32, #tpu.memory_space<vmem>>, %arg7: memref<2x2x2x512xf32, #tpu.memory_space<vmem>>) attributes {dimension_semantics = [#tpu.dimension_semantics<parallel>, #tpu.dimension_semantics<parallel>], iteration_bounds = array<i64: 1, 1>, scalar_prefetch = 0 : i64, scratch_operands = 0 : i64, tpu.core_type = #tpu.core_type<tc>, window_params = [{transform_indices = @transform_0, window_bounds = array<i64: 1, 2, 4, 4, 512>}, {pipeline_mode = #tpu.pipeline_mode<synchronous>, transform_indices = @transform_1, window_bounds = array<i64: 9, 512>}, {pipeline_mode = #tpu.pipeline_mode<synchronous>, transform_indices = @transform_2, window_bounds = array<i64: 2, 512>}, {pipeline_mode = #tpu.pipeline_mode<synchronous>, transform_indices = @transform_3, window_bounds = array<i64: 512, 512>}, {pipeline_mode = #tpu.pipeline_mode<synchronous>, transform_indices = @transform_4, window_bounds = array<i64: 2, 512>}, {transform_indices = @transform_5, window_bounds = array<i64: 2, 2, 2, 512>}]} {
    %c2_i32 = arith.constant 2 : i32
    %0 = arith.muli %arg1, %c2_i32 : i32
    %c0 = arith.constant 0 : index
    %c0_0 = arith.constant 0 : index
    %1 = vector.load %arg3[%c0, %c0_0] : memref<9x512xf32, #tpu.memory_space<vmem>>, vector<9x512xf32>
    %c0_1 = arith.constant 0 : index
    %c0_2 = arith.constant 0 : index
    %2 = vector.load %arg4[%c0_1, %c0_2] : memref<2x512xf32, #tpu.memory_space<vmem>>, vector<2x512xf32>
    %c0_i32 = arith.constant 0 : i32
    %3 = arith.addi %0, %c0_i32 : i32
    %c0_3 = arith.constant 0 : index
    %c0_4 = arith.constant 0 : index
    %4 = arith.index_cast %3 : i32 to index
    %c0_5 = arith.constant 0 : index
    %c0_6 = arith.constant 0 : index
    %5 = vector.load %arg2[%c0_3, %c0_4, %4, %c0_5, %c0_6] : memref<1x2x4x4x512xf32, #tpu.memory_space<vmem>>, vector<1x2x2x4x512xf32>
    %6 = vector.shape_cast %5 : vector<1x2x2x4x512xf32> to vector<2x2x4x512xf32>
    %7 = vector.extract_strided_slice %6 {offsets = [0, 0, 0, 0], sizes = [2, 2, 2, 512], strides = [1, 1, 1, 1]} : vector<2x2x4x512xf32> to vector<2x2x2x512xf32>
    %8 = vector.extract_strided_slice %1 {offsets = [0, 0], sizes = [1, 512], strides = [1, 1]} : vector<9x512xf32> to vector<1x512xf32>
    %9 = vector.shape_cast %8 : vector<1x512xf32> to vector<512xf32>
    %10 = vector.shape_cast %9 : vector<512xf32> to vector<1x1x1x512xf32>
    %11 = vector.broadcast %10 : vector<1x1x1x512xf32> to vector<2x2x2x512xf32>
    %12 = arith.mulf %7, %11 : vector<2x2x2x512xf32>
    %13 = vector.extract_strided_slice %6 {offsets = [0, 0, 1, 0], sizes = [2, 2, 2, 512], strides = [1, 1, 1, 1]} : vector<2x2x4x512xf32> to vector<2x2x2x512xf32>
    %14 = vector.extract_strided_slice %1 {offsets = [1, 0], sizes = [1, 512], strides = [1, 1]} : vector<9x512xf32> to vector<1x512xf32>
    %15 = vector.shape_cast %14 : vector<1x512xf32> to vector<512xf32>
    %16 = vector.shape_cast %15 : vector<512xf32> to vector<1x1x1x512xf32>
    %17 = vector.broadcast %16 : vector<1x1x1x512xf32> to vector<2x2x2x512xf32>
    %18 = arith.mulf %13, %17 : vector<2x2x2x512xf32>
    %19 = arith.addf %12, %18 : vector<2x2x2x512xf32>
    %20 = vector.extract_strided_slice %6 {offsets = [0, 0, 2, 0], sizes = [2, 2, 2, 512], strides = [1, 1, 1, 1]} : vector<2x2x4x512xf32> to vector<2x2x2x512xf32>
    %21 = vector.extract_strided_slice %1 {offsets = [2, 0], sizes = [1, 512], strides = [1, 1]} : vector<9x512xf32> to vector<1x512xf32>
    %22 = vector.shape_cast %21 : vector<1x512xf32> to vector<512xf32>
    %23 = vector.shape_cast %22 : vector<512xf32> to vector<1x1x1x512xf32>
    %24 = vector.broadcast %23 : vector<1x1x1x512xf32> to vector<2x2x2x512xf32>
    %25 = arith.mulf %20, %24 : vector<2x2x2x512xf32>
    %26 = arith.addf %19, %25 : vector<2x2x2x512xf32>
    %c1_i32 = arith.constant 1 : i32
    %27 = arith.addi %0, %c1_i32 : i32
    %c0_7 = arith.constant 0 : index
    %c0_8 = arith.constant 0 : index
    %28 = arith.index_cast %27 : i32 to index
    %c0_9 = arith.constant 0 : index
    %c0_10 = arith.constant 0 : index
    %29 = vector.load %arg2[%c0_7, %c0_8, %28, %c0_9, %c0_10] : memref<1x2x4x4x512xf32, #tpu.memory_space<vmem>>, vector<1x2x2x4x512xf32>
    %30 = vector.shape_cast %29 : vector<1x2x2x4x512xf32> to vector<2x2x4x512xf32>
    %31 = vector.extract_strided_slice %30 {offsets = [0, 0, 0, 0], sizes = [2, 2, 2, 512], strides = [1, 1, 1, 1]} : vector<2x2x4x512xf32> to vector<2x2x2x512xf32>
    %32 = vector.extract_strided_slice %1 {offsets = [3, 0], sizes = [1, 512], strides = [1, 1]} : vector<9x512xf32> to vector<1x512xf32>
    %33 = vector.shape_cast %32 : vector<1x512xf32> to vector<512xf32>
    %34 = vector.shape_cast %33 : vector<512xf32> to vector<1x1x1x512xf32>
    %35 = vector.broadcast %34 : vector<1x1x1x512xf32> to vector<2x2x2x512xf32>
    %36 = arith.mulf %31, %35 : vector<2x2x2x512xf32>
    %37 = arith.addf %26, %36 : vector<2x2x2x512xf32>
    %38 = vector.extract_strided_slice %30 {offsets = [0, 0, 1, 0], sizes = [2, 2, 2, 512], strides = [1, 1, 1, 1]} : vector<2x2x4x512xf32> to vector<2x2x2x512xf32>
    %39 = vector.extract_strided_slice %1 {offsets = [4, 0], sizes = [1, 512], strides = [1, 1]} : vector<9x512xf32> to vector<1x512xf32>
    %40 = vector.shape_cast %39 : vector<1x512xf32> to vector<512xf32>
    %41 = vector.shape_cast %40 : vector<512xf32> to vector<1x1x1x512xf32>
    %42 = vector.broadcast %41 : vector<1x1x1x512xf32> to vector<2x2x2x512xf32>
    %43 = arith.mulf %38, %42 : vector<2x2x2x512xf32>
    %44 = arith.addf %37, %43 : vector<2x2x2x512xf32>
    %45 = vector.extract_strided_slice %30 {offsets = [0, 0, 2, 0], sizes = [2, 2, 2, 512], strides = [1, 1, 1, 1]} : vector<2x2x4x512xf32> to vector<2x2x2x512xf32>
    %46 = vector.extract_strided_slice %1 {offsets = [5, 0], sizes = [1, 512], strides = [1, 1]} : vector<9x512xf32> to vector<1x512xf32>
    %47 = vector.shape_cast %46 : vector<1x512xf32> to vector<512xf32>
    %48 = vector.shape_cast %47 : vector<512xf32> to vector<1x1x1x512xf32>
    %49 = vector.broadcast %48 : vector<1x1x1x512xf32> to vector<2x2x2x512xf32>
    %50 = arith.mulf %45, %49 : vector<2x2x2x512xf32>
    %51 = arith.addf %44, %50 : vector<2x2x2x512xf32>
    %c2_i32_11 = arith.constant 2 : i32
    %52 = arith.addi %0, %c2_i32_11 : i32
    %c0_12 = arith.constant 0 : index
    %c0_13 = arith.constant 0 : index
    %53 = arith.index_cast %52 : i32 to index
    %c0_14 = arith.constant 0 : index
    %c0_15 = arith.constant 0 : index
    %54 = vector.load %arg2[%c0_12, %c0_13, %53, %c0_14, %c0_15] : memref<1x2x4x4x512xf32, #tpu.memory_space<vmem>>, vector<1x2x2x4x512xf32>
    %55 = vector.shape_cast %54 : vector<1x2x2x4x512xf32> to vector<2x2x4x512xf32>
    %56 = vector.extract_strided_slice %55 {offsets = [0, 0, 0, 0], sizes = [2, 2, 2, 512], strides = [1, 1, 1, 1]} : vector<2x2x4x512xf32> to vector<2x2x2x512xf32>
    %57 = vector.extract_strided_slice %1 {offsets = [6, 0], sizes = [1, 512], strides = [1, 1]} : vector<9x512xf32> to vector<1x512xf32>
    %58 = vector.shape_cast %57 : vector<1x512xf32> to vector<512xf32>
    %59 = vector.shape_cast %58 : vector<512xf32> to vector<1x1x1x512xf32>
    %60 = vector.broadcast %59 : vector<1x1x1x512xf32> to vector<2x2x2x512xf32>
    %61 = arith.mulf %56, %60 : vector<2x2x2x512xf32>
    %62 = arith.addf %51, %61 : vector<2x2x2x512xf32>
    %63 = vector.extract_strided_slice %55 {offsets = [0, 0, 1, 0], sizes = [2, 2, 2, 512], strides = [1, 1, 1, 1]} : vector<2x2x4x512xf32> to vector<2x2x2x512xf32>
    %64 = vector.extract_strided_slice %1 {offsets = [7, 0], sizes = [1, 512], strides = [1, 1]} : vector<9x512xf32> to vector<1x512xf32>
    %65 = vector.shape_cast %64 : vector<1x512xf32> to vector<512xf32>
    %66 = vector.shape_cast %65 : vector<512xf32> to vector<1x1x1x512xf32>
    %67 = vector.broadcast %66 : vector<1x1x1x512xf32> to vector<2x2x2x512xf32>
    %68 = arith.mulf %63, %67 : vector<2x2x2x512xf32>
    %69 = arith.addf %62, %68 : vector<2x2x2x512xf32>
    %70 = vector.extract_strided_slice %55 {offsets = [0, 0, 2, 0], sizes = [2, 2, 2, 512], strides = [1, 1, 1, 1]} : vector<2x2x4x512xf32> to vector<2x2x2x512xf32>
    %71 = vector.extract_strided_slice %1 {offsets = [8, 0], sizes = [1, 512], strides = [1, 1]} : vector<9x512xf32> to vector<1x512xf32>
    %72 = vector.shape_cast %71 : vector<1x512xf32> to vector<512xf32>
    %73 = vector.shape_cast %72 : vector<512xf32> to vector<1x1x1x512xf32>
    %74 = vector.broadcast %73 : vector<1x1x1x512xf32> to vector<2x2x2x512xf32>
    %75 = arith.mulf %70, %74 : vector<2x2x2x512xf32>
    %76 = arith.addf %69, %75 : vector<2x2x2x512xf32>
    %77 = vector.extract_strided_slice %2 {offsets = [0, 0], sizes = [1, 512], strides = [1, 1]} : vector<2x512xf32> to vector<1x512xf32>
    %78 = vector.shape_cast %77 : vector<1x512xf32> to vector<512xf32>
    %79 = vector.shape_cast %78 : vector<512xf32> to vector<1x1x1x512xf32>
    %80 = vector.broadcast %79 : vector<1x1x1x512xf32> to vector<2x2x2x512xf32>
    %81 = arith.mulf %76, %80 : vector<2x2x2x512xf32>
    %82 = vector.extract_strided_slice %2 {offsets = [1, 0], sizes = [1, 512], strides = [1, 1]} : vector<2x512xf32> to vector<1x512xf32>
    %83 = vector.shape_cast %82 : vector<1x512xf32> to vector<512xf32>
    %84 = vector.shape_cast %83 : vector<512xf32> to vector<1x1x1x512xf32>
    %85 = vector.broadcast %84 : vector<1x1x1x512xf32> to vector<2x2x2x512xf32>
    %86 = arith.addf %81, %85 : vector<2x2x2x512xf32>
    %cst = arith.constant 0.000000e+00 : f32
    %87 = vector.broadcast %cst : f32 to vector<2x2x2x512xf32>
    %88 = arith.maximumf %86, %87 : vector<2x2x2x512xf32>
    %89 = vector.shape_cast %88 : vector<2x2x2x512xf32> to vector<8x512xf32>
    %90 = arith.truncf %89 : vector<8x512xf32> to vector<8x512xbf16>
    %c0_16 = arith.constant 0 : index
    %c0_17 = arith.constant 0 : index
    %91 = vector.load %arg5[%c0_16, %c0_17] : memref<512x512xbf16, #tpu.memory_space<vmem>>, vector<512x512xbf16>
    %cst_18 = arith.constant dense<0.000000e+00> : vector<8x512xf32>
    %92 = tpu.matmul %90, %91, %cst_18 {dimension_numbers = #tpu.dot_dimension_numbers<[1], [0], [0], [1], [0, 0, 1, 1], [], []>} : vector<8x512xbf16>, vector<512x512xbf16>, vector<8x512xf32> -> vector<8x512xf32>
    %c0_19 = arith.constant 0 : index
    %c0_20 = arith.constant 0 : index
    %93 = vector.load %arg6[%c0_19, %c0_20] : memref<2x512xf32, #tpu.memory_space<vmem>>, vector<2x512xf32>
    %94 = vector.extract_strided_slice %93 {offsets = [0, 0], sizes = [1, 512], strides = [1, 1]} : vector<2x512xf32> to vector<1x512xf32>
    %95 = vector.shape_cast %94 : vector<1x512xf32> to vector<512xf32>
    %96 = vector.shape_cast %95 : vector<512xf32> to vector<1x512xf32>
    %97 = vector.broadcast %96 : vector<1x512xf32> to vector<8x512xf32>
    %98 = arith.mulf %92, %97 : vector<8x512xf32>
    %99 = vector.extract_strided_slice %93 {offsets = [1, 0], sizes = [1, 512], strides = [1, 1]} : vector<2x512xf32> to vector<1x512xf32>
    %100 = vector.shape_cast %99 : vector<1x512xf32> to vector<512xf32>
    %101 = vector.shape_cast %100 : vector<512xf32> to vector<1x512xf32>
    %102 = vector.broadcast %101 : vector<1x512xf32> to vector<8x512xf32>
    %103 = arith.addf %98, %102 : vector<8x512xf32>
    %cst_21 = arith.constant 0.000000e+00 : f32
    %104 = vector.broadcast %cst_21 : f32 to vector<8x512xf32>
    %105 = arith.maximumf %103, %104 : vector<8x512xf32>
    %106 = vector.shape_cast %105 : vector<8x512xf32> to vector<2x2x2x512xf32>
    %c0_22 = arith.constant 0 : index
    %c0_23 = arith.constant 0 : index
    %c0_24 = arith.constant 0 : index
    %c0_25 = arith.constant 0 : index
    %107 = vector.load %arg7[%c0_22, %c0_23, %c0_24, %c0_25] : memref<2x2x2x512xf32, #tpu.memory_space<vmem>>, vector<2x2x2x512xf32>
    tpu.vector_store %arg7[%c0_22, %c0_23, %c0_24, %c0_25], %106 {strides = array<i32>} : memref<2x2x2x512xf32, #tpu.memory_space<vmem>>, vector<2x2x2x512xf32>,
    return
  }
  func.func @transform_0(%arg0: i32, %arg1: i32) -> (i32, i32, i32, i32, i32) {
    %c0_i32 = arith.constant 0 : i32
    %c0_i32_0 = arith.constant 0 : i32
    %c0_i32_1 = arith.constant 0 : i32
    %c0_i32_2 = arith.constant 0 : i32
    %c0_i32_3 = arith.constant 0 : i32
    return %c0_i32, %arg0, %c0_i32_0, %c0_i32_1, %c0_i32_2 : i32, i32, i32, i32, i32
  }
  func.func @transform_1(%arg0: i32, %arg1: i32) -> (i32, i32) {
    %c0_i32 = arith.constant 0 : i32
    %c0_i32_0 = arith.constant 0 : i32
    %c0_i32_1 = arith.constant 0 : i32
    return %c0_i32, %c0_i32_0 : i32, i32
  }
  func.func @transform_2(%arg0: i32, %arg1: i32) -> (i32, i32) {
    %c0_i32 = arith.constant 0 : i32
    %c0_i32_0 = arith.constant 0 : i32
    %c0_i32_1 = arith.constant 0 : i32
    return %c0_i32, %c0_i32_0 : i32, i32
  }
  func.func @transform_3(%arg0: i32, %arg1: i32) -> (i32, i32) {
    %c0_i32 = arith.constant 0 : i32
    %c0_i32_0 = arith.constant 0 : i32
    %c0_i32_1 = arith.constant 0 : i32
    return %c0_i32, %c0_i32_0 : i32, i32
  }
  func.func @transform_4(%arg0: i32, %arg1: i32) -> (i32, i32) {
    %c0_i32 = arith.constant 0 : i32
    %c0_i32_0 = arith.constant 0 : i32
    %c0_i32_1 = arith.constant 0 : i32
    return %c0_i32, %c0_i32_0 : i32, i32
  }
  func.func @transform_5(%arg0: i32, %arg1: i32) -> (i32, i32, i32, i32) {
    %c0_i32 = arith.constant 0 : i32
    %c0_i32_0 = arith.constant 0 : i32
    %c0_i32_1 = arith.constant 0 : i32
    return %arg0, %arg1, %c0_i32, %c0_i32_0 : i32, i32, i32, i32
  }
}

module attributes {stable_mosaic.version = 11 : i64} {
  func.func @_fused_dw_pw_block_kernel(%arg0: i32, %arg1: i32, %arg2: memref<1x2x4x4x512xf32, #tpu.memory_space<vmem>>, %arg3: memref<9x512xf32, #tpu.memory_space<vmem>>, %arg4: memref<2x512xf32, #tpu.memory_space<vmem>>, %arg5: memref<512x512xbf16, #tpu.memory_space<vmem>>, %arg6: memref<2x512xf32, #tpu.memory_space<vmem>>, %arg7: memref<2x2x2x512xf32, #tpu.memory_space<vmem>>) attributes {dimension_semantics = [#tpu.dimension_semantics<parallel>, #tpu.dimension_semantics<parallel>], iteration_bounds = array<i64: 1, 1>, scalar_prefetch = 0 : i64, scratch_operands = 0 : i64, tpu.core_type = #tpu.core_type<tc>, window_params = [{transform_indices = @transform_0, window_bounds = array<i64: 1, 2, 4, 4, 512>}, {pipeline_mode = #tpu.pipeline_mode<synchronous>, transform_indices = @transform_1, window_bounds = array<i64: 9, 512>}, {pipeline_mode = #tpu.pipeline_mode<synchronous>, transform_indices = @transform_2, window_bounds = array<i64: 2, 512>}, {pipeline_mode = #tpu.pipeline_mode<synchronous>, transform_indices = @transform_3, window_bounds = array<i64: 512, 512>}, {pipeline_mode = #tpu.pipeline_mode<synchronous>, transform_indices = @transform_4, window_bounds = array<i64: 2, 512>}, {transform_indices = @transform_5, window_bounds = array<i64: 2, 2, 2, 512>}]} {
    %c2_i32 = arith.constant 2 : i32
    %0 = arith.muli %arg1, %c2_i32 : i32
    %c0 = arith.constant 0 : index
    %c0_0 = arith.constant 0 : index
    %1 = vector.load %arg3[%c0, %c0_0] : memref<9x512xf32, #tpu.memory_space<vmem>>, vector<9x512xf32>
    %c0_1 = arith.constant 0 : index
    %c0_2 = arith.constant 0 : index
    %2 = vector.load %arg4[%c0_1, %c0_2] : memref<2x512xf32, #tpu.memory_space<vmem>>, vector<2x512xf32>
    %c0_i32 = arith.constant 0 : i32
    %3 = arith.addi %0, %c0_i32 : i32
    %c0_3 = arith.constant 0 : index
    %c0_4 = arith.constant 0 : index
    %4 = arith.index_cast %3 : i32 to index
    %c0_5 = arith.constant 0 : index
    %c0_6 = arith.constant 0 : index
    %5 = vector.load %arg2[%c0_3, %c0_4, %4, %c0_5, %c0_6] : memref<1x2x4x4x512xf32, #tpu.memory_space<vmem>>, vector<1x2x2x4x512xf32>
    %6 = vector.shape_cast %5 : vector<1x2x2x4x512xf32> to vector<2x2x4x512xf32>
    %7 = vector.extract_strided_slice %6 {offsets = [0, 0, 0, 0], sizes = [2, 2, 2, 512], strides = [1, 1, 1, 1]} : vector<2x2x4x512xf32> to vector<2x2x2x512xf32>
    %8 = vector.extract_strided_slice %1 {offsets = [0, 0], sizes = [1, 512], strides = [1, 1]} : vector<9x512xf32> to vector<1x512xf32>
    %9 = vector.shape_cast %8 : vector<1x512xf32> to vector<512xf32>
    %10 = vector.shape_cast %9 : vector<512xf32> to vector<1x1x1x512xf32>
    %11 = vector.broadcast %10 : vector<1x1x1x512xf32> to vector<2x2x2x512xf32>
    %12 = arith.mulf %7, %11 : vector<2x2x2x512xf32>
    %13 = vector.extract_strided_slice %6 {offsets = [0, 0, 1, 0], sizes = [2, 2, 2, 512], strides = [1, 1, 1, 1]} : vector<2x2x4x512xf32> to vector<2x2x2x512xf32>
    %14 = vector.extract_strided_slice %1 {offsets = [1, 0], sizes = [1, 512], strides = [1, 1]} : vector<9x512xf32> to vector<1x512xf32>
    %15 = vector.shape_cast %14 : vector<1x512xf32> to vector<512xf32>
    %16 = vector.shape_cast %15 : vector<512xf32> to vector<1x1x1x512xf32>
    %17 = vector.broadcast %16 : vector<1x1x1x512xf32> to vector<2x2x2x512xf32>
    %18 = arith.mulf %13, %17 : vector<2x2x2x512xf32>
    %19 = arith.addf %12, %18 : vector<2x2x2x512xf32>
    %20 = vector.extract_strided_slice %6 {offsets = [0, 0, 2, 0], sizes = [2, 2, 2, 512], strides = [1, 1, 1, 1]} : vector<2x2x4x512xf32> to vector<2x2x2x512xf32>
    %21 = vector.extract_strided_slice %1 {offsets = [2, 0], sizes = [1, 512], strides = [1, 1]} : vector<9x512xf32> to vector<1x512xf32>
    %22 = vector.shape_cast %21 : vector<1x512xf32> to vector<512xf32>
    %23 = vector.shape_cast %22 : vector<512xf32> to vector<1x1x1x512xf32>
    %24 = vector.broadcast %23 : vector<1x1x1x512xf32> to vector<2x2x2x512xf32>
    %25 = arith.mulf %20, %24 : vector<2x2x2x512xf32>
    %26 = arith.addf %19, %25 : vector<2x2x2x512xf32>
    %c1_i32 = arith.constant 1 : i32
    %27 = arith.addi %0, %c1_i32 : i32
    %c0_7 = arith.constant 0 : index
    %c0_8 = arith.constant 0 : index
    %28 = arith.index_cast %27 : i32 to index
    %c0_9 = arith.constant 0 : index
    %c0_10 = arith.constant 0 : index
    %29 = vector.load %arg2[%c0_7, %c0_8, %28, %c0_9, %c0_10] : memref<1x2x4x4x512xf32, #tpu.memory_space<vmem>>, vector<1x2x2x4x512xf32>
    %30 = vector.shape_cast %29 : vector<1x2x2x4x512xf32> to vector<2x2x4x512xf32>
    %31 = vector.extract_strided_slice %30 {offsets = [0, 0, 0, 0], sizes = [2, 2, 2, 512], strides = [1, 1, 1, 1]} : vector<2x2x4x512xf32> to vector<2x2x2x512xf32>
    %32 = vector.extract_strided_slice %1 {offsets = [3, 0], sizes = [1, 512], strides = [1, 1]} : vector<9x512xf32> to vector<1x512xf32>
    %33 = vector.shape_cast %32 : vector<1x512xf32> to vector<512xf32>
    %34 = vector.shape_cast %33 : vector<512xf32> to vector<1x1x1x512xf32>
    %35 = vector.broadcast %34 : vector<1x1x1x512xf32> to vector<2x2x2x512xf32>
    %36 = arith.mulf %31, %35 : vector<2x2x2x512xf32>
    %37 = arith.addf %26, %36 : vector<2x2x2x512xf32>
    %38 = vector.extract_strided_slice %30 {offsets = [0, 0, 1, 0], sizes = [2, 2, 2, 512], strides = [1, 1, 1, 1]} : vector<2x2x4x512xf32> to vector<2x2x2x512xf32>
    %39 = vector.extract_strided_slice %1 {offsets = [4, 0], sizes = [1, 512], strides = [1, 1]} : vector<9x512xf32> to vector<1x512xf32>
    %40 = vector.shape_cast %39 : vector<1x512xf32> to vector<512xf32>
    %41 = vector.shape_cast %40 : vector<512xf32> to vector<1x1x1x512xf32>
    %42 = vector.broadcast %41 : vector<1x1x1x512xf32> to vector<2x2x2x512xf32>
    %43 = arith.mulf %38, %42 : vector<2x2x2x512xf32>
    %44 = arith.addf %37, %43 : vector<2x2x2x512xf32>
    %45 = vector.extract_strided_slice %30 {offsets = [0, 0, 2, 0], sizes = [2, 2, 2, 512], strides = [1, 1, 1, 1]} : vector<2x2x4x512xf32> to vector<2x2x2x512xf32>
    %46 = vector.extract_strided_slice %1 {offsets = [5, 0], sizes = [1, 512], strides = [1, 1]} : vector<9x512xf32> to vector<1x512xf32>
    %47 = vector.shape_cast %46 : vector<1x512xf32> to vector<512xf32>
    %48 = vector.shape_cast %47 : vector<512xf32> to vector<1x1x1x512xf32>
    %49 = vector.broadcast %48 : vector<1x1x1x512xf32> to vector<2x2x2x512xf32>
    %50 = arith.mulf %45, %49 : vector<2x2x2x512xf32>
    %51 = arith.addf %44, %50 : vector<2x2x2x512xf32>
    %c2_i32_11 = arith.constant 2 : i32
    %52 = arith.addi %0, %c2_i32_11 : i32
    %c0_12 = arith.constant 0 : index
    %c0_13 = arith.constant 0 : index
    %53 = arith.index_cast %52 : i32 to index
    %c0_14 = arith.constant 0 : index
    %c0_15 = arith.constant 0 : index
    %54 = vector.load %arg2[%c0_12, %c0_13, %53, %c0_14, %c0_15] : memref<1x2x4x4x512xf32, #tpu.memory_space<vmem>>, vector<1x2x2x4x512xf32>
    %55 = vector.shape_cast %54 : vector<1x2x2x4x512xf32> to vector<2x2x4x512xf32>
    %56 = vector.extract_strided_slice %55 {offsets = [0, 0, 0, 0], sizes = [2, 2, 2, 512], strides = [1, 1, 1, 1]} : vector<2x2x4x512xf32> to vector<2x2x2x512xf32>
    %57 = vector.extract_strided_slice %1 {offsets = [6, 0], sizes = [1, 512], strides = [1, 1]} : vector<9x512xf32> to vector<1x512xf32>
    %58 = vector.shape_cast %57 : vector<1x512xf32> to vector<512xf32>
    %59 = vector.shape_cast %58 : vector<512xf32> to vector<1x1x1x512xf32>
    %60 = vector.broadcast %59 : vector<1x1x1x512xf32> to vector<2x2x2x512xf32>
    %61 = arith.mulf %56, %60 : vector<2x2x2x512xf32>
    %62 = arith.addf %51, %61 : vector<2x2x2x512xf32>
    %63 = vector.extract_strided_slice %55 {offsets = [0, 0, 1, 0], sizes = [2, 2, 2, 512], strides = [1, 1, 1, 1]} : vector<2x2x4x512xf32> to vector<2x2x2x512xf32>
    %64 = vector.extract_strided_slice %1 {offsets = [7, 0], sizes = [1, 512], strides = [1, 1]} : vector<9x512xf32> to vector<1x512xf32>
    %65 = vector.shape_cast %64 : vector<1x512xf32> to vector<512xf32>
    %66 = vector.shape_cast %65 : vector<512xf32> to vector<1x1x1x512xf32>
    %67 = vector.broadcast %66 : vector<1x1x1x512xf32> to vector<2x2x2x512xf32>
    %68 = arith.mulf %63, %67 : vector<2x2x2x512xf32>
    %69 = arith.addf %62, %68 : vector<2x2x2x512xf32>
    %70 = vector.extract_strided_slice %55 {offsets = [0, 0, 2, 0], sizes = [2, 2, 2, 512], strides = [1, 1, 1, 1]} : vector<2x2x4x512xf32> to vector<2x2x2x512xf32>
    %71 = vector.extract_strided_slice %1 {offsets = [8, 0], sizes = [1, 512], strides = [1, 1]} : vector<9x512xf32> to vector<1x512xf32>
    %72 = vector.shape_cast %71 : vector<1x512xf32> to vector<512xf32>
    %73 = vector.shape_cast %72 : vector<512xf32> to vector<1x1x1x512xf32>
    %74 = vector.broadcast %73 : vector<1x1x1x512xf32> to vector<2x2x2x512xf32>
    %75 = arith.mulf %70, %74 : vector<2x2x2x512xf32>
    %76 = arith.addf %69, %75 : vector<2x2x2x512xf32>
    %77 = vector.extract_strided_slice %2 {offsets = [0, 0], sizes = [1, 512], strides = [1, 1]} : vector<2x512xf32> to vector<1x512xf32>
    %78 = vector.shape_cast %77 : vector<1x512xf32> to vector<512xf32>
    %79 = vector.shape_cast %78 : vector<512xf32> to vector<1x1x1x512xf32>
    %80 = vector.broadcast %79 : vector<1x1x1x512xf32> to vector<2x2x2x512xf32>
    %81 = arith.mulf %76, %80 : vector<2x2x2x512xf32>
    %82 = vector.extract_strided_slice %2 {offsets = [1, 0], sizes = [1, 512], strides = [1, 1]} : vector<2x512xf32> to vector<1x512xf32>
    %83 = vector.shape_cast %82 : vector<1x512xf32> to vector<512xf32>
    %84 = vector.shape_cast %83 : vector<512xf32> to vector<1x1x1x512xf32>
    %85 = vector.broadcast %84 : vector<1x1x1x512xf32> to vector<2x2x2x512xf32>
    %86 = arith.addf %81, %85 : vector<2x2x2x512xf32>
    %cst = arith.constant 0.000000e+00 : f32
    %87 = vector.broadcast %cst : f32 to vector<2x2x2x512xf32>
    %88 = arith.maximumf %86, %87 : vector<2x2x2x512xf32>
    %89 = vector.shape_cast %88 : vector<2x2x2x512xf32> to vector<8x512xf32>
    %90 = arith.truncf %89 : vector<8x512xf32> to vector<8x512xbf16>
    %c0_16 = arith.constant 0 : index
    %c0_17 = arith.constant 0 : index
    %91 = vector.load %arg5[%c0_16, %c0_17] : memref<512x512xbf16, #tpu.memory_space<vmem>>, vector<512x512xbf16>
    %cst_18 = arith.constant dense<0.000000e+00> : vector<8x512xf32>
    %92 = tpu.matmul %90, %91, %cst_18 {dimension_numbers = #tpu.dot_dimension_numbers<[1], [0], [0], [1], [0, 0, 1, 1], [], []>} : vector<8x512xbf16>, vector<512x512xbf16>, vector<8x512xf32> -> vector<8x512xf32>
    %c0_19 = arith.constant 0 : index
    %c0_20 = arith.constant 0 : index
    %93 = vector.load %arg6[%c0_19, %c0_20] : memref<2x512xf32, #tpu.memory_space<vmem>>, vector<2x512xf32>
    %94 = vector.extract_strided_slice %93 {offsets = [0, 0], sizes = [1, 512], strides = [1, 1]} : vector<2x512xf32> to vector<1x512xf32>
    %95 = vector.shape_cast %94 : vector<1x512xf32> to vector<512xf32>
    %96 = vector.shape_cast %95 : vector<512xf32> to vector<1x512xf32>
    %97 = vector.broadcast %96 : vector<1x512xf32> to vector<8x512xf32>
    %98 = arith.mulf %92, %97 : vector<8x512xf32>
    %99 = vector.extract_strided_slice %93 {offsets = [1, 0], sizes = [1, 512], strides = [1, 1]} : vector<2x512xf32> to vector<1x512xf32>
    %100 = vector.shape_cast %99 : vector<1x512xf32> to vector<512xf32>
    %101 = vector.shape_cast %100 : vector<512xf32> to vector<1x512xf32>
    %102 = vector.broadcast %101 : vector<1x512xf32> to vector<8x512xf32>
    %103 = arith.addf %98, %102 : vector<8x512xf32>
    %cst_21 = arith.constant 0.000000e+00 : f32
    %104 = vector.broadcast %cst_21 : f32 to vector<8x512xf32>
    %105 = arith.maximumf %103, %104 : vector<8x512xf32>
    %106 = vector.shape_cast %105 : vector<8x512xf32> to vector<2x2x2x512xf32>
    %c0_22 = arith.constant 0 : index
    %c0_23 = arith.constant 0 : index
    %c0_24 = arith.constant 0 : index
    %c0_25 = arith.constant 0 : index
    %107 = vector.load %arg7[%c0_22, %c0_23, %c0_24, %c0_25] : memref<2x2x2x512xf32, #tpu.memory_space<vmem>>, vector<2x2x2x512xf32>
    tpu.vector_store %arg7[%c0_22, %c0_23, %c0_24, %c0_25], %106 {strides = array<i32>} : memref<2x2x2x512xf32, #tpu.memory_space<vmem>>, vector<2x2x2x512xf32>,
    return
  }
  func.func @transform_0(%arg0: i32, %arg1: i32) -> (i32, i32, i32, i32, i32) {
    %c0_i32 = arith.constant 0 : i32
    %c0_i32_0 = arith.constant 0 : i32
    %c0_i32_1 = arith.constant 0 : i32
    %c0_i32_2 = arith.constant 0 : i32
    %c0_i32_3 = arith.constant 0 : i32
    return %c0_i32, %arg0, %c0_i32_0, %c0_i32_1, %c0_i32_2 : i32, i32, i32, i32, i32
  }
  func.func @transform_1(%arg0: i32, %arg1: i32) -> (i32, i32) {
    %c0_i32 = arith.constant 0 : i32
    %c0_i32_0 = arith.constant 0 : i32
    %c0_i32_1 = arith.constant 0 : i32
    return %c0_i32, %c0_i32_0 : i32, i32
  }
  func.func @transform_2(%arg0: i32, %arg1: i32) -> (i32, i32) {
    %c0_i32 = arith.constant 0 : i32
    %c0_i32_0 = arith.constant 0 : i32
    %c0_i32_1 = arith.constant 0 : i32
    return %c0_i32, %c0_i32_0 : i32, i32
  }
  func.func @transform_3(%arg0: i32, %arg1: i32) -> (i32, i32) {
    %c0_i32 = arith.constant 0 : i32
    %c0_i32_0 = arith.constant 0 : i32
    %c0_i32_1 = arith.constant 0 : i32
    return %c0_i32, %c0_i32_0 : i32, i32
  }
  func.func @transform_4(%arg0: i32, %arg1: i32) -> (i32, i32) {
    %c0_i32 = arith.constant 0 : i32
    %c0_i32_0 = arith.constant 0 : i32
    %c0_i32_1 = arith.constant 0 : i32
    return %c0_i32, %c0_i32_0 : i32, i32
  }
  func.func @transform_5(%arg0: i32, %arg1: i32) -> (i32, i32, i32, i32) {
    %c0_i32 = arith.constant 0 : i32
    %c0_i32_0 = arith.constant 0 : i32
    %c0_i32_1 = arith.constant 0 : i32
    return %arg0, %arg1, %c0_i32, %c0_i32_0 : i32, i32, i32, i32
  }
}

</mosaic_0001>

<llo_original>
// kernel: forward.12
$region0: #{forward.12}
  #allocation0 [shape = 'u32[]', space=smem, size = 0x4, offset = 0x4, fixed_abs, tag = 'smem constant byte address 0x4 - core index']
  #allocation1 [shape = 'u32[144,128]{1,0:T(1,128)}', space=vmem, size = 0x12000, scoped, tag = 'internal scratch']
  %s0 = inlined_call_operand.vmem [shape: f32[128,27], index: 0, kind: input, shape index: {}]
  %s1 = inlined_call_operand.vmem [shape: bf16[27,32], index: 1, kind: input, shape index: {}]
  %s2 = inlined_call_operand.vmem [shape: f32[2,32], index: 2, kind: input, shape index: {}]
  %s3 = inlined_call_operand.vmem [shape: f32[128,32], index: 3, kind: output, shape index: {}]
  %s4 = sld [smem:[#allocation0]]
  $region22: #{forward.12} parent=0
    _
  %s6 = ssub.s32 1, %s4
  %s7 = scalar_select 0, %s6, %s4
  // Predicated region
  $region2: #{forward.12} parent=0 // pred_check
    _
  $region3: #{forward.12} parent=0 // pred_check_branch
    %9 = sbr.rel (0) target = $region5
  $region4: #{forward.12} parent=0 // pred_region
    _
  $region5: #{forward.12} parent=0 // pred_fallthru
    _
  // Predicated region
  $region6: #{forward.12} parent=0 // pred_check
    _
  $region7: #{forward.12} parent=0 // pred_check_branch
    %11 = sbr.rel (0) target = $region9
  $region8: #{forward.12} parent=0 // pred_region
    _
  $region9: #{forward.12} parent=0 // pred_fallthru
    _
  // Predicated region
  $region10: #{forward.12} parent=0 // pred_check
    _
  $region11: #{forward.12} parent=0 // pred_check_branch
    %13 = sbr.rel (0) target = $region13
  $region12: #{forward.12} parent=0 // pred_region
    _
  $region13: #{forward.12} parent=0 // pred_fallthru
    _
  %v15 = vld [vmem:[%s0] sm:$0xff]
  %v16 = vld [vmem:[%s0 + $0x8] sm:$0xff]
  %v17 = vld [vmem:[%s0 + $0x10] sm:$0xff]
  %v18 = vld [vmem:[%s0 + $0x18] sm:$0xff]
  %v19 = vld [vmem:[%s0 + $0x20] sm:$0xff]
  %v20 = vld [vmem:[%s0 + $0x28] sm:$0xff]
  %v21 = vld [vmem:[%s0 + $0x30] sm:$0xff]
  %v22 = vld [vmem:[%s0 + $0x38] sm:$0xff]
  %v23 = vld [vmem:[%s0 + $0x40] sm:$0xff]
  %v24 = vld [vmem:[%s0 + $0x48] sm:$0xff]
  %v25 = vld [vmem:[%s0 + $0x50] sm:$0xff]
  %v26 = vld [vmem:[%s0 + $0x58] sm:$0xff]
  %v27 = vld [vmem:[%s0 + $0x60] sm:$0xff]
  %v28 = vld [vmem:[%s0 + $0x68] sm:$0xff]
  %v29 = vld [vmem:[%s0 + $0x70] sm:$0xff]
  %v30 = vld [vmem:[%s0 + $0x78] sm:$0xff]
  %v31 = vpack.c.bf16 %v16, %v15
  %v32 = vpack.c.bf16 %v18, %v17
  %v33 = vpack.c.bf16 %v20, %v19
  %v34 = vpack.c.bf16 %v22, %v21
  %v35 = vpack.c.bf16 %v24, %v23
  %v36 = vpack.c.bf16 %v26, %v25
  %v37 = vpack.c.bf16 %v28, %v27
  %v38 = vpack.c.bf16 %v30, %v29
  %v39 = vld [vmem:[%s1] sm:$0xf]
  %v40 = vld [vmem:[%s1 + $0x4] sm:$0xf]
  %v41 = vld [vmem:[%s1 + $0x8] sm:$0xf]
  %v42 = vld [vmem:[%s1 + $0xc] sm:$0x3]
  %v47 = vunpack.c.l.b16 %v39
  %v48 = vunpack.c.l.b16 %v40
  %v49 = vunpack.c.l.b16 %v41
  %v50 = vunpack.c.l.b16 %v42
  %v51 = vpack.c.b16 %v48, %v47
  %v52 = vpack.c.b16 %v50, %v49
  %vm54 = vcmask 220160
  %v56 = vsel %vm54, %v31, 0
  %v59 = vsel %vm54, %v32, 0
  %v62 = vsel %vm54, %v33, 0
  %v65 = vsel %vm54, %v34, 0
  %v68 = vsel %vm54, %v35, 0
  %v71 = vsel %vm54, %v36, 0
  %v74 = vsel %vm54, %v37, 0
  %v77 = vsel %vm54, %v38, 0
  %vm79 = vcmask 1044480
  %vm80 = vcmask 1045504
  %v81 = vsel %vm79, 4294967295, 65535
  %v82 = vsel %vm80, %v81, 0
  %v84 = vand.u32 %v52, %v82
  %86 = vmatprep.subr.bf16.mxu0 0
  %87 = vmatpush1.bf16.msra.mxu0 %v51
  %88 = vmatprep.subr.bf16.mxu0 0
  %89 = vmatpush1.bf16.msra.mxu0 %v84
  %90 = vmatprep.subr.bf16.mxu0 0
  %91 = vmatpush1.bf16.msra.mxu0 0
  %92 = vmatprep.subr.bf16.mxu0 0
  %93 = vmatpush1.bf16.msra.mxu0 0
  %94 = vmatprep.subr.bf16.mxu0 0
  %95 = vmatpush1.bf16.msra.mxu0 0
  %96 = vmatprep.subr.bf16.mxu0 0
  %97 = vmatpush1.bf16.msra.mxu0 0
  %98 = vmatprep.subr.bf16.mxu0 0
  %99 = vmatpush1.bf16.msra.mxu0 0
  %100 = vmatprep.subr.bf16.mxu0 0
  %101 = vmatpush1.bf16.msra.mxu0 0
  %102 = vmatprep.subr.bf16.mxu0 0
  %103 = vmatpush1.bf16.msra.mxu0 0
  %104 = vmatprep.subr.bf16.mxu0 0
  %105 = vmatpush1.bf16.msra.mxu0 0
  %106 = vmatprep.subr.bf16.mxu0 0
  %107 = vmatpush1.bf16.msra.mxu0 0
  %108 = vmatprep.subr.bf16.mxu0 0
  %109 = vmatpush1.bf16.msra.mxu0 0
  %110 = vmatprep.subr.bf16.mxu0 0
  %111 = vmatpush1.bf16.msra.mxu0 0
  %112 = vmatprep.subr.bf16.mxu0 0
  %113 = vmatpush1.bf16.msra.mxu0 0
  %114 = vmatprep.subr.bf16.mxu0 0
  %115 = vmatpush1.bf16.msra.mxu0 0
  %116 = vmatprep.subr.bf16.mxu0 0
  %117 = vmatpush1.bf16.msra.mxu0 0
  %118 = vmatprep.mubr.bf16.mxu0 0
  %119 = vmatmul.mubr.bf16.gmra.mrb[0].mxu0 %v56
  %v120 = vpop.f32.mrb[0].mxu0
  %v121 = vadd.f32 0.0, %v120
  %v122 = vpop.f32.mrb[0].mxu0
  %v123 = vpop.f32.mrb[0].mxu0
  %v124 = vadd.f32 0.0, %v123
  %v125 = vpop.f32.mrb[0].mxu0
  %126 = vmatprep.mubr.bf16.mxu0 0
  %127 = vmatmul.mubr.bf16.gmra.mrb[0].mxu0 %v59
  %v128 = vpop.f32.mrb[0].mxu0
  %v129 = vadd.f32 0.0, %v128
  %v130 = vpop.f32.mrb[0].mxu0
  %v131 = vpop.f32.mrb[0].mxu0
  %v132 = vadd.f32 0.0, %v131
  %v133 = vpop.f32.mrb[0].mxu0
  %134 = vmatprep.mubr.bf16.mxu0 0
  %135 = vmatmul.mubr.bf16.gmra.mrb[0].mxu0 %v62
  %v136 = vpop.f32.mrb[0].mxu0
  %v137 = vadd.f32 0.0, %v136
  %v138 = vpop.f32.mrb[0].mxu0
  %v139 = vpop.f32.mrb[0].mxu0
  %v140 = vadd.f32 0.0, %v139
  %v141 = vpop.f32.mrb[0].mxu0
  %142 = vmatprep.mubr.bf16.mxu0 0
  %143 = vmatmul.mubr.bf16.gmra.mrb[0].mxu0 %v65
  %v144 = vpop.f32.mrb[0].mxu0
  %v145 = vadd.f32 0.0, %v144
  %v146 = vpop.f32.mrb[0].mxu0
  %v147 = vpop.f32.mrb[0].mxu0
  %v148 = vadd.f32 0.0, %v147
  %v149 = vpop.f32.mrb[0].mxu0
  %150 = vmatprep.mubr.bf16.mxu0 0
  %151 = vmatmul.mubr.bf16.gmra.mrb[0].mxu0 %v68
  %v152 = vpop.f32.mrb[0].mxu0
  %v153 = vadd.f32 0.0, %v152
  %v154 = vpop.f32.mrb[0].mxu0
  %v155 = vpop.f32.mrb[0].mxu0
  %v156 = vadd.f32 0.0, %v155
  %v157 = vpop.f32.mrb[0].mxu0
  %158 = vmatprep.mubr.bf16.mxu0 0
  %159 = vmatmul.mubr.bf16.gmra.mrb[0].mxu0 %v71
  %v160 = vpop.f32.mrb[0].mxu0
  %v161 = vadd.f32 0.0, %v160
  %v162 = vpop.f32.mrb[0].mxu0
  %v163 = vpop.f32.mrb[0].mxu0
  %v164 = vadd.f32 0.0, %v163
  %v165 = vpop.f32.mrb[0].mxu0
  %166 = vmatprep.mubr.bf16.mxu0 0
  %167 = vmatmul.mubr.bf16.gmra.mrb[0].mxu0 %v74
  %v168 = vpop.f32.mrb[0].mxu0
  %v169 = vadd.f32 0.0, %v168
  %v170 = vpop.f32.mrb[0].mxu0
  %v171 = vpop.f32.mrb[0].mxu0
  %v172 = vadd.f32 0.0, %v171
  %v173 = vpop.f32.mrb[0].mxu0
  %174 = vmatprep.mubr.bf16.mxu0 0
  %175 = vmatmul.mubr.bf16.gmra.mrb[0].mxu0 %v77
  %v176 = vpop.f32.mrb[0].mxu0
  %v177 = vadd.f32 0.0, %v176
  %v178 = vpop.f32.mrb[0].mxu0
  %v179 = vpop.f32.mrb[0].mxu0
  %v180 = vadd.f32 0.0, %v179
  %v181 = vpop.f32.mrb[0].mxu0
  %182 = vdwg.mxu0
  %v183 = vld [vmem:[%s2] sm:$0x3]
  %v184 = vlaneseq
  %v185 = vshrl.u32 %v184, 7
  %v186 = vsub.s32 0, %v185
  %v187 = vrot.slane %v183, %v186
  %v188 = vmul.f32 %v121, %v187
  %v189 = vmul.f32 %v124, %v187
  %v190 = vmul.f32 %v129, %v187
  %v191 = vmul.f32 %v132, %v187
  %v192 = vmul.f32 %v137, %v187
  %v193 = vmul.f32 %v140, %v187
  %v194 = vmul.f32 %v145, %v187
  %v195 = vmul.f32 %v148, %v187
  %v196 = vmul.f32 %v153, %v187
  %v197 = vmul.f32 %v156, %v187
  %v198 = vmul.f32 %v161, %v187
  %v199 = vmul.f32 %v164, %v187
  %v200 = vmul.f32 %v169, %v187
  %v201 = vmul.f32 %v172, %v187
  %v202 = vmul.f32 %v177, %v187
  %v203 = vmul.f32 %v180, %v187
  %v204 = vlaneseq
  %v205 = vshrl.u32 %v204, 7
  %v206 = vsub.s32 1, %v205
  %v207 = vrot.slane %v183, %v206
  %v208 = vadd.f32 %v188, %v207
  %v209 = vadd.f32 %v189, %v207
  %v210 = vadd.f32 %v190, %v207
  %v211 = vadd.f32 %v191, %v207
  %v212 = vadd.f32 %v192, %v207
  %v213 = vadd.f32 %v193, %v207
  %v214 = vadd.f32 %v194, %v207
  %v215 = vadd.f32 %v195, %v207
  %v216 = vadd.f32 %v196, %v207
  %v217 = vadd.f32 %v197, %v207
  %v218 = vadd.f32 %v198, %v207
  %v219 = vadd.f32 %v199, %v207
  %v220 = vadd.f32 %v200, %v207
  %v221 = vadd.f32 %v201, %v207
  %v222 = vadd.f32 %v202, %v207
  %v223 = vadd.f32 %v203, %v207
  %v224 = vmax.f32 %v208, 0.0
  %v225 = vmax.f32 %v209, 0.0
  %v226 = vmax.f32 %v210, 0.0
  %v227 = vmax.f32 %v211, 0.0
  %v228 = vmax.f32 %v212, 0.0
  %v229 = vmax.f32 %v213, 0.0
  %v230 = vmax.f32 %v214, 0.0
  %v231 = vmax.f32 %v215, 0.0
  %v232 = vmax.f32 %v216, 0.0
  %v233 = vmax.f32 %v217, 0.0
  %v234 = vmax.f32 %v218, 0.0
  %v235 = vmax.f32 %v219, 0.0
  %v236 = vmax.f32 %v220, 0.0
  %v237 = vmax.f32 %v221, 0.0
  %v238 = vmax.f32 %v222, 0.0
  %v239 = vmax.f32 %v223, 0.0
  %vm240 = vcmask 261120
  %241 = vst.msk [vmem:[%s3] sm:$0xff] %vm240, %v224
  %242 = vst.msk [vmem:[%s3 + $0x8] sm:$0xff] %vm240, %v225
  %243 = vst.msk [vmem:[%s3 + $0x10] sm:$0xff] %vm240, %v226
  %244 = vst.msk [vmem:[%s3 + $0x18] sm:$0xff] %vm240, %v227
  %245 = vst.msk [vmem:[%s3 + $0x20] sm:$0xff] %vm240, %v228
  %246 = vst.msk [vmem:[%s3 + $0x28] sm:$0xff] %vm240, %v229
  %247 = vst.msk [vmem:[%s3 + $0x30] sm:$0xff] %vm240, %v230
  %248 = vst.msk [vmem:[%s3 + $0x38] sm:$0xff] %vm240, %v231
  %249 = vst.msk [vmem:[%s3 + $0x40] sm:$0xff] %vm240, %v232
  %250 = vst.msk [vmem:[%s3 + $0x48] sm:$0xff] %vm240, %v233
  %251 = vst.msk [vmem:[%s3 + $0x50] sm:$0xff] %vm240, %v234
  %252 = vst.msk [vmem:[%s3 + $0x58] sm:$0xff] %vm240, %v235
  %253 = vst.msk [vmem:[%s3 + $0x60] sm:$0xff] %vm240, %v236
  %254 = vst.msk [vmem:[%s3 + $0x68] sm:$0xff] %vm240, %v237
  %255 = vst.msk [vmem:[%s3 + $0x70] sm:$0xff] %vm240, %v238
  %256 = vst.msk [vmem:[%s3 + $0x78] sm:$0xff] %vm240, %v239
  // Predicated region
  $region14: #{forward.12} parent=0 // pred_check
    _
  $region15: #{forward.12} parent=0 // pred_check_branch
    %258 = sbr.rel (0) target = $region17
  $region16: #{forward.12} parent=0 // pred_region
    _
  $region17: #{forward.12} parent=0 // pred_fallthru
    _
  // Predicated region
  $region18: #{forward.12} parent=0 // pred_check
    _
  $region19: #{forward.12} parent=0 // pred_check_branch
    %260 = sbr.rel (0) target = $region21
  $region20: #{forward.12} parent=0 // pred_region
    _
  $region21: #{forward.12} parent=0 // pred_fallthru
    _

// kernel: forward.13
$region0: #{forward.13}
  #allocation0 [shape = 'u32[]', space=smem, size = 0x4, offset = 0x4, fixed_abs, tag = 'smem constant byte address 0x4 - core index']
  #allocation1 [shape = 'u32[144,128]{1,0:T(1,128)}', space=vmem, size = 0x12000, scoped, tag = 'internal scratch']
  %s0 = inlined_call_operand.vmem [shape: f32[1,2,10,10,32], index: 0, kind: input, shape index: {}]
  %s1 = inlined_call_operand.vmem [shape: f32[9,32], index: 1, kind: input, shape index: {}]
  %s2 = inlined_call_operand.vmem [shape: f32[2,32], index: 2, kind: input, shape index: {}]
  %s3 = inlined_call_operand.vmem [shape: bf16[32,64], index: 3, kind: input, shape index: {}]
  %s4 = inlined_call_operand.vmem [shape: f32[2,64], index: 4, kind: input, shape index: {}]
  %s5 = inlined_call_operand.vmem [shape: f32[2,8,8,64], index: 5, kind: output, shape index: {}]
  %s6 = sld [smem:[#allocation0]]
  $region30: #{forward.13} parent=0
    _
  %s8 = ssub.s32 1, %s6
  %s9 = scalar_select 0, %s8, %s6
  // Predicated region
  $region2: #{forward.13} parent=0 // pred_check
    _
  $region3: #{forward.13} parent=0 // pred_check_branch
    %11 = sbr.rel (0) target = $region5
  $region4: #{forward.13} parent=0 // pred_region
    _
  $region5: #{forward.13} parent=0 // pred_fallthru
    _
  // Predicated region
  $region6: #{forward.13} parent=0 // pred_check
    _
  $region7: #{forward.13} parent=0 // pred_check_branch
    %13 = sbr.rel (0) target = $region9
  $region8: #{forward.13} parent=0 // pred_region
    _
  $region9: #{forward.13} parent=0 // pred_fallthru
    _
  // Predicated region
  $region10: #{forward.13} parent=0 // pred_check
    _
  $region11: #{forward.13} parent=0 // pred_check_branch
    %15 = sbr.rel (0) target = $region13
  $region12: #{forward.13} parent=0 // pred_region
    _
  $region13: #{forward.13} parent=0 // pred_fallthru
    _
  // Predicated region
  $region14: #{forward.13} parent=0 // pred_check
    _
  $region15: #{forward.13} parent=0 // pred_check_branch
    %17 = sbr.rel (0) target = $region17
  $region16: #{forward.13} parent=0 // pred_region
    _
  $region17: #{forward.13} parent=0 // pred_fallthru
    _
  // Predicated region
  $region18: #{forward.13} parent=0 // pred_check
    _
  $region19: #{forward.13} parent=0 // pred_check_branch
    %19 = sbr.rel (0) target = $region21
  $region20: #{forward.13} parent=0 // pred_region
    _
  $region21: #{forward.13} parent=0 // pred_fallthru
    _
  %s21 = smul.u32 0, 8
  %v22 = vld [vmem:[%s1] sm:$0xff]
  %v23 = vld [vmem:[%s1 + $0x8] sm:$0x1]
  %v24 = vld [vmem:[%s2] sm:$0x3]
  %s25 = smul.u32 %s21, 16
  %s26 = scalar_lea.vmem %s0, %s25
  %v27 = vld [vmem:[%s26] sm:$0xff]
  %v28 = vld [vmem:[%s26 + $0x8] sm:$0x3]
  %v29 = vld [vmem:[%s26 + $0x10] sm:$0xff]
  %v30 = vld [vmem:[%s26 + $0x18] sm:$0x3]
  %v31 = vld [vmem:[%s26 + $0x20] sm:$0xff]
  %v32 = vld [vmem:[%s26 + $0x28] sm:$0x3]
  %v33 = vld [vmem:[%s26 + $0x30] sm:$0xff]
  %v34 = vld [vmem:[%s26 + $0x38] sm:$0x3]
  %v35 = vld [vmem:[%s26 + $0x40] sm:$0xff]
  %v36 = vld [vmem:[%s26 + $0x48] sm:$0x3]
  %v37 = vld [vmem:[%s26 + $0x50] sm:$0xff]
  %v38 = vld [vmem:[%s26 + $0x58] sm:$0x3]
  %v39 = vld [vmem:[%s26 + $0x60] sm:$0xff]
  %v40 = vld [vmem:[%s26 + $0x68] sm:$0x3]
  %v41 = vld [vmem:[%s26 + $0x70] sm:$0xff]
  %v42 = vld [vmem:[%s26 + $0x78] sm:$0x3]
  %v43 = vld [vmem:[%s26 + $0xa0] sm:$0xff]
  %v44 = vld [vmem:[%s26 + $0xa8] sm:$0x3]
  %v45 = vld [vmem:[%s26 + $0xb0] sm:$0xff]
  %v46 = vld [vmem:[%s26 + $0xb8] sm:$0x3]
  %v47 = vld [vmem:[%s26 + $0xc0] sm:$0xff]
  %v48 = vld [vmem:[%s26 + $0xc8] sm:$0x3]
  %v49 = vld [vmem:[%s26 + $0xd0] sm:$0xff]
  %v50 = vld [vmem:[%s26 + $0xd8] sm:$0x3]
  %v51 = vld [vmem:[%s26 + $0xe0] sm:$0xff]
  %v52 = vld [vmem:[%s26 + $0xe8] sm:$0x3]
  %v53 = vld [vmem:[%s26 + $0xf0] sm:$0xff]
  %v54 = vld [vmem:[%s26 + $0xf8] sm:$0x3]
  %v55 = vld [vmem:[%s26 + $0x100] sm:$0xff]
  %v56 = vld [vmem:[%s26 + $0x108] sm:$0x3]
  %v57 = vld [vmem:[%s26 + $0x110] sm:$0xff]
  %v58 = vld [vmem:[%s26 + $0x118] sm:$0x3]
  %v59 = vlaneseq
  %v60 = vshrl.u32 %v59, 7
  %v61 = vsub.s32 0, %v60
  %v62 = vrot.slane %v22, %v61
  %v63 = vmul.f32 %v27, %v62
  %v64 = vmul.f32 %v29, %v62
  %v65 = vmul.f32 %v31, %v62
  %v66 = vmul.f32 %v33, %v62
  %v67 = vmul.f32 %v35, %v62
  %v68 = vmul.f32 %v37, %v62
  %v69 = vmul.f32 %v39, %v62
  %v70 = vmul.f32 %v41, %v62
  %v71 = vmul.f32 %v43, %v62
  %v72 = vmul.f32 %v45, %v62
  %v73 = vmul.f32 %v47, %v62
  %v74 = vmul.f32 %v49, %v62
  %v75 = vmul.f32 %v51, %v62
  %v76 = vmul.f32 %v53, %v62
  %v77 = vmul.f32 %v55, %v62
  %v78 = vmul.f32 %v57, %v62
  %v79 = vlaneseq
  %v80 = vshrl.u32 %v79, 7
  %v81 = vsub.s32 1, %v80
  %v82 = vrot.slane %v22, %v81
  %v83 = vmul.f32 %v27, %v82
  %v84 = vmul.f32 %v28, %v82
  %v85 = vmul.f32 %v29, %v82
  %v86 = vmul.f32 %v30, %v82
  %v87 = vmul.f32 %v31, %v82
  %v88 = vmul.f32 %v32, %v82
  %v89 = vmul.f32 %v33, %v82
  %v90 = vmul.f32 %v34, %v82
  %v91 = vmul.f32 %v35, %v82
  %v92 = vmul.f32 %v36, %v82
  %v93 = vmul.f32 %v37, %v82
  %v94 = vmul.f32 %v38, %v82
  %v95 = vmul.f32 %v39, %v82
  %v96 = vmul.f32 %v40, %v82
  %v97 = vmul.f32 %v41, %v82
  %v98 = vmul.f32 %v42, %v82
  %v99 = vmul.f32 %v43, %v82
  %v100 = vmul.f32 %v44, %v82
  %v101 = vmul.f32 %v45, %v82
  %v102 = vmul.f32 %v46, %v82
  %v103 = vmul.f32 %v47, %v82
  %v104 = vmul.f32 %v48, %v82
  %v105 = vmul.f32 %v49, %v82
  %v106 = vmul.f32 %v50, %v82
  %v107 = vmul.f32 %v51, %v82
  %v108 = vmul.f32 %v52, %v82
  %v109 = vmul.f32 %v53, %v82
  %v110 = vmul.f32 %v54, %v82
  %v111 = vmul.f32 %v55, %v82
  %v112 = vmul.f32 %v56, %v82
  %v113 = vmul.f32 %v57, %v82
  %v114 = vmul.f32 %v58, %v82
  %vm147 = vcmask 1046528
  %v148 = vrot.slane %v83, 1
  %v149 = vrot.slane %v84, 1
  %v150 = vsel %vm147, %v148, %v149
  %v151 = vrot.slane %v85, 1
  %v152 = vrot.slane %v86, 1
  %v153 = vsel %vm147, %v151, %v152
  %v154 = vrot.slane %v87, 1
  %v155 = vrot.slane %v88, 1
  %v156 = vsel %vm147, %v154, %v155
  %v157 = vrot.slane %v89, 1
  %v158 = vrot.slane %v90, 1
  %v159 = vsel %vm147, %v157, %v158
  %v160 = vrot.slane %v91, 1
  %v161 = vrot.slane %v92, 1
  %v162 = vsel %vm147, %v160, %v161
  %v163 = vrot.slane %v93, 1
  %v164 = vrot.slane %v94, 1
  %v165 = vsel %vm147, %v163, %v164
  %v166 = vrot.slane %v95, 1
  %v167 = vrot.slane %v96, 1
  %v168 = vsel %vm147, %v166, %v167
  %v169 = vrot.slane %v97, 1
  %v170 = vrot.slane %v98, 1
  %v171 = vsel %vm147, %v169, %v170
  %v172 = vrot.slane %v99, 1
  %v173 = vrot.slane %v100, 1
  %v174 = vsel %vm147, %v172, %v173
  %v175 = vrot.slane %v101, 1
  %v176 = vrot.slane %v102, 1
  %v177 = vsel %vm147, %v175, %v176
  %v178 = vrot.slane %v103, 1
  %v179 = vrot.slane %v104, 1
  %v180 = vsel %vm147, %v178, %v179
  %v181 = vrot.slane %v105, 1
  %v182 = vrot.slane %v106, 1
  %v183 = vsel %vm147, %v181, %v182
  %v184 = vrot.slane %v107, 1
  %v185 = vrot.slane %v108, 1
  %v186 = vsel %vm147, %v184, %v185
  %v187 = vrot.slane %v109, 1
  %v188 = vrot.slane %v110, 1
  %v189 = vsel %vm147, %v187, %v188
  %v190 = vrot.slane %v111, 1
  %v191 = vrot.slane %v112, 1
  %v192 = vsel %vm147, %v190, %v191
  %v193 = vrot.slane %v113, 1
  %v194 = vrot.slane %v114, 1
  %v195 = vsel %vm147, %v193, %v194
  %v212 = vadd.f32 %v63, %v150
  %v213 = vadd.f32 %v64, %v153
  %v214 = vadd.f32 %v65, %v156
  %v215 = vadd.f32 %v66, %v159
  %v216 = vadd.f32 %v67, %v162
  %v217 = vadd.f32 %v68, %v165
  %v218 = vadd.f32 %v69, %v168
  %v219 = vadd.f32 %v70, %v171
  %v220 = vadd.f32 %v71, %v174
  %v221 = vadd.f32 %v72, %v177
  %v222 = vadd.f32 %v73, %v180
  %v223 = vadd.f32 %v74, %v183
  %v224 = vadd.f32 %v75, %v186
  %v225 = vadd.f32 %v76, %v189
  %v226 = vadd.f32 %v77, %v192
  %v227 = vadd.f32 %v78, %v195
  %v228 = vlaneseq
  %v229 = vshrl.u32 %v228, 7
  %v230 = vsub.s32 2, %v229
  %v231 = vrot.slane %v22, %v230
  %v232 = vmul.f32 %v27, %v231
  %v233 = vmul.f32 %v28, %v231
  %v234 = vmul.f32 %v29, %v231
  %v235 = vmul.f32 %v30, %v231
  %v236 = vmul.f32 %v31, %v231
  %v237 = vmul.f32 %v32, %v231
  %v238 = vmul.f32 %v33, %v231
  %v239 = vmul.f32 %v34, %v231
  %v240 = vmul.f32 %v35, %v231
  %v241 = vmul.f32 %v36, %v231
  %v242 = vmul.f32 %v37, %v231
  %v243 = vmul.f32 %v38, %v231
  %v244 = vmul.f32 %v39, %v231
  %v245 = vmul.f32 %v40, %v231
  %v246 = vmul.f32 %v41, %v231
  %v247 = vmul.f32 %v42, %v231
  %v248 = vmul.f32 %v43, %v231
  %v249 = vmul.f32 %v44, %v231
  %v250 = vmul.f32 %v45, %v231
  %v251 = vmul.f32 %v46, %v231
  %v252 = vmul.f32 %v47, %v231
  %v253 = vmul.f32 %v48, %v231
  %v254 = vmul.f32 %v49, %v231
  %v255 = vmul.f32 %v50, %v231
  %v256 = vmul.f32 %v51, %v231
  %v257 = vmul.f32 %v52, %v231
  %v258 = vmul.f32 %v53, %v231
  %v259 = vmul.f32 %v54, %v231
  %v260 = vmul.f32 %v55, %v231
  %v261 = vmul.f32 %v56, %v231
  %v262 = vmul.f32 %v57, %v231
  %v263 = vmul.f32 %v58, %v231
  %vm296 = vcmask 1045504
  %v297 = vrot.slane %v232, 2
  %v298 = vrot.slane %v233, 2
  %v299 = vsel %vm296, %v297, %v298
  %v300 = vrot.slane %v234, 2
  %v301 = vrot.slane %v235, 2
  %v302 = vsel %vm296, %v300, %v301
  %v303 = vrot.slane %v236, 2
  %v304 = vrot.slane %v237, 2
  %v305 = vsel %vm296, %v303, %v304
  %v306 = vrot.slane %v238, 2
  %v307 = vrot.slane %v239, 2
  %v308 = vsel %vm296, %v306, %v307
  %v309 = vrot.slane %v240, 2
  %v310 = vrot.slane %v241, 2
  %v311 = vsel %vm296, %v309, %v310
  %v312 = vrot.slane %v242, 2
  %v313 = vrot.slane %v243, 2
  %v314 = vsel %vm296, %v312, %v313
  %v315 = vrot.slane %v244, 2
  %v316 = vrot.slane %v245, 2
  %v317 = vsel %vm296, %v315, %v316
  %v318 = vrot.slane %v246, 2
  %v319 = vrot.slane %v247, 2
  %v320 = vsel %vm296, %v318, %v319
  %v321 = vrot.slane %v248, 2
  %v322 = vrot.slane %v249, 2
  %v323 = vsel %vm296, %v321, %v322
  %v324 = vrot.slane %v250, 2
  %v325 = vrot.slane %v251, 2
  %v326 = vsel %vm296, %v324, %v325
  %v327 = vrot.slane %v252, 2
  %v328 = vrot.slane %v253, 2
  %v329 = vsel %vm296, %v327, %v328
  %v330 = vrot.slane %v254, 2
  %v331 = vrot.slane %v255, 2
  %v332 = vsel %vm296, %v330, %v331
  %v333 = vrot.slane %v256, 2
  %v334 = vrot.slane %v257, 2
  %v335 = vsel %vm296, %v333, %v334
  %v336 = vrot.slane %v258, 2
  %v337 = vrot.slane %v259, 2
  %v338 = vsel %vm296, %v336, %v337
  %v339 = vrot.slane %v260, 2
  %v340 = vrot.slane %v261, 2
  %v341 = vsel %vm296, %v339, %v340
  %v342 = vrot.slane %v262, 2
  %v343 = vrot.slane %v263, 2
  %v344 = vsel %vm296, %v342, %v343
  %v361 = vadd.f32 %v212, %v299
  %v362 = vadd.f32 %v213, %v302
  %v363 = vadd.f32 %v214, %v305
  %v364 = vadd.f32 %v215, %v308
  %v365 = vadd.f32 %v216, %v311
  %v366 = vadd.f32 %v217, %v314
  %v367 = vadd.f32 %v218, %v317
  %v368 = vadd.f32 %v219, %v320
  %v369 = vadd.f32 %v220, %v323
  %v370 = vadd.f32 %v221, %v326
  %v371 = vadd.f32 %v222, %v329
  %v372 = vadd.f32 %v223, %v332
  %v373 = vadd.f32 %v224, %v335
  %v374 = vadd.f32 %v225, %v338
  %v375 = vadd.f32 %v226, %v341
  %v376 = vadd.f32 %v227, %v344
  %s377 = sadd.s32 %s21, 1
  %s378 = smul.u32 %s377, 16
  %s379 = scalar_lea.vmem %s0, %s378
  %v380 = vld [vmem:[%s379] sm:$0xff]
  %v381 = vld [vmem:[%s379 + $0x8] sm:$0x3]
  %v382 = vld [vmem:[%s379 + $0x10] sm:$0xff]
  %v383 = vld [vmem:[%s379 + $0x18] sm:$0x3]
  %v384 = vld [vmem:[%s379 + $0x20] sm:$0xff]
  %v385 = vld [vmem:[%s379 + $0x28] sm:$0x3]
  %v386 = vld [vmem:[%s379 + $0x30] sm:$0xff]
  %v387 = vld [vmem:[%s379 + $0x38] sm:$0x3]
  %v388 = vld [vmem:[%s379 + $0x40] sm:$0xff]
  %v389 = vld [vmem:[%s379 + $0x48] sm:$0x3]
  %v390 = vld [vmem:[%s379 + $0x50] sm:$0xff]
  %v391 = vld [vmem:[%s379 + $0x58] sm:$0x3]
  %v392 = vld [vmem:[%s379 + $0x60] sm:$0xff]
  %v393 = vld [vmem:[%s379 + $0x68] sm:$0x3]
  %v394 = vld [vmem:[%s379 + $0x70] sm:$0xff]
  %v395 = vld [vmem:[%s379 + $0x78] sm:$0x3]
  %v396 = vld [vmem:[%s379 + $0xa0] sm:$0xff]
  %v397 = vld [vmem:[%s379 + $0xa8] sm:$0x3]
  %v398 = vld [vmem:[%s379 + $0xb0] sm:$0xff]
  %v399 = vld [vmem:[%s379 + $0xb8] sm:$0x3]
  %v400 = vld [vmem:[%s379 + $0xc0] sm:$0xff]
  %v401 = vld [vmem:[%s379 + $0xc8] sm:$0x3]
  %v402 = vld [vmem:[%s379 + $0xd0] sm:$0xff]
  %v403 = vld [vmem:[%s379 + $0xd8] sm:$0x3]
  %v404 = vld [vmem:[%s379 + $0xe0] sm:$0xff]
  %v405 = vld [vmem:[%s379 + $0xe8] sm:$0x3]
  %v406 = vld [vmem:[%s379 + $0xf0] sm:$0xff]
  %v407 = vld [vmem:[%s379 + $0xf8] sm:$0x3]
  %v408 = vld [vmem:[%s379 + $0x100] sm:$0xff]
  %v409 = vld [vmem:[%s379 + $0x108] sm:$0x3]
  %v410 = vld [vmem:[%s379 + $0x110] sm:$0xff]
  %v411 = vld [vmem:[%s379 + $0x118] sm:$0x3]
  %v412 = vlaneseq
  %v413 = vshrl.u32 %v412, 7
  %v414 = vsub.s32 3, %v413
  %v415 = vrot.slane %v22, %v414
  %v416 = vmul.f32 %v380, %v415
  %v417 = vmul.f32 %v382, %v415
  %v418 = vmul.f32 %v384, %v415
  %v419 = vmul.f32 %v386, %v415
  %v420 = vmul.f32 %v388, %v415
  %v421 = vmul.f32 %v390, %v415
  %v422 = vmul.f32 %v392, %v415
  %v423 = vmul.f32 %v394, %v415
  %v424 = vmul.f32 %v396, %v415
  %v425 = vmul.f32 %v398, %v415
  %v426 = vmul.f32 %v400, %v415
  %v427 = vmul.f32 %v402, %v415
  %v428 = vmul.f32 %v404, %v415
  %v429 = vmul.f32 %v406, %v415
  %v430 = vmul.f32 %v408, %v415
  %v431 = vmul.f32 %v410, %v415
  %v432 = vadd.f32 %v361, %v416
  %v433 = vadd.f32 %v362, %v417
  %v434 = vadd.f32 %v363, %v418
  %v435 = vadd.f32 %v364, %v419
  %v436 = vadd.f32 %v365, %v420
  %v437 = vadd.f32 %v366, %v421
  %v438 = vadd.f32 %v367, %v422
  %v439 = vadd.f32 %v368, %v423
  %v440 = vadd.f32 %v369, %v424
  %v441 = vadd.f32 %v370, %v425
  %v442 = vadd.f32 %v371, %v426
  %v443 = vadd.f32 %v372, %v427
  %v444 = vadd.f32 %v373, %v428
  %v445 = vadd.f32 %v374, %v429
  %v446 = vadd.f32 %v375, %v430
  %v447 = vadd.f32 %v376, %v431
  %v448 = vlaneseq
  %v449 = vshrl.u32 %v448, 7
  %v450 = vsub.s32 4, %v449
  %v451 = vrot.slane %v22, %v450
  %v452 = vmul.f32 %v380, %v451
  %v453 = vmul.f32 %v381, %v451
  %v454 = vmul.f32 %v382, %v451
  %v455 = vmul.f32 %v383, %v451
  %v456 = vmul.f32 %v384, %v451
  %v457 = vmul.f32 %v385, %v451
  %v458 = vmul.f32 %v386, %v451
  %v459 = vmul.f32 %v387, %v451
  %v460 = vmul.f32 %v388, %v451
  %v461 = vmul.f32 %v389, %v451
  %v462 = vmul.f32 %v390, %v451
  %v463 = vmul.f32 %v391, %v451
  %v464 = vmul.f32 %v392, %v451
  %v465 = vmul.f32 %v393, %v451
  %v466 = vmul.f32 %v394, %v451
  %v467 = vmul.f32 %v395, %v451
  %v468 = vmul.f32 %v396, %v451
  %v469 = vmul.f32 %v397, %v451
  %v470 = vmul.f32 %v398, %v451
  %v471 = vmul.f32 %v399, %v451
  %v472 = vmul.f32 %v400, %v451
  %v473 = vmul.f32 %v401, %v451
  %v474 = vmul.f32 %v402, %v451
  %v475 = vmul.f32 %v403, %v451
  %v476 = vmul.f32 %v404, %v451
  %v477 = vmul.f32 %v405, %v451
  %v478 = vmul.f32 %v406, %v451
  %v479 = vmul.f32 %v407, %v451
  %v480 = vmul.f32 %v408, %v451
  %v481 = vmul.f32 %v409, %v451
  %v482 = vmul.f32 %v410, %v451
  %v483 = vmul.f32 %v411, %v451
  %v516 = vrot.slane %v452, 1
  %v517 = vrot.slane %v453, 1
  %v518 = vsel %vm147, %v516, %v517
  %v519 = vrot.slane %v454, 1
  %v520 = vrot.slane %v455, 1
  %v521 = vsel %vm147, %v519, %v520
  %v522 = vrot.slane %v456, 1
  %v523 = vrot.slane %v457, 1
  %v524 = vsel %vm147, %v522, %v523
  %v525 = vrot.slane %v458, 1
  %v526 = vrot.slane %v459, 1
  %v527 = vsel %vm147, %v525, %v526
  %v528 = vrot.slane %v460, 1
  %v529 = vrot.slane %v461, 1
  %v530 = vsel %vm147, %v528, %v529
  %v531 = vrot.slane %v462, 1
  %v532 = vrot.slane %v463, 1
  %v533 = vsel %vm147, %v531, %v532
  %v534 = vrot.slane %v464, 1
  %v535 = vrot.slane %v465, 1
  %v536 = vsel %vm147, %v534, %v535
  %v537 = vrot.slane %v466, 1
  %v538 = vrot.slane %v467, 1
  %v539 = vsel %vm147, %v537, %v538
  %v540 = vrot.slane %v468, 1
  %v541 = vrot.slane %v469, 1
  %v542 = vsel %vm147, %v540, %v541
  %v543 = vrot.slane %v470, 1
  %v544 = vrot.slane %v471, 1
  %v545 = vsel %vm147, %v543, %v544
  %v546 = vrot.slane %v472, 1
  %v547 = vrot.slane %v473, 1
  %v548 = vsel %vm147, %v546, %v547
  %v549 = vrot.slane %v474, 1
  %v550 = vrot.slane %v475, 1
  %v551 = vsel %vm147, %v549, %v550
  %v552 = vrot.slane %v476, 1
  %v553 = vrot.slane %v477, 1
  %v554 = vsel %vm147, %v552, %v553
  %v555 = vrot.slane %v478, 1
  %v556 = vrot.slane %v479, 1
  %v557 = vsel %vm147, %v555, %v556
  %v558 = vrot.slane %v480, 1
  %v559 = vrot.slane %v481, 1
  %v560 = vsel %vm147, %v558, %v559
  %v561 = vrot.slane %v482, 1
  %v562 = vrot.slane %v483, 1
  %v563 = vsel %vm147, %v561, %v562
  %v580 = vadd.f32 %v432, %v518
  %v581 = vadd.f32 %v433, %v521
  %v582 = vadd.f32 %v434, %v524
  %v583 = vadd.f32 %v435, %v527
  %v584 = vadd.f32 %v436, %v530
  %v585 = vadd.f32 %v437, %v533
  %v586 = vadd.f32 %v438, %v536
  %v587 = vadd.f32 %v439, %v539
  %v588 = vadd.f32 %v440, %v542
  %v589 = vadd.f32 %v441, %v545
  %v590 = vadd.f32 %v442, %v548
  %v591 = vadd.f32 %v443, %v551
  %v592 = vadd.f32 %v444, %v554
  %v593 = vadd.f32 %v445, %v557
  %v594 = vadd.f32 %v446, %v560
  %v595 = vadd.f32 %v447, %v563
  %v596 = vlaneseq
  %v597 = vshrl.u32 %v596, 7
  %v598 = vsub.s32 5, %v597
  %v599 = vrot.slane %v22, %v598
  %v600 = vmul.f32 %v380, %v599
  %v601 = vmul.f32 %v381, %v599
  %v602 = vmul.f32 %v382, %v599
  %v603 = vmul.f32 %v383, %v599
  %v604 = vmul.f32 %v384, %v599
  %v605 = vmul.f32 %v385, %v599
  %v606 = vmul.f32 %v386, %v599
  %v607 = vmul.f32 %v387, %v599
  %v608 = vmul.f32 %v388, %v599
  %v609 = vmul.f32 %v389, %v599
  %v610 = vmul.f32 %v390, %v599
  %v611 = vmul.f32 %v391, %v599
  %v612 = vmul.f32 %v392, %v599
  %v613 = vmul.f32 %v393, %v599
  %v614 = vmul.f32 %v394, %v599
  %v615 = vmul.f32 %v395, %v599
  %v616 = vmul.f32 %v396, %v599
  %v617 = vmul.f32 %v397, %v599
  %v618 = vmul.f32 %v398, %v599
  %v619 = vmul.f32 %v399, %v599
  %v620 = vmul.f32 %v400, %v599
  %v621 = vmul.f32 %v401, %v599
  %v622 = vmul.f32 %v402, %v599
  %v623 = vmul.f32 %v403, %v599
  %v624 = vmul.f32 %v404, %v599
  %v625 = vmul.f32 %v405, %v599
  %v626 = vmul.f32 %v406, %v599
  %v627 = vmul.f32 %v407, %v599
  %v628 = vmul.f32 %v408, %v599
  %v629 = vmul.f32 %v409, %v599
  %v630 = vmul.f32 %v410, %v599
  %v631 = vmul.f32 %v411, %v599
  %v664 = vrot.slane %v600, 2
  %v665 = vrot.slane %v601, 2
  %v666 = vsel %vm296, %v664, %v665
  %v667 = vrot.slane %v602, 2
  %v668 = vrot.slane %v603, 2
  %v669 = vsel %vm296, %v667, %v668
  %v670 = vrot.slane %v604, 2
  %v671 = vrot.slane %v605, 2
  %v672 = vsel %vm296, %v670, %v671
  %v673 = vrot.slane %v606, 2
  %v674 = vrot.slane %v607, 2
  %v675 = vsel %vm296, %v673, %v674
  %v676 = vrot.slane %v608, 2
  %v677 = vrot.slane %v609, 2
  %v678 = vsel %vm296, %v676, %v677
  %v679 = vrot.slane %v610, 2
  %v680 = vrot.slane %v611, 2
  %v681 = vsel %vm296, %v679, %v680
  %v682 = vrot.slane %v612, 2
  %v683 = vrot.slane %v613, 2
  %v684 = vsel %vm296, %v682, %v683
  %v685 = vrot.slane %v614, 2
  %v686 = vrot.slane %v615, 2
  %v687 = vsel %vm296, %v685, %v686
  %v688 = vrot.slane %v616, 2
  %v689 = vrot.slane %v617, 2
  %v690 = vsel %vm296, %v688, %v689
  %v691 = vrot.slane %v618, 2
  %v692 = vrot.slane %v619, 2
  %v693 = vsel %vm296, %v691, %v692
  %v694 = vrot.slane %v620, 2
  %v695 = vrot.slane %v621, 2
  %v696 = vsel %vm296, %v694, %v695
  %v697 = vrot.slane %v622, 2
  %v698 = vrot.slane %v623, 2
  %v699 = vsel %vm296, %v697, %v698
  %v700 = vrot.slane %v624, 2
  %v701 = vrot.slane %v625, 2
  %v702 = vsel %vm296, %v700, %v701
  %v703 = vrot.slane %v626, 2
  %v704 = vrot.slane %v627, 2
  %v705 = vsel %vm296, %v703, %v704
  %v706 = vrot.slane %v628, 2
  %v707 = vrot.slane %v629, 2
  %v708 = vsel %vm296, %v706, %v707
  %v709 = vrot.slane %v630, 2
  %v710 = vrot.slane %v631, 2
  %v711 = vsel %vm296, %v709, %v710
  %v728 = vadd.f32 %v580, %v666
  %v729 = vadd.f32 %v581, %v669
  %v730 = vadd.f32 %v582, %v672
  %v731 = vadd.f32 %v583, %v675
  %v732 = vadd.f32 %v584, %v678
  %v733 = vadd.f32 %v585, %v681
  %v734 = vadd.f32 %v586, %v684
  %v735 = vadd.f32 %v587, %v687
  %v736 = vadd.f32 %v588, %v690
  %v737 = vadd.f32 %v589, %v693
  %v738 = vadd.f32 %v590, %v696
  %v739 = vadd.f32 %v591, %v699
  %v740 = vadd.f32 %v592, %v702
  %v741 = vadd.f32 %v593, %v705
  %v742 = vadd.f32 %v594, %v708
  %v743 = vadd.f32 %v595, %v711
  %s744 = sadd.s32 %s21, 2
  %s745 = smul.u32 %s744, 16
  %s746 = scalar_lea.vmem %s0, %s745
  %v747 = vld [vmem:[%s746] sm:$0xff]
  %v748 = vld [vmem:[%s746 + $0x8] sm:$0x3]
  %v749 = vld [vmem:[%s746 + $0x10] sm:$0xff]
  %v750 = vld [vmem:[%s746 + $0x18] sm:$0x3]
  %v751 = vld [vmem:[%s746 + $0x20] sm:$0xff]
  %v752 = vld [vmem:[%s746 + $0x28] sm:$0x3]
  %v753 = vld [vmem:[%s746 + $0x30] sm:$0xff]
  %v754 = vld [vmem:[%s746 + $0x38] sm:$0x3]
  %v755 = vld [vmem:[%s746 + $0x40] sm:$0xff]
  %v756 = vld [vmem:[%s746 + $0x48] sm:$0x3]
  %v757 = vld [vmem:[%s746 + $0x50] sm:$0xff]
  %v758 = vld [vmem:[%s746 + $0x58] sm:$0x3]
  %v759 = vld [vmem:[%s746 + $0x60] sm:$0xff]
  %v760 = vld [vmem:[%s746 + $0x68] sm:$0x3]
  %v761 = vld [vmem:[%s746 + $0x70] sm:$0xff]
  %v762 = vld [vmem:[%s746 + $0x78] sm:$0x3]
  %v763 = vld [vmem:[%s746 + $0xa0] sm:$0xff]
  %v764 = vld [vmem:[%s746 + $0xa8] sm:$0x3]
  %v765 = vld [vmem:[%s746 + $0xb0] sm:$0xff]
  %v766 = vld [vmem:[%s746 + $0xb8] sm:$0x3]
  %v767 = vld [vmem:[%s746 + $0xc0] sm:$0xff]
  %v768 = vld [vmem:[%s746 + $0xc8] sm:$0x3]
  %v769 = vld [vmem:[%s746 + $0xd0] sm:$0xff]
  %v770 = vld [vmem:[%s746 + $0xd8] sm:$0x3]
  %v771 = vld [vmem:[%s746 + $0xe0] sm:$0xff]
  %v772 = vld [vmem:[%s746 + $0xe8] sm:$0x3]
  %v773 = vld [vmem:[%s746 + $0xf0] sm:$0xff]
  %v774 = vld [vmem:[%s746 + $0xf8] sm:$0x3]
  %v775 = vld [vmem:[%s746 + $0x100] sm:$0xff]
  %v776 = vld [vmem:[%s746 + $0x108] sm:$0x3]
  %v777 = vld [vmem:[%s746 + $0x110] sm:$0xff]
  %v778 = vld [vmem:[%s746 + $0x118] sm:$0x3]
  %v779 = vlaneseq
  %v780 = vshrl.u32 %v779, 7
  %v781 = vsub.s32 6, %v780
  %v782 = vrot.slane %v22, %v781
  %v783 = vmul.f32 %v747, %v782
  %v784 = vmul.f32 %v749, %v782
  %v785 = vmul.f32 %v751, %v782
  %v786 = vmul.f32 %v753, %v782
  %v787 = vmul.f32 %v755, %v782
  %v788 = vmul.f32 %v757, %v782
  %v789 = vmul.f32 %v759, %v782
  %v790 = vmul.f32 %v761, %v782
  %v791 = vmul.f32 %v763, %v782
  %v792 = vmul.f32 %v765, %v782
  %v793 = vmul.f32 %v767, %v782
  %v794 = vmul.f32 %v769, %v782
  %v795 = vmul.f32 %v771, %v782
  %v796 = vmul.f32 %v773, %v782
  %v797 = vmul.f32 %v775, %v782
  %v798 = vmul.f32 %v777, %v782
  %v799 = vadd.f32 %v728, %v783
  %v800 = vadd.f32 %v729, %v784
  %v801 = vadd.f32 %v730, %v785
  %v802 = vadd.f32 %v731, %v786
  %v803 = vadd.f32 %v732, %v787
  %v804 = vadd.f32 %v733, %v788
  %v805 = vadd.f32 %v734, %v789
  %v806 = vadd.f32 %v735, %v790
  %v807 = vadd.f32 %v736, %v791
  %v808 = vadd.f32 %v737, %v792
  %v809 = vadd.f32 %v738, %v793
  %v810 = vadd.f32 %v739, %v794
  %v811 = vadd.f32 %v740, %v795
  %v812 = vadd.f32 %v741, %v796
  %v813 = vadd.f32 %v742, %v797
  %v814 = vadd.f32 %v743, %v798
  %v815 = vlaneseq
  %v816 = vshrl.u32 %v815, 7
  %v817 = vsub.s32 7, %v816
  %v818 = vrot.slane %v22, %v817
  %v819 = vmul.f32 %v747, %v818
  %v820 = vmul.f32 %v748, %v818
  %v821 = vmul.f32 %v749, %v818
  %v822 = vmul.f32 %v750, %v818
  %v823 = vmul.f32 %v751, %v818
  %v824 = vmul.f32 %v752, %v818
  %v825 = vmul.f32 %v753, %v818
  %v826 = vmul.f32 %v754, %v818
  %v827 = vmul.f32 %v755, %v818
  %v828 = vmul.f32 %v756, %v818
  %v829 = vmul.f32 %v757, %v818
  %v830 = vmul.f32 %v758, %v818
  %v831 = vmul.f32 %v759, %v818
  %v832 = vmul.f32 %v760, %v818
  %v833 = vmul.f32 %v761, %v818
  %v834 = vmul.f32 %v762, %v818
  %v835 = vmul.f32 %v763, %v818
  %v836 = vmul.f32 %v764, %v818
  %v837 = vmul.f32 %v765, %v818
  %v838 = vmul.f32 %v766, %v818
  %v839 = vmul.f32 %v767, %v818
  %v840 = vmul.f32 %v768, %v818
  %v841 = vmul.f32 %v769, %v818
  %v842 = vmul.f32 %v770, %v818
  %v843 = vmul.f32 %v771, %v818
  %v844 = vmul.f32 %v772, %v818
  %v845 = vmul.f32 %v773, %v818
  %v846 = vmul.f32 %v774, %v818
  %v847 = vmul.f32 %v775, %v818
  %v848 = vmul.f32 %v776, %v818
  %v849 = vmul.f32 %v777, %v818
  %v850 = vmul.f32 %v778, %v818
  %v883 = vrot.slane %v819, 1
  %v884 = vrot.slane %v820, 1
  %v885 = vsel %vm147, %v883, %v884
  %v886 = vrot.slane %v821, 1
  %v887 = vrot.slane %v822, 1
  %v888 = vsel %vm147, %v886, %v887
  %v889 = vrot.slane %v823, 1
  %v890 = vrot.slane %v824, 1
  %v891 = vsel %vm147, %v889, %v890
  %v892 = vrot.slane %v825, 1
  %v893 = vrot.slane %v826, 1
  %v894 = vsel %vm147, %v892, %v893
  %v895 = vrot.slane %v827, 1
  %v896 = vrot.slane %v828, 1
  %v897 = vsel %vm147, %v895, %v896
  %v898 = vrot.slane %v829, 1
  %v899 = vrot.slane %v830, 1
  %v900 = vsel %vm147, %v898, %v899
  %v901 = vrot.slane %v831, 1
  %v902 = vrot.slane %v832, 1
  %v903 = vsel %vm147, %v901, %v902
  %v904 = vrot.slane %v833, 1
  %v905 = vrot.slane %v834, 1
  %v906 = vsel %vm147, %v904, %v905
  %v907 = vrot.slane %v835, 1
  %v908 = vrot.slane %v836, 1
  %v909 = vsel %vm147, %v907, %v908
  %v910 = vrot.slane %v837, 1
  %v911 = vrot.slane %v838, 1
  %v912 = vsel %vm147, %v910, %v911
  %v913 = vrot.slane %v839, 1
  %v914 = vrot.slane %v840, 1
  %v915 = vsel %vm147, %v913, %v914
  %v916 = vrot.slane %v841, 1
  %v917 = vrot.slane %v842, 1
  %v918 = vsel %vm147, %v916, %v917
  %v919 = vrot.slane %v843, 1
  %v920 = vrot.slane %v844, 1
  %v921 = vsel %vm147, %v919, %v920
  %v922 = vrot.slane %v845, 1
  %v923 = vrot.slane %v846, 1
  %v924 = vsel %vm147, %v922, %v923
  %v925 = vrot.slane %v847, 1
  %v926 = vrot.slane %v848, 1
  %v927 = vsel %vm147, %v925, %v926
  %v928 = vrot.slane %v849, 1
  %v929 = vrot.slane %v850, 1
  %v930 = vsel %vm147, %v928, %v929
  %v947 = vadd.f32 %v799, %v885
  %v948 = vadd.f32 %v800, %v888
  %v949 = vadd.f32 %v801, %v891
  %v950 = vadd.f32 %v802, %v894
  %v951 = vadd.f32 %v803, %v897
  %v952 = vadd.f32 %v804, %v900
  %v953 = vadd.f32 %v805, %v903
  %v954 = vadd.f32 %v806, %v906
  %v955 = vadd.f32 %v807, %v909
  %v956 = vadd.f32 %v808, %v912
  %v957 = vadd.f32 %v809, %v915
  %v958 = vadd.f32 %v810, %v918
  %v959 = vadd.f32 %v811, %v921
  %v960 = vadd.f32 %v812, %v924
  %v961 = vadd.f32 %v813, %v927
  %v962 = vadd.f32 %v814, %v930
  %v963 = vlaneseq
  %v964 = vshrl.u32 %v963, 7
  %v965 = vsub.s32 0, %v964
  %v966 = vrot.slane %v23, %v965
  %v967 = vmul.f32 %v747, %v966
  %v968 = vmul.f32 %v748, %v966
  %v969 = vmul.f32 %v749, %v966
  %v970 = vmul.f32 %v750, %v966
  %v971 = vmul.f32 %v751, %v966
  %v972 = vmul.f32 %v752, %v966
  %v973 = vmul.f32 %v753, %v966
  %v974 = vmul.f32 %v754, %v966
  %v975 = vmul.f32 %v755, %v966
  %v976 = vmul.f32 %v756, %v966
  %v977 = vmul.f32 %v757, %v966
  %v978 = vmul.f32 %v758, %v966
  %v979 = vmul.f32 %v759, %v966
  %v980 = vmul.f32 %v760, %v966
  %v981 = vmul.f32 %v761, %v966
  %v982 = vmul.f32 %v762, %v966
  %v983 = vmul.f32 %v763, %v966
  %v984 = vmul.f32 %v764, %v966
  %v985 = vmul.f32 %v765, %v966
  %v986 = vmul.f32 %v766, %v966
  %v987 = vmul.f32 %v767, %v966
  %v988 = vmul.f32 %v768, %v966
  %v989 = vmul.f32 %v769, %v966
  %v990 = vmul.f32 %v770, %v966
  %v991 = vmul.f32 %v771, %v966
  %v992 = vmul.f32 %v772, %v966
  %v993 = vmul.f32 %v773, %v966
  %v994 = vmul.f32 %v774, %v966
  %v995 = vmul.f32 %v775, %v966
  %v996 = vmul.f32 %v776, %v966
  %v997 = vmul.f32 %v777, %v966
  %v998 = vmul.f32 %v778, %v966
  %v1031 = vrot.slane %v967, 2
  %v1032 = vrot.slane %v968, 2
  %v1033 = vsel %vm296, %v1031, %v1032
  %v1034 = vrot.slane %v969, 2
  %v1035 = vrot.slane %v970, 2
  %v1036 = vsel %vm296, %v1034, %v1035
  %v1037 = vrot.slane %v971, 2
  %v1038 = vrot.slane %v972, 2
  %v1039 = vsel %vm296, %v1037, %v1038
  %v1040 = vrot.slane %v973, 2
  %v1041 = vrot.slane %v974, 2
  %v1042 = vsel %vm296, %v1040, %v1041
  %v1043 = vrot.slane %v975, 2
  %v1044 = vrot.slane %v976, 2
  %v1045 = vsel %vm296, %v1043, %v1044
  %v1046 = vrot.slane %v977, 2
  %v1047 = vrot.slane %v978, 2
  %v1048 = vsel %vm296, %v1046, %v1047
  %v1049 = vrot.slane %v979, 2
  %v1050 = vrot.slane %v980, 2
  %v1051 = vsel %vm296, %v1049, %v1050
  %v1052 = vrot.slane %v981, 2
  %v1053 = vrot.slane %v982, 2
  %v1054 = vsel %vm296, %v1052, %v1053
  %v1055 = vrot.slane %v983, 2
  %v1056 = vrot.slane %v984, 2
  %v1057 = vsel %vm296, %v1055, %v1056
  %v1058 = vrot.slane %v985, 2
  %v1059 = vrot.slane %v986, 2
  %v1060 = vsel %vm296, %v1058, %v1059
  %v1061 = vrot.slane %v987, 2
  %v1062 = vrot.slane %v988, 2
  %v1063 = vsel %vm296, %v1061, %v1062
  %v1064 = vrot.slane %v989, 2
  %v1065 = vrot.slane %v990, 2
  %v1066 = vsel %vm296, %v1064, %v1065
  %v1067 = vrot.slane %v991, 2
  %v1068 = vrot.slane %v992, 2
  %v1069 = vsel %vm296, %v1067, %v1068
  %v1070 = vrot.slane %v993, 2
  %v1071 = vrot.slane %v994, 2
  %v1072 = vsel %vm296, %v1070, %v1071
  %v1073 = vrot.slane %v995, 2
  %v1074 = vrot.slane %v996, 2
  %v1075 = vsel %vm296, %v1073, %v1074
  %v1076 = vrot.slane %v997, 2
  %v1077 = vrot.slane %v998, 2
  %v1078 = vsel %vm296, %v1076, %v1077
  %v1095 = vadd.f32 %v947, %v1033
  %v1096 = vadd.f32 %v948, %v1036
  %v1097 = vadd.f32 %v949, %v1039
  %v1098 = vadd.f32 %v950, %v1042
  %v1099 = vadd.f32 %v951, %v1045
  %v1100 = vadd.f32 %v952, %v1048
  %v1101 = vadd.f32 %v953, %v1051
  %v1102 = vadd.f32 %v954, %v1054
  %v1103 = vadd.f32 %v955, %v1057
  %v1104 = vadd.f32 %v956, %v1060
  %v1105 = vadd.f32 %v957, %v1063
  %v1106 = vadd.f32 %v958, %v1066
  %v1107 = vadd.f32 %v959, %v1069
  %v1108 = vadd.f32 %v960, %v1072
  %v1109 = vadd.f32 %v961, %v1075
  %v1110 = vadd.f32 %v962, %v1078
  %v1111 = vlaneseq
  %v1112 = vshrl.u32 %v1111, 7
  %v1113 = vsub.s32 0, %v1112
  %v1114 = vrot.slane %v24, %v1113
  %v1115 = vmul.f32 %v1095, %v1114
  %v1116 = vmul.f32 %v1096, %v1114
  %v1117 = vmul.f32 %v1097, %v1114
  %v1118 = vmul.f32 %v1098, %v1114
  %v1119 = vmul.f32 %v1099, %v1114
  %v1120 = vmul.f32 %v1100, %v1114
  %v1121 = vmul.f32 %v1101, %v1114
  %v1122 = vmul.f32 %v1102, %v1114
  %v1123 = vmul.f32 %v1103, %v1114
  %v1124 = vmul.f32 %v1104, %v1114
  %v1125 = vmul.f32 %v1105, %v1114
  %v1126 = vmul.f32 %v1106, %v1114
  %v1127 = vmul.f32 %v1107, %v1114
  %v1128 = vmul.f32 %v1108, %v1114
  %v1129 = vmul.f32 %v1109, %v1114
  %v1130 = vmul.f32 %v1110, %v1114
  %v1131 = vlaneseq
  %v1132 = vshrl.u32 %v1131, 7
  %v1133 = vsub.s32 1, %v1132
  %v1134 = vrot.slane %v24, %v1133
  %v1135 = vadd.f32 %v1115, %v1134
  %v1136 = vadd.f32 %v1116, %v1134
  %v1137 = vadd.f32 %v1117, %v1134
  %v1138 = vadd.f32 %v1118, %v1134
  %v1139 = vadd.f32 %v1119, %v1134
  %v1140 = vadd.f32 %v1120, %v1134
  %v1141 = vadd.f32 %v1121, %v1134
  %v1142 = vadd.f32 %v1122, %v1134
  %v1143 = vadd.f32 %v1123, %v1134
  %v1144 = vadd.f32 %v1124, %v1134
  %v1145 = vadd.f32 %v1125, %v1134
  %v1146 = vadd.f32 %v1126, %v1134
  %v1147 = vadd.f32 %v1127, %v1134
  %v1148 = vadd.f32 %v1128, %v1134
  %v1149 = vadd.f32 %v1129, %v1134
  %v1150 = vadd.f32 %v1130, %v1134
  %v1151 = vmax.f32 %v1135, 0.0
  %v1152 = vmax.f32 %v1136, 0.0
  %v1153 = vmax.f32 %v1137, 0.0
  %v1154 = vmax.f32 %v1138, 0.0
  %v1155 = vmax.f32 %v1139, 0.0
  %v1156 = vmax.f32 %v1140, 0.0
  %v1157 = vmax.f32 %v1141, 0.0
  %v1158 = vmax.f32 %v1142, 0.0
  %v1159 = vmax.f32 %v1143, 0.0
  %v1160 = vmax.f32 %v1144, 0.0
  %v1161 = vmax.f32 %v1145, 0.0
  %v1162 = vmax.f32 %v1146, 0.0
  %v1163 = vmax.f32 %v1147, 0.0
  %v1164 = vmax.f32 %v1148, 0.0
  %v1165 = vmax.f32 %v1149, 0.0
  %v1166 = vmax.f32 %v1150, 0.0
  %v1167 = vpack.c.bf16 %v1152, %v1151
  %v1168 = vpack.c.bf16 %v1154, %v1153
  %v1169 = vpack.c.bf16 %v1156, %v1155
  %v1170 = vpack.c.bf16 %v1158, %v1157
  %v1171 = vpack.c.bf16 %v1160, %v1159
  %v1172 = vpack.c.bf16 %v1162, %v1161
  %v1173 = vpack.c.bf16 %v1164, %v1163
  %v1174 = vpack.c.bf16 %v1166, %v1165
  %v1175 = vld [vmem:[%s3] sm:$0xf]
  %v1176 = vld [vmem:[%s3 + $0x4] sm:$0xf]
  %v1177 = vld [vmem:[%s3 + $0x8] sm:$0xf]
  %v1178 = vld [vmem:[%s3 + $0xc] sm:$0xf]
  %v1183 = vunpack.c.l.b16 %v1175
  %v1184 = vunpack.c.l.b16 %v1176
  %v1185 = vunpack.c.l.b16 %v1177
  %v1186 = vunpack.c.l.b16 %v1178
  %v1187 = vpack.c.b16 %v1184, %v1183
  %v1188 = vpack.c.b16 %v1186, %v1185
  %vm1191 = vcmask 261120
  %v1193 = vsel %vm1191, %v1167, 0
  %v1196 = vsel %vm1191, %v1168, 0
  %v1199 = vsel %vm1191, %v1169, 0
  %v1202 = vsel %vm1191, %v1170, 0
  %v1205 = vsel %vm1191, %v1171, 0
  %v1208 = vsel %vm1191, %v1172, 0
  %v1211 = vsel %vm1191, %v1173, 0
  %v1214 = vsel %vm1191, %v1174, 0
  %1216 = vmatprep.subr.bf16.mxu0 0
  %1217 = vmatpush1.bf16.msra.mxu0 %v1187
  %1218 = vmatprep.subr.bf16.mxu0 0
  %1219 = vmatpush1.bf16.msra.mxu0 %v1188
  %1220 = vmatprep.subr.bf16.mxu0 0
  %1221 = vmatpush1.bf16.msra.mxu0 0
  %1222 = vmatprep.subr.bf16.mxu0 0
  %1223 = vmatpush1.bf16.msra.mxu0 0
  %1224 = vmatprep.subr.bf16.mxu0 0
  %1225 = vmatpush1.bf16.msra.mxu0 0
  %1226 = vmatprep.subr.bf16.mxu0 0
  %1227 = vmatpush1.bf16.msra.mxu0 0
  %1228 = vmatprep.subr.bf16.mxu0 0
  %1229 = vmatpush1.bf16.msra.mxu0 0
  %1230 = vmatprep.subr.bf16.mxu0 0
  %1231 = vmatpush1.bf16.msra.mxu0 0
  %1232 = vmatprep.subr.bf16.mxu0 0
  %1233 = vmatpush1.bf16.msra.mxu0 0
  %1234 = vmatprep.subr.bf16.mxu0 0
  %1235 = vmatpush1.bf16.msra.mxu0 0
  %1236 = vmatprep.subr.bf16.mxu0 0
  %1237 = vmatpush1.bf16.msra.mxu0 0
  %1238 = vmatprep.subr.bf16.mxu0 0
  %1239 = vmatpush1.bf16.msra.mxu0 0
  %1240 = vmatprep.subr.bf16.mxu0 0
  %1241 = vmatpush1.bf16.msra.mxu0 0
  %1242 = vmatprep.subr.bf16.mxu0 0
  %1243 = vmatpush1.bf16.msra.mxu0 0
  %1244 = vmatprep.subr.bf16.mxu0 0
  %1245 = vmatpush1.bf16.msra.mxu0 0
  %1246 = vmatprep.subr.bf16.mxu0 0
  %1247 = vmatpush1.bf16.msra.mxu0 0
  %1248 = vmatprep.mubr.bf16.mxu0 0
  %1249 = vmatmul.mubr.bf16.gmra.mrb[0].mxu0 %v1193
  %v1250 = vpop.f32.mrb[0].mxu0
  %v1251 = vadd.f32 0.0, %v1250
  %v1252 = vpop.f32.mrb[0].mxu0
  %v1253 = vpop.f32.mrb[0].mxu0
  %v1254 = vadd.f32 0.0, %v1253
  %v1255 = vpop.f32.mrb[0].mxu0
  %1256 = vmatprep.mubr.bf16.mxu0 0
  %1257 = vmatmul.mubr.bf16.gmra.mrb[0].mxu0 %v1196
  %v1258 = vpop.f32.mrb[0].mxu0
  %v1259 = vadd.f32 0.0, %v1258
  %v1260 = vpop.f32.mrb[0].mxu0
  %v1261 = vpop.f32.mrb[0].mxu0
  %v1262 = vadd.f32 0.0, %v1261
  %v1263 = vpop.f32.mrb[0].mxu0
  %1264 = vmatprep.mubr.bf16.mxu0 0
  %1265 = vmatmul.mubr.bf16.gmra.mrb[0].mxu0 %v1199
  %v1266 = vpop.f32.mrb[0].mxu0
  %v1267 = vadd.f32 0.0, %v1266
  %v1268 = vpop.f32.mrb[0].mxu0
  %v1269 = vpop.f32.mrb[0].mxu0
  %v1270 = vadd.f32 0.0, %v1269
  %v1271 = vpop.f32.mrb[0].mxu0
  %1272 = vmatprep.mubr.bf16.mxu0 0
  %1273 = vmatmul.mubr.bf16.gmra.mrb[0].mxu0 %v1202
  %v1274 = vpop.f32.mrb[0].mxu0
  %v1275 = vadd.f32 0.0, %v1274
  %v1276 = vpop.f32.mrb[0].mxu0
  %v1277 = vpop.f32.mrb[0].mxu0
  %v1278 = vadd.f32 0.0, %v1277
  %v1279 = vpop.f32.mrb[0].mxu0
  %1280 = vmatprep.mubr.bf16.mxu0 0
  %1281 = vmatmul.mubr.bf16.gmra.mrb[0].mxu0 %v1205
  %v1282 = vpop.f32.mrb[0].mxu0
  %v1283 = vadd.f32 0.0, %v1282
  %v1284 = vpop.f32.mrb[0].mxu0
  %v1285 = vpop.f32.mrb[0].mxu0
  %v1286 = vadd.f32 0.0, %v1285
  %v1287 = vpop.f32.mrb[0].mxu0
  %1288 = vmatprep.mubr.bf16.mxu0 0
  %1289 = vmatmul.mubr.bf16.gmra.mrb[0].mxu0 %v1208
  %v1290 = vpop.f32.mrb[0].mxu0
  %v1291 = vadd.f32 0.0, %v1290
  %v1292 = vpop.f32.mrb[0].mxu0
  %v1293 = vpop.f32.mrb[0].mxu0
  %v1294 = vadd.f32 0.0, %v1293
  %v1295 = vpop.f32.mrb[0].mxu0
  %1296 = vmatprep.mubr.bf16.mxu0 0
  %1297 = vmatmul.mubr.bf16.gmra.mrb[0].mxu0 %v1211
  %v1298 = vpop.f32.mrb[0].mxu0
  %v1299 = vadd.f32 0.0, %v1298
  %v1300 = vpop.f32.mrb[0].mxu0
  %v1301 = vpop.f32.mrb[0].mxu0
  %v1302 = vadd.f32 0.0, %v1301
  %v1303 = vpop.f32.mrb[0].mxu0
  %1304 = vmatprep.mubr.bf16.mxu0 0
  %1305 = vmatmul.mubr.bf16.gmra.mrb[0].mxu0 %v1214
  %v1306 = vpop.f32.mrb[0].mxu0
  %v1307 = vadd.f32 0.0, %v1306
  %v1308 = vpop.f32.mrb[0].mxu0
  %v1309 = vpop.f32.mrb[0].mxu0
  %v1310 = vadd.f32 0.0, %v1309
  %v1311 = vpop.f32.mrb[0].mxu0
  %1312 = vdwg.mxu0
  %v1313 = vld [vmem:[%s4] sm:$0x3]
  %v1314 = vlaneseq
  %v1315 = vshrl.u32 %v1314, 7
  %v1316 = vsub.s32 0, %v1315
  %v1317 = vrot.slane %v1313, %v1316
  %v1318 = vmul.f32 %v1251, %v1317
  %v1319 = vmul.f32 %v1254, %v1317
  %v1320 = vmul.f32 %v1259, %v1317
  %v1321 = vmul.f32 %v1262, %v1317
  %v1322 = vmul.f32 %v1267, %v1317
  %v1323 = vmul.f32 %v1270, %v1317
  %v1324 = vmul.f32 %v1275, %v1317
  %v1325 = vmul.f32 %v1278, %v1317
  %v1326 = vmul.f32 %v1283, %v1317
  %v1327 = vmul.f32 %v1286, %v1317
  %v1328 = vmul.f32 %v1291, %v1317
  %v1329 = vmul.f32 %v1294, %v1317
  %v1330 = vmul.f32 %v1299, %v1317
  %v1331 = vmul.f32 %v1302, %v1317
  %v1332 = vmul.f32 %v1307, %v1317
  %v1333 = vmul.f32 %v1310, %v1317
  %v1334 = vlaneseq
  %v1335 = vshrl.u32 %v1334, 7
  %v1336 = vsub.s32 1, %v1335
  %v1337 = vrot.slane %v1313, %v1336
  %v1338 = vadd.f32 %v1318, %v1337
  %v1339 = vadd.f32 %v1319, %v1337
  %v1340 = vadd.f32 %v1320, %v1337
  %v1341 = vadd.f32 %v1321, %v1337
  %v1342 = vadd.f32 %v1322, %v1337
  %v1343 = vadd.f32 %v1323, %v1337
  %v1344 = vadd.f32 %v1324, %v1337
  %v1345 = vadd.f32 %v1325, %v1337
  %v1346 = vadd.f32 %v1326, %v1337
  %v1347 = vadd.f32 %v1327, %v1337
  %v1348 = vadd.f32 %v1328, %v1337
  %v1349 = vadd.f32 %v1329, %v1337
  %v1350 = vadd.f32 %v1330, %v1337
  %v1351 = vadd.f32 %v1331, %v1337
  %v1352 = vadd.f32 %v1332, %v1337
  %v1353 = vadd.f32 %v1333, %v1337
  %v1354 = vmax.f32 %v1338, 0.0
  %v1355 = vmax.f32 %v1339, 0.0
  %v1356 = vmax.f32 %v1340, 0.0
  %v1357 = vmax.f32 %v1341, 0.0
  %v1358 = vmax.f32 %v1342, 0.0
  %v1359 = vmax.f32 %v1343, 0.0
  %v1360 = vmax.f32 %v1344, 0.0
  %v1361 = vmax.f32 %v1345, 0.0
  %v1362 = vmax.f32 %v1346, 0.0
  %v1363 = vmax.f32 %v1347, 0.0
  %v1364 = vmax.f32 %v1348, 0.0
  %v1365 = vmax.f32 %v1349, 0.0
  %v1366 = vmax.f32 %v1350, 0.0
  %v1367 = vmax.f32 %v1351, 0.0
  %v1368 = vmax.f32 %v1352, 0.0
  %v1369 = vmax.f32 %v1353, 0.0
  %vm1370 = vcmask 523264
  %1371 = vst.msk [vmem:[%s5] sm:$0xff] %vm1370, %v1354
  %1372 = vst.msk [vmem:[%s5 + $0x8] sm:$0xff] %vm1370, %v1355
  %1373 = vst.msk [vmem:[%s5 + $0x10] sm:$0xff] %vm1370, %v1356
  %1374 = vst.msk [vmem:[%s5 + $0x18] sm:$0xff] %vm1370, %v1357
  %1375 = vst.msk [vmem:[%s5 + $0x20] sm:$0xff] %vm1370, %v1358
  %1376 = vst.msk [vmem:[%s5 + $0x28] sm:$0xff] %vm1370, %v1359
  %1377 = vst.msk [vmem:[%s5 + $0x30] sm:$0xff] %vm1370, %v1360
  %1378 = vst.msk [vmem:[%s5 + $0x38] sm:$0xff] %vm1370, %v1361
  %1379 = vst.msk [vmem:[%s5 + $0x40] sm:$0xff] %vm1370, %v1362
  %1380 = vst.msk [vmem:[%s5 + $0x48] sm:$0xff] %vm1370, %v1363
  %1381 = vst.msk [vmem:[%s5 + $0x50] sm:$0xff] %vm1370, %v1364
  %1382 = vst.msk [vmem:[%s5 + $0x58] sm:$0xff] %vm1370, %v1365
  %1383 = vst.msk [vmem:[%s5 + $0x60] sm:$0xff] %vm1370, %v1366
  %1384 = vst.msk [vmem:[%s5 + $0x68] sm:$0xff] %vm1370, %v1367
  %1385 = vst.msk [vmem:[%s5 + $0x70] sm:$0xff] %vm1370, %v1368
  %1386 = vst.msk [vmem:[%s5 + $0x78] sm:$0xff] %vm1370, %v1369
  // Predicated region
  $region22: #{forward.13} parent=0 // pred_check
    _
  $region23: #{forward.13} parent=0 // pred_check_branch
    %1388 = sbr.rel (0) target = $region25
  $region24: #{forward.13} parent=0 // pred_region
    _
  $region25: #{forward.13} parent=0 // pred_fallthru
    _
  // Predicated region
  $region26: #{forward.13} parent=0 // pred_check
    _
  $region27: #{forward.13} parent=0 // pred_check_branch
    %1390 = sbr.rel (0) target = $region29
  $region28: #{forward.13} parent=0 // pred_region
    _
  $region29: #{forward.13} parent=0 // pred_fallthru
    _

// kernel: forward.14
$region0: #{forward.14}
  #allocation0 [shape = 'u32[]', space=smem, size = 0x4, offset = 0x4, fixed_abs, tag = 'smem constant byte address 0x4 - core index']
  #allocation1 [shape = 'u32[144,128]{1,0:T(1,128)}', space=vmem, size = 0x12000, scoped, tag = 'internal scratch']
  %s0 = inlined_call_operand.vmem [shape: f32[4,2,5,5,64], index: 0, kind: input, shape index: {}]
  %s1 = inlined_call_operand.vmem [shape: f32[9,64], index: 1, kind: input, shape index: {}]
  %s2 = inlined_call_operand.vmem [shape: f32[2,64], index: 2, kind: input, shape index: {}]
  %s3 = inlined_call_operand.vmem [shape: bf16[64,128], index: 3, kind: input, shape index: {}]
  %s4 = inlined_call_operand.vmem [shape: f32[2,128], index: 4, kind: input, shape index: {}]
  %s5 = inlined_call_operand.vmem [shape: f32[2,4,4,128], index: 5, kind: output, shape index: {}]
  %s6 = sld [smem:[#allocation0]]
  $region30: #{forward.14} parent=0
    _
  %s8 = ssub.s32 1, %s6
  %s9 = scalar_select 0, %s8, %s6
  // Predicated region
  $region2: #{forward.14} parent=0 // pred_check
    _
  $region3: #{forward.14} parent=0 // pred_check_branch
    %11 = sbr.rel (0) target = $region5
  $region4: #{forward.14} parent=0 // pred_region
    _
  $region5: #{forward.14} parent=0 // pred_fallthru
    _
  // Predicated region
  $region6: #{forward.14} parent=0 // pred_check
    _
  $region7: #{forward.14} parent=0 // pred_check_branch
    %13 = sbr.rel (0) target = $region9
  $region8: #{forward.14} parent=0 // pred_region
    _
  $region9: #{forward.14} parent=0 // pred_fallthru
    _
  // Predicated region
  $region10: #{forward.14} parent=0 // pred_check
    _
  $region11: #{forward.14} parent=0 // pred_check_branch
    %15 = sbr.rel (0) target = $region13
  $region12: #{forward.14} parent=0 // pred_region
    _
  $region13: #{forward.14} parent=0 // pred_fallthru
    _
  // Predicated region
  $region14: #{forward.14} parent=0 // pred_check
    _
  $region15: #{forward.14} parent=0 // pred_check_branch
    %17 = sbr.rel (0) target = $region17
  $region16: #{forward.14} parent=0 // pred_region
    _
  $region17: #{forward.14} parent=0 // pred_fallthru
    _
  // Predicated region
  $region18: #{forward.14} parent=0 // pred_check
    _
  $region19: #{forward.14} parent=0 // pred_check_branch
    %19 = sbr.rel (0) target = $region21
  $region20: #{forward.14} parent=0 // pred_region
    _
  $region21: #{forward.14} parent=0 // pred_fallthru
    _
  %s21 = smul.u32 0, 4
  %v22 = vld [vmem:[%s1] sm:$0xff]
  %v23 = vld [vmem:[%s1 + $0x8] sm:$0x1]
  %v24 = vld [vmem:[%s2] sm:$0x3]
  %s25 = smul.u32 %s21, 8
  %s26 = scalar_lea.vmem %s0, %s25
  %v27 = vld [vmem:[%s26] sm:$0x1f]
  %v28 = vld [vmem:[%s26 + $0x8] sm:$0x1f]
  %v29 = vld [vmem:[%s26 + $0x10] sm:$0x1f]
  %v30 = vld [vmem:[%s26 + $0x18] sm:$0x1f]
  %v31 = vld [vmem:[%s26 + $0x28] sm:$0x1f]
  %v32 = vld [vmem:[%s26 + $0x30] sm:$0x1f]
  %v33 = vld [vmem:[%s26 + $0x38] sm:$0x1f]
  %v34 = vld [vmem:[%s26 + $0x40] sm:$0x1f]
  %v35 = vlaneseq
  %v36 = vshrl.u32 %v35, 7
  %v37 = vsub.s32 0, %v36
  %v38 = vrot.slane %v22, %v37
  %v39 = vmul.f32 %v27, %v38
  %v40 = vmul.f32 %v28, %v38
  %v41 = vmul.f32 %v29, %v38
  %v42 = vmul.f32 %v30, %v38
  %v43 = vmul.f32 %v31, %v38
  %v44 = vmul.f32 %v32, %v38
  %v45 = vmul.f32 %v33, %v38
  %v46 = vmul.f32 %v34, %v38
  %s47 = sadd.s32 %s25, 80
  %s48 = scalar_lea.vmem %s0, %s47
  %v49 = vld [vmem:[%s48] sm:$0x1f]
  %v50 = vld [vmem:[%s48 + $0x8] sm:$0x1f]
  %v51 = vld [vmem:[%s48 + $0x10] sm:$0x1f]
  %v52 = vld [vmem:[%s48 + $0x18] sm:$0x1f]
  %v53 = vld [vmem:[%s48 + $0x28] sm:$0x1f]
  %v54 = vld [vmem:[%s48 + $0x30] sm:$0x1f]
  %v55 = vld [vmem:[%s48 + $0x38] sm:$0x1f]
  %v56 = vld [vmem:[%s48 + $0x40] sm:$0x1f]
  %v57 = vlaneseq
  %v58 = vshrl.u32 %v57, 7
  %v59 = vsub.s32 1, %v58
  %v60 = vrot.slane %v22, %v59
  %v61 = vmul.f32 %v49, %v60
  %v62 = vmul.f32 %v50, %v60
  %v63 = vmul.f32 %v51, %v60
  %v64 = vmul.f32 %v52, %v60
  %v65 = vmul.f32 %v53, %v60
  %v66 = vmul.f32 %v54, %v60
  %v67 = vmul.f32 %v55, %v60
  %v68 = vmul.f32 %v56, %v60
  %v69 = vadd.f32 %v39, %v61
  %v70 = vadd.f32 %v40, %v62
  %v71 = vadd.f32 %v41, %v63
  %v72 = vadd.f32 %v42, %v64
  %v73 = vadd.f32 %v43, %v65
  %v74 = vadd.f32 %v44, %v66
  %v75 = vadd.f32 %v45, %v67
  %v76 = vadd.f32 %v46, %v68
  %v77 = vlaneseq
  %v78 = vshrl.u32 %v77, 7
  %v79 = vsub.s32 2, %v78
  %v80 = vrot.slane %v22, %v79
  %v81 = vmul.f32 %v27, %v80
  %v82 = vmul.f32 %v28, %v80
  %v83 = vmul.f32 %v29, %v80
  %v84 = vmul.f32 %v30, %v80
  %v85 = vmul.f32 %v31, %v80
  %v86 = vmul.f32 %v32, %v80
  %v87 = vmul.f32 %v33, %v80
  %v88 = vmul.f32 %v34, %v80
  %v97 = vrot.slane %v81, 1
  %v98 = vrot.slane %v82, 1
  %v99 = vrot.slane %v83, 1
  %v100 = vrot.slane %v84, 1
  %v101 = vrot.slane %v85, 1
  %v102 = vrot.slane %v86, 1
  %v103 = vrot.slane %v87, 1
  %v104 = vrot.slane %v88, 1
  %v113 = vadd.f32 %v69, %v97
  %v114 = vadd.f32 %v70, %v98
  %v115 = vadd.f32 %v71, %v99
  %v116 = vadd.f32 %v72, %v100
  %v117 = vadd.f32 %v73, %v101
  %v118 = vadd.f32 %v74, %v102
  %v119 = vadd.f32 %v75, %v103
  %v120 = vadd.f32 %v76, %v104
  %s121 = sadd.s32 %s25, 160
  %s122 = scalar_lea.vmem %s0, %s121
  %v123 = vld [vmem:[%s122] sm:$0x1f]
  %v124 = vld [vmem:[%s122 + $0x8] sm:$0x1f]
  %v125 = vld [vmem:[%s122 + $0x10] sm:$0x1f]
  %v126 = vld [vmem:[%s122 + $0x18] sm:$0x1f]
  %v127 = vld [vmem:[%s122 + $0x28] sm:$0x1f]
  %v128 = vld [vmem:[%s122 + $0x30] sm:$0x1f]
  %v129 = vld [vmem:[%s122 + $0x38] sm:$0x1f]
  %v130 = vld [vmem:[%s122 + $0x40] sm:$0x1f]
  %v131 = vlaneseq
  %v132 = vshrl.u32 %v131, 7
  %v133 = vsub.s32 3, %v132
  %v134 = vrot.slane %v22, %v133
  %v135 = vmul.f32 %v123, %v134
  %v136 = vmul.f32 %v124, %v134
  %v137 = vmul.f32 %v125, %v134
  %v138 = vmul.f32 %v126, %v134
  %v139 = vmul.f32 %v127, %v134
  %v140 = vmul.f32 %v128, %v134
  %v141 = vmul.f32 %v129, %v134
  %v142 = vmul.f32 %v130, %v134
  %v143 = vadd.f32 %v113, %v135
  %v144 = vadd.f32 %v114, %v136
  %v145 = vadd.f32 %v115, %v137
  %v146 = vadd.f32 %v116, %v138
  %v147 = vadd.f32 %v117, %v139
  %v148 = vadd.f32 %v118, %v140
  %v149 = vadd.f32 %v119, %v141
  %v150 = vadd.f32 %v120, %v142
  %s151 = sadd.s32 %s25, 240
  %s152 = scalar_lea.vmem %s0, %s151
  %v153 = vld [vmem:[%s152] sm:$0x1f]
  %v154 = vld [vmem:[%s152 + $0x8] sm:$0x1f]
  %v155 = vld [vmem:[%s152 + $0x10] sm:$0x1f]
  %v156 = vld [vmem:[%s152 + $0x18] sm:$0x1f]
  %v157 = vld [vmem:[%s152 + $0x28] sm:$0x1f]
  %v158 = vld [vmem:[%s152 + $0x30] sm:$0x1f]
  %v159 = vld [vmem:[%s152 + $0x38] sm:$0x1f]
  %v160 = vld [vmem:[%s152 + $0x40] sm:$0x1f]
  %v161 = vlaneseq
  %v162 = vshrl.u32 %v161, 7
  %v163 = vsub.s32 4, %v162
  %v164 = vrot.slane %v22, %v163
  %v165 = vmul.f32 %v153, %v164
  %v166 = vmul.f32 %v154, %v164
  %v167 = vmul.f32 %v155, %v164
  %v168 = vmul.f32 %v156, %v164
  %v169 = vmul.f32 %v157, %v164
  %v170 = vmul.f32 %v158, %v164
  %v171 = vmul.f32 %v159, %v164
  %v172 = vmul.f32 %v160, %v164
  %v173 = vadd.f32 %v143, %v165
  %v174 = vadd.f32 %v144, %v166
  %v175 = vadd.f32 %v145, %v167
  %v176 = vadd.f32 %v146, %v168
  %v177 = vadd.f32 %v147, %v169
  %v178 = vadd.f32 %v148, %v170
  %v179 = vadd.f32 %v149, %v171
  %v180 = vadd.f32 %v150, %v172
  %v181 = vlaneseq
  %v182 = vshrl.u32 %v181, 7
  %v183 = vsub.s32 5, %v182
  %v184 = vrot.slane %v22, %v183
  %v185 = vmul.f32 %v123, %v184
  %v186 = vmul.f32 %v124, %v184
  %v187 = vmul.f32 %v125, %v184
  %v188 = vmul.f32 %v126, %v184
  %v189 = vmul.f32 %v127, %v184
  %v190 = vmul.f32 %v128, %v184
  %v191 = vmul.f32 %v129, %v184
  %v192 = vmul.f32 %v130, %v184
  %v201 = vrot.slane %v185, 1
  %v202 = vrot.slane %v186, 1
  %v203 = vrot.slane %v187, 1
  %v204 = vrot.slane %v188, 1
  %v205 = vrot.slane %v189, 1
  %v206 = vrot.slane %v190, 1
  %v207 = vrot.slane %v191, 1
  %v208 = vrot.slane %v192, 1
  %v217 = vadd.f32 %v173, %v201
  %v218 = vadd.f32 %v174, %v202
  %v219 = vadd.f32 %v175, %v203
  %v220 = vadd.f32 %v176, %v204
  %v221 = vadd.f32 %v177, %v205
  %v222 = vadd.f32 %v178, %v206
  %v223 = vadd.f32 %v179, %v207
  %v224 = vadd.f32 %v180, %v208
  %s225 = sadd.s32 %s21, 1
  %s226 = smul.u32 %s225, 8
  %s227 = scalar_lea.vmem %s0, %s226
  %v228 = vld [vmem:[%s227] sm:$0x1f]
  %v229 = vld [vmem:[%s227 + $0x8] sm:$0x1f]
  %v230 = vld [vmem:[%s227 + $0x10] sm:$0x1f]
  %v231 = vld [vmem:[%s227 + $0x18] sm:$0x1f]
  %v232 = vld [vmem:[%s227 + $0x28] sm:$0x1f]
  %v233 = vld [vmem:[%s227 + $0x30] sm:$0x1f]
  %v234 = vld [vmem:[%s227 + $0x38] sm:$0x1f]
  %v235 = vld [vmem:[%s227 + $0x40] sm:$0x1f]
  %v236 = vlaneseq
  %v237 = vshrl.u32 %v236, 7
  %v238 = vsub.s32 6, %v237
  %v239 = vrot.slane %v22, %v238
  %v240 = vmul.f32 %v228, %v239
  %v241 = vmul.f32 %v229, %v239
  %v242 = vmul.f32 %v230, %v239
  %v243 = vmul.f32 %v231, %v239
  %v244 = vmul.f32 %v232, %v239
  %v245 = vmul.f32 %v233, %v239
  %v246 = vmul.f32 %v234, %v239
  %v247 = vmul.f32 %v235, %v239
  %v248 = vadd.f32 %v217, %v240
  %v249 = vadd.f32 %v218, %v241
  %v250 = vadd.f32 %v219, %v242
  %v251 = vadd.f32 %v220, %v243
  %v252 = vadd.f32 %v221, %v244
  %v253 = vadd.f32 %v222, %v245
  %v254 = vadd.f32 %v223, %v246
  %v255 = vadd.f32 %v224, %v247
  %s256 = sadd.s32 %s226, 80
  %s257 = scalar_lea.vmem %s0, %s256
  %v258 = vld [vmem:[%s257] sm:$0x1f]
  %v259 = vld [vmem:[%s257 + $0x8] sm:$0x1f]
  %v260 = vld [vmem:[%s257 + $0x10] sm:$0x1f]
  %v261 = vld [vmem:[%s257 + $0x18] sm:$0x1f]
  %v262 = vld [vmem:[%s257 + $0x28] sm:$0x1f]
  %v263 = vld [vmem:[%s257 + $0x30] sm:$0x1f]
  %v264 = vld [vmem:[%s257 + $0x38] sm:$0x1f]
  %v265 = vld [vmem:[%s257 + $0x40] sm:$0x1f]
  %v266 = vlaneseq
  %v267 = vshrl.u32 %v266, 7
  %v268 = vsub.s32 7, %v267
  %v269 = vrot.slane %v22, %v268
  %v270 = vmul.f32 %v258, %v269
  %v271 = vmul.f32 %v259, %v269
  %v272 = vmul.f32 %v260, %v269
  %v273 = vmul.f32 %v261, %v269
  %v274 = vmul.f32 %v262, %v269
  %v275 = vmul.f32 %v263, %v269
  %v276 = vmul.f32 %v264, %v269
  %v277 = vmul.f32 %v265, %v269
  %v278 = vadd.f32 %v248, %v270
  %v279 = vadd.f32 %v249, %v271
  %v280 = vadd.f32 %v250, %v272
  %v281 = vadd.f32 %v251, %v273
  %v282 = vadd.f32 %v252, %v274
  %v283 = vadd.f32 %v253, %v275
  %v284 = vadd.f32 %v254, %v276
  %v285 = vadd.f32 %v255, %v277
  %v286 = vlaneseq
  %v287 = vshrl.u32 %v286, 7
  %v288 = vsub.s32 0, %v287
  %v289 = vrot.slane %v23, %v288
  %v290 = vmul.f32 %v228, %v289
  %v291 = vmul.f32 %v229, %v289
  %v292 = vmul.f32 %v230, %v289
  %v293 = vmul.f32 %v231, %v289
  %v294 = vmul.f32 %v232, %v289
  %v295 = vmul.f32 %v233, %v289
  %v296 = vmul.f32 %v234, %v289
  %v297 = vmul.f32 %v235, %v289
  %v306 = vrot.slane %v290, 1
  %v307 = vrot.slane %v291, 1
  %v308 = vrot.slane %v292, 1
  %v309 = vrot.slane %v293, 1
  %v310 = vrot.slane %v294, 1
  %v311 = vrot.slane %v295, 1
  %v312 = vrot.slane %v296, 1
  %v313 = vrot.slane %v297, 1
  %v322 = vadd.f32 %v278, %v306
  %v323 = vadd.f32 %v279, %v307
  %v324 = vadd.f32 %v280, %v308
  %v325 = vadd.f32 %v281, %v309
  %v326 = vadd.f32 %v282, %v310
  %v327 = vadd.f32 %v283, %v311
  %v328 = vadd.f32 %v284, %v312
  %v329 = vadd.f32 %v285, %v313
  %v330 = vlaneseq
  %v331 = vshrl.u32 %v330, 7
  %v332 = vsub.s32 0, %v331
  %v333 = vrot.slane %v24, %v332
  %v334 = vmul.f32 %v322, %v333
  %v335 = vmul.f32 %v323, %v333
  %v336 = vmul.f32 %v324, %v333
  %v337 = vmul.f32 %v325, %v333
  %v338 = vmul.f32 %v326, %v333
  %v339 = vmul.f32 %v327, %v333
  %v340 = vmul.f32 %v328, %v333
  %v341 = vmul.f32 %v329, %v333
  %v342 = vlaneseq
  %v343 = vshrl.u32 %v342, 7
  %v344 = vsub.s32 1, %v343
  %v345 = vrot.slane %v24, %v344
  %v346 = vadd.f32 %v334, %v345
  %v347 = vadd.f32 %v335, %v345
  %v348 = vadd.f32 %v336, %v345
  %v349 = vadd.f32 %v337, %v345
  %v350 = vadd.f32 %v338, %v345
  %v351 = vadd.f32 %v339, %v345
  %v352 = vadd.f32 %v340, %v345
  %v353 = vadd.f32 %v341, %v345
  %v354 = vmax.f32 %v346, 0.0
  %v355 = vmax.f32 %v347, 0.0
  %v356 = vmax.f32 %v348, 0.0
  %v357 = vmax.f32 %v349, 0.0
  %v358 = vmax.f32 %v350, 0.0
  %v359 = vmax.f32 %v351, 0.0
  %v360 = vmax.f32 %v352, 0.0
  %v361 = vmax.f32 %v353, 0.0
  %v370 = vcombine.low %v354, %v355
  %v371 = vcombine.low %v356, %v357
  %v372 = vcombine.low %v358, %v359
  %v373 = vcombine.low %v360, %v361
  %v378 = vpack.c.bf16 %v371, %v370
  %v379 = vpack.c.bf16 %v373, %v372
  %v380 = vld [vmem:[%s3] sm:$0xf]
  %v381 = vld [vmem:[%s3 + $0x4] sm:$0xf]
  %v382 = vld [vmem:[%s3 + $0x8] sm:$0xf]
  %v383 = vld [vmem:[%s3 + $0xc] sm:$0xf]
  %v384 = vld [vmem:[%s3 + $0x10] sm:$0xf]
  %v385 = vld [vmem:[%s3 + $0x14] sm:$0xf]
  %v386 = vld [vmem:[%s3 + $0x18] sm:$0xf]
  %v387 = vld [vmem:[%s3 + $0x1c] sm:$0xf]
  %v396 = vunpack.c.l.b16 %v380
  %v397 = vunpack.c.l.b16 %v381
  %v398 = vunpack.c.l.b16 %v382
  %v399 = vunpack.c.l.b16 %v383
  %v400 = vunpack.c.l.b16 %v384
  %v401 = vunpack.c.l.b16 %v385
  %v402 = vunpack.c.l.b16 %v386
  %v403 = vunpack.c.l.b16 %v387
  %v404 = vpack.c.b16 %v397, %v396
  %v405 = vpack.c.b16 %v399, %v398
  %v406 = vpack.c.b16 %v401, %v400
  %v407 = vpack.c.b16 %v403, %v402
  %vm412 = vcmask 523264
  %v414 = vsel %vm412, %v378, 0
  %v417 = vsel %vm412, %v379, 0
  %419 = vmatprep.subr.bf16.mxu0 0
  %420 = vmatpush1.bf16.msra.mxu0 %v404
  %421 = vmatprep.subr.bf16.mxu0 0
  %422 = vmatpush1.bf16.msra.mxu0 %v405
  %423 = vmatprep.subr.bf16.mxu0 0
  %424 = vmatpush1.bf16.msra.mxu0 %v406
  %425 = vmatprep.subr.bf16.mxu0 0
  %426 = vmatpush1.bf16.msra.mxu0 %v407
  %427 = vmatprep.subr.bf16.mxu0 0
  %428 = vmatpush1.bf16.msra.mxu0 0
  %429 = vmatprep.subr.bf16.mxu0 0
  %430 = vmatpush1.bf16.msra.mxu0 0
  %431 = vmatprep.subr.bf16.mxu0 0
  %432 = vmatpush1.bf16.msra.mxu0 0
  %433 = vmatprep.subr.bf16.mxu0 0
  %434 = vmatpush1.bf16.msra.mxu0 0
  %435 = vmatprep.subr.bf16.mxu0 0
  %436 = vmatpush1.bf16.msra.mxu0 0
  %437 = vmatprep.subr.bf16.mxu0 0
  %438 = vmatpush1.bf16.msra.mxu0 0
  %439 = vmatprep.subr.bf16.mxu0 0
  %440 = vmatpush1.bf16.msra.mxu0 0
  %441 = vmatprep.subr.bf16.mxu0 0
  %442 = vmatpush1.bf16.msra.mxu0 0
  %443 = vmatprep.subr.bf16.mxu0 0
  %444 = vmatpush1.bf16.msra.mxu0 0
  %445 = vmatprep.subr.bf16.mxu0 0
  %446 = vmatpush1.bf16.msra.mxu0 0
  %447 = vmatprep.subr.bf16.mxu0 0
  %448 = vmatpush1.bf16.msra.mxu0 0
  %449 = vmatprep.subr.bf16.mxu0 0
  %450 = vmatpush1.bf16.msra.mxu0 0
  %451 = vmatprep.mubr.bf16.mxu0 0
  %452 = vmatmul.mubr.bf16.gmra.mrb[0].mxu0 %v414
  %v453 = vpop.f32.mrb[0].mxu0
  %v454 = vadd.f32 0.0, %v453
  %v455 = vpop.f32.mrb[0].mxu0
  %v456 = vpop.f32.mrb[0].mxu0
  %v457 = vadd.f32 0.0, %v456
  %v458 = vpop.f32.mrb[0].mxu0
  %459 = vmatprep.mubr.bf16.mxu0 0
  %460 = vmatmul.mubr.bf16.gmra.mrb[0].mxu0 %v417
  %v461 = vpop.f32.mrb[0].mxu0
  %v462 = vadd.f32 0.0, %v461
  %v463 = vpop.f32.mrb[0].mxu0
  %v464 = vpop.f32.mrb[0].mxu0
  %v465 = vadd.f32 0.0, %v464
  %v466 = vpop.f32.mrb[0].mxu0
  %467 = vdwg.mxu0
  %v468 = vld [vmem:[%s4] sm:$0x3]
  %v469 = vlaneseq
  %v470 = vshrl.u32 %v469, 7
  %v471 = vsub.s32 0, %v470
  %v472 = vrot.slane %v468, %v471
  %v473 = vmul.f32 %v454, %v472
  %v474 = vmul.f32 %v457, %v472
  %v475 = vmul.f32 %v462, %v472
  %v476 = vmul.f32 %v465, %v472
  %v477 = vlaneseq
  %v478 = vshrl.u32 %v477, 7
  %v479 = vsub.s32 1, %v478
  %v480 = vrot.slane %v468, %v479
  %v481 = vadd.f32 %v473, %v480
  %v482 = vadd.f32 %v474, %v480
  %v483 = vadd.f32 %v475, %v480
  %v484 = vadd.f32 %v476, %v480
  %v485 = vmax.f32 %v481, 0.0
  %v486 = vmax.f32 %v482, 0.0
  %v487 = vmax.f32 %v483, 0.0
  %v488 = vmax.f32 %v484, 0.0
  %v493 = vcombine.high %v485, %v485
  %v494 = vcombine.high %v486, %v486
  %v495 = vcombine.high %v487, %v487
  %v496 = vcombine.high %v488, %v488
  %501 = vst [vmem:[%s5] sm:$0xf] %v485
  %502 = vst [vmem:[%s5 + $0x4] sm:$0xf] %v493
  %503 = vst [vmem:[%s5 + $0x8] sm:$0xf] %v486
  %504 = vst [vmem:[%s5 + $0xc] sm:$0xf] %v494
  %505 = vst [vmem:[%s5 + $0x10] sm:$0xf] %v487
  %506 = vst [vmem:[%s5 + $0x14] sm:$0xf] %v495
  %507 = vst [vmem:[%s5 + $0x18] sm:$0xf] %v488
  %508 = vst [vmem:[%s5 + $0x1c] sm:$0xf] %v496
  // Predicated region
  $region22: #{forward.14} parent=0 // pred_check
    _
  $region23: #{forward.14} parent=0 // pred_check_branch
    %510 = sbr.rel (0) target = $region25
  $region24: #{forward.14} parent=0 // pred_region
    _
  $region25: #{forward.14} parent=0 // pred_fallthru
    _
  // Predicated region
  $region26: #{forward.14} parent=0 // pred_check
    _
  $region27: #{forward.14} parent=0 // pred_check_branch
    %512 = sbr.rel (0) target = $region29
  $region28: #{forward.14} parent=0 // pred_region
    _
  $region29: #{forward.14} parent=0 // pred_fallthru
    _

// kernel: forward.15
$region0: #{forward.15}
  #allocation0 [shape = 'u32[]', space=smem, size = 0x4, offset = 0x4, fixed_abs, tag = 'smem constant byte address 0x4 - core index']
  #allocation1 [shape = 'u32[144,128]{1,0:T(1,128)}', space=vmem, size = 0x12000, scoped, tag = 'internal scratch']
  %s0 = inlined_call_operand.vmem [shape: f32[1,2,6,6,128], index: 0, kind: input, shape index: {}]
  %s1 = inlined_call_operand.vmem [shape: f32[9,128], index: 1, kind: input, shape index: {}]
  %s2 = inlined_call_operand.vmem [shape: f32[2,128], index: 2, kind: input, shape index: {}]
  %s3 = inlined_call_operand.vmem [shape: bf16[128,128], index: 3, kind: input, shape index: {}]
  %s4 = inlined_call_operand.vmem [shape: f32[2,128], index: 4, kind: input, shape index: {}]
  %s5 = inlined_call_operand.vmem [shape: f32[2,4,4,128], index: 5, kind: output, shape index: {}]
  %s6 = sld [smem:[#allocation0]]
  $region30: #{forward.15} parent=0
    _
  %s8 = ssub.s32 1, %s6
  %s9 = scalar_select 0, %s8, %s6
  // Predicated region
  $region2: #{forward.15} parent=0 // pred_check
    _
  $region3: #{forward.15} parent=0 // pred_check_branch
    %11 = sbr.rel (0) target = $region5
  $region4: #{forward.15} parent=0 // pred_region
    _
  $region5: #{forward.15} parent=0 // pred_fallthru
    _
  // Predicated region
  $region6: #{forward.15} parent=0 // pred_check
    _
  $region7: #{forward.15} parent=0 // pred_check_branch
    %13 = sbr.rel (0) target = $region9
  $region8: #{forward.15} parent=0 // pred_region
    _
  $region9: #{forward.15} parent=0 // pred_fallthru
    _
  // Predicated region
  $region10: #{forward.15} parent=0 // pred_check
    _
  $region11: #{forward.15} parent=0 // pred_check_branch
    %15 = sbr.rel (0) target = $region13
  $region12: #{forward.15} parent=0 // pred_region
    _
  $region13: #{forward.15} parent=0 // pred_fallthru
    _
  // Predicated region
  $region14: #{forward.15} parent=0 // pred_check
    _
  $region15: #{forward.15} parent=0 // pred_check_branch
    %17 = sbr.rel (0) target = $region17
  $region16: #{forward.15} parent=0 // pred_region
    _
  $region17: #{forward.15} parent=0 // pred_fallthru
    _
  // Predicated region
  $region18: #{forward.15} parent=0 // pred_check
    _
  $region19: #{forward.15} parent=0 // pred_check_branch
    %19 = sbr.rel (0) target = $region21
  $region20: #{forward.15} parent=0 // pred_region
    _
  $region21: #{forward.15} parent=0 // pred_fallthru
    _
  %s21 = smul.u32 0, 4
  %v22 = vld [vmem:[%s1] sm:$0xff]
  %v23 = vld [vmem:[%s1 + $0x8] sm:$0x1]
  %v24 = vld [vmem:[%s2] sm:$0x3]
  %s25 = smul.u32 %s21, 8
  %s26 = scalar_lea.vmem %s0, %s25
  %v27 = vld [vmem:[%s26] sm:$0x3f]
  %v28 = vld [vmem:[%s26 + $0x8] sm:$0x3f]
  %v29 = vld [vmem:[%s26 + $0x10] sm:$0x3f]
  %v30 = vld [vmem:[%s26 + $0x18] sm:$0x3f]
  %v31 = vld [vmem:[%s26 + $0x30] sm:$0x3f]
  %v32 = vld [vmem:[%s26 + $0x38] sm:$0x3f]
  %v33 = vld [vmem:[%s26 + $0x40] sm:$0x3f]
  %v34 = vld [vmem:[%s26 + $0x48] sm:$0x3f]
  %v35 = vlaneseq
  %v36 = vshrl.u32 %v35, 7
  %v37 = vsub.s32 0, %v36
  %v38 = vrot.slane %v22, %v37
  %v39 = vmul.f32 %v27, %v38
  %v40 = vmul.f32 %v28, %v38
  %v41 = vmul.f32 %v29, %v38
  %v42 = vmul.f32 %v30, %v38
  %v43 = vmul.f32 %v31, %v38
  %v44 = vmul.f32 %v32, %v38
  %v45 = vmul.f32 %v33, %v38
  %v46 = vmul.f32 %v34, %v38
  %v47 = vlaneseq
  %v48 = vshrl.u32 %v47, 7
  %v49 = vsub.s32 1, %v48
  %v50 = vrot.slane %v22, %v49
  %v51 = vmul.f32 %v27, %v50
  %v52 = vmul.f32 %v28, %v50
  %v53 = vmul.f32 %v29, %v50
  %v54 = vmul.f32 %v30, %v50
  %v55 = vmul.f32 %v31, %v50
  %v56 = vmul.f32 %v32, %v50
  %v57 = vmul.f32 %v33, %v50
  %v58 = vmul.f32 %v34, %v50
  %v67 = vrot.slane %v51, 1
  %v68 = vrot.slane %v52, 1
  %v69 = vrot.slane %v53, 1
  %v70 = vrot.slane %v54, 1
  %v71 = vrot.slane %v55, 1
  %v72 = vrot.slane %v56, 1
  %v73 = vrot.slane %v57, 1
  %v74 = vrot.slane %v58, 1
  %v83 = vadd.f32 %v39, %v67
  %v84 = vadd.f32 %v40, %v68
  %v85 = vadd.f32 %v41, %v69
  %v86 = vadd.f32 %v42, %v70
  %v87 = vadd.f32 %v43, %v71
  %v88 = vadd.f32 %v44, %v72
  %v89 = vadd.f32 %v45, %v73
  %v90 = vadd.f32 %v46, %v74
  %v91 = vlaneseq
  %v92 = vshrl.u32 %v91, 7
  %v93 = vsub.s32 2, %v92
  %v94 = vrot.slane %v22, %v93
  %v95 = vmul.f32 %v27, %v94
  %v96 = vmul.f32 %v28, %v94
  %v97 = vmul.f32 %v29, %v94
  %v98 = vmul.f32 %v30, %v94
  %v99 = vmul.f32 %v31, %v94
  %v100 = vmul.f32 %v32, %v94
  %v101 = vmul.f32 %v33, %v94
  %v102 = vmul.f32 %v34, %v94
  %v111 = vrot.slane %v95, 2
  %v112 = vrot.slane %v96, 2
  %v113 = vrot.slane %v97, 2
  %v114 = vrot.slane %v98, 2
  %v115 = vrot.slane %v99, 2
  %v116 = vrot.slane %v100, 2
  %v117 = vrot.slane %v101, 2
  %v118 = vrot.slane %v102, 2
  %v127 = vadd.f32 %v83, %v111
  %v128 = vadd.f32 %v84, %v112
  %v129 = vadd.f32 %v85, %v113
  %v130 = vadd.f32 %v86, %v114
  %v131 = vadd.f32 %v87, %v115
  %v132 = vadd.f32 %v88, %v116
  %v133 = vadd.f32 %v89, %v117
  %v134 = vadd.f32 %v90, %v118
  %s135 = sadd.s32 %s21, 1
  %s136 = smul.u32 %s135, 8
  %s137 = scalar_lea.vmem %s0, %s136
  %v138 = vld [vmem:[%s137] sm:$0x3f]
  %v139 = vld [vmem:[%s137 + $0x8] sm:$0x3f]
  %v140 = vld [vmem:[%s137 + $0x10] sm:$0x3f]
  %v141 = vld [vmem:[%s137 + $0x18] sm:$0x3f]
  %v142 = vld [vmem:[%s137 + $0x30] sm:$0x3f]
  %v143 = vld [vmem:[%s137 + $0x38] sm:$0x3f]
  %v144 = vld [vmem:[%s137 + $0x40] sm:$0x3f]
  %v145 = vld [vmem:[%s137 + $0x48] sm:$0x3f]
  %v146 = vlaneseq
  %v147 = vshrl.u32 %v146, 7
  %v148 = vsub.s32 3, %v147
  %v149 = vrot.slane %v22, %v148
  %v150 = vmul.f32 %v138, %v149
  %v151 = vmul.f32 %v139, %v149
  %v152 = vmul.f32 %v140, %v149
  %v153 = vmul.f32 %v141, %v149
  %v154 = vmul.f32 %v142, %v149
  %v155 = vmul.f32 %v143, %v149
  %v156 = vmul.f32 %v144, %v149
  %v157 = vmul.f32 %v145, %v149
  %v158 = vadd.f32 %v127, %v150
  %v159 = vadd.f32 %v128, %v151
  %v160 = vadd.f32 %v129, %v152
  %v161 = vadd.f32 %v130, %v153
  %v162 = vadd.f32 %v131, %v154
  %v163 = vadd.f32 %v132, %v155
  %v164 = vadd.f32 %v133, %v156
  %v165 = vadd.f32 %v134, %v157
  %v166 = vlaneseq
  %v167 = vshrl.u32 %v166, 7
  %v168 = vsub.s32 4, %v167
  %v169 = vrot.slane %v22, %v168
  %v170 = vmul.f32 %v138, %v169
  %v171 = vmul.f32 %v139, %v169
  %v172 = vmul.f32 %v140, %v169
  %v173 = vmul.f32 %v141, %v169
  %v174 = vmul.f32 %v142, %v169
  %v175 = vmul.f32 %v143, %v169
  %v176 = vmul.f32 %v144, %v169
  %v177 = vmul.f32 %v145, %v169
  %v186 = vrot.slane %v170, 1
  %v187 = vrot.slane %v171, 1
  %v188 = vrot.slane %v172, 1
  %v189 = vrot.slane %v173, 1
  %v190 = vrot.slane %v174, 1
  %v191 = vrot.slane %v175, 1
  %v192 = vrot.slane %v176, 1
  %v193 = vrot.slane %v177, 1
  %v202 = vadd.f32 %v158, %v186
  %v203 = vadd.f32 %v159, %v187
  %v204 = vadd.f32 %v160, %v188
  %v205 = vadd.f32 %v161, %v189
  %v206 = vadd.f32 %v162, %v190
  %v207 = vadd.f32 %v163, %v191
  %v208 = vadd.f32 %v164, %v192
  %v209 = vadd.f32 %v165, %v193
  %v210 = vlaneseq
  %v211 = vshrl.u32 %v210, 7
  %v212 = vsub.s32 5, %v211
  %v213 = vrot.slane %v22, %v212
  %v214 = vmul.f32 %v138, %v213
  %v215 = vmul.f32 %v139, %v213
  %v216 = vmul.f32 %v140, %v213
  %v217 = vmul.f32 %v141, %v213
  %v218 = vmul.f32 %v142, %v213
  %v219 = vmul.f32 %v143, %v213
  %v220 = vmul.f32 %v144, %v213
  %v221 = vmul.f32 %v145, %v213
  %v230 = vrot.slane %v214, 2
  %v231 = vrot.slane %v215, 2
  %v232 = vrot.slane %v216, 2
  %v233 = vrot.slane %v217, 2
  %v234 = vrot.slane %v218, 2
  %v235 = vrot.slane %v219, 2
  %v236 = vrot.slane %v220, 2
  %v237 = vrot.slane %v221, 2
  %v246 = vadd.f32 %v202, %v230
  %v247 = vadd.f32 %v203, %v231
  %v248 = vadd.f32 %v204, %v232
  %v249 = vadd.f32 %v205, %v233
  %v250 = vadd.f32 %v206, %v234
  %v251 = vadd.f32 %v207, %v235
  %v252 = vadd.f32 %v208, %v236
  %v253 = vadd.f32 %v209, %v237
  %s254 = sadd.s32 %s21, 2
  %s255 = smul.u32 %s254, 8
  %s256 = scalar_lea.vmem %s0, %s255
  %v257 = vld [vmem:[%s256] sm:$0x3f]
  %v258 = vld [vmem:[%s256 + $0x8] sm:$0x3f]
  %v259 = vld [vmem:[%s256 + $0x10] sm:$0x3f]
  %v260 = vld [vmem:[%s256 + $0x18] sm:$0x3f]
  %v261 = vld [vmem:[%s256 + $0x30] sm:$0x3f]
  %v262 = vld [vmem:[%s256 + $0x38] sm:$0x3f]
  %v263 = vld [vmem:[%s256 + $0x40] sm:$0x3f]
  %v264 = vld [vmem:[%s256 + $0x48] sm:$0x3f]
  %v265 = vlaneseq
  %v266 = vshrl.u32 %v265, 7
  %v267 = vsub.s32 6, %v266
  %v268 = vrot.slane %v22, %v267
  %v269 = vmul.f32 %v257, %v268
  %v270 = vmul.f32 %v258, %v268
  %v271 = vmul.f32 %v259, %v268
  %v272 = vmul.f32 %v260, %v268
  %v273 = vmul.f32 %v261, %v268
  %v274 = vmul.f32 %v262, %v268
  %v275 = vmul.f32 %v263, %v268
  %v276 = vmul.f32 %v264, %v268
  %v277 = vadd.f32 %v246, %v269
  %v278 = vadd.f32 %v247, %v270
  %v279 = vadd.f32 %v248, %v271
  %v280 = vadd.f32 %v249, %v272
  %v281 = vadd.f32 %v250, %v273
  %v282 = vadd.f32 %v251, %v274
  %v283 = vadd.f32 %v252, %v275
  %v284 = vadd.f32 %v253, %v276
  %v285 = vlaneseq
  %v286 = vshrl.u32 %v285, 7
  %v287 = vsub.s32 7, %v286
  %v288 = vrot.slane %v22, %v287
  %v289 = vmul.f32 %v257, %v288
  %v290 = vmul.f32 %v258, %v288
  %v291 = vmul.f32 %v259, %v288
  %v292 = vmul.f32 %v260, %v288
  %v293 = vmul.f32 %v261, %v288
  %v294 = vmul.f32 %v262, %v288
  %v295 = vmul.f32 %v263, %v288
  %v296 = vmul.f32 %v264, %v288
  %v305 = vrot.slane %v289, 1
  %v306 = vrot.slane %v290, 1
  %v307 = vrot.slane %v291, 1
  %v308 = vrot.slane %v292, 1
  %v309 = vrot.slane %v293, 1
  %v310 = vrot.slane %v294, 1
  %v311 = vrot.slane %v295, 1
  %v312 = vrot.slane %v296, 1
  %v321 = vadd.f32 %v277, %v305
  %v322 = vadd.f32 %v278, %v306
  %v323 = vadd.f32 %v279, %v307
  %v324 = vadd.f32 %v280, %v308
  %v325 = vadd.f32 %v281, %v309
  %v326 = vadd.f32 %v282, %v310
  %v327 = vadd.f32 %v283, %v311
  %v328 = vadd.f32 %v284, %v312
  %v329 = vlaneseq
  %v330 = vshrl.u32 %v329, 7
  %v331 = vsub.s32 0, %v330
  %v332 = vrot.slane %v23, %v331
  %v333 = vmul.f32 %v257, %v332
  %v334 = vmul.f32 %v258, %v332
  %v335 = vmul.f32 %v259, %v332
  %v336 = vmul.f32 %v260, %v332
  %v337 = vmul.f32 %v261, %v332
  %v338 = vmul.f32 %v262, %v332
  %v339 = vmul.f32 %v263, %v332
  %v340 = vmul.f32 %v264, %v332
  %v349 = vrot.slane %v333, 2
  %v350 = vrot.slane %v334, 2
  %v351 = vrot.slane %v335, 2
  %v352 = vrot.slane %v336, 2
  %v353 = vrot.slane %v337, 2
  %v354 = vrot.slane %v338, 2
  %v355 = vrot.slane %v339, 2
  %v356 = vrot.slane %v340, 2
  %v365 = vadd.f32 %v321, %v349
  %v366 = vadd.f32 %v322, %v350
  %v367 = vadd.f32 %v323, %v351
  %v368 = vadd.f32 %v324, %v352
  %v369 = vadd.f32 %v325, %v353
  %v370 = vadd.f32 %v326, %v354
  %v371 = vadd.f32 %v327, %v355
  %v372 = vadd.f32 %v328, %v356
  %v373 = vlaneseq
  %v374 = vshrl.u32 %v373, 7
  %v375 = vsub.s32 0, %v374
  %v376 = vrot.slane %v24, %v375
  %v377 = vmul.f32 %v365, %v376
  %v378 = vmul.f32 %v366, %v376
  %v379 = vmul.f32 %v367, %v376
  %v380 = vmul.f32 %v368, %v376
  %v381 = vmul.f32 %v369, %v376
  %v382 = vmul.f32 %v370, %v376
  %v383 = vmul.f32 %v371, %v376
  %v384 = vmul.f32 %v372, %v376
  %v385 = vlaneseq
  %v386 = vshrl.u32 %v385, 7
  %v387 = vsub.s32 1, %v386
  %v388 = vrot.slane %v24, %v387
  %v389 = vadd.f32 %v377, %v388
  %v390 = vadd.f32 %v378, %v388
  %v391 = vadd.f32 %v379, %v388
  %v392 = vadd.f32 %v380, %v388
  %v393 = vadd.f32 %v381, %v388
  %v394 = vadd.f32 %v382, %v388
  %v395 = vadd.f32 %v383, %v388
  %v396 = vadd.f32 %v384, %v388
  %v397 = vmax.f32 %v389, 0.0
  %v398 = vmax.f32 %v390, 0.0
  %v399 = vmax.f32 %v391, 0.0
  %v400 = vmax.f32 %v392, 0.0
  %v401 = vmax.f32 %v393, 0.0
  %v402 = vmax.f32 %v394, 0.0
  %v403 = vmax.f32 %v395, 0.0
  %v404 = vmax.f32 %v396, 0.0
  %v413 = vcombine.low %v397, %v398
  %v414 = vcombine.low %v399, %v400
  %v415 = vcombine.low %v401, %v402
  %v416 = vcombine.low %v403, %v404
  %v421 = vpack.c.bf16 %v414, %v413
  %v422 = vpack.c.bf16 %v416, %v415
  %v423 = vld [vmem:[%s3] sm:$0xf]
  %v424 = vld [vmem:[%s3 + $0x4] sm:$0xf]
  %v425 = vld [vmem:[%s3 + $0x8] sm:$0xf]
  %v426 = vld [vmem:[%s3 + $0xc] sm:$0xf]
  %v427 = vld [vmem:[%s3 + $0x10] sm:$0xf]
  %v428 = vld [vmem:[%s3 + $0x14] sm:$0xf]
  %v429 = vld [vmem:[%s3 + $0x18] sm:$0xf]
  %v430 = vld [vmem:[%s3 + $0x1c] sm:$0xf]
  %v431 = vld [vmem:[%s3 + $0x20] sm:$0xf]
  %v432 = vld [vmem:[%s3 + $0x24] sm:$0xf]
  %v433 = vld [vmem:[%s3 + $0x28] sm:$0xf]
  %v434 = vld [vmem:[%s3 + $0x2c] sm:$0xf]
  %v435 = vld [vmem:[%s3 + $0x30] sm:$0xf]
  %v436 = vld [vmem:[%s3 + $0x34] sm:$0xf]
  %v437 = vld [vmem:[%s3 + $0x38] sm:$0xf]
  %v438 = vld [vmem:[%s3 + $0x3c] sm:$0xf]
  %v455 = vunpack.c.l.b16 %v423
  %v456 = vunpack.c.l.b16 %v424
  %v457 = vunpack.c.l.b16 %v425
  %v458 = vunpack.c.l.b16 %v426
  %v459 = vunpack.c.l.b16 %v427
  %v460 = vunpack.c.l.b16 %v428
  %v461 = vunpack.c.l.b16 %v429
  %v462 = vunpack.c.l.b16 %v430
  %v463 = vunpack.c.l.b16 %v431
  %v464 = vunpack.c.l.b16 %v432
  %v465 = vunpack.c.l.b16 %v433
  %v466 = vunpack.c.l.b16 %v434
  %v467 = vunpack.c.l.b16 %v435
  %v468 = vunpack.c.l.b16 %v436
  %v469 = vunpack.c.l.b16 %v437
  %v470 = vunpack.c.l.b16 %v438
  %v471 = vpack.c.b16 %v456, %v455
  %v472 = vpack.c.b16 %v458, %v457
  %v473 = vpack.c.b16 %v460, %v459
  %v474 = vpack.c.b16 %v462, %v461
  %v475 = vpack.c.b16 %v464, %v463
  %v476 = vpack.c.b16 %v466, %v465
  %v477 = vpack.c.b16 %v468, %v467
  %v478 = vpack.c.b16 %v470, %v469
  %487 = vmatprep.subr.bf16.mxu0 0
  %488 = vmatpush1.bf16.msra.mxu0 %v471
  %489 = vmatprep.subr.bf16.mxu0 0
  %490 = vmatpush1.bf16.msra.mxu0 %v472
  %491 = vmatprep.subr.bf16.mxu0 0
  %492 = vmatpush1.bf16.msra.mxu0 %v473
  %493 = vmatprep.subr.bf16.mxu0 0
  %494 = vmatpush1.bf16.msra.mxu0 %v474
  %495 = vmatprep.subr.bf16.mxu0 0
  %496 = vmatpush1.bf16.msra.mxu0 %v475
  %497 = vmatprep.subr.bf16.mxu0 0
  %498 = vmatpush1.bf16.msra.mxu0 %v476
  %499 = vmatprep.subr.bf16.mxu0 0
  %500 = vmatpush1.bf16.msra.mxu0 %v477
  %501 = vmatprep.subr.bf16.mxu0 0
  %502 = vmatpush1.bf16.msra.mxu0 %v478
  %503 = vmatprep.subr.bf16.mxu0 0
  %504 = vmatpush1.bf16.msra.mxu0 0
  %505 = vmatprep.subr.bf16.mxu0 0
  %506 = vmatpush1.bf16.msra.mxu0 0
  %507 = vmatprep.subr.bf16.mxu0 0
  %508 = vmatpush1.bf16.msra.mxu0 0
  %509 = vmatprep.subr.bf16.mxu0 0
  %510 = vmatpush1.bf16.msra.mxu0 0
  %511 = vmatprep.subr.bf16.mxu0 0
  %512 = vmatpush1.bf16.msra.mxu0 0
  %513 = vmatprep.subr.bf16.mxu0 0
  %514 = vmatpush1.bf16.msra.mxu0 0
  %515 = vmatprep.subr.bf16.mxu0 0
  %516 = vmatpush1.bf16.msra.mxu0 0
  %517 = vmatprep.subr.bf16.mxu0 0
  %518 = vmatpush1.bf16.msra.mxu0 0
  %519 = vmatprep.mubr.bf16.mxu0 0
  %520 = vmatmul.mubr.bf16.gmra.mrb[0].mxu0 %v421
  %v521 = vpop.f32.mrb[0].mxu0
  %v522 = vadd.f32 0.0, %v521
  %v523 = vpop.f32.mrb[0].mxu0
  %v524 = vpop.f32.mrb[0].mxu0
  %v525 = vadd.f32 0.0, %v524
  %v526 = vpop.f32.mrb[0].mxu0
  %527 = vmatprep.mubr.bf16.mxu0 0
  %528 = vmatmul.mubr.bf16.gmra.mrb[0].mxu0 %v422
  %v529 = vpop.f32.mrb[0].mxu0
  %v530 = vadd.f32 0.0, %v529
  %v531 = vpop.f32.mrb[0].mxu0
  %v532 = vpop.f32.mrb[0].mxu0
  %v533 = vadd.f32 0.0, %v532
  %v534 = vpop.f32.mrb[0].mxu0
  %535 = vdwg.mxu0
  %v536 = vld [vmem:[%s4] sm:$0x3]
  %v537 = vlaneseq
  %v538 = vshrl.u32 %v537, 7
  %v539 = vsub.s32 0, %v538
  %v540 = vrot.slane %v536, %v539
  %v541 = vmul.f32 %v522, %v540
  %v542 = vmul.f32 %v525, %v540
  %v543 = vmul.f32 %v530, %v540
  %v544 = vmul.f32 %v533, %v540
  %v545 = vlaneseq
  %v546 = vshrl.u32 %v545, 7
  %v547 = vsub.s32 1, %v546
  %v548 = vrot.slane %v536, %v547
  %v549 = vadd.f32 %v541, %v548
  %v550 = vadd.f32 %v542, %v548
  %v551 = vadd.f32 %v543, %v548
  %v552 = vadd.f32 %v544, %v548
  %v553 = vmax.f32 %v549, 0.0
  %v554 = vmax.f32 %v550, 0.0
  %v555 = vmax.f32 %v551, 0.0
  %v556 = vmax.f32 %v552, 0.0
  %v561 = vcombine.high %v553, %v553
  %v562 = vcombine.high %v554, %v554
  %v563 = vcombine.high %v555, %v555
  %v564 = vcombine.high %v556, %v556
  %569 = vst [vmem:[%s5] sm:$0xf] %v553
  %570 = vst [vmem:[%s5 + $0x4] sm:$0xf] %v561
  %571 = vst [vmem:[%s5 + $0x8] sm:$0xf] %v554
  %572 = vst [vmem:[%s5 + $0xc] sm:$0xf] %v562
  %573 = vst [vmem:[%s5 + $0x10] sm:$0xf] %v555
  %574 = vst [vmem:[%s5 + $0x14] sm:$0xf] %v563
  %575 = vst [vmem:[%s5 + $0x18] sm:$0xf] %v556
  %576 = vst [vmem:[%s5 + $0x1c] sm:$0xf] %v564
  // Predicated region
  $region22: #{forward.15} parent=0 // pred_check
    _
  $region23: #{forward.15} parent=0 // pred_check_branch
    %578 = sbr.rel (0) target = $region25
  $region24: #{forward.15} parent=0 // pred_region
    _
  $region25: #{forward.15} parent=0 // pred_fallthru
    _
  // Predicated region
  $region26: #{forward.15} parent=0 // pred_check
    _
  $region27: #{forward.15} parent=0 // pred_check_branch
    %580 = sbr.rel (0) target = $region29
  $region28: #{forward.15} parent=0 // pred_region
    _
  $region29: #{forward.15} parent=0 // pred_fallthru
    _

// kernel: forward.16
$region0: #{forward.16}
  #allocation0 [shape = 'u32[]', space=smem, size = 0x4, offset = 0x4, fixed_abs, tag = 'smem constant byte address 0x4 - core index']
  #allocation1 [shape = 'u32[144,128]{1,0:T(1,128)}', space=vmem, size = 0x12000, scoped, tag = 'internal scratch']
  %s0 = inlined_call_operand.vmem [shape: f32[4,2,3,3,128], index: 0, kind: input, shape index: {}]
  %s1 = inlined_call_operand.vmem [shape: f32[9,128], index: 1, kind: input, shape index: {}]
  %s2 = inlined_call_operand.vmem [shape: f32[2,128], index: 2, kind: input, shape index: {}]
  %s3 = inlined_call_operand.vmem [shape: bf16[128,256], index: 3, kind: input, shape index: {}]
  %s4 = inlined_call_operand.vmem [shape: f32[2,256], index: 4, kind: input, shape index: {}]
  %s5 = inlined_call_operand.vmem [shape: f32[2,2,2,256], index: 5, kind: output, shape index: {}]
  %s6 = sld [smem:[#allocation0]]
  $region30: #{forward.16} parent=0
    _
  %s8 = ssub.s32 1, %s6
  %s9 = scalar_select 0, %s8, %s6
  // Predicated region
  $region2: #{forward.16} parent=0 // pred_check
    _
  $region3: #{forward.16} parent=0 // pred_check_branch
    %11 = sbr.rel (0) target = $region5
  $region4: #{forward.16} parent=0 // pred_region
    _
  $region5: #{forward.16} parent=0 // pred_fallthru
    _
  // Predicated region
  $region6: #{forward.16} parent=0 // pred_check
    _
  $region7: #{forward.16} parent=0 // pred_check_branch
    %13 = sbr.rel (0) target = $region9
  $region8: #{forward.16} parent=0 // pred_region
    _
  $region9: #{forward.16} parent=0 // pred_fallthru
    _
  // Predicated region
  $region10: #{forward.16} parent=0 // pred_check
    _
  $region11: #{forward.16} parent=0 // pred_check_branch
    %15 = sbr.rel (0) target = $region13
  $region12: #{forward.16} parent=0 // pred_region
    _
  $region13: #{forward.16} parent=0 // pred_fallthru
    _
  // Predicated region
  $region14: #{forward.16} parent=0 // pred_check
    _
  $region15: #{forward.16} parent=0 // pred_check_branch
    %17 = sbr.rel (0) target = $region17
  $region16: #{forward.16} parent=0 // pred_region
    _
  $region17: #{forward.16} parent=0 // pred_fallthru
    _
  // Predicated region
  $region18: #{forward.16} parent=0 // pred_check
    _
  $region19: #{forward.16} parent=0 // pred_check_branch
    %19 = sbr.rel (0) target = $region21
  $region20: #{forward.16} parent=0 // pred_region
    _
  $region21: #{forward.16} parent=0 // pred_fallthru
    _
  %s21 = smul.u32 0, 2
  %v22 = vld [vmem:[%s1] sm:$0xff]
  %v23 = vld [vmem:[%s1 + $0x8] sm:$0x1]
  %v24 = vld [vmem:[%s2] sm:$0x3]
  %s25 = smul.u32 %s21, 4
  %s26 = scalar_lea.vmem %s0, %s25
  %v27 = vld [vmem:[%s26] sm:$0x7]
  %v28 = vld [vmem:[%s26 + $0x4] sm:$0x7]
  %v29 = vld [vmem:[%s26 + $0xc] sm:$0x7]
  %v30 = vld [vmem:[%s26 + $0x10] sm:$0x7]
  %v31 = vlaneseq
  %v32 = vshrl.u32 %v31, 7
  %v33 = vsub.s32 0, %v32
  %v34 = vrot.slane %v22, %v33
  %v35 = vmul.f32 %v27, %v34
  %v36 = vmul.f32 %v28, %v34
  %v37 = vmul.f32 %v29, %v34
  %v38 = vmul.f32 %v30, %v34
  %s39 = sadd.s32 %s25, 24
  %s40 = scalar_lea.vmem %s0, %s39
  %v41 = vld [vmem:[%s40] sm:$0x7]
  %v42 = vld [vmem:[%s40 + $0x4] sm:$0x7]
  %v43 = vld [vmem:[%s40 + $0xc] sm:$0x7]
  %v44 = vld [vmem:[%s40 + $0x10] sm:$0x7]
  %v45 = vlaneseq
  %v46 = vshrl.u32 %v45, 7
  %v47 = vsub.s32 1, %v46
  %v48 = vrot.slane %v22, %v47
  %v49 = vmul.f32 %v41, %v48
  %v50 = vmul.f32 %v42, %v48
  %v51 = vmul.f32 %v43, %v48
  %v52 = vmul.f32 %v44, %v48
  %v53 = vadd.f32 %v35, %v49
  %v54 = vadd.f32 %v36, %v50
  %v55 = vadd.f32 %v37, %v51
  %v56 = vadd.f32 %v38, %v52
  %v57 = vlaneseq
  %v58 = vshrl.u32 %v57, 7
  %v59 = vsub.s32 2, %v58
  %v60 = vrot.slane %v22, %v59
  %v61 = vmul.f32 %v27, %v60
  %v62 = vmul.f32 %v28, %v60
  %v63 = vmul.f32 %v29, %v60
  %v64 = vmul.f32 %v30, %v60
  %v69 = vrot.slane %v61, 1
  %v70 = vrot.slane %v62, 1
  %v71 = vrot.slane %v63, 1
  %v72 = vrot.slane %v64, 1
  %v77 = vadd.f32 %v53, %v69
  %v78 = vadd.f32 %v54, %v70
  %v79 = vadd.f32 %v55, %v71
  %v80 = vadd.f32 %v56, %v72
  %s81 = sadd.s32 %s25, 48
  %s82 = scalar_lea.vmem %s0, %s81
  %v83 = vld [vmem:[%s82] sm:$0x7]
  %v84 = vld [vmem:[%s82 + $0x4] sm:$0x7]
  %v85 = vld [vmem:[%s82 + $0xc] sm:$0x7]
  %v86 = vld [vmem:[%s82 + $0x10] sm:$0x7]
  %v87 = vlaneseq
  %v88 = vshrl.u32 %v87, 7
  %v89 = vsub.s32 3, %v88
  %v90 = vrot.slane %v22, %v89
  %v91 = vmul.f32 %v83, %v90
  %v92 = vmul.f32 %v84, %v90
  %v93 = vmul.f32 %v85, %v90
  %v94 = vmul.f32 %v86, %v90
  %v95 = vadd.f32 %v77, %v91
  %v96 = vadd.f32 %v78, %v92
  %v97 = vadd.f32 %v79, %v93
  %v98 = vadd.f32 %v80, %v94
  %s99 = sadd.s32 %s25, 72
  %s100 = scalar_lea.vmem %s0, %s99
  %v101 = vld [vmem:[%s100] sm:$0x7]
  %v102 = vld [vmem:[%s100 + $0x4] sm:$0x7]
  %v103 = vld [vmem:[%s100 + $0xc] sm:$0x7]
  %v104 = vld [vmem:[%s100 + $0x10] sm:$0x7]
  %v105 = vlaneseq
  %v106 = vshrl.u32 %v105, 7
  %v107 = vsub.s32 4, %v106
  %v108 = vrot.slane %v22, %v107
  %v109 = vmul.f32 %v101, %v108
  %v110 = vmul.f32 %v102, %v108
  %v111 = vmul.f32 %v103, %v108
  %v112 = vmul.f32 %v104, %v108
  %v113 = vadd.f32 %v95, %v109
  %v114 = vadd.f32 %v96, %v110
  %v115 = vadd.f32 %v97, %v111
  %v116 = vadd.f32 %v98, %v112
  %v117 = vlaneseq
  %v118 = vshrl.u32 %v117, 7
  %v119 = vsub.s32 5, %v118
  %v120 = vrot.slane %v22, %v119
  %v121 = vmul.f32 %v83, %v120
  %v122 = vmul.f32 %v84, %v120
  %v123 = vmul.f32 %v85, %v120
  %v124 = vmul.f32 %v86, %v120
  %v129 = vrot.slane %v121, 1
  %v130 = vrot.slane %v122, 1
  %v131 = vrot.slane %v123, 1
  %v132 = vrot.slane %v124, 1
  %v137 = vadd.f32 %v113, %v129
  %v138 = vadd.f32 %v114, %v130
  %v139 = vadd.f32 %v115, %v131
  %v140 = vadd.f32 %v116, %v132
  %s141 = sadd.s32 %s21, 1
  %s142 = smul.u32 %s141, 4
  %s143 = scalar_lea.vmem %s0, %s142
  %v144 = vld [vmem:[%s143] sm:$0x7]
  %v145 = vld [vmem:[%s143 + $0x4] sm:$0x7]
  %v146 = vld [vmem:[%s143 + $0xc] sm:$0x7]
  %v147 = vld [vmem:[%s143 + $0x10] sm:$0x7]
  %v148 = vlaneseq
  %v149 = vshrl.u32 %v148, 7
  %v150 = vsub.s32 6, %v149
  %v151 = vrot.slane %v22, %v150
  %v152 = vmul.f32 %v144, %v151
  %v153 = vmul.f32 %v145, %v151
  %v154 = vmul.f32 %v146, %v151
  %v155 = vmul.f32 %v147, %v151
  %v156 = vadd.f32 %v137, %v152
  %v157 = vadd.f32 %v138, %v153
  %v158 = vadd.f32 %v139, %v154
  %v159 = vadd.f32 %v140, %v155
  %s160 = sadd.s32 %s142, 24
  %s161 = scalar_lea.vmem %s0, %s160
  %v162 = vld [vmem:[%s161] sm:$0x7]
  %v163 = vld [vmem:[%s161 + $0x4] sm:$0x7]
  %v164 = vld [vmem:[%s161 + $0xc] sm:$0x7]
  %v165 = vld [vmem:[%s161 + $0x10] sm:$0x7]
  %v166 = vlaneseq
  %v167 = vshrl.u32 %v166, 7
  %v168 = vsub.s32 7, %v167
  %v169 = vrot.slane %v22, %v168
  %v170 = vmul.f32 %v162, %v169
  %v171 = vmul.f32 %v163, %v169
  %v172 = vmul.f32 %v164, %v169
  %v173 = vmul.f32 %v165, %v169
  %v174 = vadd.f32 %v156, %v170
  %v175 = vadd.f32 %v157, %v171
  %v176 = vadd.f32 %v158, %v172
  %v177 = vadd.f32 %v159, %v173
  %v178 = vlaneseq
  %v179 = vshrl.u32 %v178, 7
  %v180 = vsub.s32 0, %v179
  %v181 = vrot.slane %v23, %v180
  %v182 = vmul.f32 %v144, %v181
  %v183 = vmul.f32 %v145, %v181
  %v184 = vmul.f32 %v146, %v181
  %v185 = vmul.f32 %v147, %v181
  %v190 = vrot.slane %v182, 1
  %v191 = vrot.slane %v183, 1
  %v192 = vrot.slane %v184, 1
  %v193 = vrot.slane %v185, 1
  %v198 = vadd.f32 %v174, %v190
  %v199 = vadd.f32 %v175, %v191
  %v200 = vadd.f32 %v176, %v192
  %v201 = vadd.f32 %v177, %v193
  %v202 = vlaneseq
  %v203 = vshrl.u32 %v202, 7
  %v204 = vsub.s32 0, %v203
  %v205 = vrot.slane %v24, %v204
  %v206 = vmul.f32 %v198, %v205
  %v207 = vmul.f32 %v199, %v205
  %v208 = vmul.f32 %v200, %v205
  %v209 = vmul.f32 %v201, %v205
  %v210 = vlaneseq
  %v211 = vshrl.u32 %v210, 7
  %v212 = vsub.s32 1, %v211
  %v213 = vrot.slane %v24, %v212
  %v214 = vadd.f32 %v206, %v213
  %v215 = vadd.f32 %v207, %v213
  %v216 = vadd.f32 %v208, %v213
  %v217 = vadd.f32 %v209, %v213
  %v218 = vmax.f32 %v214, 0.0
  %v219 = vmax.f32 %v215, 0.0
  %v220 = vmax.f32 %v216, 0.0
  %v221 = vmax.f32 %v217, 0.0
  %v226 = vcombine.low %v218, %v219
  %v227 = vcombine.low %v220, %v221
  %v229 = vunpack.c.l.s4 1983009808
  %v230 = vunpack.c.0.s8 %v229
  %v231 = vlaneseq
  %v232 = vshrl.u32 %v231, 7
  %v233 = vsub.s32 %v230, %v232
  %v234 = vrot.slane %v226, %v233
  %v236 = vunpack.c.l.s4 1983009808
  %v237 = vunpack.c.0.s8 %v236
  %v238 = vlaneseq
  %v239 = vshrl.u32 %v238, 7
  %v240 = vsub.s32 %v237, %v239
  %v241 = vrot.slane %v227, %v240
  %v242 = vcombine.low %v234, %v241
  %v244 = vpack.c.bf16 %v242, %v242
  %v245 = vld [vmem:[%s3] sm:$0xff]
  %v246 = vld [vmem:[%s3 + $0x8] sm:$0xff]
  %v247 = vld [vmem:[%s3 + $0x10] sm:$0xff]
  %v248 = vld [vmem:[%s3 + $0x18] sm:$0xff]
  %v249 = vld [vmem:[%s3 + $0x20] sm:$0xff]
  %v250 = vld [vmem:[%s3 + $0x28] sm:$0xff]
  %v251 = vld [vmem:[%s3 + $0x30] sm:$0xff]
  %v252 = vld [vmem:[%s3 + $0x38] sm:$0xff]
  %v253 = vld [vmem:[%s3 + $0x40] sm:$0xff]
  %v254 = vld [vmem:[%s3 + $0x48] sm:$0xff]
  %v255 = vld [vmem:[%s3 + $0x50] sm:$0xff]
  %v256 = vld [vmem:[%s3 + $0x58] sm:$0xff]
  %v257 = vld [vmem:[%s3 + $0x60] sm:$0xff]
  %v258 = vld [vmem:[%s3 + $0x68] sm:$0xff]
  %v259 = vld [vmem:[%s3 + $0x70] sm:$0xff]
  %v260 = vld [vmem:[%s3 + $0x78] sm:$0xff]
  %v277 = vunpack.c.l.b16 %v245
  %v278 = vunpack.c.h.b16 %v245
  %v279 = vunpack.c.l.b16 %v246
  %v280 = vunpack.c.h.b16 %v246
  %v281 = vunpack.c.l.b16 %v247
  %v282 = vunpack.c.h.b16 %v247
  %v283 = vunpack.c.l.b16 %v248
  %v284 = vunpack.c.h.b16 %v248
  %v285 = vunpack.c.l.b16 %v249
  %v286 = vunpack.c.h.b16 %v249
  %v287 = vunpack.c.l.b16 %v250
  %v288 = vunpack.c.h.b16 %v250
  %v289 = vunpack.c.l.b16 %v251
  %v290 = vunpack.c.h.b16 %v251
  %v291 = vunpack.c.l.b16 %v252
  %v292 = vunpack.c.h.b16 %v252
  %v293 = vunpack.c.l.b16 %v253
  %v294 = vunpack.c.h.b16 %v253
  %v295 = vunpack.c.l.b16 %v254
  %v296 = vunpack.c.h.b16 %v254
  %v297 = vunpack.c.l.b16 %v255
  %v298 = vunpack.c.h.b16 %v255
  %v299 = vunpack.c.l.b16 %v256
  %v300 = vunpack.c.h.b16 %v256
  %v301 = vunpack.c.l.b16 %v257
  %v302 = vunpack.c.h.b16 %v257
  %v303 = vunpack.c.l.b16 %v258
  %v304 = vunpack.c.h.b16 %v258
  %v305 = vunpack.c.l.b16 %v259
  %v306 = vunpack.c.h.b16 %v259
  %v307 = vunpack.c.l.b16 %v260
  %v308 = vunpack.c.h.b16 %v260
  %v309 = vpack.c.b16 %v279, %v277
  %v310 = vpack.c.b16 %v280, %v278
  %v311 = vpack.c.b16 %v283, %v281
  %v312 = vpack.c.b16 %v284, %v282
  %v313 = vpack.c.b16 %v287, %v285
  %v314 = vpack.c.b16 %v288, %v286
  %v315 = vpack.c.b16 %v291, %v289
  %v316 = vpack.c.b16 %v292, %v290
  %v317 = vpack.c.b16 %v295, %v293
  %v318 = vpack.c.b16 %v296, %v294
  %v319 = vpack.c.b16 %v299, %v297
  %v320 = vpack.c.b16 %v300, %v298
  %v321 = vpack.c.b16 %v303, %v301
  %v322 = vpack.c.b16 %v304, %v302
  %v323 = vpack.c.b16 %v307, %v305
  %v324 = vpack.c.b16 %v308, %v306
  %341 = vmatprep.subr.bf16.mxu0 %v310
  %342 = vmatpush1.bf16.msra.mxu0 %v309
  %343 = vmatprep.subr.bf16.mxu0 %v312
  %344 = vmatpush1.bf16.msra.mxu0 %v311
  %345 = vmatprep.subr.bf16.mxu0 %v314
  %346 = vmatpush1.bf16.msra.mxu0 %v313
  %347 = vmatprep.subr.bf16.mxu0 %v316
  %348 = vmatpush1.bf16.msra.mxu0 %v315
  %349 = vmatprep.subr.bf16.mxu0 %v318
  %350 = vmatpush1.bf16.msra.mxu0 %v317
  %351 = vmatprep.subr.bf16.mxu0 %v320
  %352 = vmatpush1.bf16.msra.mxu0 %v319
  %353 = vmatprep.subr.bf16.mxu0 %v322
  %354 = vmatpush1.bf16.msra.mxu0 %v321
  %355 = vmatprep.subr.bf16.mxu0 %v324
  %356 = vmatpush1.bf16.msra.mxu0 %v323
  %357 = vmatprep.subr.bf16.mxu0 0
  %358 = vmatpush1.bf16.msra.mxu0 0
  %359 = vmatprep.subr.bf16.mxu0 0
  %360 = vmatpush1.bf16.msra.mxu0 0
  %361 = vmatprep.subr.bf16.mxu0 0
  %362 = vmatpush1.bf16.msra.mxu0 0
  %363 = vmatprep.subr.bf16.mxu0 0
  %364 = vmatpush1.bf16.msra.mxu0 0
  %365 = vmatprep.subr.bf16.mxu0 0
  %366 = vmatpush1.bf16.msra.mxu0 0
  %367 = vmatprep.subr.bf16.mxu0 0
  %368 = vmatpush1.bf16.msra.mxu0 0
  %369 = vmatprep.subr.bf16.mxu0 0
  %370 = vmatpush1.bf16.msra.mxu0 0
  %371 = vmatprep.subr.bf16.mxu0 0
  %372 = vmatpush1.bf16.msra.mxu0 0
  %373 = vmatprep.mubr.bf16.mxu0 0
  %374 = vmatmul.mubr.bf16.gmra.mrb[0].mxu0 %v244
  %v375 = vpop.f32.mrb[0].mxu0
  %v376 = vadd.f32 0.0, %v375
  %v377 = vpop.f32.mrb[0].mxu0
  %v378 = vadd.f32 0.0, %v377
  %v379 = vpop.f32.mrb[0].mxu0
  %v380 = vpop.f32.mrb[0].mxu0
  %381 = vdwg.mxu0
  %v382 = vld [vmem:[%s4] sm:$0xf]
  %v384 = vlaneseq
  %v385 = vshrl.u32 %v384, 7
  %v386 = vsub.s32 0, %v385
  %v387 = vrot.slane %v382, %v386
  %v388 = vlaneseq
  %v389 = vshrl.u32 %v388, 7
  %v390 = vsub.s32 2, %v389
  %v391 = vrot.slane %v382, %v390
  %v394 = vlaneseq
  %v395 = vshrl.u32 %v394, 7
  %v396 = vsub.s32 0, %v395
  %v397 = vrot.slane %v387, %v396
  %v398 = vlaneseq
  %v399 = vshrl.u32 %v398, 7
  %v400 = vsub.s32 0, %v399
  %v401 = vrot.slane %v391, %v400
  %v402 = vmul.f32 %v376, %v397
  %v403 = vmul.f32 %v378, %v401
  %v404 = vlaneseq
  %v405 = vshrl.u32 %v404, 7
  %v406 = vsub.s32 1, %v405
  %v407 = vrot.slane %v382, %v406
  %v408 = vlaneseq
  %v409 = vshrl.u32 %v408, 7
  %v410 = vsub.s32 3, %v409
  %v411 = vrot.slane %v382, %v410
  %v414 = vlaneseq
  %v415 = vshrl.u32 %v414, 7
  %v416 = vsub.s32 1, %v415
  %v417 = vrot.slane %v407, %v416
  %v418 = vlaneseq
  %v419 = vshrl.u32 %v418, 7
  %v420 = vsub.s32 1, %v419
  %v421 = vrot.slane %v411, %v420
  %v422 = vadd.f32 %v402, %v417
  %v423 = vadd.f32 %v403, %v421
  %v424 = vmax.f32 %v422, 0.0
  %v425 = vmax.f32 %v423, 0.0
  %v428 = vcombine.low %v424, %v425
  %v429 = vcombine.high %v424, %v425
  %v431 = vunpack.c.l.s4 1983009808
  %v432 = vunpack.c.0.s8 %v431
  %v433 = vlaneseq
  %v434 = vshrl.u32 %v433, 7
  %v435 = vsub.s32 %v432, %v434
  %v436 = vrot.slane %v428, %v435
  %v438 = vunpack.c.l.s4 1983009808
  %v439 = vunpack.c.0.s8 %v438
  %v440 = vlaneseq
  %v441 = vshrl.u32 %v440, 7
  %v442 = vsub.s32 %v439, %v441
  %v443 = vrot.slane %v429, %v442
  %v444 = vcombine.high %v436, %v436
  %v445 = vcombine.high %v443, %v443
  %450 = vst [vmem:[%s5] sm:$0xf] %v436
  %451 = vst [vmem:[%s5 + $0x4] sm:$0xf] %v444
  %452 = vst [vmem:[%s5 + $0x8] sm:$0xf] %v443
  %453 = vst [vmem:[%s5 + $0xc] sm:$0xf] %v445
  // Predicated region
  $region22: #{forward.16} parent=0 // pred_check
    _
  $region23: #{forward.16} parent=0 // pred_check_branch
    %455 = sbr.rel (0) target = $region25
  $region24: #{forward.16} parent=0 // pred_region
    _
  $region25: #{forward.16} parent=0 // pred_fallthru
    _
  // Predicated region
  $region26: #{forward.16} parent=0 // pred_check
    _
  $region27: #{forward.16} parent=0 // pred_check_branch
    %457 = sbr.rel (0) target = $region29
  $region28: #{forward.16} parent=0 // pred_region
    _
  $region29: #{forward.16} parent=0 // pred_fallthru
    _

// kernel: forward.17
$region0: #{forward.17}
  #allocation0 [shape = 'u32[]', space=smem, size = 0x4, offset = 0x4, fixed_abs, tag = 'smem constant byte address 0x4 - core index']
  #allocation1 [shape = 'u32[144,128]{1,0:T(1,128)}', space=vmem, size = 0x12000, scoped, tag = 'internal scratch']
  %s0 = inlined_call_operand.vmem [shape: f32[1,2,4,4,256], index: 0, kind: input, shape index: {}]
  %s1 = inlined_call_operand.vmem [shape: f32[9,256], index: 1, kind: input, shape index: {}]
  %s2 = inlined_call_operand.vmem [shape: f32[2,256], index: 2, kind: input, shape index: {}]
  %s3 = inlined_call_operand.vmem [shape: bf16[256,256], index: 3, kind: input, shape index: {}]
  %s4 = inlined_call_operand.vmem [shape: f32[2,256], index: 4, kind: input, shape index: {}]
  %s5 = inlined_call_operand.vmem [shape: f32[2,2,2,256], index: 5, kind: output, shape index: {}]
  %s6 = sld [smem:[#allocation0]]
  $region30: #{forward.17} parent=0
    _
  %s8 = ssub.s32 1, %s6
  %s9 = scalar_select 0, %s8, %s6
  // Predicated region
  $region2: #{forward.17} parent=0 // pred_check
    _
  $region3: #{forward.17} parent=0 // pred_check_branch
    %11 = sbr.rel (0) target = $region5
  $region4: #{forward.17} parent=0 // pred_region
    _
  $region5: #{forward.17} parent=0 // pred_fallthru
    _
  // Predicated region
  $region6: #{forward.17} parent=0 // pred_check
    _
  $region7: #{forward.17} parent=0 // pred_check_branch
    %13 = sbr.rel (0) target = $region9
  $region8: #{forward.17} parent=0 // pred_region
    _
  $region9: #{forward.17} parent=0 // pred_fallthru
    _
  // Predicated region
  $region10: #{forward.17} parent=0 // pred_check
    _
  $region11: #{forward.17} parent=0 // pred_check_branch
    %15 = sbr.rel (0) target = $region13
  $region12: #{forward.17} parent=0 // pred_region
    _
  $region13: #{forward.17} parent=0 // pred_fallthru
    _
  // Predicated region
  $region14: #{forward.17} parent=0 // pred_check
    _
  $region15: #{forward.17} parent=0 // pred_check_branch
    %17 = sbr.rel (0) target = $region17
  $region16: #{forward.17} parent=0 // pred_region
    _
  $region17: #{forward.17} parent=0 // pred_fallthru
    _
  // Predicated region
  $region18: #{forward.17} parent=0 // pred_check
    _
  $region19: #{forward.17} parent=0 // pred_check_branch
    %19 = sbr.rel (0) target = $region21
  $region20: #{forward.17} parent=0 // pred_region
    _
  $region21: #{forward.17} parent=0 // pred_fallthru
    _
  %s20 = smul.u32 0, 2
  %v21 = vld [vmem:[%s1] sm:$0xff]
  %v22 = vld [vmem:[%s1 + $0x8] sm:$0xff]
  %v23 = vld [vmem:[%s1 + $0x10] sm:$0x1]
  %v24 = vld [vmem:[%s1 + $0x18] sm:$0x1]
  %v25 = vld [vmem:[%s2] sm:$0xf]
  %s26 = smul.u32 %s20, 2
  %s27 = smul.addr %s26, 4
  %s28 = scalar_lea.vmem %s0, %s27
  %v29 = vld [vmem:[%s28] sm:$0xff]
  %v30 = vld [vmem:[%s28 + $0x8] sm:$0xff]
  %v31 = vld [vmem:[%s28 + $0x20] sm:$0xff]
  %v32 = vld [vmem:[%s28 + $0x28] sm:$0xff]
  %v33 = vlaneseq
  %v34 = vshrl.u32 %v33, 7
  %v35 = vsub.s32 0, %v34
  %v36 = vrot.slane %v21, %v35
  %v37 = vlaneseq
  %v38 = vshrl.u32 %v37, 7
  %v39 = vsub.s32 0, %v38
  %v40 = vrot.slane %v22, %v39
  %v43 = vcombine.low %v36, %v40
  %v45 = vmul.f32 %v29, %v43
  %v46 = vmul.f32 %v30, %v43
  %v47 = vmul.f32 %v31, %v43
  %v48 = vmul.f32 %v32, %v43
  %v49 = vlaneseq
  %v50 = vshrl.u32 %v49, 7
  %v51 = vsub.s32 1, %v50
  %v52 = vrot.slane %v21, %v51
  %v53 = vlaneseq
  %v54 = vshrl.u32 %v53, 7
  %v55 = vsub.s32 1, %v54
  %v56 = vrot.slane %v22, %v55
  %v59 = vcombine.low %v52, %v56
  %v60 = vrot.slane %v59, 7
  %v62 = vmul.f32 %v29, %v60
  %v63 = vmul.f32 %v30, %v60
  %v64 = vmul.f32 %v31, %v60
  %v65 = vmul.f32 %v32, %v60
  %v70 = vrot.slane %v62, 5
  %v71 = vrot.slane %v70, 4
  %v72 = vrot.slane %v63, 5
  %v73 = vrot.slane %v72, 4
  %v74 = vrot.slane %v64, 5
  %v75 = vrot.slane %v74, 4
  %v76 = vrot.slane %v65, 5
  %v77 = vrot.slane %v76, 4
  %v82 = vadd.f32 %v45, %v71
  %v83 = vadd.f32 %v46, %v73
  %v84 = vadd.f32 %v47, %v75
  %v85 = vadd.f32 %v48, %v77
  %v86 = vlaneseq
  %v87 = vshrl.u32 %v86, 7
  %v88 = vsub.s32 2, %v87
  %v89 = vrot.slane %v21, %v88
  %v90 = vlaneseq
  %v91 = vshrl.u32 %v90, 7
  %v92 = vsub.s32 2, %v91
  %v93 = vrot.slane %v22, %v92
  %v96 = vcombine.low %v89, %v93
  %v97 = vrot.slane %v96, 6
  %v99 = vmul.f32 %v29, %v97
  %v100 = vmul.f32 %v30, %v97
  %v101 = vmul.f32 %v31, %v97
  %v102 = vmul.f32 %v32, %v97
  %v107 = vrot.slane %v99, 6
  %v108 = vrot.slane %v107, 4
  %v109 = vrot.slane %v100, 6
  %v110 = vrot.slane %v109, 4
  %v111 = vrot.slane %v101, 6
  %v112 = vrot.slane %v111, 4
  %v113 = vrot.slane %v102, 6
  %v114 = vrot.slane %v113, 4
  %v119 = vadd.f32 %v82, %v108
  %v120 = vadd.f32 %v83, %v110
  %v121 = vadd.f32 %v84, %v112
  %v122 = vadd.f32 %v85, %v114
  %s123 = sadd.s32 %s20, 1
  %s124 = smul.u32 %s123, 2
  %s125 = smul.addr %s124, 4
  %s126 = scalar_lea.vmem %s0, %s125
  %v127 = vld [vmem:[%s126] sm:$0xff]
  %v128 = vld [vmem:[%s126 + $0x8] sm:$0xff]
  %v129 = vld [vmem:[%s126 + $0x20] sm:$0xff]
  %v130 = vld [vmem:[%s126 + $0x28] sm:$0xff]
  %v131 = vlaneseq
  %v132 = vshrl.u32 %v131, 7
  %v133 = vsub.s32 3, %v132
  %v134 = vrot.slane %v21, %v133
  %v135 = vlaneseq
  %v136 = vshrl.u32 %v135, 7
  %v137 = vsub.s32 3, %v136
  %v138 = vrot.slane %v22, %v137
  %v141 = vcombine.low %v134, %v138
  %v143 = vmul.f32 %v127, %v141
  %v144 = vmul.f32 %v128, %v141
  %v145 = vmul.f32 %v129, %v141
  %v146 = vmul.f32 %v130, %v141
  %v147 = vadd.f32 %v119, %v143
  %v148 = vadd.f32 %v120, %v144
  %v149 = vadd.f32 %v121, %v145
  %v150 = vadd.f32 %v122, %v146
  %v151 = vlaneseq
  %v152 = vshrl.u32 %v151, 7
  %v153 = vsub.s32 4, %v152
  %v154 = vrot.slane %v21, %v153
  %v155 = vlaneseq
  %v156 = vshrl.u32 %v155, 7
  %v157 = vsub.s32 4, %v156
  %v158 = vrot.slane %v22, %v157
  %v161 = vcombine.low %v154, %v158
  %v162 = vrot.slane %v161, 7
  %v164 = vmul.f32 %v127, %v162
  %v165 = vmul.f32 %v128, %v162
  %v166 = vmul.f32 %v129, %v162
  %v167 = vmul.f32 %v130, %v162
  %v172 = vrot.slane %v164, 5
  %v173 = vrot.slane %v172, 4
  %v174 = vrot.slane %v165, 5
  %v175 = vrot.slane %v174, 4
  %v176 = vrot.slane %v166, 5
  %v177 = vrot.slane %v176, 4
  %v178 = vrot.slane %v167, 5
  %v179 = vrot.slane %v178, 4
  %v184 = vadd.f32 %v147, %v173
  %v185 = vadd.f32 %v148, %v175
  %v186 = vadd.f32 %v149, %v177
  %v187 = vadd.f32 %v150, %v179
  %v188 = vlaneseq
  %v189 = vshrl.u32 %v188, 7
  %v190 = vsub.s32 5, %v189
  %v191 = vrot.slane %v21, %v190
  %v192 = vlaneseq
  %v193 = vshrl.u32 %v192, 7
  %v194 = vsub.s32 5, %v193
  %v195 = vrot.slane %v22, %v194
  %v198 = vcombine.low %v191, %v195
  %v199 = vrot.slane %v198, 6
  %v201 = vmul.f32 %v127, %v199
  %v202 = vmul.f32 %v128, %v199
  %v203 = vmul.f32 %v129, %v199
  %v204 = vmul.f32 %v130, %v199
  %v209 = vrot.slane %v201, 6
  %v210 = vrot.slane %v209, 4
  %v211 = vrot.slane %v202, 6
  %v212 = vrot.slane %v211, 4
  %v213 = vrot.slane %v203, 6
  %v214 = vrot.slane %v213, 4
  %v215 = vrot.slane %v204, 6
  %v216 = vrot.slane %v215, 4
  %v221 = vadd.f32 %v184, %v210
  %v222 = vadd.f32 %v185, %v212
  %v223 = vadd.f32 %v186, %v214
  %v224 = vadd.f32 %v187, %v216
  %s225 = sadd.s32 %s20, 2
  %s226 = smul.u32 %s225, 2
  %s227 = smul.addr %s226, 4
  %s228 = scalar_lea.vmem %s0, %s227
  %v229 = vld [vmem:[%s228] sm:$0xff]
  %v230 = vld [vmem:[%s228 + $0x8] sm:$0xff]
  %v231 = vld [vmem:[%s228 + $0x20] sm:$0xff]
  %v232 = vld [vmem:[%s228 + $0x28] sm:$0xff]
  %v233 = vlaneseq
  %v234 = vshrl.u32 %v233, 7
  %v235 = vsub.s32 6, %v234
  %v236 = vrot.slane %v21, %v235
  %v237 = vlaneseq
  %v238 = vshrl.u32 %v237, 7
  %v239 = vsub.s32 6, %v238
  %v240 = vrot.slane %v22, %v239
  %v243 = vcombine.low %v236, %v240
  %v245 = vmul.f32 %v229, %v243
  %v246 = vmul.f32 %v230, %v243
  %v247 = vmul.f32 %v231, %v243
  %v248 = vmul.f32 %v232, %v243
  %v249 = vadd.f32 %v221, %v245
  %v250 = vadd.f32 %v222, %v246
  %v251 = vadd.f32 %v223, %v247
  %v252 = vadd.f32 %v224, %v248
  %v253 = vlaneseq
  %v254 = vshrl.u32 %v253, 7
  %v255 = vsub.s32 7, %v254
  %v256 = vrot.slane %v21, %v255
  %v257 = vlaneseq
  %v258 = vshrl.u32 %v257, 7
  %v259 = vsub.s32 7, %v258
  %v260 = vrot.slane %v22, %v259
  %v263 = vcombine.low %v256, %v260
  %v264 = vrot.slane %v263, 7
  %v266 = vmul.f32 %v229, %v264
  %v267 = vmul.f32 %v230, %v264
  %v268 = vmul.f32 %v231, %v264
  %v269 = vmul.f32 %v232, %v264
  %v274 = vrot.slane %v266, 5
  %v275 = vrot.slane %v274, 4
  %v276 = vrot.slane %v267, 5
  %v277 = vrot.slane %v276, 4
  %v278 = vrot.slane %v268, 5
  %v279 = vrot.slane %v278, 4
  %v280 = vrot.slane %v269, 5
  %v281 = vrot.slane %v280, 4
  %v286 = vadd.f32 %v249, %v275
  %v287 = vadd.f32 %v250, %v277
  %v288 = vadd.f32 %v251, %v279
  %v289 = vadd.f32 %v252, %v281
  %v290 = vlaneseq
  %v291 = vshrl.u32 %v290, 7
  %v292 = vsub.s32 0, %v291
  %v293 = vrot.slane %v23, %v292
  %v294 = vlaneseq
  %v295 = vshrl.u32 %v294, 7
  %v296 = vsub.s32 0, %v295
  %v297 = vrot.slane %v24, %v296
  %v300 = vcombine.low %v293, %v297
  %v301 = vrot.slane %v300, 6
  %v303 = vmul.f32 %v229, %v301
  %v304 = vmul.f32 %v230, %v301
  %v305 = vmul.f32 %v231, %v301
  %v306 = vmul.f32 %v232, %v301
  %v311 = vrot.slane %v303, 6
  %v312 = vrot.slane %v311, 4
  %v313 = vrot.slane %v304, 6
  %v314 = vrot.slane %v313, 4
  %v315 = vrot.slane %v305, 6
  %v316 = vrot.slane %v315, 4
  %v317 = vrot.slane %v306, 6
  %v318 = vrot.slane %v317, 4
  %v323 = vadd.f32 %v286, %v312
  %v324 = vadd.f32 %v287, %v314
  %v325 = vadd.f32 %v288, %v316
  %v326 = vadd.f32 %v289, %v318
  %v328 = vlaneseq
  %v329 = vshrl.u32 %v328, 7
  %v330 = vsub.s32 0, %v329
  %v331 = vrot.slane %v25, %v330
  %v332 = vlaneseq
  %v333 = vshrl.u32 %v332, 7
  %v334 = vsub.s32 2, %v333
  %v335 = vrot.slane %v25, %v334
  %v338 = vlaneseq
  %v339 = vshrl.u32 %v338, 7
  %v340 = vsub.s32 0, %v339
  %v341 = vrot.slane %v331, %v340
  %v342 = vlaneseq
  %v343 = vshrl.u32 %v342, 7
  %v344 = vsub.s32 0, %v343
  %v345 = vrot.slane %v335, %v344
  %v348 = vcombine.low %v341, %v345
  %v350 = vmul.f32 %v323, %v348
  %v351 = vmul.f32 %v324, %v348
  %v352 = vmul.f32 %v325, %v348
  %v353 = vmul.f32 %v326, %v348
  %v354 = vlaneseq
  %v355 = vshrl.u32 %v354, 7
  %v356 = vsub.s32 1, %v355
  %v357 = vrot.slane %v25, %v356
  %v358 = vlaneseq
  %v359 = vshrl.u32 %v358, 7
  %v360 = vsub.s32 3, %v359
  %v361 = vrot.slane %v25, %v360
  %v364 = vlaneseq
  %v365 = vshrl.u32 %v364, 7
  %v366 = vsub.s32 1, %v365
  %v367 = vrot.slane %v357, %v366
  %v368 = vlaneseq
  %v369 = vshrl.u32 %v368, 7
  %v370 = vsub.s32 1, %v369
  %v371 = vrot.slane %v361, %v370
  %v374 = vcombine.low %v367, %v371
  %v376 = vadd.f32 %v350, %v374
  %v377 = vadd.f32 %v351, %v374
  %v378 = vadd.f32 %v352, %v374
  %v379 = vadd.f32 %v353, %v374
  %v380 = vmax.f32 %v376, 0.0
  %v381 = vmax.f32 %v377, 0.0
  %v382 = vmax.f32 %v378, 0.0
  %v383 = vmax.f32 %v379, 0.0
  %v389 = vunpack.c.l.s4 1983009808
  %v390 = vunpack.c.0.s8 %v389
  %v391 = vlaneseq
  %v392 = vshrl.u32 %v391, 7
  %v393 = vsub.s32 %v390, %v392
  %v394 = vrot.slane %v380, %v393
  %v396 = vunpack.c.l.s4 1983009808
  %v397 = vunpack.c.0.s8 %v396
  %v398 = vlaneseq
  %v399 = vshrl.u32 %v398, 7
  %v400 = vsub.s32 %v397, %v399
  %v401 = vrot.slane %v381, %v400
  %v403 = vunpack.c.l.s4 1983009808
  %v404 = vunpack.c.0.s8 %v403
  %v405 = vlaneseq
  %v406 = vshrl.u32 %v405, 7
  %v407 = vsub.s32 %v404, %v406
  %v408 = vrot.slane %v382, %v407
  %v410 = vunpack.c.l.s4 1983009808
  %v411 = vunpack.c.0.s8 %v410
  %v412 = vlaneseq
  %v413 = vshrl.u32 %v412, 7
  %v414 = vsub.s32 %v411, %v413
  %v415 = vrot.slane %v383, %v414
  %v416 = vcombine.low %v394, %v401
  %v417 = vcombine.low %v408, %v415
  %v419 = vunpack.c.l.s4 1983009808
  %v420 = vunpack.c.0.s8 %v419
  %v421 = vlaneseq
  %v422 = vshrl.u32 %v421, 7
  %v423 = vsub.s32 %v420, %v422
  %v424 = vrot.slane %v416, %v423
  %v426 = vunpack.c.l.s4 1983009808
  %v427 = vunpack.c.0.s8 %v426
  %v428 = vlaneseq
  %v429 = vshrl.u32 %v428, 7
  %v430 = vsub.s32 %v427, %v429
  %v431 = vrot.slane %v417, %v430
  %v432 = vcombine.low %v424, %v431
  %v433 = vcombine.high %v424, %v431
  %v436 = vpack.c.bf16 %v432, %v432
  %v437 = vpack.c.bf16 %v433, %v433
  %v438 = vld [vmem:[%s3] sm:$0xff]
  %v439 = vld [vmem:[%s3 + $0x8] sm:$0xff]
  %v440 = vld [vmem:[%s3 + $0x10] sm:$0xff]
  %v441 = vld [vmem:[%s3 + $0x18] sm:$0xff]
  %v442 = vld [vmem:[%s3 + $0x20] sm:$0xff]
  %v443 = vld [vmem:[%s3 + $0x28] sm:$0xff]
  %v444 = vld [vmem:[%s3 + $0x30] sm:$0xff]
  %v445 = vld [vmem:[%s3 + $0x38] sm:$0xff]
  %v446 = vld [vmem:[%s3 + $0x40] sm:$0xff]
  %v447 = vld [vmem:[%s3 + $0x48] sm:$0xff]
  %v448 = vld [vmem:[%s3 + $0x50] sm:$0xff]
  %v449 = vld [vmem:[%s3 + $0x58] sm:$0xff]
  %v450 = vld [vmem:[%s3 + $0x60] sm:$0xff]
  %v451 = vld [vmem:[%s3 + $0x68] sm:$0xff]
  %v452 = vld [vmem:[%s3 + $0x70] sm:$0xff]
  %v453 = vld [vmem:[%s3 + $0x78] sm:$0xff]
  %v454 = vld [vmem:[%s3 + $0x80] sm:$0xff]
  %v455 = vld [vmem:[%s3 + $0x88] sm:$0xff]
  %v456 = vld [vmem:[%s3 + $0x90] sm:$0xff]
  %v457 = vld [vmem:[%s3 + $0x98] sm:$0xff]
  %v458 = vld [vmem:[%s3 + $0xa0] sm:$0xff]
  %v459 = vld [vmem:[%s3 + $0xa8] sm:$0xff]
  %v460 = vld [vmem:[%s3 + $0xb0] sm:$0xff]
  %v461 = vld [vmem:[%s3 + $0xb8] sm:$0xff]
  %v462 = vld [vmem:[%s3 + $0xc0] sm:$0xff]
  %v463 = vld [vmem:[%s3 + $0xc8] sm:$0xff]
  %v464 = vld [vmem:[%s3 + $0xd0] sm:$0xff]
  %v465 = vld [vmem:[%s3 + $0xd8] sm:$0xff]
  %v466 = vld [vmem:[%s3 + $0xe0] sm:$0xff]
  %v467 = vld [vmem:[%s3 + $0xe8] sm:$0xff]
  %v468 = vld [vmem:[%s3 + $0xf0] sm:$0xff]
  %v469 = vld [vmem:[%s3 + $0xf8] sm:$0xff]
  %v502 = vunpack.c.l.b16 %v438
  %v503 = vunpack.c.h.b16 %v438
  %v504 = vunpack.c.l.b16 %v439
  %v505 = vunpack.c.h.b16 %v439
  %v506 = vunpack.c.l.b16 %v440
  %v507 = vunpack.c.h.b16 %v440
  %v508 = vunpack.c.l.b16 %v441
  %v509 = vunpack.c.h.b16 %v441
  %v510 = vunpack.c.l.b16 %v442
  %v511 = vunpack.c.h.b16 %v442
  %v512 = vunpack.c.l.b16 %v443
  %v513 = vunpack.c.h.b16 %v443
  %v514 = vunpack.c.l.b16 %v444
  %v515 = vunpack.c.h.b16 %v444
  %v516 = vunpack.c.l.b16 %v445
  %v517 = vunpack.c.h.b16 %v445
  %v518 = vunpack.c.l.b16 %v446
  %v519 = vunpack.c.h.b16 %v446
  %v520 = vunpack.c.l.b16 %v447
  %v521 = vunpack.c.h.b16 %v447
  %v522 = vunpack.c.l.b16 %v448
  %v523 = vunpack.c.h.b16 %v448
  %v524 = vunpack.c.l.b16 %v449
  %v525 = vunpack.c.h.b16 %v449
  %v526 = vunpack.c.l.b16 %v450
  %v527 = vunpack.c.h.b16 %v450
  %v528 = vunpack.c.l.b16 %v451
  %v529 = vunpack.c.h.b16 %v451
  %v530 = vunpack.c.l.b16 %v452
  %v531 = vunpack.c.h.b16 %v452
  %v532 = vunpack.c.l.b16 %v453
  %v533 = vunpack.c.h.b16 %v453
  %v534 = vunpack.c.l.b16 %v454
  %v535 = vunpack.c.h.b16 %v454
  %v536 = vunpack.c.l.b16 %v455
  %v537 = vunpack.c.h.b16 %v455
  %v538 = vunpack.c.l.b16 %v456
  %v539 = vunpack.c.h.b16 %v456
  %v540 = vunpack.c.l.b16 %v457
  %v541 = vunpack.c.h.b16 %v457
  %v542 = vunpack.c.l.b16 %v458
  %v543 = vunpack.c.h.b16 %v458
  %v544 = vunpack.c.l.b16 %v459
  %v545 = vunpack.c.h.b16 %v459
  %v546 = vunpack.c.l.b16 %v460
  %v547 = vunpack.c.h.b16 %v460
  %v548 = vunpack.c.l.b16 %v461
  %v549 = vunpack.c.h.b16 %v461
  %v550 = vunpack.c.l.b16 %v462
  %v551 = vunpack.c.h.b16 %v462
  %v552 = vunpack.c.l.b16 %v463
  %v553 = vunpack.c.h.b16 %v463
  %v554 = vunpack.c.l.b16 %v464
  %v555 = vunpack.c.h.b16 %v464
  %v556 = vunpack.c.l.b16 %v465
  %v557 = vunpack.c.h.b16 %v465
  %v558 = vunpack.c.l.b16 %v466
  %v559 = vunpack.c.h.b16 %v466
  %v560 = vunpack.c.l.b16 %v467
  %v561 = vunpack.c.h.b16 %v467
  %v562 = vunpack.c.l.b16 %v468
  %v563 = vunpack.c.h.b16 %v468
  %v564 = vunpack.c.l.b16 %v469
  %v565 = vunpack.c.h.b16 %v469
  %v566 = vpack.c.b16 %v504, %v502
  %v567 = vpack.c.b16 %v505, %v503
  %v568 = vpack.c.b16 %v508, %v506
  %v569 = vpack.c.b16 %v509, %v507
  %v570 = vpack.c.b16 %v512, %v510
  %v571 = vpack.c.b16 %v513, %v511
  %v572 = vpack.c.b16 %v516, %v514
  %v573 = vpack.c.b16 %v517, %v515
  %v574 = vpack.c.b16 %v520, %v518
  %v575 = vpack.c.b16 %v521, %v519
  %v576 = vpack.c.b16 %v524, %v522
  %v577 = vpack.c.b16 %v525, %v523
  %v578 = vpack.c.b16 %v528, %v526
  %v579 = vpack.c.b16 %v529, %v527
  %v580 = vpack.c.b16 %v532, %v530
  %v581 = vpack.c.b16 %v533, %v531
  %v582 = vpack.c.b16 %v536, %v534
  %v583 = vpack.c.b16 %v537, %v535
  %v584 = vpack.c.b16 %v540, %v538
  %v585 = vpack.c.b16 %v541, %v539
  %v586 = vpack.c.b16 %v544, %v542
  %v587 = vpack.c.b16 %v545, %v543
  %v588 = vpack.c.b16 %v548, %v546
  %v589 = vpack.c.b16 %v549, %v547
  %v590 = vpack.c.b16 %v552, %v550
  %v591 = vpack.c.b16 %v553, %v551
  %v592 = vpack.c.b16 %v556, %v554
  %v593 = vpack.c.b16 %v557, %v555
  %v594 = vpack.c.b16 %v560, %v558
  %v595 = vpack.c.b16 %v561, %v559
  %v596 = vpack.c.b16 %v564, %v562
  %v597 = vpack.c.b16 %v565, %v563
  %630 = vmatprep.subr.bf16.mxu0 %v567
  %631 = vmatpush1.bf16.msra.mxu0 %v566
  %632 = vmatprep.subr.bf16.mxu0 %v569
  %633 = vmatpush1.bf16.msra.mxu0 %v568
  %634 = vmatprep.subr.bf16.mxu0 %v571
  %635 = vmatpush1.bf16.msra.mxu0 %v570
  %636 = vmatprep.subr.bf16.mxu0 %v573
  %637 = vmatpush1.bf16.msra.mxu0 %v572
  %638 = vmatprep.subr.bf16.mxu0 %v575
  %639 = vmatpush1.bf16.msra.mxu0 %v574
  %640 = vmatprep.subr.bf16.mxu0 %v577
  %641 = vmatpush1.bf16.msra.mxu0 %v576
  %642 = vmatprep.subr.bf16.mxu0 %v579
  %643 = vmatpush1.bf16.msra.mxu0 %v578
  %644 = vmatprep.subr.bf16.mxu0 %v581
  %645 = vmatpush1.bf16.msra.mxu0 %v580
  %646 = vmatprep.subr.bf16.mxu0 %v583
  %647 = vmatpush1.bf16.msra.mxu0 %v582
  %648 = vmatprep.subr.bf16.mxu0 %v585
  %649 = vmatpush1.bf16.msra.mxu0 %v584
  %650 = vmatprep.subr.bf16.mxu0 %v587
  %651 = vmatpush1.bf16.msra.mxu0 %v586
  %652 = vmatprep.subr.bf16.mxu0 %v589
  %653 = vmatpush1.bf16.msra.mxu0 %v588
  %654 = vmatprep.subr.bf16.mxu0 %v591
  %655 = vmatpush1.bf16.msra.mxu0 %v590
  %656 = vmatprep.subr.bf16.mxu0 %v593
  %657 = vmatpush1.bf16.msra.mxu0 %v592
  %658 = vmatprep.subr.bf16.mxu0 %v595
  %659 = vmatpush1.bf16.msra.mxu0 %v594
  %660 = vmatprep.subr.bf16.mxu0 %v597
  %661 = vmatpush1.bf16.msra.mxu0 %v596
  %662 = vmatprep.mubr.bf16.mxu0 %v437
  %663 = vmatmul.mubr.bf16.gmra.mrb[0].mxu0 %v436
  %v664 = vpop.f32.mrb[0].mxu0
  %v665 = vadd.f32 0.0, %v664
  %v666 = vpop.f32.mrb[0].mxu0
  %v667 = vadd.f32 0.0, %v666
  %v668 = vpop.f32.mrb[0].mxu0
  %v669 = vpop.f32.mrb[0].mxu0
  %670 = vdwg.mxu0
  %v671 = vld [vmem:[%s4] sm:$0xf]
  %v673 = vlaneseq
  %v674 = vshrl.u32 %v673, 7
  %v675 = vsub.s32 0, %v674
  %v676 = vrot.slane %v671, %v675
  %v677 = vlaneseq
  %v678 = vshrl.u32 %v677, 7
  %v679 = vsub.s32 2, %v678
  %v680 = vrot.slane %v671, %v679
  %v683 = vlaneseq
  %v684 = vshrl.u32 %v683, 7
  %v685 = vsub.s32 0, %v684
  %v686 = vrot.slane %v676, %v685
  %v687 = vlaneseq
  %v688 = vshrl.u32 %v687, 7
  %v689 = vsub.s32 0, %v688
  %v690 = vrot.slane %v680, %v689
  %v691 = vmul.f32 %v665, %v686
  %v692 = vmul.f32 %v667, %v690
  %v693 = vlaneseq
  %v694 = vshrl.u32 %v693, 7
  %v695 = vsub.s32 1, %v694
  %v696 = vrot.slane %v671, %v695
  %v697 = vlaneseq
  %v698 = vshrl.u32 %v697, 7
  %v699 = vsub.s32 3, %v698
  %v700 = vrot.slane %v671, %v699
  %v703 = vlaneseq
  %v704 = vshrl.u32 %v703, 7
  %v705 = vsub.s32 1, %v704
  %v706 = vrot.slane %v696, %v705
  %v707 = vlaneseq
  %v708 = vshrl.u32 %v707, 7
  %v709 = vsub.s32 1, %v708
  %v710 = vrot.slane %v700, %v709
  %v711 = vadd.f32 %v691, %v706
  %v712 = vadd.f32 %v692, %v710
  %v713 = vmax.f32 %v711, 0.0
  %v714 = vmax.f32 %v712, 0.0
  %v717 = vcombine.low %v713, %v714
  %v718 = vcombine.high %v713, %v714
  %v720 = vunpack.c.l.s4 1983009808
  %v721 = vunpack.c.0.s8 %v720
  %v722 = vlaneseq
  %v723 = vshrl.u32 %v722, 7
  %v724 = vsub.s32 %v721, %v723
  %v725 = vrot.slane %v717, %v724
  %v727 = vunpack.c.l.s4 1983009808
  %v728 = vunpack.c.0.s8 %v727
  %v729 = vlaneseq
  %v730 = vshrl.u32 %v729, 7
  %v731 = vsub.s32 %v728, %v730
  %v732 = vrot.slane %v718, %v731
  %v733 = vcombine.high %v725, %v725
  %v734 = vcombine.high %v732, %v732
  %739 = vst [vmem:[%s5] sm:$0xf] %v725
  %740 = vst [vmem:[%s5 + $0x4] sm:$0xf] %v733
  %741 = vst [vmem:[%s5 + $0x8] sm:$0xf] %v732
  %742 = vst [vmem:[%s5 + $0xc] sm:$0xf] %v734
  // Predicated region
  $region22: #{forward.17} parent=0 // pred_check
    _
  $region23: #{forward.17} parent=0 // pred_check_branch
    %744 = sbr.rel (0) target = $region25
  $region24: #{forward.17} parent=0 // pred_region
    _
  $region25: #{forward.17} parent=0 // pred_fallthru
    _
  // Predicated region
  $region26: #{forward.17} parent=0 // pred_check
    _
  $region27: #{forward.17} parent=0 // pred_check_branch
    %746 = sbr.rel (0) target = $region29
  $region28: #{forward.17} parent=0 // pred_region
    _
  $region29: #{forward.17} parent=0 // pred_fallthru
    _

// kernel: forward.18
$region0: #{forward.18}
  #allocation0 [shape = 'u32[]', space=smem, size = 0x4, offset = 0x4, fixed_abs, tag = 'smem constant byte address 0x4 - core index']
  #allocation1 [shape = 'u32[144,128]{1,0:T(1,128)}', space=vmem, size = 0x12000, scoped, tag = 'internal scratch']
  %s0 = inlined_call_operand.vmem [shape: f32[1,2,4,4,256], index: 0, kind: input, shape index: {}]
  %s1 = inlined_call_operand.vmem [shape: f32[9,256], index: 1, kind: input, shape index: {}]
  %s2 = inlined_call_operand.vmem [shape: f32[2,256], index: 2, kind: input, shape index: {}]
  %s3 = inlined_call_operand.vmem [shape: bf16[256,512], index: 3, kind: input, shape index: {}]
  %s4 = inlined_call_operand.vmem [shape: f32[2,512], index: 4, kind: input, shape index: {}]
  %s5 = inlined_call_operand.vmem [shape: f32[2,2,2,512], index: 5, kind: output, shape index: {}]
  %s6 = sld [smem:[#allocation0]]
  $region30: #{forward.18} parent=0
    _
  %s8 = ssub.s32 1, %s6
  %s9 = scalar_select 0, %s8, %s6
  // Predicated region
  $region2: #{forward.18} parent=0 // pred_check
    _
  $region3: #{forward.18} parent=0 // pred_check_branch
    %11 = sbr.rel (0) target = $region5
  $region4: #{forward.18} parent=0 // pred_region
    _
  $region5: #{forward.18} parent=0 // pred_fallthru
    _
  // Predicated region
  $region6: #{forward.18} parent=0 // pred_check
    _
  $region7: #{forward.18} parent=0 // pred_check_branch
    %13 = sbr.rel (0) target = $region9
  $region8: #{forward.18} parent=0 // pred_region
    _
  $region9: #{forward.18} parent=0 // pred_fallthru
    _
  // Predicated region
  $region10: #{forward.18} parent=0 // pred_check
    _
  $region11: #{forward.18} parent=0 // pred_check_branch
    %15 = sbr.rel (0) target = $region13
  $region12: #{forward.18} parent=0 // pred_region
    _
  $region13: #{forward.18} parent=0 // pred_fallthru
    _
  // Predicated region
  $region14: #{forward.18} parent=0 // pred_check
    _
  $region15: #{forward.18} parent=0 // pred_check_branch
    %17 = sbr.rel (0) target = $region17
  $region16: #{forward.18} parent=0 // pred_region
    _
  $region17: #{forward.18} parent=0 // pred_fallthru
    _
  // Predicated region
  $region18: #{forward.18} parent=0 // pred_check
    _
  $region19: #{forward.18} parent=0 // pred_check_branch
    %19 = sbr.rel (0) target = $region21
  $region20: #{forward.18} parent=0 // pred_region
    _
  $region21: #{forward.18} parent=0 // pred_fallthru
    _
  %s20 = smul.u32 0, 2
  %v21 = vld [vmem:[%s1] sm:$0xff]
  %v22 = vld [vmem:[%s1 + $0x8] sm:$0xff]
  %v23 = vld [vmem:[%s1 + $0x10] sm:$0x1]
  %v24 = vld [vmem:[%s1 + $0x18] sm:$0x1]
  %v25 = vld [vmem:[%s2] sm:$0xf]
  %s26 = smul.u32 %s20, 2
  %s27 = smul.addr %s26, 4
  %s28 = scalar_lea.vmem %s0, %s27
  %v29 = vld [vmem:[%s28] sm:$0xff]
  %v30 = vld [vmem:[%s28 + $0x8] sm:$0xff]
  %v31 = vld [vmem:[%s28 + $0x20] sm:$0xff]
  %v32 = vld [vmem:[%s28 + $0x28] sm:$0xff]
  %v33 = vlaneseq
  %v34 = vshrl.u32 %v33, 7
  %v35 = vsub.s32 0, %v34
  %v36 = vrot.slane %v21, %v35
  %v37 = vlaneseq
  %v38 = vshrl.u32 %v37, 7
  %v39 = vsub.s32 0, %v38
  %v40 = vrot.slane %v22, %v39
  %v43 = vcombine.low %v36, %v40
  %v45 = vmul.f32 %v29, %v43
  %v46 = vmul.f32 %v30, %v43
  %v47 = vmul.f32 %v31, %v43
  %v48 = vmul.f32 %v32, %v43
  %v49 = vlaneseq
  %v50 = vshrl.u32 %v49, 7
  %v51 = vsub.s32 1, %v50
  %v52 = vrot.slane %v21, %v51
  %v53 = vlaneseq
  %v54 = vshrl.u32 %v53, 7
  %v55 = vsub.s32 1, %v54
  %v56 = vrot.slane %v22, %v55
  %v59 = vcombine.low %v52, %v56
  %v60 = vrot.slane %v59, 7
  %v62 = vmul.f32 %v29, %v60
  %v63 = vmul.f32 %v30, %v60
  %v64 = vmul.f32 %v31, %v60
  %v65 = vmul.f32 %v32, %v60
  %v70 = vrot.slane %v62, 5
  %v71 = vrot.slane %v70, 4
  %v72 = vrot.slane %v63, 5
  %v73 = vrot.slane %v72, 4
  %v74 = vrot.slane %v64, 5
  %v75 = vrot.slane %v74, 4
  %v76 = vrot.slane %v65, 5
  %v77 = vrot.slane %v76, 4
  %v82 = vadd.f32 %v45, %v71
  %v83 = vadd.f32 %v46, %v73
  %v84 = vadd.f32 %v47, %v75
  %v85 = vadd.f32 %v48, %v77
  %v86 = vlaneseq
  %v87 = vshrl.u32 %v86, 7
  %v88 = vsub.s32 2, %v87
  %v89 = vrot.slane %v21, %v88
  %v90 = vlaneseq
  %v91 = vshrl.u32 %v90, 7
  %v92 = vsub.s32 2, %v91
  %v93 = vrot.slane %v22, %v92
  %v96 = vcombine.low %v89, %v93
  %v97 = vrot.slane %v96, 6
  %v99 = vmul.f32 %v29, %v97
  %v100 = vmul.f32 %v30, %v97
  %v101 = vmul.f32 %v31, %v97
  %v102 = vmul.f32 %v32, %v97
  %v107 = vrot.slane %v99, 6
  %v108 = vrot.slane %v107, 4
  %v109 = vrot.slane %v100, 6
  %v110 = vrot.slane %v109, 4
  %v111 = vrot.slane %v101, 6
  %v112 = vrot.slane %v111, 4
  %v113 = vrot.slane %v102, 6
  %v114 = vrot.slane %v113, 4
  %v119 = vadd.f32 %v82, %v108
  %v120 = vadd.f32 %v83, %v110
  %v121 = vadd.f32 %v84, %v112
  %v122 = vadd.f32 %v85, %v114
  %s123 = sadd.s32 %s20, 1
  %s124 = smul.u32 %s123, 2
  %s125 = smul.addr %s124, 4
  %s126 = scalar_lea.vmem %s0, %s125
  %v127 = vld [vmem:[%s126] sm:$0xff]
  %v128 = vld [vmem:[%s126 + $0x8] sm:$0xff]
  %v129 = vld [vmem:[%s126 + $0x20] sm:$0xff]
  %v130 = vld [vmem:[%s126 + $0x28] sm:$0xff]
  %v131 = vlaneseq
  %v132 = vshrl.u32 %v131, 7
  %v133 = vsub.s32 3, %v132
  %v134 = vrot.slane %v21, %v133
  %v135 = vlaneseq
  %v136 = vshrl.u32 %v135, 7
  %v137 = vsub.s32 3, %v136
  %v138 = vrot.slane %v22, %v137
  %v141 = vcombine.low %v134, %v138
  %v143 = vmul.f32 %v127, %v141
  %v144 = vmul.f32 %v128, %v141
  %v145 = vmul.f32 %v129, %v141
  %v146 = vmul.f32 %v130, %v141
  %v147 = vadd.f32 %v119, %v143
  %v148 = vadd.f32 %v120, %v144
  %v149 = vadd.f32 %v121, %v145
  %v150 = vadd.f32 %v122, %v146
  %v151 = vlaneseq
  %v152 = vshrl.u32 %v151, 7
  %v153 = vsub.s32 4, %v152
  %v154 = vrot.slane %v21, %v153
  %v155 = vlaneseq
  %v156 = vshrl.u32 %v155, 7
  %v157 = vsub.s32 4, %v156
  %v158 = vrot.slane %v22, %v157
  %v161 = vcombine.low %v154, %v158
  %v162 = vrot.slane %v161, 7
  %v164 = vmul.f32 %v127, %v162
  %v165 = vmul.f32 %v128, %v162
  %v166 = vmul.f32 %v129, %v162
  %v167 = vmul.f32 %v130, %v162
  %v172 = vrot.slane %v164, 5
  %v173 = vrot.slane %v172, 4
  %v174 = vrot.slane %v165, 5
  %v175 = vrot.slane %v174, 4
  %v176 = vrot.slane %v166, 5
  %v177 = vrot.slane %v176, 4
  %v178 = vrot.slane %v167, 5
  %v179 = vrot.slane %v178, 4
  %v184 = vadd.f32 %v147, %v173
  %v185 = vadd.f32 %v148, %v175
  %v186 = vadd.f32 %v149, %v177
  %v187 = vadd.f32 %v150, %v179
  %v188 = vlaneseq
  %v189 = vshrl.u32 %v188, 7
  %v190 = vsub.s32 5, %v189
  %v191 = vrot.slane %v21, %v190
  %v192 = vlaneseq
  %v193 = vshrl.u32 %v192, 7
  %v194 = vsub.s32 5, %v193
  %v195 = vrot.slane %v22, %v194
  %v198 = vcombine.low %v191, %v195
  %v199 = vrot.slane %v198, 6
  %v201 = vmul.f32 %v127, %v199
  %v202 = vmul.f32 %v128, %v199
  %v203 = vmul.f32 %v129, %v199
  %v204 = vmul.f32 %v130, %v199
  %v209 = vrot.slane %v201, 6
  %v210 = vrot.slane %v209, 4
  %v211 = vrot.slane %v202, 6
  %v212 = vrot.slane %v211, 4
  %v213 = vrot.slane %v203, 6
  %v214 = vrot.slane %v213, 4
  %v215 = vrot.slane %v204, 6
  %v216 = vrot.slane %v215, 4
  %v221 = vadd.f32 %v184, %v210
  %v222 = vadd.f32 %v185, %v212
  %v223 = vadd.f32 %v186, %v214
  %v224 = vadd.f32 %v187, %v216
  %s225 = sadd.s32 %s20, 2
  %s226 = smul.u32 %s225, 2
  %s227 = smul.addr %s226, 4
  %s228 = scalar_lea.vmem %s0, %s227
  %v229 = vld [vmem:[%s228] sm:$0xff]
  %v230 = vld [vmem:[%s228 + $0x8] sm:$0xff]
  %v231 = vld [vmem:[%s228 + $0x20] sm:$0xff]
  %v232 = vld [vmem:[%s228 + $0x28] sm:$0xff]
  %v233 = vlaneseq
  %v234 = vshrl.u32 %v233, 7
  %v235 = vsub.s32 6, %v234
  %v236 = vrot.slane %v21, %v235
  %v237 = vlaneseq
  %v238 = vshrl.u32 %v237, 7
  %v239 = vsub.s32 6, %v238
  %v240 = vrot.slane %v22, %v239
  %v243 = vcombine.low %v236, %v240
  %v245 = vmul.f32 %v229, %v243
  %v246 = vmul.f32 %v230, %v243
  %v247 = vmul.f32 %v231, %v243
  %v248 = vmul.f32 %v232, %v243
  %v249 = vadd.f32 %v221, %v245
  %v250 = vadd.f32 %v222, %v246
  %v251 = vadd.f32 %v223, %v247
  %v252 = vadd.f32 %v224, %v248
  %v253 = vlaneseq
  %v254 = vshrl.u32 %v253, 7
  %v255 = vsub.s32 7, %v254
  %v256 = vrot.slane %v21, %v255
  %v257 = vlaneseq
  %v258 = vshrl.u32 %v257, 7
  %v259 = vsub.s32 7, %v258
  %v260 = vrot.slane %v22, %v259
  %v263 = vcombine.low %v256, %v260
  %v264 = vrot.slane %v263, 7
  %v266 = vmul.f32 %v229, %v264
  %v267 = vmul.f32 %v230, %v264
  %v268 = vmul.f32 %v231, %v264
  %v269 = vmul.f32 %v232, %v264
  %v274 = vrot.slane %v266, 5
  %v275 = vrot.slane %v274, 4
  %v276 = vrot.slane %v267, 5
  %v277 = vrot.slane %v276, 4
  %v278 = vrot.slane %v268, 5
  %v279 = vrot.slane %v278, 4
  %v280 = vrot.slane %v269, 5
  %v281 = vrot.slane %v280, 4
  %v286 = vadd.f32 %v249, %v275
  %v287 = vadd.f32 %v250, %v277
  %v288 = vadd.f32 %v251, %v279
  %v289 = vadd.f32 %v252, %v281
  %v290 = vlaneseq
  %v291 = vshrl.u32 %v290, 7
  %v292 = vsub.s32 0, %v291
  %v293 = vrot.slane %v23, %v292
  %v294 = vlaneseq
  %v295 = vshrl.u32 %v294, 7
  %v296 = vsub.s32 0, %v295
  %v297 = vrot.slane %v24, %v296
  %v300 = vcombine.low %v293, %v297
  %v301 = vrot.slane %v300, 6
  %v303 = vmul.f32 %v229, %v301
  %v304 = vmul.f32 %v230, %v301
  %v305 = vmul.f32 %v231, %v301
  %v306 = vmul.f32 %v232, %v301
  %v311 = vrot.slane %v303, 6
  %v312 = vrot.slane %v311, 4
  %v313 = vrot.slane %v304, 6
  %v314 = vrot.slane %v313, 4
  %v315 = vrot.slane %v305, 6
  %v316 = vrot.slane %v315, 4
  %v317 = vrot.slane %v306, 6
  %v318 = vrot.slane %v317, 4
  %v323 = vadd.f32 %v286, %v312
  %v324 = vadd.f32 %v287, %v314
  %v325 = vadd.f32 %v288, %v316
  %v326 = vadd.f32 %v289, %v318
  %v328 = vlaneseq
  %v329 = vshrl.u32 %v328, 7
  %v330 = vsub.s32 0, %v329
  %v331 = vrot.slane %v25, %v330
  %v332 = vlaneseq
  %v333 = vshrl.u32 %v332, 7
  %v334 = vsub.s32 2, %v333
  %v335 = vrot.slane %v25, %v334
  %v338 = vlaneseq
  %v339 = vshrl.u32 %v338, 7
  %v340 = vsub.s32 0, %v339
  %v341 = vrot.slane %v331, %v340
  %v342 = vlaneseq
  %v343 = vshrl.u32 %v342, 7
  %v344 = vsub.s32 0, %v343
  %v345 = vrot.slane %v335, %v344
  %v348 = vcombine.low %v341, %v345
  %v350 = vmul.f32 %v323, %v348
  %v351 = vmul.f32 %v324, %v348
  %v352 = vmul.f32 %v325, %v348
  %v353 = vmul.f32 %v326, %v348
  %v354 = vlaneseq
  %v355 = vshrl.u32 %v354, 7
  %v356 = vsub.s32 1, %v355
  %v357 = vrot.slane %v25, %v356
  %v358 = vlaneseq
  %v359 = vshrl.u32 %v358, 7
  %v360 = vsub.s32 3, %v359
  %v361 = vrot.slane %v25, %v360
  %v364 = vlaneseq
  %v365 = vshrl.u32 %v364, 7
  %v366 = vsub.s32 1, %v365
  %v367 = vrot.slane %v357, %v366
  %v368 = vlaneseq
  %v369 = vshrl.u32 %v368, 7
  %v370 = vsub.s32 1, %v369
  %v371 = vrot.slane %v361, %v370
  %v374 = vcombine.low %v367, %v371
  %v376 = vadd.f32 %v350, %v374
  %v377 = vadd.f32 %v351, %v374
  %v378 = vadd.f32 %v352, %v374
  %v379 = vadd.f32 %v353, %v374
  %v380 = vmax.f32 %v376, 0.0
  %v381 = vmax.f32 %v377, 0.0
  %v382 = vmax.f32 %v378, 0.0
  %v383 = vmax.f32 %v379, 0.0
  %v389 = vunpack.c.l.s4 1983009808
  %v390 = vunpack.c.0.s8 %v389
  %v391 = vlaneseq
  %v392 = vshrl.u32 %v391, 7
  %v393 = vsub.s32 %v390, %v392
  %v394 = vrot.slane %v380, %v393
  %v396 = vunpack.c.l.s4 1983009808
  %v397 = vunpack.c.0.s8 %v396
  %v398 = vlaneseq
  %v399 = vshrl.u32 %v398, 7
  %v400 = vsub.s32 %v397, %v399
  %v401 = vrot.slane %v381, %v400
  %v403 = vunpack.c.l.s4 1983009808
  %v404 = vunpack.c.0.s8 %v403
  %v405 = vlaneseq
  %v406 = vshrl.u32 %v405, 7
  %v407 = vsub.s32 %v404, %v406
  %v408 = vrot.slane %v382, %v407
  %v410 = vunpack.c.l.s4 1983009808
  %v411 = vunpack.c.0.s8 %v410
  %v412 = vlaneseq
  %v413 = vshrl.u32 %v412, 7
  %v414 = vsub.s32 %v411, %v413
  %v415 = vrot.slane %v383, %v414
  %v416 = vcombine.low %v394, %v401
  %v417 = vcombine.low %v408, %v415
  %v419 = vunpack.c.l.s4 1983009808
  %v420 = vunpack.c.0.s8 %v419
  %v421 = vlaneseq
  %v422 = vshrl.u32 %v421, 7
  %v423 = vsub.s32 %v420, %v422
  %v424 = vrot.slane %v416, %v423
  %v426 = vunpack.c.l.s4 1983009808
  %v427 = vunpack.c.0.s8 %v426
  %v428 = vlaneseq
  %v429 = vshrl.u32 %v428, 7
  %v430 = vsub.s32 %v427, %v429
  %v431 = vrot.slane %v417, %v430
  %v432 = vcombine.low %v424, %v431
  %v433 = vcombine.high %v424, %v431
  %v436 = vpack.c.bf16 %v432, %v432
  %v437 = vpack.c.bf16 %v433, %v433
  %v438 = vld [vmem:[%s3] sm:$0xff]
  %v439 = vld [vmem:[%s3 + $0x8] sm:$0xff]
  %v440 = vld [vmem:[%s3 + $0x10] sm:$0xff]
  %v441 = vld [vmem:[%s3 + $0x18] sm:$0xff]
  %v442 = vld [vmem:[%s3 + $0x20] sm:$0xff]
  %v443 = vld [vmem:[%s3 + $0x28] sm:$0xff]
  %v444 = vld [vmem:[%s3 + $0x30] sm:$0xff]
  %v445 = vld [vmem:[%s3 + $0x38] sm:$0xff]
  %v446 = vld [vmem:[%s3 + $0x40] sm:$0xff]
  %v447 = vld [vmem:[%s3 + $0x48] sm:$0xff]
  %v448 = vld [vmem:[%s3 + $0x50] sm:$0xff]
  %v449 = vld [vmem:[%s3 + $0x58] sm:$0xff]
  %v450 = vld [vmem:[%s3 + $0x60] sm:$0xff]
  %v451 = vld [vmem:[%s3 + $0x68] sm:$0xff]
  %v452 = vld [vmem:[%s3 + $0x70] sm:$0xff]
  %v453 = vld [vmem:[%s3 + $0x78] sm:$0xff]
  %v454 = vld [vmem:[%s3 + $0x80] sm:$0xff]
  %v455 = vld [vmem:[%s3 + $0x88] sm:$0xff]
  %v456 = vld [vmem:[%s3 + $0x90] sm:$0xff]
  %v457 = vld [vmem:[%s3 + $0x98] sm:$0xff]
  %v458 = vld [vmem:[%s3 + $0xa0] sm:$0xff]
  %v459 = vld [vmem:[%s3 + $0xa8] sm:$0xff]
  %v460 = vld [vmem:[%s3 + $0xb0] sm:$0xff]
  %v461 = vld [vmem:[%s3 + $0xb8] sm:$0xff]
  %v462 = vld [vmem:[%s3 + $0xc0] sm:$0xff]
  %v463 = vld [vmem:[%s3 + $0xc8] sm:$0xff]
  %v464 = vld [vmem:[%s3 + $0xd0] sm:$0xff]
  %v465 = vld [vmem:[%s3 + $0xd8] sm:$0xff]
  %v466 = vld [vmem:[%s3 + $0xe0] sm:$0xff]
  %v467 = vld [vmem:[%s3 + $0xe8] sm:$0xff]
  %v468 = vld [vmem:[%s3 + $0xf0] sm:$0xff]
  %v469 = vld [vmem:[%s3 + $0xf8] sm:$0xff]
  %v470 = vld [vmem:[%s3 + $0x100] sm:$0xff]
  %v471 = vld [vmem:[%s3 + $0x108] sm:$0xff]
  %v472 = vld [vmem:[%s3 + $0x110] sm:$0xff]
  %v473 = vld [vmem:[%s3 + $0x118] sm:$0xff]
  %v474 = vld [vmem:[%s3 + $0x120] sm:$0xff]
  %v475 = vld [vmem:[%s3 + $0x128] sm:$0xff]
  %v476 = vld [vmem:[%s3 + $0x130] sm:$0xff]
  %v477 = vld [vmem:[%s3 + $0x138] sm:$0xff]
  %v478 = vld [vmem:[%s3 + $0x140] sm:$0xff]
  %v479 = vld [vmem:[%s3 + $0x148] sm:$0xff]
  %v480 = vld [vmem:[%s3 + $0x150] sm:$0xff]
  %v481 = vld [vmem:[%s3 + $0x158] sm:$0xff]
  %v482 = vld [vmem:[%s3 + $0x160] sm:$0xff]
  %v483 = vld [vmem:[%s3 + $0x168] sm:$0xff]
  %v484 = vld [vmem:[%s3 + $0x170] sm:$0xff]
  %v485 = vld [vmem:[%s3 + $0x178] sm:$0xff]
  %v486 = vld [vmem:[%s3 + $0x180] sm:$0xff]
  %v487 = vld [vmem:[%s3 + $0x188] sm:$0xff]
  %v488 = vld [vmem:[%s3 + $0x190] sm:$0xff]
  %v489 = vld [vmem:[%s3 + $0x198] sm:$0xff]
  %v490 = vld [vmem:[%s3 + $0x1a0] sm:$0xff]
  %v491 = vld [vmem:[%s3 + $0x1a8] sm:$0xff]
  %v492 = vld [vmem:[%s3 + $0x1b0] sm:$0xff]
  %v493 = vld [vmem:[%s3 + $0x1b8] sm:$0xff]
  %v494 = vld [vmem:[%s3 + $0x1c0] sm:$0xff]
  %v495 = vld [vmem:[%s3 + $0x1c8] sm:$0xff]
  %v496 = vld [vmem:[%s3 + $0x1d0] sm:$0xff]
  %v497 = vld [vmem:[%s3 + $0x1d8] sm:$0xff]
  %v498 = vld [vmem:[%s3 + $0x1e0] sm:$0xff]
  %v499 = vld [vmem:[%s3 + $0x1e8] sm:$0xff]
  %v500 = vld [vmem:[%s3 + $0x1f0] sm:$0xff]
  %v501 = vld [vmem:[%s3 + $0x1f8] sm:$0xff]
  %v566 = vunpack.c.l.b16 %v438
  %v567 = vunpack.c.h.b16 %v438
  %v568 = vunpack.c.l.b16 %v439
  %v569 = vunpack.c.h.b16 %v439
  %v570 = vunpack.c.l.b16 %v440
  %v571 = vunpack.c.h.b16 %v440
  %v572 = vunpack.c.l.b16 %v441
  %v573 = vunpack.c.h.b16 %v441
  %v574 = vunpack.c.l.b16 %v442
  %v575 = vunpack.c.h.b16 %v442
  %v576 = vunpack.c.l.b16 %v443
  %v577 = vunpack.c.h.b16 %v443
  %v578 = vunpack.c.l.b16 %v444
  %v579 = vunpack.c.h.b16 %v444
  %v580 = vunpack.c.l.b16 %v445
  %v581 = vunpack.c.h.b16 %v445
  %v582 = vunpack.c.l.b16 %v446
  %v583 = vunpack.c.h.b16 %v446
  %v584 = vunpack.c.l.b16 %v447
  %v585 = vunpack.c.h.b16 %v447
  %v586 = vunpack.c.l.b16 %v448
  %v587 = vunpack.c.h.b16 %v448
  %v588 = vunpack.c.l.b16 %v449
  %v589 = vunpack.c.h.b16 %v449
  %v590 = vunpack.c.l.b16 %v450
  %v591 = vunpack.c.h.b16 %v450
  %v592 = vunpack.c.l.b16 %v451
  %v593 = vunpack.c.h.b16 %v451
  %v594 = vunpack.c.l.b16 %v452
  %v595 = vunpack.c.h.b16 %v452
  %v596 = vunpack.c.l.b16 %v453
  %v597 = vunpack.c.h.b16 %v453
  %v598 = vunpack.c.l.b16 %v454
  %v599 = vunpack.c.h.b16 %v454
  %v600 = vunpack.c.l.b16 %v455
  %v601 = vunpack.c.h.b16 %v455
  %v602 = vunpack.c.l.b16 %v456
  %v603 = vunpack.c.h.b16 %v456
  %v604 = vunpack.c.l.b16 %v457
  %v605 = vunpack.c.h.b16 %v457
  %v606 = vunpack.c.l.b16 %v458
  %v607 = vunpack.c.h.b16 %v458
  %v608 = vunpack.c.l.b16 %v459
  %v609 = vunpack.c.h.b16 %v459
  %v610 = vunpack.c.l.b16 %v460
  %v611 = vunpack.c.h.b16 %v460
  %v612 = vunpack.c.l.b16 %v461
  %v613 = vunpack.c.h.b16 %v461
  %v614 = vunpack.c.l.b16 %v462
  %v615 = vunpack.c.h.b16 %v462
  %v616 = vunpack.c.l.b16 %v463
  %v617 = vunpack.c.h.b16 %v463
  %v618 = vunpack.c.l.b16 %v464
  %v619 = vunpack.c.h.b16 %v464
  %v620 = vunpack.c.l.b16 %v465
  %v621 = vunpack.c.h.b16 %v465
  %v622 = vunpack.c.l.b16 %v466
  %v623 = vunpack.c.h.b16 %v466
  %v624 = vunpack.c.l.b16 %v467
  %v625 = vunpack.c.h.b16 %v467
  %v626 = vunpack.c.l.b16 %v468
  %v627 = vunpack.c.h.b16 %v468
  %v628 = vunpack.c.l.b16 %v469
  %v629 = vunpack.c.h.b16 %v469
  %v630 = vunpack.c.l.b16 %v470
  %v631 = vunpack.c.h.b16 %v470
  %v632 = vunpack.c.l.b16 %v471
  %v633 = vunpack.c.h.b16 %v471
  %v634 = vunpack.c.l.b16 %v472
  %v635 = vunpack.c.h.b16 %v472
  %v636 = vunpack.c.l.b16 %v473
  %v637 = vunpack.c.h.b16 %v473
  %v638 = vunpack.c.l.b16 %v474
  %v639 = vunpack.c.h.b16 %v474
  %v640 = vunpack.c.l.b16 %v475
  %v641 = vunpack.c.h.b16 %v475
  %v642 = vunpack.c.l.b16 %v476
  %v643 = vunpack.c.h.b16 %v476
  %v644 = vunpack.c.l.b16 %v477
  %v645 = vunpack.c.h.b16 %v477
  %v646 = vunpack.c.l.b16 %v478
  %v647 = vunpack.c.h.b16 %v478
  %v648 = vunpack.c.l.b16 %v479
  %v649 = vunpack.c.h.b16 %v479
  %v650 = vunpack.c.l.b16 %v480
  %v651 = vunpack.c.h.b16 %v480
  %v652 = vunpack.c.l.b16 %v481
  %v653 = vunpack.c.h.b16 %v481
  %v654 = vunpack.c.l.b16 %v482
  %v655 = vunpack.c.h.b16 %v482
  %v656 = vunpack.c.l.b16 %v483
  %v657 = vunpack.c.h.b16 %v483
  %v658 = vunpack.c.l.b16 %v484
  %v659 = vunpack.c.h.b16 %v484
  %v660 = vunpack.c.l.b16 %v485
  %v661 = vunpack.c.h.b16 %v485
  %v662 = vunpack.c.l.b16 %v486
  %v663 = vunpack.c.h.b16 %v486
  %v664 = vunpack.c.l.b16 %v487
  %v665 = vunpack.c.h.b16 %v487
  %v666 = vunpack.c.l.b16 %v488
  %v667 = vunpack.c.h.b16 %v488
  %v668 = vunpack.c.l.b16 %v489
  %v669 = vunpack.c.h.b16 %v489
  %v670 = vunpack.c.l.b16 %v490
  %v671 = vunpack.c.h.b16 %v490
  %v672 = vunpack.c.l.b16 %v491
  %v673 = vunpack.c.h.b16 %v491
  %v674 = vunpack.c.l.b16 %v492
  %v675 = vunpack.c.h.b16 %v492
  %v676 = vunpack.c.l.b16 %v493
  %v677 = vunpack.c.h.b16 %v493
  %v678 = vunpack.c.l.b16 %v494
  %v679 = vunpack.c.h.b16 %v494
  %v680 = vunpack.c.l.b16 %v495
  %v681 = vunpack.c.h.b16 %v495
  %v682 = vunpack.c.l.b16 %v496
  %v683 = vunpack.c.h.b16 %v496
  %v684 = vunpack.c.l.b16 %v497
  %v685 = vunpack.c.h.b16 %v497
  %v686 = vunpack.c.l.b16 %v498
  %v687 = vunpack.c.h.b16 %v498
  %v688 = vunpack.c.l.b16 %v499
  %v689 = vunpack.c.h.b16 %v499
  %v690 = vunpack.c.l.b16 %v500
  %v691 = vunpack.c.h.b16 %v500
  %v692 = vunpack.c.l.b16 %v501
  %v693 = vunpack.c.h.b16 %v501
  %v694 = vpack.c.b16 %v570, %v566
  %v695 = vpack.c.b16 %v571, %v567
  %v696 = vpack.c.b16 %v572, %v568
  %v697 = vpack.c.b16 %v573, %v569
  %v698 = vpack.c.b16 %v578, %v574
  %v699 = vpack.c.b16 %v579, %v575
  %v700 = vpack.c.b16 %v580, %v576
  %v701 = vpack.c.b16 %v581, %v577
  %v702 = vpack.c.b16 %v586, %v582
  %v703 = vpack.c.b16 %v587, %v583
  %v704 = vpack.c.b16 %v588, %v584
  %v705 = vpack.c.b16 %v589, %v585
  %v706 = vpack.c.b16 %v594, %v590
  %v707 = vpack.c.b16 %v595, %v591
  %v708 = vpack.c.b16 %v596, %v592
  %v709 = vpack.c.b16 %v597, %v593
  %v710 = vpack.c.b16 %v602, %v598
  %v711 = vpack.c.b16 %v603, %v599
  %v712 = vpack.c.b16 %v604, %v600
  %v713 = vpack.c.b16 %v605, %v601
  %v714 = vpack.c.b16 %v610, %v606
  %v715 = vpack.c.b16 %v611, %v607
  %v716 = vpack.c.b16 %v612, %v608
  %v717 = vpack.c.b16 %v613, %v609
  %v718 = vpack.c.b16 %v618, %v614
  %v719 = vpack.c.b16 %v619, %v615
  %v720 = vpack.c.b16 %v620, %v616
  %v721 = vpack.c.b16 %v621, %v617
  %v722 = vpack.c.b16 %v626, %v622
  %v723 = vpack.c.b16 %v627, %v623
  %v724 = vpack.c.b16 %v628, %v624
  %v725 = vpack.c.b16 %v629, %v625
  %v726 = vpack.c.b16 %v634, %v630
  %v727 = vpack.c.b16 %v635, %v631
  %v728 = vpack.c.b16 %v636, %v632
  %v729 = vpack.c.b16 %v637, %v633
  %v730 = vpack.c.b16 %v642, %v638
  %v731 = vpack.c.b16 %v643, %v639
  %v732 = vpack.c.b16 %v644, %v640
  %v733 = vpack.c.b16 %v645, %v641
  %v734 = vpack.c.b16 %v650, %v646
  %v735 = vpack.c.b16 %v651, %v647
  %v736 = vpack.c.b16 %v652, %v648
  %v737 = vpack.c.b16 %v653, %v649
  %v738 = vpack.c.b16 %v658, %v654
  %v739 = vpack.c.b16 %v659, %v655
  %v740 = vpack.c.b16 %v660, %v656
  %v741 = vpack.c.b16 %v661, %v657
  %v742 = vpack.c.b16 %v666, %v662
  %v743 = vpack.c.b16 %v667, %v663
  %v744 = vpack.c.b16 %v668, %v664
  %v745 = vpack.c.b16 %v669, %v665
  %v746 = vpack.c.b16 %v674, %v670
  %v747 = vpack.c.b16 %v675, %v671
  %v748 = vpack.c.b16 %v676, %v672
  %v749 = vpack.c.b16 %v677, %v673
  %v750 = vpack.c.b16 %v682, %v678
  %v751 = vpack.c.b16 %v683, %v679
  %v752 = vpack.c.b16 %v684, %v680
  %v753 = vpack.c.b16 %v685, %v681
  %v754 = vpack.c.b16 %v690, %v686
  %v755 = vpack.c.b16 %v691, %v687
  %v756 = vpack.c.b16 %v692, %v688
  %v757 = vpack.c.b16 %v693, %v689
  %822 = vmatprep.subr.bf16.mxu0 %v695
  %823 = vmatpush1.bf16.msra.mxu0 %v694
  %824 = vmatprep.subr.bf16.mxu0 %v699
  %825 = vmatpush1.bf16.msra.mxu0 %v698
  %826 = vmatprep.subr.bf16.mxu0 %v703
  %827 = vmatpush1.bf16.msra.mxu0 %v702
  %828 = vmatprep.subr.bf16.mxu0 %v707
  %829 = vmatpush1.bf16.msra.mxu0 %v706
  %830 = vmatprep.subr.bf16.mxu0 %v711
  %831 = vmatpush1.bf16.msra.mxu0 %v710
  %832 = vmatprep.subr.bf16.mxu0 %v715
  %833 = vmatpush1.bf16.msra.mxu0 %v714
  %834 = vmatprep.subr.bf16.mxu0 %v719
  %835 = vmatpush1.bf16.msra.mxu0 %v718
  %836 = vmatprep.subr.bf16.mxu0 %v723
  %837 = vmatpush1.bf16.msra.mxu0 %v722
  %838 = vmatprep.subr.bf16.mxu0 %v727
  %839 = vmatpush1.bf16.msra.mxu0 %v726
  %840 = vmatprep.subr.bf16.mxu0 %v731
  %841 = vmatpush1.bf16.msra.mxu0 %v730
  %842 = vmatprep.subr.bf16.mxu0 %v735
  %843 = vmatpush1.bf16.msra.mxu0 %v734
  %844 = vmatprep.subr.bf16.mxu0 %v739
  %845 = vmatpush1.bf16.msra.mxu0 %v738
  %846 = vmatprep.subr.bf16.mxu0 %v743
  %847 = vmatpush1.bf16.msra.mxu0 %v742
  %848 = vmatprep.subr.bf16.mxu0 %v747
  %849 = vmatpush1.bf16.msra.mxu0 %v746
  %850 = vmatprep.subr.bf16.mxu0 %v751
  %851 = vmatpush1.bf16.msra.mxu0 %v750
  %852 = vmatprep.subr.bf16.mxu0 %v755
  %853 = vmatpush1.bf16.msra.mxu0 %v754
  %854 = vmatprep.mubr.bf16.mxu0 %v437
  %855 = vmatmul.mubr.bf16.gmra.mrb[0].mxu0 %v436
  %v856 = vpop.f32.mrb[0].mxu0
  %v857 = vadd.f32 0.0, %v856
  %v858 = vpop.f32.mrb[0].mxu0
  %v859 = vadd.f32 0.0, %v858
  %v860 = vpop.f32.mrb[0].mxu0
  %v861 = vpop.f32.mrb[0].mxu0
  %862 = vdwg.mxu0
  %863 = vmatprep.subr.bf16.mxu0 %v697
  %864 = vmatpush1.bf16.msra.mxu0 %v696
  %865 = vmatprep.subr.bf16.mxu0 %v701
  %866 = vmatpush1.bf16.msra.mxu0 %v700
  %867 = vmatprep.subr.bf16.mxu0 %v705
  %868 = vmatpush1.bf16.msra.mxu0 %v704
  %869 = vmatprep.subr.bf16.mxu0 %v709
  %870 = vmatpush1.bf16.msra.mxu0 %v708
  %871 = vmatprep.subr.bf16.mxu0 %v713
  %872 = vmatpush1.bf16.msra.mxu0 %v712
  %873 = vmatprep.subr.bf16.mxu0 %v717
  %874 = vmatpush1.bf16.msra.mxu0 %v716
  %875 = vmatprep.subr.bf16.mxu0 %v721
  %876 = vmatpush1.bf16.msra.mxu0 %v720
  %877 = vmatprep.subr.bf16.mxu0 %v725
  %878 = vmatpush1.bf16.msra.mxu0 %v724
  %879 = vmatprep.subr.bf16.mxu0 %v729
  %880 = vmatpush1.bf16.msra.mxu0 %v728
  %881 = vmatprep.subr.bf16.mxu0 %v733
  %882 = vmatpush1.bf16.msra.mxu0 %v732
  %883 = vmatprep.subr.bf16.mxu0 %v737
  %884 = vmatpush1.bf16.msra.mxu0 %v736
  %885 = vmatprep.subr.bf16.mxu0 %v741
  %886 = vmatpush1.bf16.msra.mxu0 %v740
  %887 = vmatprep.subr.bf16.mxu0 %v745
  %888 = vmatpush1.bf16.msra.mxu0 %v744
  %889 = vmatprep.subr.bf16.mxu0 %v749
  %890 = vmatpush1.bf16.msra.mxu0 %v748
  %891 = vmatprep.subr.bf16.mxu0 %v753
  %892 = vmatpush1.bf16.msra.mxu0 %v752
  %893 = vmatprep.subr.bf16.mxu0 %v757
  %894 = vmatpush1.bf16.msra.mxu0 %v756
  %895 = vmatprep.mubr.bf16.mxu0 %v437
  %896 = vmatmul.mubr.bf16.gmra.mrb[0].mxu0 %v436
  %v897 = vpop.f32.mrb[0].mxu0
  %v898 = vadd.f32 0.0, %v897
  %v899 = vpop.f32.mrb[0].mxu0
  %v900 = vadd.f32 0.0, %v899
  %v901 = vpop.f32.mrb[0].mxu0
  %v902 = vpop.f32.mrb[0].mxu0
  %903 = vdwg.mxu0
  %v904 = vld [vmem:[%s4] sm:$0xff]
  %v906 = vlaneseq
  %v907 = vshrl.u32 %v906, 7
  %v908 = vsub.s32 0, %v907
  %v909 = vrot.slane %v904, %v908
  %v910 = vlaneseq
  %v911 = vshrl.u32 %v910, 7
  %v912 = vsub.s32 2, %v911
  %v913 = vrot.slane %v904, %v912
  %v914 = vlaneseq
  %v915 = vshrl.u32 %v914, 7
  %v916 = vsub.s32 4, %v915
  %v917 = vrot.slane %v904, %v916
  %v918 = vlaneseq
  %v919 = vshrl.u32 %v918, 7
  %v920 = vsub.s32 6, %v919
  %v921 = vrot.slane %v904, %v920
  %v926 = vlaneseq
  %v927 = vshrl.u32 %v926, 7
  %v928 = vsub.s32 0, %v927
  %v929 = vrot.slane %v909, %v928
  %v930 = vlaneseq
  %v931 = vshrl.u32 %v930, 7
  %v932 = vsub.s32 0, %v931
  %v933 = vrot.slane %v913, %v932
  %v934 = vlaneseq
  %v935 = vshrl.u32 %v934, 7
  %v936 = vsub.s32 0, %v935
  %v937 = vrot.slane %v917, %v936
  %v938 = vlaneseq
  %v939 = vshrl.u32 %v938, 7
  %v940 = vsub.s32 0, %v939
  %v941 = vrot.slane %v921, %v940
  %v942 = vmul.f32 %v857, %v929
  %v943 = vmul.f32 %v859, %v933
  %v944 = vmul.f32 %v898, %v937
  %v945 = vmul.f32 %v900, %v941
  %v946 = vlaneseq
  %v947 = vshrl.u32 %v946, 7
  %v948 = vsub.s32 1, %v947
  %v949 = vrot.slane %v904, %v948
  %v950 = vlaneseq
  %v951 = vshrl.u32 %v950, 7
  %v952 = vsub.s32 3, %v951
  %v953 = vrot.slane %v904, %v952
  %v954 = vlaneseq
  %v955 = vshrl.u32 %v954, 7
  %v956 = vsub.s32 5, %v955
  %v957 = vrot.slane %v904, %v956
  %v958 = vlaneseq
  %v959 = vshrl.u32 %v958, 7
  %v960 = vsub.s32 7, %v959
  %v961 = vrot.slane %v904, %v960
  %v966 = vlaneseq
  %v967 = vshrl.u32 %v966, 7
  %v968 = vsub.s32 1, %v967
  %v969 = vrot.slane %v949, %v968
  %v970 = vlaneseq
  %v971 = vshrl.u32 %v970, 7
  %v972 = vsub.s32 1, %v971
  %v973 = vrot.slane %v953, %v972
  %v974 = vlaneseq
  %v975 = vshrl.u32 %v974, 7
  %v976 = vsub.s32 1, %v975
  %v977 = vrot.slane %v957, %v976
  %v978 = vlaneseq
  %v979 = vshrl.u32 %v978, 7
  %v980 = vsub.s32 1, %v979
  %v981 = vrot.slane %v961, %v980
  %v982 = vadd.f32 %v942, %v969
  %v983 = vadd.f32 %v943, %v973
  %v984 = vadd.f32 %v944, %v977
  %v985 = vadd.f32 %v945, %v981
  %v986 = vmax.f32 %v982, 0.0
  %v987 = vmax.f32 %v983, 0.0
  %v988 = vmax.f32 %v984, 0.0
  %v989 = vmax.f32 %v985, 0.0
  %v994 = vcombine.low %v986, %v987
  %v995 = vcombine.high %v986, %v987
  %v996 = vcombine.low %v988, %v989
  %v997 = vcombine.high %v988, %v989
  %v999 = vunpack.c.l.s4 1983009808
  %v1000 = vunpack.c.0.s8 %v999
  %v1001 = vlaneseq
  %v1002 = vshrl.u32 %v1001, 7
  %v1003 = vsub.s32 %v1000, %v1002
  %v1004 = vrot.slane %v994, %v1003
  %v1006 = vunpack.c.l.s4 1983009808
  %v1007 = vunpack.c.0.s8 %v1006
  %v1008 = vlaneseq
  %v1009 = vshrl.u32 %v1008, 7
  %v1010 = vsub.s32 %v1007, %v1009
  %v1011 = vrot.slane %v995, %v1010
  %v1013 = vunpack.c.l.s4 1983009808
  %v1014 = vunpack.c.0.s8 %v1013
  %v1015 = vlaneseq
  %v1016 = vshrl.u32 %v1015, 7
  %v1017 = vsub.s32 %v1014, %v1016
  %v1018 = vrot.slane %v996, %v1017
  %v1020 = vunpack.c.l.s4 1983009808
  %v1021 = vunpack.c.0.s8 %v1020
  %v1022 = vlaneseq
  %v1023 = vshrl.u32 %v1022, 7
  %v1024 = vsub.s32 %v1021, %v1023
  %v1025 = vrot.slane %v997, %v1024
  %v1026 = vcombine.low %v1004, %v1018
  %v1027 = vcombine.high %v1004, %v1018
  %v1028 = vcombine.low %v1011, %v1025
  %v1029 = vcombine.high %v1011, %v1025
  %1034 = vst [vmem:[%s5] sm:$0xff] %v1026
  %1035 = vst [vmem:[%s5 + $0x8] sm:$0xff] %v1027
  %1036 = vst [vmem:[%s5 + $0x10] sm:$0xff] %v1028
  %1037 = vst [vmem:[%s5 + $0x18] sm:$0xff] %v1029
  // Predicated region
  $region22: #{forward.18} parent=0 // pred_check
    _
  $region23: #{forward.18} parent=0 // pred_check_branch
    %1039 = sbr.rel (0) target = $region25
  $region24: #{forward.18} parent=0 // pred_region
    _
  $region25: #{forward.18} parent=0 // pred_fallthru
    _
  // Predicated region
  $region26: #{forward.18} parent=0 // pred_check
    _
  $region27: #{forward.18} parent=0 // pred_check_branch
    %1041 = sbr.rel (0) target = $region29
  $region28: #{forward.18} parent=0 // pred_region
    _
  $region29: #{forward.18} parent=0 // pred_fallthru
    _

// kernel: forward.19
$region0: #{forward.19}
  #allocation0 [shape = 'u32[]', space=smem, size = 0x4, offset = 0x4, fixed_abs, tag = 'smem constant byte address 0x4 - core index']
  #allocation1 [shape = 'u32[144,128]{1,0:T(1,128)}', space=vmem, size = 0x12000, scoped, tag = 'internal scratch']
  %s0 = inlined_call_operand.vmem [shape: f32[1,2,6,6,512], index: 0, kind: input, shape index: {}]
  %s1 = inlined_call_operand.vmem [shape: f32[9,512], index: 1, kind: input, shape index: {}]
  %s2 = inlined_call_operand.vmem [shape: f32[2,512], index: 2, kind: input, shape index: {}]
  %s3 = inlined_call_operand.vmem [shape: bf16[512,512], index: 3, kind: input, shape index: {}]
  %s4 = inlined_call_operand.vmem [shape: f32[2,512], index: 4, kind: input, shape index: {}]
  %s5 = inlined_call_operand.vmem [shape: f32[2,2,2,512], index: 5, kind: output, shape index: {}]
  %s6 = sld [smem:[#allocation0]]
  $region30: #{forward.19} parent=0
    _
  %s8 = ssub.s32 1, %s6
  %s9 = scalar_select 0, %s8, %s6
  // Predicated region
  $region2: #{forward.19} parent=0 // pred_check
    _
  $region3: #{forward.19} parent=0 // pred_check_branch
    %11 = sbr.rel (0) target = $region5
  $region4: #{forward.19} parent=0 // pred_region
    _
  $region5: #{forward.19} parent=0 // pred_fallthru
    _
  // Predicated region
  $region6: #{forward.19} parent=0 // pred_check
    _
  $region7: #{forward.19} parent=0 // pred_check_branch
    %13 = sbr.rel (0) target = $region9
  $region8: #{forward.19} parent=0 // pred_region
    _
  $region9: #{forward.19} parent=0 // pred_fallthru
    _
  // Predicated region
  $region10: #{forward.19} parent=0 // pred_check
    _
  $region11: #{forward.19} parent=0 // pred_check_branch
    %15 = sbr.rel (0) target = $region13
  $region12: #{forward.19} parent=0 // pred_region
    _
  $region13: #{forward.19} parent=0 // pred_fallthru
    _
  // Predicated region
  $region14: #{forward.19} parent=0 // pred_check
    _
  $region15: #{forward.19} parent=0 // pred_check_branch
    %17 = sbr.rel (0) target = $region17
  $region16: #{forward.19} parent=0 // pred_region
    _
  $region17: #{forward.19} parent=0 // pred_fallthru
    _
  // Predicated region
  $region18: #{forward.19} parent=0 // pred_check
    _
  $region19: #{forward.19} parent=0 // pred_check_branch
    %19 = sbr.rel (0) target = $region21
  $region20: #{forward.19} parent=0 // pred_region
    _
  $region21: #{forward.19} parent=0 // pred_fallthru
    _
  %s20 = smul.u32 0, 2
  %v21 = vld [vmem:[%s1] sm:$0xff]
  %v22 = vld [vmem:[%s1 + $0x8] sm:$0xff]
  %v23 = vld [vmem:[%s1 + $0x10] sm:$0xff]
  %v24 = vld [vmem:[%s1 + $0x18] sm:$0xff]
  %v25 = vld [vmem:[%s1 + $0x20] sm:$0x1]
  %v26 = vld [vmem:[%s1 + $0x28] sm:$0x1]
  %v27 = vld [vmem:[%s1 + $0x30] sm:$0x1]
  %v28 = vld [vmem:[%s1 + $0x38] sm:$0x1]
  %v29 = vld [vmem:[%s2] sm:$0xff]
  %s30 = smul.u32 %s20, 4
  %s31 = smul.addr %s30, 8
  %s32 = scalar_lea.vmem %s0, %s31
  %v33 = vld [vmem:[%s32] sm:$0x3f]
  %v34 = vld [vmem:[%s32 + $0x8] sm:$0x3f]
  %v35 = vld [vmem:[%s32 + $0x10] sm:$0x3f]
  %v36 = vld [vmem:[%s32 + $0x18] sm:$0x3f]
  %v37 = vld [vmem:[%s32 + $0x20] sm:$0x3f]
  %v38 = vld [vmem:[%s32 + $0x28] sm:$0x3f]
  %v39 = vld [vmem:[%s32 + $0x30] sm:$0x3f]
  %v40 = vld [vmem:[%s32 + $0x38] sm:$0x3f]
  %v41 = vld [vmem:[%s32 + $0xc0] sm:$0x3f]
  %v42 = vld [vmem:[%s32 + $0xc8] sm:$0x3f]
  %v43 = vld [vmem:[%s32 + $0xd0] sm:$0x3f]
  %v44 = vld [vmem:[%s32 + $0xd8] sm:$0x3f]
  %v45 = vld [vmem:[%s32 + $0xe0] sm:$0x3f]
  %v46 = vld [vmem:[%s32 + $0xe8] sm:$0x3f]
  %v47 = vld [vmem:[%s32 + $0xf0] sm:$0x3f]
  %v48 = vld [vmem:[%s32 + $0xf8] sm:$0x3f]
  %v49 = vlaneseq
  %v50 = vshrl.u32 %v49, 7
  %v51 = vsub.s32 0, %v50
  %v52 = vrot.slane %v21, %v51
  %v53 = vlaneseq
  %v54 = vshrl.u32 %v53, 7
  %v55 = vsub.s32 0, %v54
  %v56 = vrot.slane %v22, %v55
  %v57 = vlaneseq
  %v58 = vshrl.u32 %v57, 7
  %v59 = vsub.s32 0, %v58
  %v60 = vrot.slane %v23, %v59
  %v61 = vlaneseq
  %v62 = vshrl.u32 %v61, 7
  %v63 = vsub.s32 0, %v62
  %v64 = vrot.slane %v24, %v63
  %v65 = vmul.f32 %v33, %v52
  %v66 = vmul.f32 %v34, %v56
  %v67 = vmul.f32 %v35, %v60
  %v68 = vmul.f32 %v36, %v64
  %v69 = vmul.f32 %v37, %v52
  %v70 = vmul.f32 %v38, %v56
  %v71 = vmul.f32 %v39, %v60
  %v72 = vmul.f32 %v40, %v64
  %v73 = vmul.f32 %v41, %v52
  %v74 = vmul.f32 %v42, %v56
  %v75 = vmul.f32 %v43, %v60
  %v76 = vmul.f32 %v44, %v64
  %v77 = vmul.f32 %v45, %v52
  %v78 = vmul.f32 %v46, %v56
  %v79 = vmul.f32 %v47, %v60
  %v80 = vmul.f32 %v48, %v64
  %v81 = vlaneseq
  %v82 = vshrl.u32 %v81, 7
  %v83 = vsub.s32 1, %v82
  %v84 = vrot.slane %v21, %v83
  %v85 = vlaneseq
  %v86 = vshrl.u32 %v85, 7
  %v87 = vsub.s32 1, %v86
  %v88 = vrot.slane %v22, %v87
  %v89 = vlaneseq
  %v90 = vshrl.u32 %v89, 7
  %v91 = vsub.s32 1, %v90
  %v92 = vrot.slane %v23, %v91
  %v93 = vlaneseq
  %v94 = vshrl.u32 %v93, 7
  %v95 = vsub.s32 1, %v94
  %v96 = vrot.slane %v24, %v95
  %v97 = vmul.f32 %v33, %v84
  %v98 = vmul.f32 %v34, %v88
  %v99 = vmul.f32 %v35, %v92
  %v100 = vmul.f32 %v36, %v96
  %v101 = vmul.f32 %v37, %v84
  %v102 = vmul.f32 %v38, %v88
  %v103 = vmul.f32 %v39, %v92
  %v104 = vmul.f32 %v40, %v96
  %v105 = vmul.f32 %v41, %v84
  %v106 = vmul.f32 %v42, %v88
  %v107 = vmul.f32 %v43, %v92
  %v108 = vmul.f32 %v44, %v96
  %v109 = vmul.f32 %v45, %v84
  %v110 = vmul.f32 %v46, %v88
  %v111 = vmul.f32 %v47, %v92
  %v112 = vmul.f32 %v48, %v96
  %v129 = vrot.slane %v97, 2
  %v130 = vrot.slane %v98, 2
  %v131 = vrot.slane %v99, 2
  %v132 = vrot.slane %v100, 2
  %v133 = vrot.slane %v101, 2
  %v134 = vrot.slane %v102, 2
  %v135 = vrot.slane %v103, 2
  %v136 = vrot.slane %v104, 2
  %v137 = vrot.slane %v105, 2
  %v138 = vrot.slane %v106, 2
  %v139 = vrot.slane %v107, 2
  %v140 = vrot.slane %v108, 2
  %v141 = vrot.slane %v109, 2
  %v142 = vrot.slane %v110, 2
  %v143 = vrot.slane %v111, 2
  %v144 = vrot.slane %v112, 2
  %v161 = vadd.f32 %v65, %v129
  %v162 = vadd.f32 %v66, %v130
  %v163 = vadd.f32 %v67, %v131
  %v164 = vadd.f32 %v68, %v132
  %v165 = vadd.f32 %v69, %v133
  %v166 = vadd.f32 %v70, %v134
  %v167 = vadd.f32 %v71, %v135
  %v168 = vadd.f32 %v72, %v136
  %v169 = vadd.f32 %v73, %v137
  %v170 = vadd.f32 %v74, %v138
  %v171 = vadd.f32 %v75, %v139
  %v172 = vadd.f32 %v76, %v140
  %v173 = vadd.f32 %v77, %v141
  %v174 = vadd.f32 %v78, %v142
  %v175 = vadd.f32 %v79, %v143
  %v176 = vadd.f32 %v80, %v144
  %v177 = vlaneseq
  %v178 = vshrl.u32 %v177, 7
  %v179 = vsub.s32 2, %v178
  %v180 = vrot.slane %v21, %v179
  %v181 = vlaneseq
  %v182 = vshrl.u32 %v181, 7
  %v183 = vsub.s32 2, %v182
  %v184 = vrot.slane %v22, %v183
  %v185 = vlaneseq
  %v186 = vshrl.u32 %v185, 7
  %v187 = vsub.s32 2, %v186
  %v188 = vrot.slane %v23, %v187
  %v189 = vlaneseq
  %v190 = vshrl.u32 %v189, 7
  %v191 = vsub.s32 2, %v190
  %v192 = vrot.slane %v24, %v191
  %v193 = vmul.f32 %v33, %v180
  %v194 = vmul.f32 %v34, %v184
  %v195 = vmul.f32 %v35, %v188
  %v196 = vmul.f32 %v36, %v192
  %v197 = vmul.f32 %v37, %v180
  %v198 = vmul.f32 %v38, %v184
  %v199 = vmul.f32 %v39, %v188
  %v200 = vmul.f32 %v40, %v192
  %v201 = vmul.f32 %v41, %v180
  %v202 = vmul.f32 %v42, %v184
  %v203 = vmul.f32 %v43, %v188
  %v204 = vmul.f32 %v44, %v192
  %v205 = vmul.f32 %v45, %v180
  %v206 = vmul.f32 %v46, %v184
  %v207 = vmul.f32 %v47, %v188
  %v208 = vmul.f32 %v48, %v192
  %v225 = vrot.slane %v193, 4
  %v226 = vrot.slane %v194, 4
  %v227 = vrot.slane %v195, 4
  %v228 = vrot.slane %v196, 4
  %v229 = vrot.slane %v197, 4
  %v230 = vrot.slane %v198, 4
  %v231 = vrot.slane %v199, 4
  %v232 = vrot.slane %v200, 4
  %v233 = vrot.slane %v201, 4
  %v234 = vrot.slane %v202, 4
  %v235 = vrot.slane %v203, 4
  %v236 = vrot.slane %v204, 4
  %v237 = vrot.slane %v205, 4
  %v238 = vrot.slane %v206, 4
  %v239 = vrot.slane %v207, 4
  %v240 = vrot.slane %v208, 4
  %v257 = vadd.f32 %v161, %v225
  %v258 = vadd.f32 %v162, %v226
  %v259 = vadd.f32 %v163, %v227
  %v260 = vadd.f32 %v164, %v228
  %v261 = vadd.f32 %v165, %v229
  %v262 = vadd.f32 %v166, %v230
  %v263 = vadd.f32 %v167, %v231
  %v264 = vadd.f32 %v168, %v232
  %v265 = vadd.f32 %v169, %v233
  %v266 = vadd.f32 %v170, %v234
  %v267 = vadd.f32 %v171, %v235
  %v268 = vadd.f32 %v172, %v236
  %v269 = vadd.f32 %v173, %v237
  %v270 = vadd.f32 %v174, %v238
  %v271 = vadd.f32 %v175, %v239
  %v272 = vadd.f32 %v176, %v240
  %s273 = sadd.s32 %s20, 2
  %s274 = smul.u32 %s273, 4
  %s275 = smul.addr %s274, 8
  %s276 = scalar_lea.vmem %s0, %s275
  %v277 = vld [vmem:[%s276] sm:$0x3f]
  %v278 = vld [vmem:[%s276 + $0x8] sm:$0x3f]
  %v279 = vld [vmem:[%s276 + $0x10] sm:$0x3f]
  %v280 = vld [vmem:[%s276 + $0x18] sm:$0x3f]
  %v281 = vld [vmem:[%s276 + $0x20] sm:$0x3f]
  %v282 = vld [vmem:[%s276 + $0x28] sm:$0x3f]
  %v283 = vld [vmem:[%s276 + $0x30] sm:$0x3f]
  %v284 = vld [vmem:[%s276 + $0x38] sm:$0x3f]
  %v285 = vld [vmem:[%s276 + $0xc0] sm:$0x3f]
  %v286 = vld [vmem:[%s276 + $0xc8] sm:$0x3f]
  %v287 = vld [vmem:[%s276 + $0xd0] sm:$0x3f]
  %v288 = vld [vmem:[%s276 + $0xd8] sm:$0x3f]
  %v289 = vld [vmem:[%s276 + $0xe0] sm:$0x3f]
  %v290 = vld [vmem:[%s276 + $0xe8] sm:$0x3f]
  %v291 = vld [vmem:[%s276 + $0xf0] sm:$0x3f]
  %v292 = vld [vmem:[%s276 + $0xf8] sm:$0x3f]
  %v293 = vlaneseq
  %v294 = vshrl.u32 %v293, 7
  %v295 = vsub.s32 3, %v294
  %v296 = vrot.slane %v21, %v295
  %v297 = vlaneseq
  %v298 = vshrl.u32 %v297, 7
  %v299 = vsub.s32 3, %v298
  %v300 = vrot.slane %v22, %v299
  %v301 = vlaneseq
  %v302 = vshrl.u32 %v301, 7
  %v303 = vsub.s32 3, %v302
  %v304 = vrot.slane %v23, %v303
  %v305 = vlaneseq
  %v306 = vshrl.u32 %v305, 7
  %v307 = vsub.s32 3, %v306
  %v308 = vrot.slane %v24, %v307
  %v309 = vmul.f32 %v277, %v296
  %v310 = vmul.f32 %v278, %v300
  %v311 = vmul.f32 %v279, %v304
  %v312 = vmul.f32 %v280, %v308
  %v313 = vmul.f32 %v281, %v296
  %v314 = vmul.f32 %v282, %v300
  %v315 = vmul.f32 %v283, %v304
  %v316 = vmul.f32 %v284, %v308
  %v317 = vmul.f32 %v285, %v296
  %v318 = vmul.f32 %v286, %v300
  %v319 = vmul.f32 %v287, %v304
  %v320 = vmul.f32 %v288, %v308
  %v321 = vmul.f32 %v289, %v296
  %v322 = vmul.f32 %v290, %v300
  %v323 = vmul.f32 %v291, %v304
  %v324 = vmul.f32 %v292, %v308
  %v325 = vadd.f32 %v257, %v309
  %v326 = vadd.f32 %v258, %v310
  %v327 = vadd.f32 %v259, %v311
  %v328 = vadd.f32 %v260, %v312
  %v329 = vadd.f32 %v261, %v313
  %v330 = vadd.f32 %v262, %v314
  %v331 = vadd.f32 %v263, %v315
  %v332 = vadd.f32 %v264, %v316
  %v333 = vadd.f32 %v265, %v317
  %v334 = vadd.f32 %v266, %v318
  %v335 = vadd.f32 %v267, %v319
  %v336 = vadd.f32 %v268, %v320
  %v337 = vadd.f32 %v269, %v321
  %v338 = vadd.f32 %v270, %v322
  %v339 = vadd.f32 %v271, %v323
  %v340 = vadd.f32 %v272, %v324
  %v341 = vlaneseq
  %v342 = vshrl.u32 %v341, 7
  %v343 = vsub.s32 4, %v342
  %v344 = vrot.slane %v21, %v343
  %v345 = vlaneseq
  %v346 = vshrl.u32 %v345, 7
  %v347 = vsub.s32 4, %v346
  %v348 = vrot.slane %v22, %v347
  %v349 = vlaneseq
  %v350 = vshrl.u32 %v349, 7
  %v351 = vsub.s32 4, %v350
  %v352 = vrot.slane %v23, %v351
  %v353 = vlaneseq
  %v354 = vshrl.u32 %v353, 7
  %v355 = vsub.s32 4, %v354
  %v356 = vrot.slane %v24, %v355
  %v357 = vmul.f32 %v277, %v344
  %v358 = vmul.f32 %v278, %v348
  %v359 = vmul.f32 %v279, %v352
  %v360 = vmul.f32 %v280, %v356
  %v361 = vmul.f32 %v281, %v344
  %v362 = vmul.f32 %v282, %v348
  %v363 = vmul.f32 %v283, %v352
  %v364 = vmul.f32 %v284, %v356
  %v365 = vmul.f32 %v285, %v344
  %v366 = vmul.f32 %v286, %v348
  %v367 = vmul.f32 %v287, %v352
  %v368 = vmul.f32 %v288, %v356
  %v369 = vmul.f32 %v289, %v344
  %v370 = vmul.f32 %v290, %v348
  %v371 = vmul.f32 %v291, %v352
  %v372 = vmul.f32 %v292, %v356
  %v389 = vrot.slane %v357, 2
  %v390 = vrot.slane %v358, 2
  %v391 = vrot.slane %v359, 2
  %v392 = vrot.slane %v360, 2
  %v393 = vrot.slane %v361, 2
  %v394 = vrot.slane %v362, 2
  %v395 = vrot.slane %v363, 2
  %v396 = vrot.slane %v364, 2
  %v397 = vrot.slane %v365, 2
  %v398 = vrot.slane %v366, 2
  %v399 = vrot.slane %v367, 2
  %v400 = vrot.slane %v368, 2
  %v401 = vrot.slane %v369, 2
  %v402 = vrot.slane %v370, 2
  %v403 = vrot.slane %v371, 2
  %v404 = vrot.slane %v372, 2
  %v421 = vadd.f32 %v325, %v389
  %v422 = vadd.f32 %v326, %v390
  %v423 = vadd.f32 %v327, %v391
  %v424 = vadd.f32 %v328, %v392
  %v425 = vadd.f32 %v329, %v393
  %v426 = vadd.f32 %v330, %v394
  %v427 = vadd.f32 %v331, %v395
  %v428 = vadd.f32 %v332, %v396
  %v429 = vadd.f32 %v333, %v397
  %v430 = vadd.f32 %v334, %v398
  %v431 = vadd.f32 %v335, %v399
  %v432 = vadd.f32 %v336, %v400
  %v433 = vadd.f32 %v337, %v401
  %v434 = vadd.f32 %v338, %v402
  %v435 = vadd.f32 %v339, %v403
  %v436 = vadd.f32 %v340, %v404
  %v437 = vlaneseq
  %v438 = vshrl.u32 %v437, 7
  %v439 = vsub.s32 5, %v438
  %v440 = vrot.slane %v21, %v439
  %v441 = vlaneseq
  %v442 = vshrl.u32 %v441, 7
  %v443 = vsub.s32 5, %v442
  %v444 = vrot.slane %v22, %v443
  %v445 = vlaneseq
  %v446 = vshrl.u32 %v445, 7
  %v447 = vsub.s32 5, %v446
  %v448 = vrot.slane %v23, %v447
  %v449 = vlaneseq
  %v450 = vshrl.u32 %v449, 7
  %v451 = vsub.s32 5, %v450
  %v452 = vrot.slane %v24, %v451
  %v453 = vmul.f32 %v277, %v440
  %v454 = vmul.f32 %v278, %v444
  %v455 = vmul.f32 %v279, %v448
  %v456 = vmul.f32 %v280, %v452
  %v457 = vmul.f32 %v281, %v440
  %v458 = vmul.f32 %v282, %v444
  %v459 = vmul.f32 %v283, %v448
  %v460 = vmul.f32 %v284, %v452
  %v461 = vmul.f32 %v285, %v440
  %v462 = vmul.f32 %v286, %v444
  %v463 = vmul.f32 %v287, %v448
  %v464 = vmul.f32 %v288, %v452
  %v465 = vmul.f32 %v289, %v440
  %v466 = vmul.f32 %v290, %v444
  %v467 = vmul.f32 %v291, %v448
  %v468 = vmul.f32 %v292, %v452
  %v485 = vrot.slane %v453, 4
  %v486 = vrot.slane %v454, 4
  %v487 = vrot.slane %v455, 4
  %v488 = vrot.slane %v456, 4
  %v489 = vrot.slane %v457, 4
  %v490 = vrot.slane %v458, 4
  %v491 = vrot.slane %v459, 4
  %v492 = vrot.slane %v460, 4
  %v493 = vrot.slane %v461, 4
  %v494 = vrot.slane %v462, 4
  %v495 = vrot.slane %v463, 4
  %v496 = vrot.slane %v464, 4
  %v497 = vrot.slane %v465, 4
  %v498 = vrot.slane %v466, 4
  %v499 = vrot.slane %v467, 4
  %v500 = vrot.slane %v468, 4
  %v517 = vadd.f32 %v421, %v485
  %v518 = vadd.f32 %v422, %v486
  %v519 = vadd.f32 %v423, %v487
  %v520 = vadd.f32 %v424, %v488
  %v521 = vadd.f32 %v425, %v489
  %v522 = vadd.f32 %v426, %v490
  %v523 = vadd.f32 %v427, %v491
  %v524 = vadd.f32 %v428, %v492
  %v525 = vadd.f32 %v429, %v493
  %v526 = vadd.f32 %v430, %v494
  %v527 = vadd.f32 %v431, %v495
  %v528 = vadd.f32 %v432, %v496
  %v529 = vadd.f32 %v433, %v497
  %v530 = vadd.f32 %v434, %v498
  %v531 = vadd.f32 %v435, %v499
  %v532 = vadd.f32 %v436, %v500
  %s533 = sadd.s32 %s20, 4
  %s534 = smul.u32 %s533, 4
  %s535 = smul.addr %s534, 8
  %s536 = scalar_lea.vmem %s0, %s535
  %v537 = vld [vmem:[%s536] sm:$0x3f]
  %v538 = vld [vmem:[%s536 + $0x8] sm:$0x3f]
  %v539 = vld [vmem:[%s536 + $0x10] sm:$0x3f]
  %v540 = vld [vmem:[%s536 + $0x18] sm:$0x3f]
  %v541 = vld [vmem:[%s536 + $0x20] sm:$0x3f]
  %v542 = vld [vmem:[%s536 + $0x28] sm:$0x3f]
  %v543 = vld [vmem:[%s536 + $0x30] sm:$0x3f]
  %v544 = vld [vmem:[%s536 + $0x38] sm:$0x3f]
  %v545 = vld [vmem:[%s536 + $0xc0] sm:$0x3f]
  %v546 = vld [vmem:[%s536 + $0xc8] sm:$0x3f]
  %v547 = vld [vmem:[%s536 + $0xd0] sm:$0x3f]
  %v548 = vld [vmem:[%s536 + $0xd8] sm:$0x3f]
  %v549 = vld [vmem:[%s536 + $0xe0] sm:$0x3f]
  %v550 = vld [vmem:[%s536 + $0xe8] sm:$0x3f]
  %v551 = vld [vmem:[%s536 + $0xf0] sm:$0x3f]
  %v552 = vld [vmem:[%s536 + $0xf8] sm:$0x3f]
  %v553 = vlaneseq
  %v554 = vshrl.u32 %v553, 7
  %v555 = vsub.s32 6, %v554
  %v556 = vrot.slane %v21, %v555
  %v557 = vlaneseq
  %v558 = vshrl.u32 %v557, 7
  %v559 = vsub.s32 6, %v558
  %v560 = vrot.slane %v22, %v559
  %v561 = vlaneseq
  %v562 = vshrl.u32 %v561, 7
  %v563 = vsub.s32 6, %v562
  %v564 = vrot.slane %v23, %v563
  %v565 = vlaneseq
  %v566 = vshrl.u32 %v565, 7
  %v567 = vsub.s32 6, %v566
  %v568 = vrot.slane %v24, %v567
  %v569 = vmul.f32 %v537, %v556
  %v570 = vmul.f32 %v538, %v560
  %v571 = vmul.f32 %v539, %v564
  %v572 = vmul.f32 %v540, %v568
  %v573 = vmul.f32 %v541, %v556
  %v574 = vmul.f32 %v542, %v560
  %v575 = vmul.f32 %v543, %v564
  %v576 = vmul.f32 %v544, %v568
  %v577 = vmul.f32 %v545, %v556
  %v578 = vmul.f32 %v546, %v560
  %v579 = vmul.f32 %v547, %v564
  %v580 = vmul.f32 %v548, %v568
  %v581 = vmul.f32 %v549, %v556
  %v582 = vmul.f32 %v550, %v560
  %v583 = vmul.f32 %v551, %v564
  %v584 = vmul.f32 %v552, %v568
  %v585 = vadd.f32 %v517, %v569
  %v586 = vadd.f32 %v518, %v570
  %v587 = vadd.f32 %v519, %v571
  %v588 = vadd.f32 %v520, %v572
  %v589 = vadd.f32 %v521, %v573
  %v590 = vadd.f32 %v522, %v574
  %v591 = vadd.f32 %v523, %v575
  %v592 = vadd.f32 %v524, %v576
  %v593 = vadd.f32 %v525, %v577
  %v594 = vadd.f32 %v526, %v578
  %v595 = vadd.f32 %v527, %v579
  %v596 = vadd.f32 %v528, %v580
  %v597 = vadd.f32 %v529, %v581
  %v598 = vadd.f32 %v530, %v582
  %v599 = vadd.f32 %v531, %v583
  %v600 = vadd.f32 %v532, %v584
  %v601 = vlaneseq
  %v602 = vshrl.u32 %v601, 7
  %v603 = vsub.s32 7, %v602
  %v604 = vrot.slane %v21, %v603
  %v605 = vlaneseq
  %v606 = vshrl.u32 %v605, 7
  %v607 = vsub.s32 7, %v606
  %v608 = vrot.slane %v22, %v607
  %v609 = vlaneseq
  %v610 = vshrl.u32 %v609, 7
  %v611 = vsub.s32 7, %v610
  %v612 = vrot.slane %v23, %v611
  %v613 = vlaneseq
  %v614 = vshrl.u32 %v613, 7
  %v615 = vsub.s32 7, %v614
  %v616 = vrot.slane %v24, %v615
  %v617 = vmul.f32 %v537, %v604
  %v618 = vmul.f32 %v538, %v608
  %v619 = vmul.f32 %v539, %v612
  %v620 = vmul.f32 %v540, %v616
  %v621 = vmul.f32 %v541, %v604
  %v622 = vmul.f32 %v542, %v608
  %v623 = vmul.f32 %v543, %v612
  %v624 = vmul.f32 %v544, %v616
  %v625 = vmul.f32 %v545, %v604
  %v626 = vmul.f32 %v546, %v608
  %v627 = vmul.f32 %v547, %v612
  %v628 = vmul.f32 %v548, %v616
  %v629 = vmul.f32 %v549, %v604
  %v630 = vmul.f32 %v550, %v608
  %v631 = vmul.f32 %v551, %v612
  %v632 = vmul.f32 %v552, %v616
  %v649 = vrot.slane %v617, 2
  %v650 = vrot.slane %v618, 2
  %v651 = vrot.slane %v619, 2
  %v652 = vrot.slane %v620, 2
  %v653 = vrot.slane %v621, 2
  %v654 = vrot.slane %v622, 2
  %v655 = vrot.slane %v623, 2
  %v656 = vrot.slane %v624, 2
  %v657 = vrot.slane %v625, 2
  %v658 = vrot.slane %v626, 2
  %v659 = vrot.slane %v627, 2
  %v660 = vrot.slane %v628, 2
  %v661 = vrot.slane %v629, 2
  %v662 = vrot.slane %v630, 2
  %v663 = vrot.slane %v631, 2
  %v664 = vrot.slane %v632, 2
  %v681 = vadd.f32 %v585, %v649
  %v682 = vadd.f32 %v586, %v650
  %v683 = vadd.f32 %v587, %v651
  %v684 = vadd.f32 %v588, %v652
  %v685 = vadd.f32 %v589, %v653
  %v686 = vadd.f32 %v590, %v654
  %v687 = vadd.f32 %v591, %v655
  %v688 = vadd.f32 %v592, %v656
  %v689 = vadd.f32 %v593, %v657
  %v690 = vadd.f32 %v594, %v658
  %v691 = vadd.f32 %v595, %v659
  %v692 = vadd.f32 %v596, %v660
  %v693 = vadd.f32 %v597, %v661
  %v694 = vadd.f32 %v598, %v662
  %v695 = vadd.f32 %v599, %v663
  %v696 = vadd.f32 %v600, %v664
  %v697 = vlaneseq
  %v698 = vshrl.u32 %v697, 7
  %v699 = vsub.s32 0, %v698
  %v700 = vrot.slane %v25, %v699
  %v701 = vlaneseq
  %v702 = vshrl.u32 %v701, 7
  %v703 = vsub.s32 0, %v702
  %v704 = vrot.slane %v26, %v703
  %v705 = vlaneseq
  %v706 = vshrl.u32 %v705, 7
  %v707 = vsub.s32 0, %v706
  %v708 = vrot.slane %v27, %v707
  %v709 = vlaneseq
  %v710 = vshrl.u32 %v709, 7
  %v711 = vsub.s32 0, %v710
  %v712 = vrot.slane %v28, %v711
  %v713 = vmul.f32 %v537, %v700
  %v714 = vmul.f32 %v538, %v704
  %v715 = vmul.f32 %v539, %v708
  %v716 = vmul.f32 %v540, %v712
  %v717 = vmul.f32 %v541, %v700
  %v718 = vmul.f32 %v542, %v704
  %v719 = vmul.f32 %v543, %v708
  %v720 = vmul.f32 %v544, %v712
  %v721 = vmul.f32 %v545, %v700
  %v722 = vmul.f32 %v546, %v704
  %v723 = vmul.f32 %v547, %v708
  %v724 = vmul.f32 %v548, %v712
  %v725 = vmul.f32 %v549, %v700
  %v726 = vmul.f32 %v550, %v704
  %v727 = vmul.f32 %v551, %v708
  %v728 = vmul.f32 %v552, %v712
  %v745 = vrot.slane %v713, 4
  %v746 = vrot.slane %v714, 4
  %v747 = vrot.slane %v715, 4
  %v748 = vrot.slane %v716, 4
  %v749 = vrot.slane %v717, 4
  %v750 = vrot.slane %v718, 4
  %v751 = vrot.slane %v719, 4
  %v752 = vrot.slane %v720, 4
  %v753 = vrot.slane %v721, 4
  %v754 = vrot.slane %v722, 4
  %v755 = vrot.slane %v723, 4
  %v756 = vrot.slane %v724, 4
  %v757 = vrot.slane %v725, 4
  %v758 = vrot.slane %v726, 4
  %v759 = vrot.slane %v727, 4
  %v760 = vrot.slane %v728, 4
  %v777 = vadd.f32 %v681, %v745
  %v778 = vadd.f32 %v682, %v746
  %v779 = vadd.f32 %v683, %v747
  %v780 = vadd.f32 %v684, %v748
  %v781 = vadd.f32 %v685, %v749
  %v782 = vadd.f32 %v686, %v750
  %v783 = vadd.f32 %v687, %v751
  %v784 = vadd.f32 %v688, %v752
  %v785 = vadd.f32 %v689, %v753
  %v786 = vadd.f32 %v690, %v754
  %v787 = vadd.f32 %v691, %v755
  %v788 = vadd.f32 %v692, %v756
  %v789 = vadd.f32 %v693, %v757
  %v790 = vadd.f32 %v694, %v758
  %v791 = vadd.f32 %v695, %v759
  %v792 = vadd.f32 %v696, %v760
  %v794 = vlaneseq
  %v795 = vshrl.u32 %v794, 7
  %v796 = vsub.s32 0, %v795
  %v797 = vrot.slane %v29, %v796
  %v798 = vlaneseq
  %v799 = vshrl.u32 %v798, 7
  %v800 = vsub.s32 2, %v799
  %v801 = vrot.slane %v29, %v800
  %v802 = vlaneseq
  %v803 = vshrl.u32 %v802, 7
  %v804 = vsub.s32 4, %v803
  %v805 = vrot.slane %v29, %v804
  %v806 = vlaneseq
  %v807 = vshrl.u32 %v806, 7
  %v808 = vsub.s32 6, %v807
  %v809 = vrot.slane %v29, %v808
  %v814 = vlaneseq
  %v815 = vshrl.u32 %v814, 7
  %v816 = vsub.s32 0, %v815
  %v817 = vrot.slane %v797, %v816
  %v818 = vlaneseq
  %v819 = vshrl.u32 %v818, 7
  %v820 = vsub.s32 0, %v819
  %v821 = vrot.slane %v801, %v820
  %v822 = vlaneseq
  %v823 = vshrl.u32 %v822, 7
  %v824 = vsub.s32 0, %v823
  %v825 = vrot.slane %v805, %v824
  %v826 = vlaneseq
  %v827 = vshrl.u32 %v826, 7
  %v828 = vsub.s32 0, %v827
  %v829 = vrot.slane %v809, %v828
  %v830 = vmul.f32 %v777, %v817
  %v831 = vmul.f32 %v778, %v821
  %v832 = vmul.f32 %v779, %v825
  %v833 = vmul.f32 %v780, %v829
  %v834 = vmul.f32 %v781, %v817
  %v835 = vmul.f32 %v782, %v821
  %v836 = vmul.f32 %v783, %v825
  %v837 = vmul.f32 %v784, %v829
  %v838 = vmul.f32 %v785, %v817
  %v839 = vmul.f32 %v786, %v821
  %v840 = vmul.f32 %v787, %v825
  %v841 = vmul.f32 %v788, %v829
  %v842 = vmul.f32 %v789, %v817
  %v843 = vmul.f32 %v790, %v821
  %v844 = vmul.f32 %v791, %v825
  %v845 = vmul.f32 %v792, %v829
  %v846 = vlaneseq
  %v847 = vshrl.u32 %v846, 7
  %v848 = vsub.s32 1, %v847
  %v849 = vrot.slane %v29, %v848
  %v850 = vlaneseq
  %v851 = vshrl.u32 %v850, 7
  %v852 = vsub.s32 3, %v851
  %v853 = vrot.slane %v29, %v852
  %v854 = vlaneseq
  %v855 = vshrl.u32 %v854, 7
  %v856 = vsub.s32 5, %v855
  %v857 = vrot.slane %v29, %v856
  %v858 = vlaneseq
  %v859 = vshrl.u32 %v858, 7
  %v860 = vsub.s32 7, %v859
  %v861 = vrot.slane %v29, %v860
  %v866 = vlaneseq
  %v867 = vshrl.u32 %v866, 7
  %v868 = vsub.s32 1, %v867
  %v869 = vrot.slane %v849, %v868
  %v870 = vlaneseq
  %v871 = vshrl.u32 %v870, 7
  %v872 = vsub.s32 1, %v871
  %v873 = vrot.slane %v853, %v872
  %v874 = vlaneseq
  %v875 = vshrl.u32 %v874, 7
  %v876 = vsub.s32 1, %v875
  %v877 = vrot.slane %v857, %v876
  %v878 = vlaneseq
  %v879 = vshrl.u32 %v878, 7
  %v880 = vsub.s32 1, %v879
  %v881 = vrot.slane %v861, %v880
  %v882 = vadd.f32 %v830, %v869
  %v883 = vadd.f32 %v831, %v873
  %v884 = vadd.f32 %v832, %v877
  %v885 = vadd.f32 %v833, %v881
  %v886 = vadd.f32 %v834, %v869
  %v887 = vadd.f32 %v835, %v873
  %v888 = vadd.f32 %v836, %v877
  %v889 = vadd.f32 %v837, %v881
  %v890 = vadd.f32 %v838, %v869
  %v891 = vadd.f32 %v839, %v873
  %v892 = vadd.f32 %v840, %v877
  %v893 = vadd.f32 %v841, %v881
  %v894 = vadd.f32 %v842, %v869
  %v895 = vadd.f32 %v843, %v873
  %v896 = vadd.f32 %v844, %v877
  %v897 = vadd.f32 %v845, %v881
  %v898 = vmax.f32 %v882, 0.0
  %v899 = vmax.f32 %v883, 0.0
  %v900 = vmax.f32 %v884, 0.0
  %v901 = vmax.f32 %v885, 0.0
  %v902 = vmax.f32 %v886, 0.0
  %v903 = vmax.f32 %v887, 0.0
  %v904 = vmax.f32 %v888, 0.0
  %v905 = vmax.f32 %v889, 0.0
  %v906 = vmax.f32 %v890, 0.0
  %v907 = vmax.f32 %v891, 0.0
  %v908 = vmax.f32 %v892, 0.0
  %v909 = vmax.f32 %v893, 0.0
  %v910 = vmax.f32 %v894, 0.0
  %v911 = vmax.f32 %v895, 0.0
  %v912 = vmax.f32 %v896, 0.0
  %v913 = vmax.f32 %v897, 0.0
  %v930 = vcombine.low %v898, %v899
  %v931 = vcombine.low %v900, %v901
  %v933 = vunpack.c.l.s4 1983009808
  %v934 = vunpack.c.0.s8 %v933
  %v935 = vlaneseq
  %v936 = vshrl.u32 %v935, 7
  %v937 = vsub.s32 %v934, %v936
  %v938 = vrot.slane %v930, %v937
  %v940 = vunpack.c.l.s4 1983009808
  %v941 = vunpack.c.0.s8 %v940
  %v942 = vlaneseq
  %v943 = vshrl.u32 %v942, 7
  %v944 = vsub.s32 %v941, %v943
  %v945 = vrot.slane %v931, %v944
  %v946 = vcombine.low %v938, %v945
  %v947 = vcombine.low %v902, %v903
  %v948 = vcombine.low %v904, %v905
  %v950 = vunpack.c.l.s4 1983009808
  %v951 = vunpack.c.0.s8 %v950
  %v952 = vlaneseq
  %v953 = vshrl.u32 %v952, 7
  %v954 = vsub.s32 %v951, %v953
  %v955 = vrot.slane %v947, %v954
  %v957 = vunpack.c.l.s4 1983009808
  %v958 = vunpack.c.0.s8 %v957
  %v959 = vlaneseq
  %v960 = vshrl.u32 %v959, 7
  %v961 = vsub.s32 %v958, %v960
  %v962 = vrot.slane %v948, %v961
  %v963 = vcombine.low %v955, %v962
  %v964 = vcombine.low %v906, %v907
  %v965 = vcombine.low %v908, %v909
  %v967 = vunpack.c.l.s4 1983009808
  %v968 = vunpack.c.0.s8 %v967
  %v969 = vlaneseq
  %v970 = vshrl.u32 %v969, 7
  %v971 = vsub.s32 %v968, %v970
  %v972 = vrot.slane %v964, %v971
  %v974 = vunpack.c.l.s4 1983009808
  %v975 = vunpack.c.0.s8 %v974
  %v976 = vlaneseq
  %v977 = vshrl.u32 %v976, 7
  %v978 = vsub.s32 %v975, %v977
  %v979 = vrot.slane %v965, %v978
  %v980 = vcombine.low %v972, %v979
  %v981 = vcombine.low %v910, %v911
  %v982 = vcombine.low %v912, %v913
  %v984 = vunpack.c.l.s4 1983009808
  %v985 = vunpack.c.0.s8 %v984
  %v986 = vlaneseq
  %v987 = vshrl.u32 %v986, 7
  %v988 = vsub.s32 %v985, %v987
  %v989 = vrot.slane %v981, %v988
  %v991 = vunpack.c.l.s4 1983009808
  %v992 = vunpack.c.0.s8 %v991
  %v993 = vlaneseq
  %v994 = vshrl.u32 %v993, 7
  %v995 = vsub.s32 %v992, %v994
  %v996 = vrot.slane %v982, %v995
  %v997 = vcombine.low %v989, %v996
  %v998 = vcombine.low %v946, %v963
  %v999 = vcombine.high %v946, %v963
  %v1000 = vcombine.low %v980, %v997
  %v1001 = vcombine.high %v980, %v997
  %v1003 = vunpack.c.l.s4 1983009808
  %v1004 = vunpack.c.0.s8 %v1003
  %v1005 = vlaneseq
  %v1006 = vshrl.u32 %v1005, 7
  %v1007 = vsub.s32 %v1004, %v1006
  %v1008 = vrot.slane %v998, %v1007
  %v1010 = vunpack.c.l.s4 1983009808
  %v1011 = vunpack.c.0.s8 %v1010
  %v1012 = vlaneseq
  %v1013 = vshrl.u32 %v1012, 7
  %v1014 = vsub.s32 %v1011, %v1013
  %v1015 = vrot.slane %v999, %v1014
  %v1017 = vunpack.c.l.s4 1983009808
  %v1018 = vunpack.c.0.s8 %v1017
  %v1019 = vlaneseq
  %v1020 = vshrl.u32 %v1019, 7
  %v1021 = vsub.s32 %v1018, %v1020
  %v1022 = vrot.slane %v1000, %v1021
  %v1024 = vunpack.c.l.s4 1983009808
  %v1025 = vunpack.c.0.s8 %v1024
  %v1026 = vlaneseq
  %v1027 = vshrl.u32 %v1026, 7
  %v1028 = vsub.s32 %v1025, %v1027
  %v1029 = vrot.slane %v1001, %v1028
  %v1030 = vcombine.low %v1008, %v1022
  %v1031 = vcombine.high %v1008, %v1022
  %v1032 = vcombine.low %v1015, %v1029
  %v1033 = vcombine.high %v1015, %v1029
  %v1038 = vpack.c.bf16 %v1030, %v1030
  %v1039 = vpack.c.bf16 %v1031, %v1031
  %v1040 = vpack.c.bf16 %v1032, %v1032
  %v1041 = vpack.c.bf16 %v1033, %v1033
  %v1042 = vld [vmem:[%s3] sm:$0xff]
  %v1043 = vld [vmem:[%s3 + $0x8] sm:$0xff]
  %v1044 = vld [vmem:[%s3 + $0x10] sm:$0xff]
  %v1045 = vld [vmem:[%s3 + $0x18] sm:$0xff]
  %v1046 = vld [vmem:[%s3 + $0x20] sm:$0xff]
  %v1047 = vld [vmem:[%s3 + $0x28] sm:$0xff]
  %v1048 = vld [vmem:[%s3 + $0x30] sm:$0xff]
  %v1049 = vld [vmem:[%s3 + $0x38] sm:$0xff]
  %v1050 = vld [vmem:[%s3 + $0x40] sm:$0xff]
  %v1051 = vld [vmem:[%s3 + $0x48] sm:$0xff]
  %v1052 = vld [vmem:[%s3 + $0x50] sm:$0xff]
  %v1053 = vld [vmem:[%s3 + $0x58] sm:$0xff]
  %v1054 = vld [vmem:[%s3 + $0x60] sm:$0xff]
  %v1055 = vld [vmem:[%s3 + $0x68] sm:$0xff]
  %v1056 = vld [vmem:[%s3 + $0x70] sm:$0xff]
  %v1057 = vld [vmem:[%s3 + $0x78] sm:$0xff]
  %v1058 = vld [vmem:[%s3 + $0x80] sm:$0xff]
  %v1059 = vld [vmem:[%s3 + $0x88] sm:$0xff]
  %v1060 = vld [vmem:[%s3 + $0x90] sm:$0xff]
  %v1061 = vld [vmem:[%s3 + $0x98] sm:$0xff]
  %v1062 = vld [vmem:[%s3 + $0xa0] sm:$0xff]
  %v1063 = vld [vmem:[%s3 + $0xa8] sm:$0xff]
  %v1064 = vld [vmem:[%s3 + $0xb0] sm:$0xff]
  %v1065 = vld [vmem:[%s3 + $0xb8] sm:$0xff]
  %v1066 = vld [vmem:[%s3 + $0xc0] sm:$0xff]
  %v1067 = vld [vmem:[%s3 + $0xc8] sm:$0xff]
  %v1068 = vld [vmem:[%s3 + $0xd0] sm:$0xff]
  %v1069 = vld [vmem:[%s3 + $0xd8] sm:$0xff]
  %v1070 = vld [vmem:[%s3 + $0xe0] sm:$0xff]
  %v1071 = vld [vmem:[%s3 + $0xe8] sm:$0xff]
  %v1072 = vld [vmem:[%s3 + $0xf0] sm:$0xff]
  %v1073 = vld [vmem:[%s3 + $0xf8] sm:$0xff]
  %v1074 = vld [vmem:[%s3 + $0x100] sm:$0xff]
  %v1075 = vld [vmem:[%s3 + $0x108] sm:$0xff]
  %v1076 = vld [vmem:[%s3 + $0x110] sm:$0xff]
  %v1077 = vld [vmem:[%s3 + $0x118] sm:$0xff]
  %v1078 = vld [vmem:[%s3 + $0x120] sm:$0xff]
  %v1079 = vld [vmem:[%s3 + $0x128] sm:$0xff]
  %v1080 = vld [vmem:[%s3 + $0x130] sm:$0xff]
  %v1081 = vld [vmem:[%s3 + $0x138] sm:$0xff]
  %v1082 = vld [vmem:[%s3 + $0x140] sm:$0xff]
  %v1083 = vld [vmem:[%s3 + $0x148] sm:$0xff]
  %v1084 = vld [vmem:[%s3 + $0x150] sm:$0xff]
  %v1085 = vld [vmem:[%s3 + $0x158] sm:$0xff]
  %v1086 = vld [vmem:[%s3 + $0x160] sm:$0xff]
  %v1087 = vld [vmem:[%s3 + $0x168] sm:$0xff]
  %v1088 = vld [vmem:[%s3 + $0x170] sm:$0xff]
  %v1089 = vld [vmem:[%s3 + $0x178] sm:$0xff]
  %v1090 = vld [vmem:[%s3 + $0x180] sm:$0xff]
  %v1091 = vld [vmem:[%s3 + $0x188] sm:$0xff]
  %v1092 = vld [vmem:[%s3 + $0x190] sm:$0xff]
  %v1093 = vld [vmem:[%s3 + $0x198] sm:$0xff]
  %v1094 = vld [vmem:[%s3 + $0x1a0] sm:$0xff]
  %v1095 = vld [vmem:[%s3 + $0x1a8] sm:$0xff]
  %v1096 = vld [vmem:[%s3 + $0x1b0] sm:$0xff]
  %v1097 = vld [vmem:[%s3 + $0x1b8] sm:$0xff]
  %v1098 = vld [vmem:[%s3 + $0x1c0] sm:$0xff]
  %v1099 = vld [vmem:[%s3 + $0x1c8] sm:$0xff]
  %v1100 = vld [vmem:[%s3 + $0x1d0] sm:$0xff]
  %v1101 = vld [vmem:[%s3 + $0x1d8] sm:$0xff]
  %v1102 = vld [vmem:[%s3 + $0x1e0] sm:$0xff]
  %v1103 = vld [vmem:[%s3 + $0x1e8] sm:$0xff]
  %v1104 = vld [vmem:[%s3 + $0x1f0] sm:$0xff]
  %v1105 = vld [vmem:[%s3 + $0x1f8] sm:$0xff]
  %v1106 = vld [vmem:[%s3 + $0x200] sm:$0xff]
  %v1107 = vld [vmem:[%s3 + $0x208] sm:$0xff]
  %v1108 = vld [vmem:[%s3 + $0x210] sm:$0xff]
  %v1109 = vld [vmem:[%s3 + $0x218] sm:$0xff]
  %v1110 = vld [vmem:[%s3 + $0x220] sm:$0xff]
  %v1111 = vld [vmem:[%s3 + $0x228] sm:$0xff]
  %v1112 = vld [vmem:[%s3 + $0x230] sm:$0xff]
  %v1113 = vld [vmem:[%s3 + $0x238] sm:$0xff]
  %v1114 = vld [vmem:[%s3 + $0x240] sm:$0xff]
  %v1115 = vld [vmem:[%s3 + $0x248] sm:$0xff]
  %v1116 = vld [vmem:[%s3 + $0x250] sm:$0xff]
  %v1117 = vld [vmem:[%s3 + $0x258] sm:$0xff]
  %v1118 = vld [vmem:[%s3 + $0x260] sm:$0xff]
  %v1119 = vld [vmem:[%s3 + $0x268] sm:$0xff]
  %v1120 = vld [vmem:[%s3 + $0x270] sm:$0xff]
  %v1121 = vld [vmem:[%s3 + $0x278] sm:$0xff]
  %v1122 = vld [vmem:[%s3 + $0x280] sm:$0xff]
  %v1123 = vld [vmem:[%s3 + $0x288] sm:$0xff]
  %v1124 = vld [vmem:[%s3 + $0x290] sm:$0xff]
  %v1125 = vld [vmem:[%s3 + $0x298] sm:$0xff]
  %v1126 = vld [vmem:[%s3 + $0x2a0] sm:$0xff]
  %v1127 = vld [vmem:[%s3 + $0x2a8] sm:$0xff]
  %v1128 = vld [vmem:[%s3 + $0x2b0] sm:$0xff]
  %v1129 = vld [vmem:[%s3 + $0x2b8] sm:$0xff]
  %v1130 = vld [vmem:[%s3 + $0x2c0] sm:$0xff]
  %v1131 = vld [vmem:[%s3 + $0x2c8] sm:$0xff]
  %v1132 = vld [vmem:[%s3 + $0x2d0] sm:$0xff]
  %v1133 = vld [vmem:[%s3 + $0x2d8] sm:$0xff]
  %v1134 = vld [vmem:[%s3 + $0x2e0] sm:$0xff]
  %v1135 = vld [vmem:[%s3 + $0x2e8] sm:$0xff]
  %v1136 = vld [vmem:[%s3 + $0x2f0] sm:$0xff]
  %v1137 = vld [vmem:[%s3 + $0x2f8] sm:$0xff]
  %v1138 = vld [vmem:[%s3 + $0x300] sm:$0xff]
  %v1139 = vld [vmem:[%s3 + $0x308] sm:$0xff]
  %v1140 = vld [vmem:[%s3 + $0x310] sm:$0xff]
  %v1141 = vld [vmem:[%s3 + $0x318] sm:$0xff]
  %v1142 = vld [vmem:[%s3 + $0x320] sm:$0xff]
  %v1143 = vld [vmem:[%s3 + $0x328] sm:$0xff]
  %v1144 = vld [vmem:[%s3 + $0x330] sm:$0xff]
  %v1145 = vld [vmem:[%s3 + $0x338] sm:$0xff]
  %v1146 = vld [vmem:[%s3 + $0x340] sm:$0xff]
  %v1147 = vld [vmem:[%s3 + $0x348] sm:$0xff]
  %v1148 = vld [vmem:[%s3 + $0x350] sm:$0xff]
  %v1149 = vld [vmem:[%s3 + $0x358] sm:$0xff]
  %v1150 = vld [vmem:[%s3 + $0x360] sm:$0xff]
  %v1151 = vld [vmem:[%s3 + $0x368] sm:$0xff]
  %v1152 = vld [vmem:[%s3 + $0x370] sm:$0xff]
  %v1153 = vld [vmem:[%s3 + $0x378] sm:$0xff]
  %v1154 = vld [vmem:[%s3 + $0x380] sm:$0xff]
  %v1155 = vld [vmem:[%s3 + $0x388] sm:$0xff]
  %v1156 = vld [vmem:[%s3 + $0x390] sm:$0xff]
  %v1157 = vld [vmem:[%s3 + $0x398] sm:$0xff]
  %v1158 = vld [vmem:[%s3 + $0x3a0] sm:$0xff]
  %v1159 = vld [vmem:[%s3 + $0x3a8] sm:$0xff]
  %v1160 = vld [vmem:[%s3 + $0x3b0] sm:$0xff]
  %v1161 = vld [vmem:[%s3 + $0x3b8] sm:$0xff]
  %v1162 = vld [vmem:[%s3 + $0x3c0] sm:$0xff]
  %v1163 = vld [vmem:[%s3 + $0x3c8] sm:$0xff]
  %v1164 = vld [vmem:[%s3 + $0x3d0] sm:$0xff]
  %v1165 = vld [vmem:[%s3 + $0x3d8] sm:$0xff]
  %v1166 = vld [vmem:[%s3 + $0x3e0] sm:$0xff]
  %v1167 = vld [vmem:[%s3 + $0x3e8] sm:$0xff]
  %v1168 = vld [vmem:[%s3 + $0x3f0] sm:$0xff]
  %v1169 = vld [vmem:[%s3 + $0x3f8] sm:$0xff]
  %v1298 = vunpack.c.l.b16 %v1042
  %v1299 = vunpack.c.h.b16 %v1042
  %v1300 = vunpack.c.l.b16 %v1043
  %v1301 = vunpack.c.h.b16 %v1043
  %v1302 = vunpack.c.l.b16 %v1044
  %v1303 = vunpack.c.h.b16 %v1044
  %v1304 = vunpack.c.l.b16 %v1045
  %v1305 = vunpack.c.h.b16 %v1045
  %v1306 = vunpack.c.l.b16 %v1046
  %v1307 = vunpack.c.h.b16 %v1046
  %v1308 = vunpack.c.l.b16 %v1047
  %v1309 = vunpack.c.h.b16 %v1047
  %v1310 = vunpack.c.l.b16 %v1048
  %v1311 = vunpack.c.h.b16 %v1048
  %v1312 = vunpack.c.l.b16 %v1049
  %v1313 = vunpack.c.h.b16 %v1049
  %v1314 = vunpack.c.l.b16 %v1050
  %v1315 = vunpack.c.h.b16 %v1050
  %v1316 = vunpack.c.l.b16 %v1051
  %v1317 = vunpack.c.h.b16 %v1051
  %v1318 = vunpack.c.l.b16 %v1052
  %v1319 = vunpack.c.h.b16 %v1052
  %v1320 = vunpack.c.l.b16 %v1053
  %v1321 = vunpack.c.h.b16 %v1053
  %v1322 = vunpack.c.l.b16 %v1054
  %v1323 = vunpack.c.h.b16 %v1054
  %v1324 = vunpack.c.l.b16 %v1055
  %v1325 = vunpack.c.h.b16 %v1055
  %v1326 = vunpack.c.l.b16 %v1056
  %v1327 = vunpack.c.h.b16 %v1056
  %v1328 = vunpack.c.l.b16 %v1057
  %v1329 = vunpack.c.h.b16 %v1057
  %v1330 = vunpack.c.l.b16 %v1058
  %v1331 = vunpack.c.h.b16 %v1058
  %v1332 = vunpack.c.l.b16 %v1059
  %v1333 = vunpack.c.h.b16 %v1059
  %v1334 = vunpack.c.l.b16 %v1060
  %v1335 = vunpack.c.h.b16 %v1060
  %v1336 = vunpack.c.l.b16 %v1061
  %v1337 = vunpack.c.h.b16 %v1061
  %v1338 = vunpack.c.l.b16 %v1062
  %v1339 = vunpack.c.h.b16 %v1062
  %v1340 = vunpack.c.l.b16 %v1063
  %v1341 = vunpack.c.h.b16 %v1063
  %v1342 = vunpack.c.l.b16 %v1064
  %v1343 = vunpack.c.h.b16 %v1064
  %v1344 = vunpack.c.l.b16 %v1065
  %v1345 = vunpack.c.h.b16 %v1065
  %v1346 = vunpack.c.l.b16 %v1066
  %v1347 = vunpack.c.h.b16 %v1066
  %v1348 = vunpack.c.l.b16 %v1067
  %v1349 = vunpack.c.h.b16 %v1067
  %v1350 = vunpack.c.l.b16 %v1068
  %v1351 = vunpack.c.h.b16 %v1068
  %v1352 = vunpack.c.l.b16 %v1069
  %v1353 = vunpack.c.h.b16 %v1069
  %v1354 = vunpack.c.l.b16 %v1070
  %v1355 = vunpack.c.h.b16 %v1070
  %v1356 = vunpack.c.l.b16 %v1071
  %v1357 = vunpack.c.h.b16 %v1071
  %v1358 = vunpack.c.l.b16 %v1072
  %v1359 = vunpack.c.h.b16 %v1072
  %v1360 = vunpack.c.l.b16 %v1073
  %v1361 = vunpack.c.h.b16 %v1073
  %v1362 = vunpack.c.l.b16 %v1074
  %v1363 = vunpack.c.h.b16 %v1074
  %v1364 = vunpack.c.l.b16 %v1075
  %v1365 = vunpack.c.h.b16 %v1075
  %v1366 = vunpack.c.l.b16 %v1076
  %v1367 = vunpack.c.h.b16 %v1076
  %v1368 = vunpack.c.l.b16 %v1077
  %v1369 = vunpack.c.h.b16 %v1077
  %v1370 = vunpack.c.l.b16 %v1078
  %v1371 = vunpack.c.h.b16 %v1078
  %v1372 = vunpack.c.l.b16 %v1079
  %v1373 = vunpack.c.h.b16 %v1079
  %v1374 = vunpack.c.l.b16 %v1080
  %v1375 = vunpack.c.h.b16 %v1080
  %v1376 = vunpack.c.l.b16 %v1081
  %v1377 = vunpack.c.h.b16 %v1081
  %v1378 = vunpack.c.l.b16 %v1082
  %v1379 = vunpack.c.h.b16 %v1082
  %v1380 = vunpack.c.l.b16 %v1083
  %v1381 = vunpack.c.h.b16 %v1083
  %v1382 = vunpack.c.l.b16 %v1084
  %v1383 = vunpack.c.h.b16 %v1084
  %v1384 = vunpack.c.l.b16 %v1085
  %v1385 = vunpack.c.h.b16 %v1085
  %v1386 = vunpack.c.l.b16 %v1086
  %v1387 = vunpack.c.h.b16 %v1086
  %v1388 = vunpack.c.l.b16 %v1087
  %v1389 = vunpack.c.h.b16 %v1087
  %v1390 = vunpack.c.l.b16 %v1088
  %v1391 = vunpack.c.h.b16 %v1088
  %v1392 = vunpack.c.l.b16 %v1089
  %v1393 = vunpack.c.h.b16 %v1089
  %v1394 = vunpack.c.l.b16 %v1090
  %v1395 = vunpack.c.h.b16 %v1090
  %v1396 = vunpack.c.l.b16 %v1091
  %v1397 = vunpack.c.h.b16 %v1091
  %v1398 = vunpack.c.l.b16 %v1092
  %v1399 = vunpack.c.h.b16 %v1092
  %v1400 = vunpack.c.l.b16 %v1093
  %v1401 = vunpack.c.h.b16 %v1093
  %v1402 = vunpack.c.l.b16 %v1094
  %v1403 = vunpack.c.h.b16 %v1094
  %v1404 = vunpack.c.l.b16 %v1095
  %v1405 = vunpack.c.h.b16 %v1095
  %v1406 = vunpack.c.l.b16 %v1096
  %v1407 = vunpack.c.h.b16 %v1096
  %v1408 = vunpack.c.l.b16 %v1097
  %v1409 = vunpack.c.h.b16 %v1097
  %v1410 = vunpack.c.l.b16 %v1098
  %v1411 = vunpack.c.h.b16 %v1098
  %v1412 = vunpack.c.l.b16 %v1099
  %v1413 = vunpack.c.h.b16 %v1099
  %v1414 = vunpack.c.l.b16 %v1100
  %v1415 = vunpack.c.h.b16 %v1100
  %v1416 = vunpack.c.l.b16 %v1101
  %v1417 = vunpack.c.h.b16 %v1101
  %v1418 = vunpack.c.l.b16 %v1102
  %v1419 = vunpack.c.h.b16 %v1102
  %v1420 = vunpack.c.l.b16 %v1103
  %v1421 = vunpack.c.h.b16 %v1103
  %v1422 = vunpack.c.l.b16 %v1104
  %v1423 = vunpack.c.h.b16 %v1104
  %v1424 = vunpack.c.l.b16 %v1105
  %v1425 = vunpack.c.h.b16 %v1105
  %v1426 = vunpack.c.l.b16 %v1106
  %v1427 = vunpack.c.h.b16 %v1106
  %v1428 = vunpack.c.l.b16 %v1107
  %v1429 = vunpack.c.h.b16 %v1107
  %v1430 = vunpack.c.l.b16 %v1108
  %v1431 = vunpack.c.h.b16 %v1108
  %v1432 = vunpack.c.l.b16 %v1109
  %v1433 = vunpack.c.h.b16 %v1109
  %v1434 = vunpack.c.l.b16 %v1110
  %v1435 = vunpack.c.h.b16 %v1110
  %v1436 = vunpack.c.l.b16 %v1111
  %v1437 = vunpack.c.h.b16 %v1111
  %v1438 = vunpack.c.l.b16 %v1112
  %v1439 = vunpack.c.h.b16 %v1112
  %v1440 = vunpack.c.l.b16 %v1113
  %v1441 = vunpack.c.h.b16 %v1113
  %v1442 = vunpack.c.l.b16 %v1114
  %v1443 = vunpack.c.h.b16 %v1114
  %v1444 = vunpack.c.l.b16 %v1115
  %v1445 = vunpack.c.h.b16 %v1115
  %v1446 = vunpack.c.l.b16 %v1116
  %v1447 = vunpack.c.h.b16 %v1116
  %v1448 = vunpack.c.l.b16 %v1117
  %v1449 = vunpack.c.h.b16 %v1117
  %v1450 = vunpack.c.l.b16 %v1118
  %v1451 = vunpack.c.h.b16 %v1118
  %v1452 = vunpack.c.l.b16 %v1119
  %v1453 = vunpack.c.h.b16 %v1119
  %v1454 = vunpack.c.l.b16 %v1120
  %v1455 = vunpack.c.h.b16 %v1120
  %v1456 = vunpack.c.l.b16 %v1121
  %v1457 = vunpack.c.h.b16 %v1121
  %v1458 = vunpack.c.l.b16 %v1122
  %v1459 = vunpack.c.h.b16 %v1122
  %v1460 = vunpack.c.l.b16 %v1123
  %v1461 = vunpack.c.h.b16 %v1123
  %v1462 = vunpack.c.l.b16 %v1124
  %v1463 = vunpack.c.h.b16 %v1124
  %v1464 = vunpack.c.l.b16 %v1125
  %v1465 = vunpack.c.h.b16 %v1125
  %v1466 = vunpack.c.l.b16 %v1126
  %v1467 = vunpack.c.h.b16 %v1126
  %v1468 = vunpack.c.l.b16 %v1127
  %v1469 = vunpack.c.h.b16 %v1127
  %v1470 = vunpack.c.l.b16 %v1128
  %v1471 = vunpack.c.h.b16 %v1128
  %v1472 = vunpack.c.l.b16 %v1129
  %v1473 = vunpack.c.h.b16 %v1129
  %v1474 = vunpack.c.l.b16 %v1130
  %v1475 = vunpack.c.h.b16 %v1130
  %v1476 = vunpack.c.l.b16 %v1131
  %v1477 = vunpack.c.h.b16 %v1131
  %v1478 = vunpack.c.l.b16 %v1132
  %v1479 = vunpack.c.h.b16 %v1132
  %v1480 = vunpack.c.l.b16 %v1133
  %v1481 = vunpack.c.h.b16 %v1133
  %v1482 = vunpack.c.l.b16 %v1134
  %v1483 = vunpack.c.h.b16 %v1134
  %v1484 = vunpack.c.l.b16 %v1135
  %v1485 = vunpack.c.h.b16 %v1135
  %v1486 = vunpack.c.l.b16 %v1136
  %v1487 = vunpack.c.h.b16 %v1136
  %v1488 = vunpack.c.l.b16 %v1137
  %v1489 = vunpack.c.h.b16 %v1137
  %v1490 = vunpack.c.l.b16 %v1138
  %v1491 = vunpack.c.h.b16 %v1138
  %v1492 = vunpack.c.l.b16 %v1139
  %v1493 = vunpack.c.h.b16 %v1139
  %v1494 = vunpack.c.l.b16 %v1140
  %v1495 = vunpack.c.h.b16 %v1140
  %v1496 = vunpack.c.l.b16 %v1141
  %v1497 = vunpack.c.h.b16 %v1141
  %v1498 = vunpack.c.l.b16 %v1142
  %v1499 = vunpack.c.h.b16 %v1142
  %v1500 = vunpack.c.l.b16 %v1143
  %v1501 = vunpack.c.h.b16 %v1143
  %v1502 = vunpack.c.l.b16 %v1144
  %v1503 = vunpack.c.h.b16 %v1144
  %v1504 = vunpack.c.l.b16 %v1145
  %v1505 = vunpack.c.h.b16 %v1145
  %v1506 = vunpack.c.l.b16 %v1146
  %v1507 = vunpack.c.h.b16 %v1146
  %v1508 = vunpack.c.l.b16 %v1147
  %v1509 = vunpack.c.h.b16 %v1147
  %v1510 = vunpack.c.l.b16 %v1148
  %v1511 = vunpack.c.h.b16 %v1148
  %v1512 = vunpack.c.l.b16 %v1149
  %v1513 = vunpack.c.h.b16 %v1149
  %v1514 = vunpack.c.l.b16 %v1150
  %v1515 = vunpack.c.h.b16 %v1150
  %v1516 = vunpack.c.l.b16 %v1151
  %v1517 = vunpack.c.h.b16 %v1151
  %v1518 = vunpack.c.l.b16 %v1152
  %v1519 = vunpack.c.h.b16 %v1152
  %v1520 = vunpack.c.l.b16 %v1153
  %v1521 = vunpack.c.h.b16 %v1153
  %v1522 = vunpack.c.l.b16 %v1154
  %v1523 = vunpack.c.h.b16 %v1154
  %v1524 = vunpack.c.l.b16 %v1155
  %v1525 = vunpack.c.h.b16 %v1155
  %v1526 = vunpack.c.l.b16 %v1156
  %v1527 = vunpack.c.h.b16 %v1156
  %v1528 = vunpack.c.l.b16 %v1157
  %v1529 = vunpack.c.h.b16 %v1157
  %v1530 = vunpack.c.l.b16 %v1158
  %v1531 = vunpack.c.h.b16 %v1158
  %v1532 = vunpack.c.l.b16 %v1159
  %v1533 = vunpack.c.h.b16 %v1159
  %v1534 = vunpack.c.l.b16 %v1160
  %v1535 = vunpack.c.h.b16 %v1160
  %v1536 = vunpack.c.l.b16 %v1161
  %v1537 = vunpack.c.h.b16 %v1161
  %v1538 = vunpack.c.l.b16 %v1162
  %v1539 = vunpack.c.h.b16 %v1162
  %v1540 = vunpack.c.l.b16 %v1163
  %v1541 = vunpack.c.h.b16 %v1163
  %v1542 = vunpack.c.l.b16 %v1164
  %v1543 = vunpack.c.h.b16 %v1164
  %v1544 = vunpack.c.l.b16 %v1165
  %v1545 = vunpack.c.h.b16 %v1165
  %v1546 = vunpack.c.l.b16 %v1166
  %v1547 = vunpack.c.h.b16 %v1166
  %v1548 = vunpack.c.l.b16 %v1167
  %v1549 = vunpack.c.h.b16 %v1167
  %v1550 = vunpack.c.l.b16 %v1168
  %v1551 = vunpack.c.h.b16 %v1168
  %v1552 = vunpack.c.l.b16 %v1169
  %v1553 = vunpack.c.h.b16 %v1169
  %v1554 = vpack.c.b16 %v1302, %v1298
  %v1555 = vpack.c.b16 %v1303, %v1299
  %v1556 = vpack.c.b16 %v1304, %v1300
  %v1557 = vpack.c.b16 %v1305, %v1301
  %v1558 = vpack.c.b16 %v1310, %v1306
  %v1559 = vpack.c.b16 %v1311, %v1307
  %v1560 = vpack.c.b16 %v1312, %v1308
  %v1561 = vpack.c.b16 %v1313, %v1309
  %v1562 = vpack.c.b16 %v1318, %v1314
  %v1563 = vpack.c.b16 %v1319, %v1315
  %v1564 = vpack.c.b16 %v1320, %v1316
  %v1565 = vpack.c.b16 %v1321, %v1317
  %v1566 = vpack.c.b16 %v1326, %v1322
  %v1567 = vpack.c.b16 %v1327, %v1323
  %v1568 = vpack.c.b16 %v1328, %v1324
  %v1569 = vpack.c.b16 %v1329, %v1325
  %v1570 = vpack.c.b16 %v1334, %v1330
  %v1571 = vpack.c.b16 %v1335, %v1331
  %v1572 = vpack.c.b16 %v1336, %v1332
  %v1573 = vpack.c.b16 %v1337, %v1333
  %v1574 = vpack.c.b16 %v1342, %v1338
  %v1575 = vpack.c.b16 %v1343, %v1339
  %v1576 = vpack.c.b16 %v1344, %v1340
  %v1577 = vpack.c.b16 %v1345, %v1341
  %v1578 = vpack.c.b16 %v1350, %v1346
  %v1579 = vpack.c.b16 %v1351, %v1347
  %v1580 = vpack.c.b16 %v1352, %v1348
  %v1581 = vpack.c.b16 %v1353, %v1349
  %v1582 = vpack.c.b16 %v1358, %v1354
  %v1583 = vpack.c.b16 %v1359, %v1355
  %v1584 = vpack.c.b16 %v1360, %v1356
  %v1585 = vpack.c.b16 %v1361, %v1357
  %v1586 = vpack.c.b16 %v1366, %v1362
  %v1587 = vpack.c.b16 %v1367, %v1363
  %v1588 = vpack.c.b16 %v1368, %v1364
  %v1589 = vpack.c.b16 %v1369, %v1365
  %v1590 = vpack.c.b16 %v1374, %v1370
  %v1591 = vpack.c.b16 %v1375, %v1371
  %v1592 = vpack.c.b16 %v1376, %v1372
  %v1593 = vpack.c.b16 %v1377, %v1373
  %v1594 = vpack.c.b16 %v1382, %v1378
  %v1595 = vpack.c.b16 %v1383, %v1379
  %v1596 = vpack.c.b16 %v1384, %v1380
  %v1597 = vpack.c.b16 %v1385, %v1381
  %v1598 = vpack.c.b16 %v1390, %v1386
  %v1599 = vpack.c.b16 %v1391, %v1387
  %v1600 = vpack.c.b16 %v1392, %v1388
  %v1601 = vpack.c.b16 %v1393, %v1389
  %v1602 = vpack.c.b16 %v1398, %v1394
  %v1603 = vpack.c.b16 %v1399, %v1395
  %v1604 = vpack.c.b16 %v1400, %v1396
  %v1605 = vpack.c.b16 %v1401, %v1397
  %v1606 = vpack.c.b16 %v1406, %v1402
  %v1607 = vpack.c.b16 %v1407, %v1403
  %v1608 = vpack.c.b16 %v1408, %v1404
  %v1609 = vpack.c.b16 %v1409, %v1405
  %v1610 = vpack.c.b16 %v1414, %v1410
  %v1611 = vpack.c.b16 %v1415, %v1411
  %v1612 = vpack.c.b16 %v1416, %v1412
  %v1613 = vpack.c.b16 %v1417, %v1413
  %v1614 = vpack.c.b16 %v1422, %v1418
  %v1615 = vpack.c.b16 %v1423, %v1419
  %v1616 = vpack.c.b16 %v1424, %v1420
  %v1617 = vpack.c.b16 %v1425, %v1421
  %v1618 = vpack.c.b16 %v1430, %v1426
  %v1619 = vpack.c.b16 %v1431, %v1427
  %v1620 = vpack.c.b16 %v1432, %v1428
  %v1621 = vpack.c.b16 %v1433, %v1429
  %v1622 = vpack.c.b16 %v1438, %v1434
  %v1623 = vpack.c.b16 %v1439, %v1435
  %v1624 = vpack.c.b16 %v1440, %v1436
  %v1625 = vpack.c.b16 %v1441, %v1437
  %v1626 = vpack.c.b16 %v1446, %v1442
  %v1627 = vpack.c.b16 %v1447, %v1443
  %v1628 = vpack.c.b16 %v1448, %v1444
  %v1629 = vpack.c.b16 %v1449, %v1445
  %v1630 = vpack.c.b16 %v1454, %v1450
  %v1631 = vpack.c.b16 %v1455, %v1451
  %v1632 = vpack.c.b16 %v1456, %v1452
  %v1633 = vpack.c.b16 %v1457, %v1453
  %v1634 = vpack.c.b16 %v1462, %v1458
  %v1635 = vpack.c.b16 %v1463, %v1459
  %v1636 = vpack.c.b16 %v1464, %v1460
  %v1637 = vpack.c.b16 %v1465, %v1461
  %v1638 = vpack.c.b16 %v1470, %v1466
  %v1639 = vpack.c.b16 %v1471, %v1467
  %v1640 = vpack.c.b16 %v1472, %v1468
  %v1641 = vpack.c.b16 %v1473, %v1469
  %v1642 = vpack.c.b16 %v1478, %v1474
  %v1643 = vpack.c.b16 %v1479, %v1475
  %v1644 = vpack.c.b16 %v1480, %v1476
  %v1645 = vpack.c.b16 %v1481, %v1477
  %v1646 = vpack.c.b16 %v1486, %v1482
  %v1647 = vpack.c.b16 %v1487, %v1483
  %v1648 = vpack.c.b16 %v1488, %v1484
  %v1649 = vpack.c.b16 %v1489, %v1485
  %v1650 = vpack.c.b16 %v1494, %v1490
  %v1651 = vpack.c.b16 %v1495, %v1491
  %v1652 = vpack.c.b16 %v1496, %v1492
  %v1653 = vpack.c.b16 %v1497, %v1493
  %v1654 = vpack.c.b16 %v1502, %v1498
  %v1655 = vpack.c.b16 %v1503, %v1499
  %v1656 = vpack.c.b16 %v1504, %v1500
  %v1657 = vpack.c.b16 %v1505, %v1501
  %v1658 = vpack.c.b16 %v1510, %v1506
  %v1659 = vpack.c.b16 %v1511, %v1507
  %v1660 = vpack.c.b16 %v1512, %v1508
  %v1661 = vpack.c.b16 %v1513, %v1509
  %v1662 = vpack.c.b16 %v1518, %v1514
  %v1663 = vpack.c.b16 %v1519, %v1515
  %v1664 = vpack.c.b16 %v1520, %v1516
  %v1665 = vpack.c.b16 %v1521, %v1517
  %v1666 = vpack.c.b16 %v1526, %v1522
  %v1667 = vpack.c.b16 %v1527, %v1523
  %v1668 = vpack.c.b16 %v1528, %v1524
  %v1669 = vpack.c.b16 %v1529, %v1525
  %v1670 = vpack.c.b16 %v1534, %v1530
  %v1671 = vpack.c.b16 %v1535, %v1531
  %v1672 = vpack.c.b16 %v1536, %v1532
  %v1673 = vpack.c.b16 %v1537, %v1533
  %v1674 = vpack.c.b16 %v1542, %v1538
  %v1675 = vpack.c.b16 %v1543, %v1539
  %v1676 = vpack.c.b16 %v1544, %v1540
  %v1677 = vpack.c.b16 %v1545, %v1541
  %v1678 = vpack.c.b16 %v1550, %v1546
  %v1679 = vpack.c.b16 %v1551, %v1547
  %v1680 = vpack.c.b16 %v1552, %v1548
  %v1681 = vpack.c.b16 %v1553, %v1549
  %1810 = vmatprep.subr.bf16.mxu0 %v1555
  %1811 = vmatpush1.bf16.msra.mxu0 %v1554
  %1812 = vmatprep.subr.bf16.mxu0 %v1559
  %1813 = vmatpush1.bf16.msra.mxu0 %v1558
  %1814 = vmatprep.subr.bf16.mxu0 %v1563
  %1815 = vmatpush1.bf16.msra.mxu0 %v1562
  %1816 = vmatprep.subr.bf16.mxu0 %v1567
  %1817 = vmatpush1.bf16.msra.mxu0 %v1566
  %1818 = vmatprep.subr.bf16.mxu0 %v1571
  %1819 = vmatpush1.bf16.msra.mxu0 %v1570
  %1820 = vmatprep.subr.bf16.mxu0 %v1575
  %1821 = vmatpush1.bf16.msra.mxu0 %v1574
  %1822 = vmatprep.subr.bf16.mxu0 %v1579
  %1823 = vmatpush1.bf16.msra.mxu0 %v1578
  %1824 = vmatprep.subr.bf16.mxu0 %v1583
  %1825 = vmatpush1.bf16.msra.mxu0 %v1582
  %1826 = vmatprep.subr.bf16.mxu0 %v1587
  %1827 = vmatpush1.bf16.msra.mxu0 %v1586
  %1828 = vmatprep.subr.bf16.mxu0 %v1591
  %1829 = vmatpush1.bf16.msra.mxu0 %v1590
  %1830 = vmatprep.subr.bf16.mxu0 %v1595
  %1831 = vmatpush1.bf16.msra.mxu0 %v1594
  %1832 = vmatprep.subr.bf16.mxu0 %v1599
  %1833 = vmatpush1.bf16.msra.mxu0 %v1598
  %1834 = vmatprep.subr.bf16.mxu0 %v1603
  %1835 = vmatpush1.bf16.msra.mxu0 %v1602
  %1836 = vmatprep.subr.bf16.mxu0 %v1607
  %1837 = vmatpush1.bf16.msra.mxu0 %v1606
  %1838 = vmatprep.subr.bf16.mxu0 %v1611
  %1839 = vmatpush1.bf16.msra.mxu0 %v1610
  %1840 = vmatprep.subr.bf16.mxu0 %v1615
  %1841 = vmatpush1.bf16.msra.mxu0 %v1614
  %1842 = vmatprep.mubr.bf16.mxu0 %v1039
  %1843 = vmatmul.mubr.bf16.gmra.mrb[0].mxu0 %v1038
  %v1844 = vpop.f32.mrb[0].mxu0
  %v1845 = vadd.f32 0.0, %v1844
  %v1846 = vpop.f32.mrb[0].mxu0
  %v1847 = vadd.f32 0.0, %v1846
  %v1848 = vpop.f32.mrb[0].mxu0
  %v1849 = vpop.f32.mrb[0].mxu0
  %1850 = vdwg.mxu0
  %1851 = vmatprep.subr.bf16.mxu0 %v1619
  %1852 = vmatpush1.bf16.msra.mxu0 %v1618
  %1853 = vmatprep.subr.bf16.mxu0 %v1623
  %1854 = vmatpush1.bf16.msra.mxu0 %v1622
  %1855 = vmatprep.subr.bf16.mxu0 %v1627
  %1856 = vmatpush1.bf16.msra.mxu0 %v1626
  %1857 = vmatprep.subr.bf16.mxu0 %v1631
  %1858 = vmatpush1.bf16.msra.mxu0 %v1630
  %1859 = vmatprep.subr.bf16.mxu0 %v1635
  %1860 = vmatpush1.bf16.msra.mxu0 %v1634
  %1861 = vmatprep.subr.bf16.mxu0 %v1639
  %1862 = vmatpush1.bf16.msra.mxu0 %v1638
  %1863 = vmatprep.subr.bf16.mxu0 %v1643
  %1864 = vmatpush1.bf16.msra.mxu0 %v1642
  %1865 = vmatprep.subr.bf16.mxu0 %v1647
  %1866 = vmatpush1.bf16.msra.mxu0 %v1646
  %1867 = vmatprep.subr.bf16.mxu0 %v1651
  %1868 = vmatpush1.bf16.msra.mxu0 %v1650
  %1869 = vmatprep.subr.bf16.mxu0 %v1655
  %1870 = vmatpush1.bf16.msra.mxu0 %v1654
  %1871 = vmatprep.subr.bf16.mxu0 %v1659
  %1872 = vmatpush1.bf16.msra.mxu0 %v1658
  %1873 = vmatprep.subr.bf16.mxu0 %v1663
  %1874 = vmatpush1.bf16.msra.mxu0 %v1662
  %1875 = vmatprep.subr.bf16.mxu0 %v1667
  %1876 = vmatpush1.bf16.msra.mxu0 %v1666
  %1877 = vmatprep.subr.bf16.mxu0 %v1671
  %1878 = vmatpush1.bf16.msra.mxu0 %v1670
  %1879 = vmatprep.subr.bf16.mxu0 %v1675
  %1880 = vmatpush1.bf16.msra.mxu0 %v1674
  %1881 = vmatprep.subr.bf16.mxu0 %v1679
  %1882 = vmatpush1.bf16.msra.mxu0 %v1678
  %1883 = vmatprep.mubr.bf16.mxu0 %v1041
  %1884 = vmatmul.mubr.bf16.gmra.mrb[0].mxu0 %v1040
  %v1885 = vpop.f32.mrb[0].mxu0
  %v1886 = vadd.f32 %v1845, %v1885
  %v1887 = vpop.f32.mrb[0].mxu0
  %v1888 = vadd.f32 %v1847, %v1887
  %v1889 = vpop.f32.mrb[0].mxu0
  %v1890 = vpop.f32.mrb[0].mxu0
  %1891 = vdwg.mxu0
  %1892 = vmatprep.subr.bf16.mxu0 %v1557
  %1893 = vmatpush1.bf16.msra.mxu0 %v1556
  %1894 = vmatprep.subr.bf16.mxu0 %v1561
  %1895 = vmatpush1.bf16.msra.mxu0 %v1560
  %1896 = vmatprep.subr.bf16.mxu0 %v1565
  %1897 = vmatpush1.bf16.msra.mxu0 %v1564
  %1898 = vmatprep.subr.bf16.mxu0 %v1569
  %1899 = vmatpush1.bf16.msra.mxu0 %v1568
  %1900 = vmatprep.subr.bf16.mxu0 %v1573
  %1901 = vmatpush1.bf16.msra.mxu0 %v1572
  %1902 = vmatprep.subr.bf16.mxu0 %v1577
  %1903 = vmatpush1.bf16.msra.mxu0 %v1576
  %1904 = vmatprep.subr.bf16.mxu0 %v1581
  %1905 = vmatpush1.bf16.msra.mxu0 %v1580
  %1906 = vmatprep.subr.bf16.mxu0 %v1585
  %1907 = vmatpush1.bf16.msra.mxu0 %v1584
  %1908 = vmatprep.subr.bf16.mxu0 %v1589
  %1909 = vmatpush1.bf16.msra.mxu0 %v1588
  %1910 = vmatprep.subr.bf16.mxu0 %v1593
  %1911 = vmatpush1.bf16.msra.mxu0 %v1592
  %1912 = vmatprep.subr.bf16.mxu0 %v1597
  %1913 = vmatpush1.bf16.msra.mxu0 %v1596
  %1914 = vmatprep.subr.bf16.mxu0 %v1601
  %1915 = vmatpush1.bf16.msra.mxu0 %v1600
  %1916 = vmatprep.subr.bf16.mxu0 %v1605
  %1917 = vmatpush1.bf16.msra.mxu0 %v1604
  %1918 = vmatprep.subr.bf16.mxu0 %v1609
  %1919 = vmatpush1.bf16.msra.mxu0 %v1608
  %1920 = vmatprep.subr.bf16.mxu0 %v1613
  %1921 = vmatpush1.bf16.msra.mxu0 %v1612
  %1922 = vmatprep.subr.bf16.mxu0 %v1617
  %1923 = vmatpush1.bf16.msra.mxu0 %v1616
  %1924 = vmatprep.mubr.bf16.mxu0 %v1039
  %1925 = vmatmul.mubr.bf16.gmra.mrb[0].mxu0 %v1038
  %v1926 = vpop.f32.mrb[0].mxu0
  %v1927 = vadd.f32 0.0, %v1926
  %v1928 = vpop.f32.mrb[0].mxu0
  %v1929 = vadd.f32 0.0, %v1928
  %v1930 = vpop.f32.mrb[0].mxu0
  %v1931 = vpop.f32.mrb[0].mxu0
  %1932 = vdwg.mxu0
  %1933 = vmatprep.subr.bf16.mxu0 %v1621
  %1934 = vmatpush1.bf16.msra.mxu0 %v1620
  %1935 = vmatprep.subr.bf16.mxu0 %v1625
  %1936 = vmatpush1.bf16.msra.mxu0 %v1624
  %1937 = vmatprep.subr.bf16.mxu0 %v1629
  %1938 = vmatpush1.bf16.msra.mxu0 %v1628
  %1939 = vmatprep.subr.bf16.mxu0 %v1633
  %1940 = vmatpush1.bf16.msra.mxu0 %v1632
  %1941 = vmatprep.subr.bf16.mxu0 %v1637
  %1942 = vmatpush1.bf16.msra.mxu0 %v1636
  %1943 = vmatprep.subr.bf16.mxu0 %v1641
  %1944 = vmatpush1.bf16.msra.mxu0 %v1640
  %1945 = vmatprep.subr.bf16.mxu0 %v1645
  %1946 = vmatpush1.bf16.msra.mxu0 %v1644
  %1947 = vmatprep.subr.bf16.mxu0 %v1649
  %1948 = vmatpush1.bf16.msra.mxu0 %v1648
  %1949 = vmatprep.subr.bf16.mxu0 %v1653
  %1950 = vmatpush1.bf16.msra.mxu0 %v1652
  %1951 = vmatprep.subr.bf16.mxu0 %v1657
  %1952 = vmatpush1.bf16.msra.mxu0 %v1656
  %1953 = vmatprep.subr.bf16.mxu0 %v1661
  %1954 = vmatpush1.bf16.msra.mxu0 %v1660
  %1955 = vmatprep.subr.bf16.mxu0 %v1665
  %1956 = vmatpush1.bf16.msra.mxu0 %v1664
  %1957 = vmatprep.subr.bf16.mxu0 %v1669
  %1958 = vmatpush1.bf16.msra.mxu0 %v1668
  %1959 = vmatprep.subr.bf16.mxu0 %v1673
  %1960 = vmatpush1.bf16.msra.mxu0 %v1672
  %1961 = vmatprep.subr.bf16.mxu0 %v1677
  %1962 = vmatpush1.bf16.msra.mxu0 %v1676
  %1963 = vmatprep.subr.bf16.mxu0 %v1681
  %1964 = vmatpush1.bf16.msra.mxu0 %v1680
  %1965 = vmatprep.mubr.bf16.mxu0 %v1041
  %1966 = vmatmul.mubr.bf16.gmra.mrb[0].mxu0 %v1040
  %v1967 = vpop.f32.mrb[0].mxu0
  %v1968 = vadd.f32 %v1927, %v1967
  %v1969 = vpop.f32.mrb[0].mxu0
  %v1970 = vadd.f32 %v1929, %v1969
  %v1971 = vpop.f32.mrb[0].mxu0
  %v1972 = vpop.f32.mrb[0].mxu0
  %1973 = vdwg.mxu0
  %v1974 = vld [vmem:[%s4] sm:$0xff]
  %v1976 = vlaneseq
  %v1977 = vshrl.u32 %v1976, 7
  %v1978 = vsub.s32 0, %v1977
  %v1979 = vrot.slane %v1974, %v1978
  %v1980 = vlaneseq
  %v1981 = vshrl.u32 %v1980, 7
  %v1982 = vsub.s32 2, %v1981
  %v1983 = vrot.slane %v1974, %v1982
  %v1984 = vlaneseq
  %v1985 = vshrl.u32 %v1984, 7
  %v1986 = vsub.s32 4, %v1985
  %v1987 = vrot.slane %v1974, %v1986
  %v1988 = vlaneseq
  %v1989 = vshrl.u32 %v1988, 7
  %v1990 = vsub.s32 6, %v1989
  %v1991 = vrot.slane %v1974, %v1990
  %v1996 = vlaneseq
  %v1997 = vshrl.u32 %v1996, 7
  %v1998 = vsub.s32 0, %v1997
  %v1999 = vrot.slane %v1979, %v1998
  %v2000 = vlaneseq
  %v2001 = vshrl.u32 %v2000, 7
  %v2002 = vsub.s32 0, %v2001
  %v2003 = vrot.slane %v1983, %v2002
  %v2004 = vlaneseq
  %v2005 = vshrl.u32 %v2004, 7
  %v2006 = vsub.s32 0, %v2005
  %v2007 = vrot.slane %v1987, %v2006
  %v2008 = vlaneseq
  %v2009 = vshrl.u32 %v2008, 7
  %v2010 = vsub.s32 0, %v2009
  %v2011 = vrot.slane %v1991, %v2010
  %v2012 = vmul.f32 %v1886, %v1999
  %v2013 = vmul.f32 %v1888, %v2003
  %v2014 = vmul.f32 %v1968, %v2007
  %v2015 = vmul.f32 %v1970, %v2011
  %v2016 = vlaneseq
  %v2017 = vshrl.u32 %v2016, 7
  %v2018 = vsub.s32 1, %v2017
  %v2019 = vrot.slane %v1974, %v2018
  %v2020 = vlaneseq
  %v2021 = vshrl.u32 %v2020, 7
  %v2022 = vsub.s32 3, %v2021
  %v2023 = vrot.slane %v1974, %v2022
  %v2024 = vlaneseq
  %v2025 = vshrl.u32 %v2024, 7
  %v2026 = vsub.s32 5, %v2025
  %v2027 = vrot.slane %v1974, %v2026
  %v2028 = vlaneseq
  %v2029 = vshrl.u32 %v2028, 7
  %v2030 = vsub.s32 7, %v2029
  %v2031 = vrot.slane %v1974, %v2030
  %v2036 = vlaneseq
  %v2037 = vshrl.u32 %v2036, 7
  %v2038 = vsub.s32 1, %v2037
  %v2039 = vrot.slane %v2019, %v2038
  %v2040 = vlaneseq
  %v2041 = vshrl.u32 %v2040, 7
  %v2042 = vsub.s32 1, %v2041
  %v2043 = vrot.slane %v2023, %v2042
  %v2044 = vlaneseq
  %v2045 = vshrl.u32 %v2044, 7
  %v2046 = vsub.s32 1, %v2045
  %v2047 = vrot.slane %v2027, %v2046
  %v2048 = vlaneseq
  %v2049 = vshrl.u32 %v2048, 7
  %v2050 = vsub.s32 1, %v2049
  %v2051 = vrot.slane %v2031, %v2050
  %v2052 = vadd.f32 %v2012, %v2039
  %v2053 = vadd.f32 %v2013, %v2043
  %v2054 = vadd.f32 %v2014, %v2047
  %v2055 = vadd.f32 %v2015, %v2051
  %v2056 = vmax.f32 %v2052, 0.0
  %v2057 = vmax.f32 %v2053, 0.0
  %v2058 = vmax.f32 %v2054, 0.0
  %v2059 = vmax.f32 %v2055, 0.0
  %v2064 = vcombine.low %v2056, %v2057
  %v2065 = vcombine.high %v2056, %v2057
  %v2066 = vcombine.low %v2058, %v2059
  %v2067 = vcombine.high %v2058, %v2059
  %v2069 = vunpack.c.l.s4 1983009808
  %v2070 = vunpack.c.0.s8 %v2069
  %v2071 = vlaneseq
  %v2072 = vshrl.u32 %v2071, 7
  %v2073 = vsub.s32 %v2070, %v2072
  %v2074 = vrot.slane %v2064, %v2073
  %v2076 = vunpack.c.l.s4 1983009808
  %v2077 = vunpack.c.0.s8 %v2076
  %v2078 = vlaneseq
  %v2079 = vshrl.u32 %v2078, 7
  %v2080 = vsub.s32 %v2077, %v2079
  %v2081 = vrot.slane %v2065, %v2080
  %v2083 = vunpack.c.l.s4 1983009808
  %v2084 = vunpack.c.0.s8 %v2083
  %v2085 = vlaneseq
  %v2086 = vshrl.u32 %v2085, 7
  %v2087 = vsub.s32 %v2084, %v2086
  %v2088 = vrot.slane %v2066, %v2087
  %v2090 = vunpack.c.l.s4 1983009808
  %v2091 = vunpack.c.0.s8 %v2090
  %v2092 = vlaneseq
  %v2093 = vshrl.u32 %v2092, 7
  %v2094 = vsub.s32 %v2091, %v2093
  %v2095 = vrot.slane %v2067, %v2094
  %v2096 = vcombine.low %v2074, %v2088
  %v2097 = vcombine.high %v2074, %v2088
  %v2098 = vcombine.low %v2081, %v2095
  %v2099 = vcombine.high %v2081, %v2095
  %2104 = vst [vmem:[%s5] sm:$0xff] %v2096
  %2105 = vst [vmem:[%s5 + $0x8] sm:$0xff] %v2097
  %2106 = vst [vmem:[%s5 + $0x10] sm:$0xff] %v2098
  %2107 = vst [vmem:[%s5 + $0x18] sm:$0xff] %v2099
  // Predicated region
  $region22: #{forward.19} parent=0 // pred_check
    _
  $region23: #{forward.19} parent=0 // pred_check_branch
    %2109 = sbr.rel (0) target = $region25
  $region24: #{forward.19} parent=0 // pred_region
    _
  $region25: #{forward.19} parent=0 // pred_fallthru
    _
  // Predicated region
  $region26: #{forward.19} parent=0 // pred_check
    _
  $region27: #{forward.19} parent=0 // pred_check_branch
    %2111 = sbr.rel (0) target = $region29
  $region28: #{forward.19} parent=0 // pred_region
    _
  $region29: #{forward.19} parent=0 // pred_fallthru
    _

// kernel: forward.20
$region0: #{forward.20}
  #allocation0 [shape = 'u32[]', space=smem, size = 0x4, offset = 0x4, fixed_abs, tag = 'smem constant byte address 0x4 - core index']
  #allocation1 [shape = 'u32[144,128]{1,0:T(1,128)}', space=vmem, size = 0x12000, scoped, tag = 'internal scratch']
  %s0 = inlined_call_operand.vmem [shape: f32[1,2,4,4,512], index: 0, kind: input, shape index: {}]
  %s1 = inlined_call_operand.vmem [shape: f32[9,512], index: 1, kind: input, shape index: {}]
  %s2 = inlined_call_operand.vmem [shape: f32[2,512], index: 2, kind: input, shape index: {}]
  %s3 = inlined_call_operand.vmem [shape: bf16[512,512], index: 3, kind: input, shape index: {}]
  %s4 = inlined_call_operand.vmem [shape: f32[2,512], index: 4, kind: input, shape index: {}]
  %s5 = inlined_call_operand.vmem [shape: f32[2,2,2,512], index: 5, kind: output, shape index: {}]
  %s6 = sld [smem:[#allocation0]]
  $region30: #{forward.20} parent=0
    _
  %s8 = ssub.s32 1, %s6
  %s9 = scalar_select 0, %s8, %s6
  // Predicated region
  $region2: #{forward.20} parent=0 // pred_check
    _
  $region3: #{forward.20} parent=0 // pred_check_branch
    %11 = sbr.rel (0) target = $region5
  $region4: #{forward.20} parent=0 // pred_region
    _
  $region5: #{forward.20} parent=0 // pred_fallthru
    _
  // Predicated region
  $region6: #{forward.20} parent=0 // pred_check
    _
  $region7: #{forward.20} parent=0 // pred_check_branch
    %13 = sbr.rel (0) target = $region9
  $region8: #{forward.20} parent=0 // pred_region
    _
  $region9: #{forward.20} parent=0 // pred_fallthru
    _
  // Predicated region
  $region10: #{forward.20} parent=0 // pred_check
    _
  $region11: #{forward.20} parent=0 // pred_check_branch
    %15 = sbr.rel (0) target = $region13
  $region12: #{forward.20} parent=0 // pred_region
    _
  $region13: #{forward.20} parent=0 // pred_fallthru
    _
  // Predicated region
  $region14: #{forward.20} parent=0 // pred_check
    _
  $region15: #{forward.20} parent=0 // pred_check_branch
    %17 = sbr.rel (0) target = $region17
  $region16: #{forward.20} parent=0 // pred_region
    _
  $region17: #{forward.20} parent=0 // pred_fallthru
    _
  // Predicated region
  $region18: #{forward.20} parent=0 // pred_check
    _
  $region19: #{forward.20} parent=0 // pred_check_branch
    %19 = sbr.rel (0) target = $region21
  $region20: #{forward.20} parent=0 // pred_region
    _
  $region21: #{forward.20} parent=0 // pred_fallthru
    _
  %s20 = smul.u32 0, 2
  %v21 = vld [vmem:[%s1] sm:$0xff]
  %v22 = vld [vmem:[%s1 + $0x8] sm:$0xff]
  %v23 = vld [vmem:[%s1 + $0x10] sm:$0xff]
  %v24 = vld [vmem:[%s1 + $0x18] sm:$0xff]
  %v25 = vld [vmem:[%s1 + $0x20] sm:$0x1]
  %v26 = vld [vmem:[%s1 + $0x28] sm:$0x1]
  %v27 = vld [vmem:[%s1 + $0x30] sm:$0x1]
  %v28 = vld [vmem:[%s1 + $0x38] sm:$0x1]
  %v29 = vld [vmem:[%s2] sm:$0xff]
  %s30 = smul.u32 %s20, 4
  %s31 = smul.addr %s30, 4
  %s32 = scalar_lea.vmem %s0, %s31
  %v33 = vld [vmem:[%s32] sm:$0xff]
  %v34 = vld [vmem:[%s32 + $0x8] sm:$0xff]
  %v35 = vld [vmem:[%s32 + $0x10] sm:$0xff]
  %v36 = vld [vmem:[%s32 + $0x18] sm:$0xff]
  %v37 = vld [vmem:[%s32 + $0x40] sm:$0xff]
  %v38 = vld [vmem:[%s32 + $0x48] sm:$0xff]
  %v39 = vld [vmem:[%s32 + $0x50] sm:$0xff]
  %v40 = vld [vmem:[%s32 + $0x58] sm:$0xff]
  %v41 = vlaneseq
  %v42 = vshrl.u32 %v41, 7
  %v43 = vsub.s32 0, %v42
  %v44 = vrot.slane %v21, %v43
  %v45 = vlaneseq
  %v46 = vshrl.u32 %v45, 7
  %v47 = vsub.s32 0, %v46
  %v48 = vrot.slane %v22, %v47
  %v49 = vlaneseq
  %v50 = vshrl.u32 %v49, 7
  %v51 = vsub.s32 0, %v50
  %v52 = vrot.slane %v23, %v51
  %v53 = vlaneseq
  %v54 = vshrl.u32 %v53, 7
  %v55 = vsub.s32 0, %v54
  %v56 = vrot.slane %v24, %v55
  %v61 = vcombine.low %v44, %v48
  %v62 = vcombine.low %v52, %v56
  %v65 = vmul.f32 %v33, %v61
  %v66 = vmul.f32 %v34, %v62
  %v67 = vmul.f32 %v35, %v61
  %v68 = vmul.f32 %v36, %v62
  %v69 = vmul.f32 %v37, %v61
  %v70 = vmul.f32 %v38, %v62
  %v71 = vmul.f32 %v39, %v61
  %v72 = vmul.f32 %v40, %v62
  %v73 = vlaneseq
  %v74 = vshrl.u32 %v73, 7
  %v75 = vsub.s32 1, %v74
  %v76 = vrot.slane %v21, %v75
  %v77 = vlaneseq
  %v78 = vshrl.u32 %v77, 7
  %v79 = vsub.s32 1, %v78
  %v80 = vrot.slane %v22, %v79
  %v81 = vlaneseq
  %v82 = vshrl.u32 %v81, 7
  %v83 = vsub.s32 1, %v82
  %v84 = vrot.slane %v23, %v83
  %v85 = vlaneseq
  %v86 = vshrl.u32 %v85, 7
  %v87 = vsub.s32 1, %v86
  %v88 = vrot.slane %v24, %v87
  %v93 = vcombine.low %v76, %v80
  %v94 = vcombine.low %v84, %v88
  %v95 = vrot.slane %v93, 7
  %v96 = vrot.slane %v94, 7
  %v99 = vmul.f32 %v33, %v95
  %v100 = vmul.f32 %v34, %v96
  %v101 = vmul.f32 %v35, %v95
  %v102 = vmul.f32 %v36, %v96
  %v103 = vmul.f32 %v37, %v95
  %v104 = vmul.f32 %v38, %v96
  %v105 = vmul.f32 %v39, %v95
  %v106 = vmul.f32 %v40, %v96
  %v115 = vrot.slane %v99, 5
  %v116 = vrot.slane %v115, 4
  %v117 = vrot.slane %v100, 5
  %v118 = vrot.slane %v117, 4
  %v119 = vrot.slane %v101, 5
  %v120 = vrot.slane %v119, 4
  %v121 = vrot.slane %v102, 5
  %v122 = vrot.slane %v121, 4
  %v123 = vrot.slane %v103, 5
  %v124 = vrot.slane %v123, 4
  %v125 = vrot.slane %v104, 5
  %v126 = vrot.slane %v125, 4
  %v127 = vrot.slane %v105, 5
  %v128 = vrot.slane %v127, 4
  %v129 = vrot.slane %v106, 5
  %v130 = vrot.slane %v129, 4
  %v139 = vadd.f32 %v65, %v116
  %v140 = vadd.f32 %v66, %v118
  %v141 = vadd.f32 %v67, %v120
  %v142 = vadd.f32 %v68, %v122
  %v143 = vadd.f32 %v69, %v124
  %v144 = vadd.f32 %v70, %v126
  %v145 = vadd.f32 %v71, %v128
  %v146 = vadd.f32 %v72, %v130
  %v147 = vlaneseq
  %v148 = vshrl.u32 %v147, 7
  %v149 = vsub.s32 2, %v148
  %v150 = vrot.slane %v21, %v149
  %v151 = vlaneseq
  %v152 = vshrl.u32 %v151, 7
  %v153 = vsub.s32 2, %v152
  %v154 = vrot.slane %v22, %v153
  %v155 = vlaneseq
  %v156 = vshrl.u32 %v155, 7
  %v157 = vsub.s32 2, %v156
  %v158 = vrot.slane %v23, %v157
  %v159 = vlaneseq
  %v160 = vshrl.u32 %v159, 7
  %v161 = vsub.s32 2, %v160
  %v162 = vrot.slane %v24, %v161
  %v167 = vcombine.low %v150, %v154
  %v168 = vcombine.low %v158, %v162
  %v169 = vrot.slane %v167, 6
  %v170 = vrot.slane %v168, 6
  %v173 = vmul.f32 %v33, %v169
  %v174 = vmul.f32 %v34, %v170
  %v175 = vmul.f32 %v35, %v169
  %v176 = vmul.f32 %v36, %v170
  %v177 = vmul.f32 %v37, %v169
  %v178 = vmul.f32 %v38, %v170
  %v179 = vmul.f32 %v39, %v169
  %v180 = vmul.f32 %v40, %v170
  %v189 = vrot.slane %v173, 6
  %v190 = vrot.slane %v189, 4
  %v191 = vrot.slane %v174, 6
  %v192 = vrot.slane %v191, 4
  %v193 = vrot.slane %v175, 6
  %v194 = vrot.slane %v193, 4
  %v195 = vrot.slane %v176, 6
  %v196 = vrot.slane %v195, 4
  %v197 = vrot.slane %v177, 6
  %v198 = vrot.slane %v197, 4
  %v199 = vrot.slane %v178, 6
  %v200 = vrot.slane %v199, 4
  %v201 = vrot.slane %v179, 6
  %v202 = vrot.slane %v201, 4
  %v203 = vrot.slane %v180, 6
  %v204 = vrot.slane %v203, 4
  %v213 = vadd.f32 %v139, %v190
  %v214 = vadd.f32 %v140, %v192
  %v215 = vadd.f32 %v141, %v194
  %v216 = vadd.f32 %v142, %v196
  %v217 = vadd.f32 %v143, %v198
  %v218 = vadd.f32 %v144, %v200
  %v219 = vadd.f32 %v145, %v202
  %v220 = vadd.f32 %v146, %v204
  %s221 = sadd.s32 %s20, 1
  %s222 = smul.u32 %s221, 4
  %s223 = smul.addr %s222, 4
  %s224 = scalar_lea.vmem %s0, %s223
  %v225 = vld [vmem:[%s224] sm:$0xff]
  %v226 = vld [vmem:[%s224 + $0x8] sm:$0xff]
  %v227 = vld [vmem:[%s224 + $0x10] sm:$0xff]
  %v228 = vld [vmem:[%s224 + $0x18] sm:$0xff]
  %v229 = vld [vmem:[%s224 + $0x40] sm:$0xff]
  %v230 = vld [vmem:[%s224 + $0x48] sm:$0xff]
  %v231 = vld [vmem:[%s224 + $0x50] sm:$0xff]
  %v232 = vld [vmem:[%s224 + $0x58] sm:$0xff]
  %v233 = vlaneseq
  %v234 = vshrl.u32 %v233, 7
  %v235 = vsub.s32 3, %v234
  %v236 = vrot.slane %v21, %v235
  %v237 = vlaneseq
  %v238 = vshrl.u32 %v237, 7
  %v239 = vsub.s32 3, %v238
  %v240 = vrot.slane %v22, %v239
  %v241 = vlaneseq
  %v242 = vshrl.u32 %v241, 7
  %v243 = vsub.s32 3, %v242
  %v244 = vrot.slane %v23, %v243
  %v245 = vlaneseq
  %v246 = vshrl.u32 %v245, 7
  %v247 = vsub.s32 3, %v246
  %v248 = vrot.slane %v24, %v247
  %v253 = vcombine.low %v236, %v240
  %v254 = vcombine.low %v244, %v248
  %v257 = vmul.f32 %v225, %v253
  %v258 = vmul.f32 %v226, %v254
  %v259 = vmul.f32 %v227, %v253
  %v260 = vmul.f32 %v228, %v254
  %v261 = vmul.f32 %v229, %v253
  %v262 = vmul.f32 %v230, %v254
  %v263 = vmul.f32 %v231, %v253
  %v264 = vmul.f32 %v232, %v254
  %v265 = vadd.f32 %v213, %v257
  %v266 = vadd.f32 %v214, %v258
  %v267 = vadd.f32 %v215, %v259
  %v268 = vadd.f32 %v216, %v260
  %v269 = vadd.f32 %v217, %v261
  %v270 = vadd.f32 %v218, %v262
  %v271 = vadd.f32 %v219, %v263
  %v272 = vadd.f32 %v220, %v264
  %v273 = vlaneseq
  %v274 = vshrl.u32 %v273, 7
  %v275 = vsub.s32 4, %v274
  %v276 = vrot.slane %v21, %v275
  %v277 = vlaneseq
  %v278 = vshrl.u32 %v277, 7
  %v279 = vsub.s32 4, %v278
  %v280 = vrot.slane %v22, %v279
  %v281 = vlaneseq
  %v282 = vshrl.u32 %v281, 7
  %v283 = vsub.s32 4, %v282
  %v284 = vrot.slane %v23, %v283
  %v285 = vlaneseq
  %v286 = vshrl.u32 %v285, 7
  %v287 = vsub.s32 4, %v286
  %v288 = vrot.slane %v24, %v287
  %v293 = vcombine.low %v276, %v280
  %v294 = vcombine.low %v284, %v288
  %v295 = vrot.slane %v293, 7
  %v296 = vrot.slane %v294, 7
  %v299 = vmul.f32 %v225, %v295
  %v300 = vmul.f32 %v226, %v296
  %v301 = vmul.f32 %v227, %v295
  %v302 = vmul.f32 %v228, %v296
  %v303 = vmul.f32 %v229, %v295
  %v304 = vmul.f32 %v230, %v296
  %v305 = vmul.f32 %v231, %v295
  %v306 = vmul.f32 %v232, %v296
  %v315 = vrot.slane %v299, 5
  %v316 = vrot.slane %v315, 4
  %v317 = vrot.slane %v300, 5
  %v318 = vrot.slane %v317, 4
  %v319 = vrot.slane %v301, 5
  %v320 = vrot.slane %v319, 4
  %v321 = vrot.slane %v302, 5
  %v322 = vrot.slane %v321, 4
  %v323 = vrot.slane %v303, 5
  %v324 = vrot.slane %v323, 4
  %v325 = vrot.slane %v304, 5
  %v326 = vrot.slane %v325, 4
  %v327 = vrot.slane %v305, 5
  %v328 = vrot.slane %v327, 4
  %v329 = vrot.slane %v306, 5
  %v330 = vrot.slane %v329, 4
  %v339 = vadd.f32 %v265, %v316
  %v340 = vadd.f32 %v266, %v318
  %v341 = vadd.f32 %v267, %v320
  %v342 = vadd.f32 %v268, %v322
  %v343 = vadd.f32 %v269, %v324
  %v344 = vadd.f32 %v270, %v326
  %v345 = vadd.f32 %v271, %v328
  %v346 = vadd.f32 %v272, %v330
  %v347 = vlaneseq
  %v348 = vshrl.u32 %v347, 7
  %v349 = vsub.s32 5, %v348
  %v350 = vrot.slane %v21, %v349
  %v351 = vlaneseq
  %v352 = vshrl.u32 %v351, 7
  %v353 = vsub.s32 5, %v352
  %v354 = vrot.slane %v22, %v353
  %v355 = vlaneseq
  %v356 = vshrl.u32 %v355, 7
  %v357 = vsub.s32 5, %v356
  %v358 = vrot.slane %v23, %v357
  %v359 = vlaneseq
  %v360 = vshrl.u32 %v359, 7
  %v361 = vsub.s32 5, %v360
  %v362 = vrot.slane %v24, %v361
  %v367 = vcombine.low %v350, %v354
  %v368 = vcombine.low %v358, %v362
  %v369 = vrot.slane %v367, 6
  %v370 = vrot.slane %v368, 6
  %v373 = vmul.f32 %v225, %v369
  %v374 = vmul.f32 %v226, %v370
  %v375 = vmul.f32 %v227, %v369
  %v376 = vmul.f32 %v228, %v370
  %v377 = vmul.f32 %v229, %v369
  %v378 = vmul.f32 %v230, %v370
  %v379 = vmul.f32 %v231, %v369
  %v380 = vmul.f32 %v232, %v370
  %v389 = vrot.slane %v373, 6
  %v390 = vrot.slane %v389, 4
  %v391 = vrot.slane %v374, 6
  %v392 = vrot.slane %v391, 4
  %v393 = vrot.slane %v375, 6
  %v394 = vrot.slane %v393, 4
  %v395 = vrot.slane %v376, 6
  %v396 = vrot.slane %v395, 4
  %v397 = vrot.slane %v377, 6
  %v398 = vrot.slane %v397, 4
  %v399 = vrot.slane %v378, 6
  %v400 = vrot.slane %v399, 4
  %v401 = vrot.slane %v379, 6
  %v402 = vrot.slane %v401, 4
  %v403 = vrot.slane %v380, 6
  %v404 = vrot.slane %v403, 4
  %v413 = vadd.f32 %v339, %v390
  %v414 = vadd.f32 %v340, %v392
  %v415 = vadd.f32 %v341, %v394
  %v416 = vadd.f32 %v342, %v396
  %v417 = vadd.f32 %v343, %v398
  %v418 = vadd.f32 %v344, %v400
  %v419 = vadd.f32 %v345, %v402
  %v420 = vadd.f32 %v346, %v404
  %s421 = sadd.s32 %s20, 2
  %s422 = smul.u32 %s421, 4
  %s423 = smul.addr %s422, 4
  %s424 = scalar_lea.vmem %s0, %s423
  %v425 = vld [vmem:[%s424] sm:$0xff]
  %v426 = vld [vmem:[%s424 + $0x8] sm:$0xff]
  %v427 = vld [vmem:[%s424 + $0x10] sm:$0xff]
  %v428 = vld [vmem:[%s424 + $0x18] sm:$0xff]
  %v429 = vld [vmem:[%s424 + $0x40] sm:$0xff]
  %v430 = vld [vmem:[%s424 + $0x48] sm:$0xff]
  %v431 = vld [vmem:[%s424 + $0x50] sm:$0xff]
  %v432 = vld [vmem:[%s424 + $0x58] sm:$0xff]
  %v433 = vlaneseq
  %v434 = vshrl.u32 %v433, 7
  %v435 = vsub.s32 6, %v434
  %v436 = vrot.slane %v21, %v435
  %v437 = vlaneseq
  %v438 = vshrl.u32 %v437, 7
  %v439 = vsub.s32 6, %v438
  %v440 = vrot.slane %v22, %v439
  %v441 = vlaneseq
  %v442 = vshrl.u32 %v441, 7
  %v443 = vsub.s32 6, %v442
  %v444 = vrot.slane %v23, %v443
  %v445 = vlaneseq
  %v446 = vshrl.u32 %v445, 7
  %v447 = vsub.s32 6, %v446
  %v448 = vrot.slane %v24, %v447
  %v453 = vcombine.low %v436, %v440
  %v454 = vcombine.low %v444, %v448
  %v457 = vmul.f32 %v425, %v453
  %v458 = vmul.f32 %v426, %v454
  %v459 = vmul.f32 %v427, %v453
  %v460 = vmul.f32 %v428, %v454
  %v461 = vmul.f32 %v429, %v453
  %v462 = vmul.f32 %v430, %v454
  %v463 = vmul.f32 %v431, %v453
  %v464 = vmul.f32 %v432, %v454
  %v465 = vadd.f32 %v413, %v457
  %v466 = vadd.f32 %v414, %v458
  %v467 = vadd.f32 %v415, %v459
  %v468 = vadd.f32 %v416, %v460
  %v469 = vadd.f32 %v417, %v461
  %v470 = vadd.f32 %v418, %v462
  %v471 = vadd.f32 %v419, %v463
  %v472 = vadd.f32 %v420, %v464
  %v473 = vlaneseq
  %v474 = vshrl.u32 %v473, 7
  %v475 = vsub.s32 7, %v474
  %v476 = vrot.slane %v21, %v475
  %v477 = vlaneseq
  %v478 = vshrl.u32 %v477, 7
  %v479 = vsub.s32 7, %v478
  %v480 = vrot.slane %v22, %v479
  %v481 = vlaneseq
  %v482 = vshrl.u32 %v481, 7
  %v483 = vsub.s32 7, %v482
  %v484 = vrot.slane %v23, %v483
  %v485 = vlaneseq
  %v486 = vshrl.u32 %v485, 7
  %v487 = vsub.s32 7, %v486
  %v488 = vrot.slane %v24, %v487
  %v493 = vcombine.low %v476, %v480
  %v494 = vcombine.low %v484, %v488
  %v495 = vrot.slane %v493, 7
  %v496 = vrot.slane %v494, 7
  %v499 = vmul.f32 %v425, %v495
  %v500 = vmul.f32 %v426, %v496
  %v501 = vmul.f32 %v427, %v495
  %v502 = vmul.f32 %v428, %v496
  %v503 = vmul.f32 %v429, %v495
  %v504 = vmul.f32 %v430, %v496
  %v505 = vmul.f32 %v431, %v495
  %v506 = vmul.f32 %v432, %v496
  %v515 = vrot.slane %v499, 5
  %v516 = vrot.slane %v515, 4
  %v517 = vrot.slane %v500, 5
  %v518 = vrot.slane %v517, 4
  %v519 = vrot.slane %v501, 5
  %v520 = vrot.slane %v519, 4
  %v521 = vrot.slane %v502, 5
  %v522 = vrot.slane %v521, 4
  %v523 = vrot.slane %v503, 5
  %v524 = vrot.slane %v523, 4
  %v525 = vrot.slane %v504, 5
  %v526 = vrot.slane %v525, 4
  %v527 = vrot.slane %v505, 5
  %v528 = vrot.slane %v527, 4
  %v529 = vrot.slane %v506, 5
  %v530 = vrot.slane %v529, 4
  %v539 = vadd.f32 %v465, %v516
  %v540 = vadd.f32 %v466, %v518
  %v541 = vadd.f32 %v467, %v520
  %v542 = vadd.f32 %v468, %v522
  %v543 = vadd.f32 %v469, %v524
  %v544 = vadd.f32 %v470, %v526
  %v545 = vadd.f32 %v471, %v528
  %v546 = vadd.f32 %v472, %v530
  %v547 = vlaneseq
  %v548 = vshrl.u32 %v547, 7
  %v549 = vsub.s32 0, %v548
  %v550 = vrot.slane %v25, %v549
  %v551 = vlaneseq
  %v552 = vshrl.u32 %v551, 7
  %v553 = vsub.s32 0, %v552
  %v554 = vrot.slane %v26, %v553
  %v555 = vlaneseq
  %v556 = vshrl.u32 %v555, 7
  %v557 = vsub.s32 0, %v556
  %v558 = vrot.slane %v27, %v557
  %v559 = vlaneseq
  %v560 = vshrl.u32 %v559, 7
  %v561 = vsub.s32 0, %v560
  %v562 = vrot.slane %v28, %v561
  %v567 = vcombine.low %v550, %v554
  %v568 = vcombine.low %v558, %v562
  %v569 = vrot.slane %v567, 6
  %v570 = vrot.slane %v568, 6
  %v573 = vmul.f32 %v425, %v569
  %v574 = vmul.f32 %v426, %v570
  %v575 = vmul.f32 %v427, %v569
  %v576 = vmul.f32 %v428, %v570
  %v577 = vmul.f32 %v429, %v569
  %v578 = vmul.f32 %v430, %v570
  %v579 = vmul.f32 %v431, %v569
  %v580 = vmul.f32 %v432, %v570
  %v589 = vrot.slane %v573, 6
  %v590 = vrot.slane %v589, 4
  %v591 = vrot.slane %v574, 6
  %v592 = vrot.slane %v591, 4
  %v593 = vrot.slane %v575, 6
  %v594 = vrot.slane %v593, 4
  %v595 = vrot.slane %v576, 6
  %v596 = vrot.slane %v595, 4
  %v597 = vrot.slane %v577, 6
  %v598 = vrot.slane %v597, 4
  %v599 = vrot.slane %v578, 6
  %v600 = vrot.slane %v599, 4
  %v601 = vrot.slane %v579, 6
  %v602 = vrot.slane %v601, 4
  %v603 = vrot.slane %v580, 6
  %v604 = vrot.slane %v603, 4
  %v613 = vadd.f32 %v539, %v590
  %v614 = vadd.f32 %v540, %v592
  %v615 = vadd.f32 %v541, %v594
  %v616 = vadd.f32 %v542, %v596
  %v617 = vadd.f32 %v543, %v598
  %v618 = vadd.f32 %v544, %v600
  %v619 = vadd.f32 %v545, %v602
  %v620 = vadd.f32 %v546, %v604
  %v622 = vlaneseq
  %v623 = vshrl.u32 %v622, 7
  %v624 = vsub.s32 0, %v623
  %v625 = vrot.slane %v29, %v624
  %v626 = vlaneseq
  %v627 = vshrl.u32 %v626, 7
  %v628 = vsub.s32 2, %v627
  %v629 = vrot.slane %v29, %v628
  %v630 = vlaneseq
  %v631 = vshrl.u32 %v630, 7
  %v632 = vsub.s32 4, %v631
  %v633 = vrot.slane %v29, %v632
  %v634 = vlaneseq
  %v635 = vshrl.u32 %v634, 7
  %v636 = vsub.s32 6, %v635
  %v637 = vrot.slane %v29, %v636
  %v642 = vlaneseq
  %v643 = vshrl.u32 %v642, 7
  %v644 = vsub.s32 0, %v643
  %v645 = vrot.slane %v625, %v644
  %v646 = vlaneseq
  %v647 = vshrl.u32 %v646, 7
  %v648 = vsub.s32 0, %v647
  %v649 = vrot.slane %v629, %v648
  %v650 = vlaneseq
  %v651 = vshrl.u32 %v650, 7
  %v652 = vsub.s32 0, %v651
  %v653 = vrot.slane %v633, %v652
  %v654 = vlaneseq
  %v655 = vshrl.u32 %v654, 7
  %v656 = vsub.s32 0, %v655
  %v657 = vrot.slane %v637, %v656
  %v662 = vcombine.low %v645, %v649
  %v663 = vcombine.low %v653, %v657
  %v666 = vmul.f32 %v613, %v662
  %v667 = vmul.f32 %v614, %v663
  %v668 = vmul.f32 %v615, %v662
  %v669 = vmul.f32 %v616, %v663
  %v670 = vmul.f32 %v617, %v662
  %v671 = vmul.f32 %v618, %v663
  %v672 = vmul.f32 %v619, %v662
  %v673 = vmul.f32 %v620, %v663
  %v674 = vlaneseq
  %v675 = vshrl.u32 %v674, 7
  %v676 = vsub.s32 1, %v675
  %v677 = vrot.slane %v29, %v676
  %v678 = vlaneseq
  %v679 = vshrl.u32 %v678, 7
  %v680 = vsub.s32 3, %v679
  %v681 = vrot.slane %v29, %v680
  %v682 = vlaneseq
  %v683 = vshrl.u32 %v682, 7
  %v684 = vsub.s32 5, %v683
  %v685 = vrot.slane %v29, %v684
  %v686 = vlaneseq
  %v687 = vshrl.u32 %v686, 7
  %v688 = vsub.s32 7, %v687
  %v689 = vrot.slane %v29, %v688
  %v694 = vlaneseq
  %v695 = vshrl.u32 %v694, 7
  %v696 = vsub.s32 1, %v695
  %v697 = vrot.slane %v677, %v696
  %v698 = vlaneseq
  %v699 = vshrl.u32 %v698, 7
  %v700 = vsub.s32 1, %v699
  %v701 = vrot.slane %v681, %v700
  %v702 = vlaneseq
  %v703 = vshrl.u32 %v702, 7
  %v704 = vsub.s32 1, %v703
  %v705 = vrot.slane %v685, %v704
  %v706 = vlaneseq
  %v707 = vshrl.u32 %v706, 7
  %v708 = vsub.s32 1, %v707
  %v709 = vrot.slane %v689, %v708
  %v714 = vcombine.low %v697, %v701
  %v715 = vcombine.low %v705, %v709
  %v718 = vadd.f32 %v666, %v714
  %v719 = vadd.f32 %v667, %v715
  %v720 = vadd.f32 %v668, %v714
  %v721 = vadd.f32 %v669, %v715
  %v722 = vadd.f32 %v670, %v714
  %v723 = vadd.f32 %v671, %v715
  %v724 = vadd.f32 %v672, %v714
  %v725 = vadd.f32 %v673, %v715
  %v726 = vmax.f32 %v718, 0.0
  %v727 = vmax.f32 %v719, 0.0
  %v728 = vmax.f32 %v720, 0.0
  %v729 = vmax.f32 %v721, 0.0
  %v730 = vmax.f32 %v722, 0.0
  %v731 = vmax.f32 %v723, 0.0
  %v732 = vmax.f32 %v724, 0.0
  %v733 = vmax.f32 %v725, 0.0
  %v743 = vunpack.c.l.s4 1983009808
  %v744 = vunpack.c.0.s8 %v743
  %v745 = vlaneseq
  %v746 = vshrl.u32 %v745, 7
  %v747 = vsub.s32 %v744, %v746
  %v748 = vrot.slane %v726, %v747
  %v750 = vunpack.c.l.s4 1983009808
  %v751 = vunpack.c.0.s8 %v750
  %v752 = vlaneseq
  %v753 = vshrl.u32 %v752, 7
  %v754 = vsub.s32 %v751, %v753
  %v755 = vrot.slane %v727, %v754
  %v756 = vcombine.low %v748, %v755
  %v758 = vunpack.c.l.s4 1983009808
  %v759 = vunpack.c.0.s8 %v758
  %v760 = vlaneseq
  %v761 = vshrl.u32 %v760, 7
  %v762 = vsub.s32 %v759, %v761
  %v763 = vrot.slane %v728, %v762
  %v765 = vunpack.c.l.s4 1983009808
  %v766 = vunpack.c.0.s8 %v765
  %v767 = vlaneseq
  %v768 = vshrl.u32 %v767, 7
  %v769 = vsub.s32 %v766, %v768
  %v770 = vrot.slane %v729, %v769
  %v771 = vcombine.low %v763, %v770
  %v773 = vunpack.c.l.s4 1983009808
  %v774 = vunpack.c.0.s8 %v773
  %v775 = vlaneseq
  %v776 = vshrl.u32 %v775, 7
  %v777 = vsub.s32 %v774, %v776
  %v778 = vrot.slane %v730, %v777
  %v780 = vunpack.c.l.s4 1983009808
  %v781 = vunpack.c.0.s8 %v780
  %v782 = vlaneseq
  %v783 = vshrl.u32 %v782, 7
  %v784 = vsub.s32 %v781, %v783
  %v785 = vrot.slane %v731, %v784
  %v786 = vcombine.low %v778, %v785
  %v788 = vunpack.c.l.s4 1983009808
  %v789 = vunpack.c.0.s8 %v788
  %v790 = vlaneseq
  %v791 = vshrl.u32 %v790, 7
  %v792 = vsub.s32 %v789, %v791
  %v793 = vrot.slane %v732, %v792
  %v795 = vunpack.c.l.s4 1983009808
  %v796 = vunpack.c.0.s8 %v795
  %v797 = vlaneseq
  %v798 = vshrl.u32 %v797, 7
  %v799 = vsub.s32 %v796, %v798
  %v800 = vrot.slane %v733, %v799
  %v801 = vcombine.low %v793, %v800
  %v802 = vcombine.low %v756, %v771
  %v803 = vcombine.high %v756, %v771
  %v804 = vcombine.low %v786, %v801
  %v805 = vcombine.high %v786, %v801
  %v807 = vunpack.c.l.s4 1983009808
  %v808 = vunpack.c.0.s8 %v807
  %v809 = vlaneseq
  %v810 = vshrl.u32 %v809, 7
  %v811 = vsub.s32 %v808, %v810
  %v812 = vrot.slane %v802, %v811
  %v814 = vunpack.c.l.s4 1983009808
  %v815 = vunpack.c.0.s8 %v814
  %v816 = vlaneseq
  %v817 = vshrl.u32 %v816, 7
  %v818 = vsub.s32 %v815, %v817
  %v819 = vrot.slane %v803, %v818
  %v821 = vunpack.c.l.s4 1983009808
  %v822 = vunpack.c.0.s8 %v821
  %v823 = vlaneseq
  %v824 = vshrl.u32 %v823, 7
  %v825 = vsub.s32 %v822, %v824
  %v826 = vrot.slane %v804, %v825
  %v828 = vunpack.c.l.s4 1983009808
  %v829 = vunpack.c.0.s8 %v828
  %v830 = vlaneseq
  %v831 = vshrl.u32 %v830, 7
  %v832 = vsub.s32 %v829, %v831
  %v833 = vrot.slane %v805, %v832
  %v834 = vcombine.low %v812, %v826
  %v835 = vcombine.high %v812, %v826
  %v836 = vcombine.low %v819, %v833
  %v837 = vcombine.high %v819, %v833
  %v842 = vpack.c.bf16 %v834, %v834
  %v843 = vpack.c.bf16 %v835, %v835
  %v844 = vpack.c.bf16 %v836, %v836
  %v845 = vpack.c.bf16 %v837, %v837
  %v846 = vld [vmem:[%s3] sm:$0xff]
  %v847 = vld [vmem:[%s3 + $0x8] sm:$0xff]
  %v848 = vld [vmem:[%s3 + $0x10] sm:$0xff]
  %v849 = vld [vmem:[%s3 + $0x18] sm:$0xff]
  %v850 = vld [vmem:[%s3 + $0x20] sm:$0xff]
  %v851 = vld [vmem:[%s3 + $0x28] sm:$0xff]
  %v852 = vld [vmem:[%s3 + $0x30] sm:$0xff]
  %v853 = vld [vmem:[%s3 + $0x38] sm:$0xff]
  %v854 = vld [vmem:[%s3 + $0x40] sm:$0xff]
  %v855 = vld [vmem:[%s3 + $0x48] sm:$0xff]
  %v856 = vld [vmem:[%s3 + $0x50] sm:$0xff]
  %v857 = vld [vmem:[%s3 + $0x58] sm:$0xff]
  %v858 = vld [vmem:[%s3 + $0x60] sm:$0xff]
  %v859 = vld [vmem:[%s3 + $0x68] sm:$0xff]
  %v860 = vld [vmem:[%s3 + $0x70] sm:$0xff]
  %v861 = vld [vmem:[%s3 + $0x78] sm:$0xff]
  %v862 = vld [vmem:[%s3 + $0x80] sm:$0xff]
  %v863 = vld [vmem:[%s3 + $0x88] sm:$0xff]
  %v864 = vld [vmem:[%s3 + $0x90] sm:$0xff]
  %v865 = vld [vmem:[%s3 + $0x98] sm:$0xff]
  %v866 = vld [vmem:[%s3 + $0xa0] sm:$0xff]
  %v867 = vld [vmem:[%s3 + $0xa8] sm:$0xff]
  %v868 = vld [vmem:[%s3 + $0xb0] sm:$0xff]
  %v869 = vld [vmem:[%s3 + $0xb8] sm:$0xff]
  %v870 = vld [vmem:[%s3 + $0xc0] sm:$0xff]
  %v871 = vld [vmem:[%s3 + $0xc8] sm:$0xff]
  %v872 = vld [vmem:[%s3 + $0xd0] sm:$0xff]
  %v873 = vld [vmem:[%s3 + $0xd8] sm:$0xff]
  %v874 = vld [vmem:[%s3 + $0xe0] sm:$0xff]
  %v875 = vld [vmem:[%s3 + $0xe8] sm:$0xff]
  %v876 = vld [vmem:[%s3 + $0xf0] sm:$0xff]
  %v877 = vld [vmem:[%s3 + $0xf8] sm:$0xff]
  %v878 = vld [vmem:[%s3 + $0x100] sm:$0xff]
  %v879 = vld [vmem:[%s3 + $0x108] sm:$0xff]
  %v880 = vld [vmem:[%s3 + $0x110] sm:$0xff]
  %v881 = vld [vmem:[%s3 + $0x118] sm:$0xff]
  %v882 = vld [vmem:[%s3 + $0x120] sm:$0xff]
  %v883 = vld [vmem:[%s3 + $0x128] sm:$0xff]
  %v884 = vld [vmem:[%s3 + $0x130] sm:$0xff]
  %v885 = vld [vmem:[%s3 + $0x138] sm:$0xff]
  %v886 = vld [vmem:[%s3 + $0x140] sm:$0xff]
  %v887 = vld [vmem:[%s3 + $0x148] sm:$0xff]
  %v888 = vld [vmem:[%s3 + $0x150] sm:$0xff]
  %v889 = vld [vmem:[%s3 + $0x158] sm:$0xff]
  %v890 = vld [vmem:[%s3 + $0x160] sm:$0xff]
  %v891 = vld [vmem:[%s3 + $0x168] sm:$0xff]
  %v892 = vld [vmem:[%s3 + $0x170] sm:$0xff]
  %v893 = vld [vmem:[%s3 + $0x178] sm:$0xff]
  %v894 = vld [vmem:[%s3 + $0x180] sm:$0xff]
  %v895 = vld [vmem:[%s3 + $0x188] sm:$0xff]
  %v896 = vld [vmem:[%s3 + $0x190] sm:$0xff]
  %v897 = vld [vmem:[%s3 + $0x198] sm:$0xff]
  %v898 = vld [vmem:[%s3 + $0x1a0] sm:$0xff]
  %v899 = vld [vmem:[%s3 + $0x1a8] sm:$0xff]
  %v900 = vld [vmem:[%s3 + $0x1b0] sm:$0xff]
  %v901 = vld [vmem:[%s3 + $0x1b8] sm:$0xff]
  %v902 = vld [vmem:[%s3 + $0x1c0] sm:$0xff]
  %v903 = vld [vmem:[%s3 + $0x1c8] sm:$0xff]
  %v904 = vld [vmem:[%s3 + $0x1d0] sm:$0xff]
  %v905 = vld [vmem:[%s3 + $0x1d8] sm:$0xff]
  %v906 = vld [vmem:[%s3 + $0x1e0] sm:$0xff]
  %v907 = vld [vmem:[%s3 + $0x1e8] sm:$0xff]
  %v908 = vld [vmem:[%s3 + $0x1f0] sm:$0xff]
  %v909 = vld [vmem:[%s3 + $0x1f8] sm:$0xff]
  %v910 = vld [vmem:[%s3 + $0x200] sm:$0xff]
  %v911 = vld [vmem:[%s3 + $0x208] sm:$0xff]
  %v912 = vld [vmem:[%s3 + $0x210] sm:$0xff]
  %v913 = vld [vmem:[%s3 + $0x218] sm:$0xff]
  %v914 = vld [vmem:[%s3 + $0x220] sm:$0xff]
  %v915 = vld [vmem:[%s3 + $0x228] sm:$0xff]
  %v916 = vld [vmem:[%s3 + $0x230] sm:$0xff]
  %v917 = vld [vmem:[%s3 + $0x238] sm:$0xff]
  %v918 = vld [vmem:[%s3 + $0x240] sm:$0xff]
  %v919 = vld [vmem:[%s3 + $0x248] sm:$0xff]
  %v920 = vld [vmem:[%s3 + $0x250] sm:$0xff]
  %v921 = vld [vmem:[%s3 + $0x258] sm:$0xff]
  %v922 = vld [vmem:[%s3 + $0x260] sm:$0xff]
  %v923 = vld [vmem:[%s3 + $0x268] sm:$0xff]
  %v924 = vld [vmem:[%s3 + $0x270] sm:$0xff]
  %v925 = vld [vmem:[%s3 + $0x278] sm:$0xff]
  %v926 = vld [vmem:[%s3 + $0x280] sm:$0xff]
  %v927 = vld [vmem:[%s3 + $0x288] sm:$0xff]
  %v928 = vld [vmem:[%s3 + $0x290] sm:$0xff]
  %v929 = vld [vmem:[%s3 + $0x298] sm:$0xff]
  %v930 = vld [vmem:[%s3 + $0x2a0] sm:$0xff]
  %v931 = vld [vmem:[%s3 + $0x2a8] sm:$0xff]
  %v932 = vld [vmem:[%s3 + $0x2b0] sm:$0xff]
  %v933 = vld [vmem:[%s3 + $0x2b8] sm:$0xff]
  %v934 = vld [vmem:[%s3 + $0x2c0] sm:$0xff]
  %v935 = vld [vmem:[%s3 + $0x2c8] sm:$0xff]
  %v936 = vld [vmem:[%s3 + $0x2d0] sm:$0xff]
  %v937 = vld [vmem:[%s3 + $0x2d8] sm:$0xff]
  %v938 = vld [vmem:[%s3 + $0x2e0] sm:$0xff]
  %v939 = vld [vmem:[%s3 + $0x2e8] sm:$0xff]
  %v940 = vld [vmem:[%s3 + $0x2f0] sm:$0xff]
  %v941 = vld [vmem:[%s3 + $0x2f8] sm:$0xff]
  %v942 = vld [vmem:[%s3 + $0x300] sm:$0xff]
  %v943 = vld [vmem:[%s3 + $0x308] sm:$0xff]
  %v944 = vld [vmem:[%s3 + $0x310] sm:$0xff]
  %v945 = vld [vmem:[%s3 + $0x318] sm:$0xff]
  %v946 = vld [vmem:[%s3 + $0x320] sm:$0xff]
  %v947 = vld [vmem:[%s3 + $0x328] sm:$0xff]
  %v948 = vld [vmem:[%s3 + $0x330] sm:$0xff]
  %v949 = vld [vmem:[%s3 + $0x338] sm:$0xff]
  %v950 = vld [vmem:[%s3 + $0x340] sm:$0xff]
  %v951 = vld [vmem:[%s3 + $0x348] sm:$0xff]
  %v952 = vld [vmem:[%s3 + $0x350] sm:$0xff]
  %v953 = vld [vmem:[%s3 + $0x358] sm:$0xff]
  %v954 = vld [vmem:[%s3 + $0x360] sm:$0xff]
  %v955 = vld [vmem:[%s3 + $0x368] sm:$0xff]
  %v956 = vld [vmem:[%s3 + $0x370] sm:$0xff]
  %v957 = vld [vmem:[%s3 + $0x378] sm:$0xff]
  %v958 = vld [vmem:[%s3 + $0x380] sm:$0xff]
  %v959 = vld [vmem:[%s3 + $0x388] sm:$0xff]
  %v960 = vld [vmem:[%s3 + $0x390] sm:$0xff]
  %v961 = vld [vmem:[%s3 + $0x398] sm:$0xff]
  %v962 = vld [vmem:[%s3 + $0x3a0] sm:$0xff]
  %v963 = vld [vmem:[%s3 + $0x3a8] sm:$0xff]
  %v964 = vld [vmem:[%s3 + $0x3b0] sm:$0xff]
  %v965 = vld [vmem:[%s3 + $0x3b8] sm:$0xff]
  %v966 = vld [vmem:[%s3 + $0x3c0] sm:$0xff]
  %v967 = vld [vmem:[%s3 + $0x3c8] sm:$0xff]
  %v968 = vld [vmem:[%s3 + $0x3d0] sm:$0xff]
  %v969 = vld [vmem:[%s3 + $0x3d8] sm:$0xff]
  %v970 = vld [vmem:[%s3 + $0x3e0] sm:$0xff]
  %v971 = vld [vmem:[%s3 + $0x3e8] sm:$0xff]
  %v972 = vld [vmem:[%s3 + $0x3f0] sm:$0xff]
  %v973 = vld [vmem:[%s3 + $0x3f8] sm:$0xff]
  %v1102 = vunpack.c.l.b16 %v846
  %v1103 = vunpack.c.h.b16 %v846
  %v1104 = vunpack.c.l.b16 %v847
  %v1105 = vunpack.c.h.b16 %v847
  %v1106 = vunpack.c.l.b16 %v848
  %v1107 = vunpack.c.h.b16 %v848
  %v1108 = vunpack.c.l.b16 %v849
  %v1109 = vunpack.c.h.b16 %v849
  %v1110 = vunpack.c.l.b16 %v850
  %v1111 = vunpack.c.h.b16 %v850
  %v1112 = vunpack.c.l.b16 %v851
  %v1113 = vunpack.c.h.b16 %v851
  %v1114 = vunpack.c.l.b16 %v852
  %v1115 = vunpack.c.h.b16 %v852
  %v1116 = vunpack.c.l.b16 %v853
  %v1117 = vunpack.c.h.b16 %v853
  %v1118 = vunpack.c.l.b16 %v854
  %v1119 = vunpack.c.h.b16 %v854
  %v1120 = vunpack.c.l.b16 %v855
  %v1121 = vunpack.c.h.b16 %v855
  %v1122 = vunpack.c.l.b16 %v856
  %v1123 = vunpack.c.h.b16 %v856
  %v1124 = vunpack.c.l.b16 %v857
  %v1125 = vunpack.c.h.b16 %v857
  %v1126 = vunpack.c.l.b16 %v858
  %v1127 = vunpack.c.h.b16 %v858
  %v1128 = vunpack.c.l.b16 %v859
  %v1129 = vunpack.c.h.b16 %v859
  %v1130 = vunpack.c.l.b16 %v860
  %v1131 = vunpack.c.h.b16 %v860
  %v1132 = vunpack.c.l.b16 %v861
  %v1133 = vunpack.c.h.b16 %v861
  %v1134 = vunpack.c.l.b16 %v862
  %v1135 = vunpack.c.h.b16 %v862
  %v1136 = vunpack.c.l.b16 %v863
  %v1137 = vunpack.c.h.b16 %v863
  %v1138 = vunpack.c.l.b16 %v864
  %v1139 = vunpack.c.h.b16 %v864
  %v1140 = vunpack.c.l.b16 %v865
  %v1141 = vunpack.c.h.b16 %v865
  %v1142 = vunpack.c.l.b16 %v866
  %v1143 = vunpack.c.h.b16 %v866
  %v1144 = vunpack.c.l.b16 %v867
  %v1145 = vunpack.c.h.b16 %v867
  %v1146 = vunpack.c.l.b16 %v868
  %v1147 = vunpack.c.h.b16 %v868
  %v1148 = vunpack.c.l.b16 %v869
  %v1149 = vunpack.c.h.b16 %v869
  %v1150 = vunpack.c.l.b16 %v870
  %v1151 = vunpack.c.h.b16 %v870
  %v1152 = vunpack.c.l.b16 %v871
  %v1153 = vunpack.c.h.b16 %v871
  %v1154 = vunpack.c.l.b16 %v872
  %v1155 = vunpack.c.h.b16 %v872
  %v1156 = vunpack.c.l.b16 %v873
  %v1157 = vunpack.c.h.b16 %v873
  %v1158 = vunpack.c.l.b16 %v874
  %v1159 = vunpack.c.h.b16 %v874
  %v1160 = vunpack.c.l.b16 %v875
  %v1161 = vunpack.c.h.b16 %v875
  %v1162 = vunpack.c.l.b16 %v876
  %v1163 = vunpack.c.h.b16 %v876
  %v1164 = vunpack.c.l.b16 %v877
  %v1165 = vunpack.c.h.b16 %v877
  %v1166 = vunpack.c.l.b16 %v878
  %v1167 = vunpack.c.h.b16 %v878
  %v1168 = vunpack.c.l.b16 %v879
  %v1169 = vunpack.c.h.b16 %v879
  %v1170 = vunpack.c.l.b16 %v880
  %v1171 = vunpack.c.h.b16 %v880
  %v1172 = vunpack.c.l.b16 %v881
  %v1173 = vunpack.c.h.b16 %v881
  %v1174 = vunpack.c.l.b16 %v882
  %v1175 = vunpack.c.h.b16 %v882
  %v1176 = vunpack.c.l.b16 %v883
  %v1177 = vunpack.c.h.b16 %v883
  %v1178 = vunpack.c.l.b16 %v884
  %v1179 = vunpack.c.h.b16 %v884
  %v1180 = vunpack.c.l.b16 %v885
  %v1181 = vunpack.c.h.b16 %v885
  %v1182 = vunpack.c.l.b16 %v886
  %v1183 = vunpack.c.h.b16 %v886
  %v1184 = vunpack.c.l.b16 %v887
  %v1185 = vunpack.c.h.b16 %v887
  %v1186 = vunpack.c.l.b16 %v888
  %v1187 = vunpack.c.h.b16 %v888
  %v1188 = vunpack.c.l.b16 %v889
  %v1189 = vunpack.c.h.b16 %v889
  %v1190 = vunpack.c.l.b16 %v890
  %v1191 = vunpack.c.h.b16 %v890
  %v1192 = vunpack.c.l.b16 %v891
  %v1193 = vunpack.c.h.b16 %v891
  %v1194 = vunpack.c.l.b16 %v892
  %v1195 = vunpack.c.h.b16 %v892
  %v1196 = vunpack.c.l.b16 %v893
  %v1197 = vunpack.c.h.b16 %v893
  %v1198 = vunpack.c.l.b16 %v894
  %v1199 = vunpack.c.h.b16 %v894
  %v1200 = vunpack.c.l.b16 %v895
  %v1201 = vunpack.c.h.b16 %v895
  %v1202 = vunpack.c.l.b16 %v896
  %v1203 = vunpack.c.h.b16 %v896
  %v1204 = vunpack.c.l.b16 %v897
  %v1205 = vunpack.c.h.b16 %v897
  %v1206 = vunpack.c.l.b16 %v898
  %v1207 = vunpack.c.h.b16 %v898
  %v1208 = vunpack.c.l.b16 %v899
  %v1209 = vunpack.c.h.b16 %v899
  %v1210 = vunpack.c.l.b16 %v900
  %v1211 = vunpack.c.h.b16 %v900
  %v1212 = vunpack.c.l.b16 %v901
  %v1213 = vunpack.c.h.b16 %v901
  %v1214 = vunpack.c.l.b16 %v902
  %v1215 = vunpack.c.h.b16 %v902
  %v1216 = vunpack.c.l.b16 %v903
  %v1217 = vunpack.c.h.b16 %v903
  %v1218 = vunpack.c.l.b16 %v904
  %v1219 = vunpack.c.h.b16 %v904
  %v1220 = vunpack.c.l.b16 %v905
  %v1221 = vunpack.c.h.b16 %v905
  %v1222 = vunpack.c.l.b16 %v906
  %v1223 = vunpack.c.h.b16 %v906
  %v1224 = vunpack.c.l.b16 %v907
  %v1225 = vunpack.c.h.b16 %v907
  %v1226 = vunpack.c.l.b16 %v908
  %v1227 = vunpack.c.h.b16 %v908
  %v1228 = vunpack.c.l.b16 %v909
  %v1229 = vunpack.c.h.b16 %v909
  %v1230 = vunpack.c.l.b16 %v910
  %v1231 = vunpack.c.h.b16 %v910
  %v1232 = vunpack.c.l.b16 %v911
  %v1233 = vunpack.c.h.b16 %v911
  %v1234 = vunpack.c.l.b16 %v912
  %v1235 = vunpack.c.h.b16 %v912
  %v1236 = vunpack.c.l.b16 %v913
  %v1237 = vunpack.c.h.b16 %v913
  %v1238 = vunpack.c.l.b16 %v914
  %v1239 = vunpack.c.h.b16 %v914
  %v1240 = vunpack.c.l.b16 %v915
  %v1241 = vunpack.c.h.b16 %v915
  %v1242 = vunpack.c.l.b16 %v916
  %v1243 = vunpack.c.h.b16 %v916
  %v1244 = vunpack.c.l.b16 %v917
  %v1245 = vunpack.c.h.b16 %v917
  %v1246 = vunpack.c.l.b16 %v918
  %v1247 = vunpack.c.h.b16 %v918
  %v1248 = vunpack.c.l.b16 %v919
  %v1249 = vunpack.c.h.b16 %v919
  %v1250 = vunpack.c.l.b16 %v920
  %v1251 = vunpack.c.h.b16 %v920
  %v1252 = vunpack.c.l.b16 %v921
  %v1253 = vunpack.c.h.b16 %v921
  %v1254 = vunpack.c.l.b16 %v922
  %v1255 = vunpack.c.h.b16 %v922
  %v1256 = vunpack.c.l.b16 %v923
  %v1257 = vunpack.c.h.b16 %v923
  %v1258 = vunpack.c.l.b16 %v924
  %v1259 = vunpack.c.h.b16 %v924
  %v1260 = vunpack.c.l.b16 %v925
  %v1261 = vunpack.c.h.b16 %v925
  %v1262 = vunpack.c.l.b16 %v926
  %v1263 = vunpack.c.h.b16 %v926
  %v1264 = vunpack.c.l.b16 %v927
  %v1265 = vunpack.c.h.b16 %v927
  %v1266 = vunpack.c.l.b16 %v928
  %v1267 = vunpack.c.h.b16 %v928
  %v1268 = vunpack.c.l.b16 %v929
  %v1269 = vunpack.c.h.b16 %v929
  %v1270 = vunpack.c.l.b16 %v930
  %v1271 = vunpack.c.h.b16 %v930
  %v1272 = vunpack.c.l.b16 %v931
  %v1273 = vunpack.c.h.b16 %v931
  %v1274 = vunpack.c.l.b16 %v932
  %v1275 = vunpack.c.h.b16 %v932
  %v1276 = vunpack.c.l.b16 %v933
  %v1277 = vunpack.c.h.b16 %v933
  %v1278 = vunpack.c.l.b16 %v934
  %v1279 = vunpack.c.h.b16 %v934
  %v1280 = vunpack.c.l.b16 %v935
  %v1281 = vunpack.c.h.b16 %v935
  %v1282 = vunpack.c.l.b16 %v936
  %v1283 = vunpack.c.h.b16 %v936
  %v1284 = vunpack.c.l.b16 %v937
  %v1285 = vunpack.c.h.b16 %v937
  %v1286 = vunpack.c.l.b16 %v938
  %v1287 = vunpack.c.h.b16 %v938
  %v1288 = vunpack.c.l.b16 %v939
  %v1289 = vunpack.c.h.b16 %v939
  %v1290 = vunpack.c.l.b16 %v940
  %v1291 = vunpack.c.h.b16 %v940
  %v1292 = vunpack.c.l.b16 %v941
  %v1293 = vunpack.c.h.b16 %v941
  %v1294 = vunpack.c.l.b16 %v942
  %v1295 = vunpack.c.h.b16 %v942
  %v1296 = vunpack.c.l.b16 %v943
  %v1297 = vunpack.c.h.b16 %v943
  %v1298 = vunpack.c.l.b16 %v944
  %v1299 = vunpack.c.h.b16 %v944
  %v1300 = vunpack.c.l.b16 %v945
  %v1301 = vunpack.c.h.b16 %v945
  %v1302 = vunpack.c.l.b16 %v946
  %v1303 = vunpack.c.h.b16 %v946
  %v1304 = vunpack.c.l.b16 %v947
  %v1305 = vunpack.c.h.b16 %v947
  %v1306 = vunpack.c.l.b16 %v948
  %v1307 = vunpack.c.h.b16 %v948
  %v1308 = vunpack.c.l.b16 %v949
  %v1309 = vunpack.c.h.b16 %v949
  %v1310 = vunpack.c.l.b16 %v950
  %v1311 = vunpack.c.h.b16 %v950
  %v1312 = vunpack.c.l.b16 %v951
  %v1313 = vunpack.c.h.b16 %v951
  %v1314 = vunpack.c.l.b16 %v952
  %v1315 = vunpack.c.h.b16 %v952
  %v1316 = vunpack.c.l.b16 %v953
  %v1317 = vunpack.c.h.b16 %v953
  %v1318 = vunpack.c.l.b16 %v954
  %v1319 = vunpack.c.h.b16 %v954
  %v1320 = vunpack.c.l.b16 %v955
  %v1321 = vunpack.c.h.b16 %v955
  %v1322 = vunpack.c.l.b16 %v956
  %v1323 = vunpack.c.h.b16 %v956
  %v1324 = vunpack.c.l.b16 %v957
  %v1325 = vunpack.c.h.b16 %v957
  %v1326 = vunpack.c.l.b16 %v958
  %v1327 = vunpack.c.h.b16 %v958
  %v1328 = vunpack.c.l.b16 %v959
  %v1329 = vunpack.c.h.b16 %v959
  %v1330 = vunpack.c.l.b16 %v960
  %v1331 = vunpack.c.h.b16 %v960
  %v1332 = vunpack.c.l.b16 %v961
  %v1333 = vunpack.c.h.b16 %v961
  %v1334 = vunpack.c.l.b16 %v962
  %v1335 = vunpack.c.h.b16 %v962
  %v1336 = vunpack.c.l.b16 %v963
  %v1337 = vunpack.c.h.b16 %v963
  %v1338 = vunpack.c.l.b16 %v964
  %v1339 = vunpack.c.h.b16 %v964
  %v1340 = vunpack.c.l.b16 %v965
  %v1341 = vunpack.c.h.b16 %v965
  %v1342 = vunpack.c.l.b16 %v966
  %v1343 = vunpack.c.h.b16 %v966
  %v1344 = vunpack.c.l.b16 %v967
  %v1345 = vunpack.c.h.b16 %v967
  %v1346 = vunpack.c.l.b16 %v968
  %v1347 = vunpack.c.h.b16 %v968
  %v1348 = vunpack.c.l.b16 %v969
  %v1349 = vunpack.c.h.b16 %v969
  %v1350 = vunpack.c.l.b16 %v970
  %v1351 = vunpack.c.h.b16 %v970
  %v1352 = vunpack.c.l.b16 %v971
  %v1353 = vunpack.c.h.b16 %v971
  %v1354 = vunpack.c.l.b16 %v972
  %v1355 = vunpack.c.h.b16 %v972
  %v1356 = vunpack.c.l.b16 %v973
  %v1357 = vunpack.c.h.b16 %v973
  %v1358 = vpack.c.b16 %v1106, %v1102
  %v1359 = vpack.c.b16 %v1107, %v1103
  %v1360 = vpack.c.b16 %v1108, %v1104
  %v1361 = vpack.c.b16 %v1109, %v1105
  %v1362 = vpack.c.b16 %v1114, %v1110
  %v1363 = vpack.c.b16 %v1115, %v1111
  %v1364 = vpack.c.b16 %v1116, %v1112
  %v1365 = vpack.c.b16 %v1117, %v1113
  %v1366 = vpack.c.b16 %v1122, %v1118
  %v1367 = vpack.c.b16 %v1123, %v1119
  %v1368 = vpack.c.b16 %v1124, %v1120
  %v1369 = vpack.c.b16 %v1125, %v1121
  %v1370 = vpack.c.b16 %v1130, %v1126
  %v1371 = vpack.c.b16 %v1131, %v1127
  %v1372 = vpack.c.b16 %v1132, %v1128
  %v1373 = vpack.c.b16 %v1133, %v1129
  %v1374 = vpack.c.b16 %v1138, %v1134
  %v1375 = vpack.c.b16 %v1139, %v1135
  %v1376 = vpack.c.b16 %v1140, %v1136
  %v1377 = vpack.c.b16 %v1141, %v1137
  %v1378 = vpack.c.b16 %v1146, %v1142
  %v1379 = vpack.c.b16 %v1147, %v1143
  %v1380 = vpack.c.b16 %v1148, %v1144
  %v1381 = vpack.c.b16 %v1149, %v1145
  %v1382 = vpack.c.b16 %v1154, %v1150
  %v1383 = vpack.c.b16 %v1155, %v1151
  %v1384 = vpack.c.b16 %v1156, %v1152
  %v1385 = vpack.c.b16 %v1157, %v1153
  %v1386 = vpack.c.b16 %v1162, %v1158
  %v1387 = vpack.c.b16 %v1163, %v1159
  %v1388 = vpack.c.b16 %v1164, %v1160
  %v1389 = vpack.c.b16 %v1165, %v1161
  %v1390 = vpack.c.b16 %v1170, %v1166
  %v1391 = vpack.c.b16 %v1171, %v1167
  %v1392 = vpack.c.b16 %v1172, %v1168
  %v1393 = vpack.c.b16 %v1173, %v1169
  %v1394 = vpack.c.b16 %v1178, %v1174
  %v1395 = vpack.c.b16 %v1179, %v1175
  %v1396 = vpack.c.b16 %v1180, %v1176
  %v1397 = vpack.c.b16 %v1181, %v1177
  %v1398 = vpack.c.b16 %v1186, %v1182
  %v1399 = vpack.c.b16 %v1187, %v1183
  %v1400 = vpack.c.b16 %v1188, %v1184
  %v1401 = vpack.c.b16 %v1189, %v1185
  %v1402 = vpack.c.b16 %v1194, %v1190
  %v1403 = vpack.c.b16 %v1195, %v1191
  %v1404 = vpack.c.b16 %v1196, %v1192
  %v1405 = vpack.c.b16 %v1197, %v1193
  %v1406 = vpack.c.b16 %v1202, %v1198
  %v1407 = vpack.c.b16 %v1203, %v1199
  %v1408 = vpack.c.b16 %v1204, %v1200
  %v1409 = vpack.c.b16 %v1205, %v1201
  %v1410 = vpack.c.b16 %v1210, %v1206
  %v1411 = vpack.c.b16 %v1211, %v1207
  %v1412 = vpack.c.b16 %v1212, %v1208
  %v1413 = vpack.c.b16 %v1213, %v1209
  %v1414 = vpack.c.b16 %v1218, %v1214
  %v1415 = vpack.c.b16 %v1219, %v1215
  %v1416 = vpack.c.b16 %v1220, %v1216
  %v1417 = vpack.c.b16 %v1221, %v1217
  %v1418 = vpack.c.b16 %v1226, %v1222
  %v1419 = vpack.c.b16 %v1227, %v1223
  %v1420 = vpack.c.b16 %v1228, %v1224
  %v1421 = vpack.c.b16 %v1229, %v1225
  %v1422 = vpack.c.b16 %v1234, %v1230
  %v1423 = vpack.c.b16 %v1235, %v1231
  %v1424 = vpack.c.b16 %v1236, %v1232
  %v1425 = vpack.c.b16 %v1237, %v1233
  %v1426 = vpack.c.b16 %v1242, %v1238
  %v1427 = vpack.c.b16 %v1243, %v1239
  %v1428 = vpack.c.b16 %v1244, %v1240
  %v1429 = vpack.c.b16 %v1245, %v1241
  %v1430 = vpack.c.b16 %v1250, %v1246
  %v1431 = vpack.c.b16 %v1251, %v1247
  %v1432 = vpack.c.b16 %v1252, %v1248
  %v1433 = vpack.c.b16 %v1253, %v1249
  %v1434 = vpack.c.b16 %v1258, %v1254
  %v1435 = vpack.c.b16 %v1259, %v1255
  %v1436 = vpack.c.b16 %v1260, %v1256
  %v1437 = vpack.c.b16 %v1261, %v1257
  %v1438 = vpack.c.b16 %v1266, %v1262
  %v1439 = vpack.c.b16 %v1267, %v1263
  %v1440 = vpack.c.b16 %v1268, %v1264
  %v1441 = vpack.c.b16 %v1269, %v1265
  %v1442 = vpack.c.b16 %v1274, %v1270
  %v1443 = vpack.c.b16 %v1275, %v1271
  %v1444 = vpack.c.b16 %v1276, %v1272
  %v1445 = vpack.c.b16 %v1277, %v1273
  %v1446 = vpack.c.b16 %v1282, %v1278
  %v1447 = vpack.c.b16 %v1283, %v1279
  %v1448 = vpack.c.b16 %v1284, %v1280
  %v1449 = vpack.c.b16 %v1285, %v1281
  %v1450 = vpack.c.b16 %v1290, %v1286
  %v1451 = vpack.c.b16 %v1291, %v1287
  %v1452 = vpack.c.b16 %v1292, %v1288
  %v1453 = vpack.c.b16 %v1293, %v1289
  %v1454 = vpack.c.b16 %v1298, %v1294
  %v1455 = vpack.c.b16 %v1299, %v1295
  %v1456 = vpack.c.b16 %v1300, %v1296
  %v1457 = vpack.c.b16 %v1301, %v1297
  %v1458 = vpack.c.b16 %v1306, %v1302
  %v1459 = vpack.c.b16 %v1307, %v1303
  %v1460 = vpack.c.b16 %v1308, %v1304
  %v1461 = vpack.c.b16 %v1309, %v1305
  %v1462 = vpack.c.b16 %v1314, %v1310
  %v1463 = vpack.c.b16 %v1315, %v1311
  %v1464 = vpack.c.b16 %v1316, %v1312
  %v1465 = vpack.c.b16 %v1317, %v1313
  %v1466 = vpack.c.b16 %v1322, %v1318
  %v1467 = vpack.c.b16 %v1323, %v1319
  %v1468 = vpack.c.b16 %v1324, %v1320
  %v1469 = vpack.c.b16 %v1325, %v1321
  %v1470 = vpack.c.b16 %v1330, %v1326
  %v1471 = vpack.c.b16 %v1331, %v1327
  %v1472 = vpack.c.b16 %v1332, %v1328
  %v1473 = vpack.c.b16 %v1333, %v1329
  %v1474 = vpack.c.b16 %v1338, %v1334
  %v1475 = vpack.c.b16 %v1339, %v1335
  %v1476 = vpack.c.b16 %v1340, %v1336
  %v1477 = vpack.c.b16 %v1341, %v1337
  %v1478 = vpack.c.b16 %v1346, %v1342
  %v1479 = vpack.c.b16 %v1347, %v1343
  %v1480 = vpack.c.b16 %v1348, %v1344
  %v1481 = vpack.c.b16 %v1349, %v1345
  %v1482 = vpack.c.b16 %v1354, %v1350
  %v1483 = vpack.c.b16 %v1355, %v1351
  %v1484 = vpack.c.b16 %v1356, %v1352
  %v1485 = vpack.c.b16 %v1357, %v1353
  %1614 = vmatprep.subr.bf16.mxu0 %v1359
  %1615 = vmatpush1.bf16.msra.mxu0 %v1358
  %1616 = vmatprep.subr.bf16.mxu0 %v1363
  %1617 = vmatpush1.bf16.msra.mxu0 %v1362
  %1618 = vmatprep.subr.bf16.mxu0 %v1367
  %1619 = vmatpush1.bf16.msra.mxu0 %v1366
  %1620 = vmatprep.subr.bf16.mxu0 %v1371
  %1621 = vmatpush1.bf16.msra.mxu0 %v1370
  %1622 = vmatprep.subr.bf16.mxu0 %v1375
  %1623 = vmatpush1.bf16.msra.mxu0 %v1374
  %1624 = vmatprep.subr.bf16.mxu0 %v1379
  %1625 = vmatpush1.bf16.msra.mxu0 %v1378
  %1626 = vmatprep.subr.bf16.mxu0 %v1383
  %1627 = vmatpush1.bf16.msra.mxu0 %v1382
  %1628 = vmatprep.subr.bf16.mxu0 %v1387
  %1629 = vmatpush1.bf16.msra.mxu0 %v1386
  %1630 = vmatprep.subr.bf16.mxu0 %v1391
  %1631 = vmatpush1.bf16.msra.mxu0 %v1390
  %1632 = vmatprep.subr.bf16.mxu0 %v1395
  %1633 = vmatpush1.bf16.msra.mxu0 %v1394
  %1634 = vmatprep.subr.bf16.mxu0 %v1399
  %1635 = vmatpush1.bf16.msra.mxu0 %v1398
  %1636 = vmatprep.subr.bf16.mxu0 %v1403
  %1637 = vmatpush1.bf16.msra.mxu0 %v1402
  %1638 = vmatprep.subr.bf16.mxu0 %v1407
  %1639 = vmatpush1.bf16.msra.mxu0 %v1406
  %1640 = vmatprep.subr.bf16.mxu0 %v1411
  %1641 = vmatpush1.bf16.msra.mxu0 %v1410
  %1642 = vmatprep.subr.bf16.mxu0 %v1415
  %1643 = vmatpush1.bf16.msra.mxu0 %v1414
  %1644 = vmatprep.subr.bf16.mxu0 %v1419
  %1645 = vmatpush1.bf16.msra.mxu0 %v1418
  %1646 = vmatprep.mubr.bf16.mxu0 %v843
  %1647 = vmatmul.mubr.bf16.gmra.mrb[0].mxu0 %v842
  %v1648 = vpop.f32.mrb[0].mxu0
  %v1649 = vadd.f32 0.0, %v1648
  %v1650 = vpop.f32.mrb[0].mxu0
  %v1651 = vadd.f32 0.0, %v1650
  %v1652 = vpop.f32.mrb[0].mxu0
  %v1653 = vpop.f32.mrb[0].mxu0
  %1654 = vdwg.mxu0
  %1655 = vmatprep.subr.bf16.mxu0 %v1423
  %1656 = vmatpush1.bf16.msra.mxu0 %v1422
  %1657 = vmatprep.subr.bf16.mxu0 %v1427
  %1658 = vmatpush1.bf16.msra.mxu0 %v1426
  %1659 = vmatprep.subr.bf16.mxu0 %v1431
  %1660 = vmatpush1.bf16.msra.mxu0 %v1430
  %1661 = vmatprep.subr.bf16.mxu0 %v1435
  %1662 = vmatpush1.bf16.msra.mxu0 %v1434
  %1663 = vmatprep.subr.bf16.mxu0 %v1439
  %1664 = vmatpush1.bf16.msra.mxu0 %v1438
  %1665 = vmatprep.subr.bf16.mxu0 %v1443
  %1666 = vmatpush1.bf16.msra.mxu0 %v1442
  %1667 = vmatprep.subr.bf16.mxu0 %v1447
  %1668 = vmatpush1.bf16.msra.mxu0 %v1446
  %1669 = vmatprep.subr.bf16.mxu0 %v1451
  %1670 = vmatpush1.bf16.msra.mxu0 %v1450
  %1671 = vmatprep.subr.bf16.mxu0 %v1455
  %1672 = vmatpush1.bf16.msra.mxu0 %v1454
  %1673 = vmatprep.subr.bf16.mxu0 %v1459
  %1674 = vmatpush1.bf16.msra.mxu0 %v1458
  %1675 = vmatprep.subr.bf16.mxu0 %v1463
  %1676 = vmatpush1.bf16.msra.mxu0 %v1462
  %1677 = vmatprep.subr.bf16.mxu0 %v1467
  %1678 = vmatpush1.bf16.msra.mxu0 %v1466
  %1679 = vmatprep.subr.bf16.mxu0 %v1471
  %1680 = vmatpush1.bf16.msra.mxu0 %v1470
  %1681 = vmatprep.subr.bf16.mxu0 %v1475
  %1682 = vmatpush1.bf16.msra.mxu0 %v1474
  %1683 = vmatprep.subr.bf16.mxu0 %v1479
  %1684 = vmatpush1.bf16.msra.mxu0 %v1478
  %1685 = vmatprep.subr.bf16.mxu0 %v1483
  %1686 = vmatpush1.bf16.msra.mxu0 %v1482
  %1687 = vmatprep.mubr.bf16.mxu0 %v845
  %1688 = vmatmul.mubr.bf16.gmra.mrb[0].mxu0 %v844
  %v1689 = vpop.f32.mrb[0].mxu0
  %v1690 = vadd.f32 %v1649, %v1689
  %v1691 = vpop.f32.mrb[0].mxu0
  %v1692 = vadd.f32 %v1651, %v1691
  %v1693 = vpop.f32.mrb[0].mxu0
  %v1694 = vpop.f32.mrb[0].mxu0
  %1695 = vdwg.mxu0
  %1696 = vmatprep.subr.bf16.mxu0 %v1361
  %1697 = vmatpush1.bf16.msra.mxu0 %v1360
  %1698 = vmatprep.subr.bf16.mxu0 %v1365
  %1699 = vmatpush1.bf16.msra.mxu0 %v1364
  %1700 = vmatprep.subr.bf16.mxu0 %v1369
  %1701 = vmatpush1.bf16.msra.mxu0 %v1368
  %1702 = vmatprep.subr.bf16.mxu0 %v1373
  %1703 = vmatpush1.bf16.msra.mxu0 %v1372
  %1704 = vmatprep.subr.bf16.mxu0 %v1377
  %1705 = vmatpush1.bf16.msra.mxu0 %v1376
  %1706 = vmatprep.subr.bf16.mxu0 %v1381
  %1707 = vmatpush1.bf16.msra.mxu0 %v1380
  %1708 = vmatprep.subr.bf16.mxu0 %v1385
  %1709 = vmatpush1.bf16.msra.mxu0 %v1384
  %1710 = vmatprep.subr.bf16.mxu0 %v1389
  %1711 = vmatpush1.bf16.msra.mxu0 %v1388
  %1712 = vmatprep.subr.bf16.mxu0 %v1393
  %1713 = vmatpush1.bf16.msra.mxu0 %v1392
  %1714 = vmatprep.subr.bf16.mxu0 %v1397
  %1715 = vmatpush1.bf16.msra.mxu0 %v1396
  %1716 = vmatprep.subr.bf16.mxu0 %v1401
  %1717 = vmatpush1.bf16.msra.mxu0 %v1400
  %1718 = vmatprep.subr.bf16.mxu0 %v1405
  %1719 = vmatpush1.bf16.msra.mxu0 %v1404
  %1720 = vmatprep.subr.bf16.mxu0 %v1409
  %1721 = vmatpush1.bf16.msra.mxu0 %v1408
  %1722 = vmatprep.subr.bf16.mxu0 %v1413
  %1723 = vmatpush1.bf16.msra.mxu0 %v1412
  %1724 = vmatprep.subr.bf16.mxu0 %v1417
  %1725 = vmatpush1.bf16.msra.mxu0 %v1416
  %1726 = vmatprep.subr.bf16.mxu0 %v1421
  %1727 = vmatpush1.bf16.msra.mxu0 %v1420
  %1728 = vmatprep.mubr.bf16.mxu0 %v843
  %1729 = vmatmul.mubr.bf16.gmra.mrb[0].mxu0 %v842
  %v1730 = vpop.f32.mrb[0].mxu0
  %v1731 = vadd.f32 0.0, %v1730
  %v1732 = vpop.f32.mrb[0].mxu0
  %v1733 = vadd.f32 0.0, %v1732
  %v1734 = vpop.f32.mrb[0].mxu0
  %v1735 = vpop.f32.mrb[0].mxu0
  %1736 = vdwg.mxu0
  %1737 = vmatprep.subr.bf16.mxu0 %v1425
  %1738 = vmatpush1.bf16.msra.mxu0 %v1424
  %1739 = vmatprep.subr.bf16.mxu0 %v1429
  %1740 = vmatpush1.bf16.msra.mxu0 %v1428
  %1741 = vmatprep.subr.bf16.mxu0 %v1433
  %1742 = vmatpush1.bf16.msra.mxu0 %v1432
  %1743 = vmatprep.subr.bf16.mxu0 %v1437
  %1744 = vmatpush1.bf16.msra.mxu0 %v1436
  %1745 = vmatprep.subr.bf16.mxu0 %v1441
  %1746 = vmatpush1.bf16.msra.mxu0 %v1440
  %1747 = vmatprep.subr.bf16.mxu0 %v1445
  %1748 = vmatpush1.bf16.msra.mxu0 %v1444
  %1749 = vmatprep.subr.bf16.mxu0 %v1449
  %1750 = vmatpush1.bf16.msra.mxu0 %v1448
  %1751 = vmatprep.subr.bf16.mxu0 %v1453
  %1752 = vmatpush1.bf16.msra.mxu0 %v1452
  %1753 = vmatprep.subr.bf16.mxu0 %v1457
  %1754 = vmatpush1.bf16.msra.mxu0 %v1456
  %1755 = vmatprep.subr.bf16.mxu0 %v1461
  %1756 = vmatpush1.bf16.msra.mxu0 %v1460
  %1757 = vmatprep.subr.bf16.mxu0 %v1465
  %1758 = vmatpush1.bf16.msra.mxu0 %v1464
  %1759 = vmatprep.subr.bf16.mxu0 %v1469
  %1760 = vmatpush1.bf16.msra.mxu0 %v1468
  %1761 = vmatprep.subr.bf16.mxu0 %v1473
  %1762 = vmatpush1.bf16.msra.mxu0 %v1472
  %1763 = vmatprep.subr.bf16.mxu0 %v1477
  %1764 = vmatpush1.bf16.msra.mxu0 %v1476
  %1765 = vmatprep.subr.bf16.mxu0 %v1481
  %1766 = vmatpush1.bf16.msra.mxu0 %v1480
  %1767 = vmatprep.subr.bf16.mxu0 %v1485
  %1768 = vmatpush1.bf16.msra.mxu0 %v1484
  %1769 = vmatprep.mubr.bf16.mxu0 %v845
  %1770 = vmatmul.mubr.bf16.gmra.mrb[0].mxu0 %v844
  %v1771 = vpop.f32.mrb[0].mxu0
  %v1772 = vadd.f32 %v1731, %v1771
  %v1773 = vpop.f32.mrb[0].mxu0
  %v1774 = vadd.f32 %v1733, %v1773
  %v1775 = vpop.f32.mrb[0].mxu0
  %v1776 = vpop.f32.mrb[0].mxu0
  %1777 = vdwg.mxu0
  %v1778 = vld [vmem:[%s4] sm:$0xff]
  %v1780 = vlaneseq
  %v1781 = vshrl.u32 %v1780, 7
  %v1782 = vsub.s32 0, %v1781
  %v1783 = vrot.slane %v1778, %v1782
  %v1784 = vlaneseq
  %v1785 = vshrl.u32 %v1784, 7
  %v1786 = vsub.s32 2, %v1785
  %v1787 = vrot.slane %v1778, %v1786
  %v1788 = vlaneseq
  %v1789 = vshrl.u32 %v1788, 7
  %v1790 = vsub.s32 4, %v1789
  %v1791 = vrot.slane %v1778, %v1790
  %v1792 = vlaneseq
  %v1793 = vshrl.u32 %v1792, 7
  %v1794 = vsub.s32 6, %v1793
  %v1795 = vrot.slane %v1778, %v1794
  %v1800 = vlaneseq
  %v1801 = vshrl.u32 %v1800, 7
  %v1802 = vsub.s32 0, %v1801
  %v1803 = vrot.slane %v1783, %v1802
  %v1804 = vlaneseq
  %v1805 = vshrl.u32 %v1804, 7
  %v1806 = vsub.s32 0, %v1805
  %v1807 = vrot.slane %v1787, %v1806
  %v1808 = vlaneseq
  %v1809 = vshrl.u32 %v1808, 7
  %v1810 = vsub.s32 0, %v1809
  %v1811 = vrot.slane %v1791, %v1810
  %v1812 = vlaneseq
  %v1813 = vshrl.u32 %v1812, 7
  %v1814 = vsub.s32 0, %v1813
  %v1815 = vrot.slane %v1795, %v1814
  %v1816 = vmul.f32 %v1690, %v1803
  %v1817 = vmul.f32 %v1692, %v1807
  %v1818 = vmul.f32 %v1772, %v1811
  %v1819 = vmul.f32 %v1774, %v1815
  %v1820 = vlaneseq
  %v1821 = vshrl.u32 %v1820, 7
  %v1822 = vsub.s32 1, %v1821
  %v1823 = vrot.slane %v1778, %v1822
  %v1824 = vlaneseq
  %v1825 = vshrl.u32 %v1824, 7
  %v1826 = vsub.s32 3, %v1825
  %v1827 = vrot.slane %v1778, %v1826
  %v1828 = vlaneseq
  %v1829 = vshrl.u32 %v1828, 7
  %v1830 = vsub.s32 5, %v1829
  %v1831 = vrot.slane %v1778, %v1830
  %v1832 = vlaneseq
  %v1833 = vshrl.u32 %v1832, 7
  %v1834 = vsub.s32 7, %v1833
  %v1835 = vrot.slane %v1778, %v1834
  %v1840 = vlaneseq
  %v1841 = vshrl.u32 %v1840, 7
  %v1842 = vsub.s32 1, %v1841
  %v1843 = vrot.slane %v1823, %v1842
  %v1844 = vlaneseq
  %v1845 = vshrl.u32 %v1844, 7
  %v1846 = vsub.s32 1, %v1845
  %v1847 = vrot.slane %v1827, %v1846
  %v1848 = vlaneseq
  %v1849 = vshrl.u32 %v1848, 7
  %v1850 = vsub.s32 1, %v1849
  %v1851 = vrot.slane %v1831, %v1850
  %v1852 = vlaneseq
  %v1853 = vshrl.u32 %v1852, 7
  %v1854 = vsub.s32 1, %v1853
  %v1855 = vrot.slane %v1835, %v1854
  %v1856 = vadd.f32 %v1816, %v1843
  %v1857 = vadd.f32 %v1817, %v1847
  %v1858 = vadd.f32 %v1818, %v1851
  %v1859 = vadd.f32 %v1819, %v1855
  %v1860 = vmax.f32 %v1856, 0.0
  %v1861 = vmax.f32 %v1857, 0.0
  %v1862 = vmax.f32 %v1858, 0.0
  %v1863 = vmax.f32 %v1859, 0.0
  %v1868 = vcombine.low %v1860, %v1861
  %v1869 = vcombine.high %v1860, %v1861
  %v1870 = vcombine.low %v1862, %v1863
  %v1871 = vcombine.high %v1862, %v1863
  %v1873 = vunpack.c.l.s4 1983009808
  %v1874 = vunpack.c.0.s8 %v1873
  %v1875 = vlaneseq
  %v1876 = vshrl.u32 %v1875, 7
  %v1877 = vsub.s32 %v1874, %v1876
  %v1878 = vrot.slane %v1868, %v1877
  %v1880 = vunpack.c.l.s4 1983009808
  %v1881 = vunpack.c.0.s8 %v1880
  %v1882 = vlaneseq
  %v1883 = vshrl.u32 %v1882, 7
  %v1884 = vsub.s32 %v1881, %v1883
  %v1885 = vrot.slane %v1869, %v1884
  %v1887 = vunpack.c.l.s4 1983009808
  %v1888 = vunpack.c.0.s8 %v1887
  %v1889 = vlaneseq
  %v1890 = vshrl.u32 %v1889, 7
  %v1891 = vsub.s32 %v1888, %v1890
  %v1892 = vrot.slane %v1870, %v1891
  %v1894 = vunpack.c.l.s4 1983009808
  %v1895 = vunpack.c.0.s8 %v1894
  %v1896 = vlaneseq
  %v1897 = vshrl.u32 %v1896, 7
  %v1898 = vsub.s32 %v1895, %v1897
  %v1899 = vrot.slane %v1871, %v1898
  %v1900 = vcombine.low %v1878, %v1892
  %v1901 = vcombine.high %v1878, %v1892
  %v1902 = vcombine.low %v1885, %v1899
  %v1903 = vcombine.high %v1885, %v1899
  %1908 = vst [vmem:[%s5] sm:$0xff] %v1900
  %1909 = vst [vmem:[%s5 + $0x8] sm:$0xff] %v1901
  %1910 = vst [vmem:[%s5 + $0x10] sm:$0xff] %v1902
  %1911 = vst [vmem:[%s5 + $0x18] sm:$0xff] %v1903
  // Predicated region
  $region22: #{forward.20} parent=0 // pred_check
    _
  $region23: #{forward.20} parent=0 // pred_check_branch
    %1913 = sbr.rel (0) target = $region25
  $region24: #{forward.20} parent=0 // pred_region
    _
  $region25: #{forward.20} parent=0 // pred_fallthru
    _
  // Predicated region
  $region26: #{forward.20} parent=0 // pred_check
    _
  $region27: #{forward.20} parent=0 // pred_check_branch
    %1915 = sbr.rel (0) target = $region29
  $region28: #{forward.20} parent=0 // pred_region
    _
  $region29: #{forward.20} parent=0 // pred_fallthru
    _

// kernel: forward.23
$region0: #{forward.23}
  #allocation0 [shape = 'u32[]', space=smem, size = 0x4, offset = 0x4, fixed_abs, tag = 'smem constant byte address 0x4 - core index']
  #allocation1 [shape = 'u32[144,128]{1,0:T(1,128)}', space=vmem, size = 0x12000, scoped, tag = 'internal scratch']
  %s0 = inlined_call_operand.vmem [shape: f32[1,2,4,4,512], index: 0, kind: input, shape index: {}]
  %s1 = inlined_call_operand.vmem [shape: f32[9,512], index: 1, kind: input, shape index: {}]
  %s2 = inlined_call_operand.vmem [shape: f32[2,512], index: 2, kind: input, shape index: {}]
  %s3 = inlined_call_operand.vmem [shape: bf16[512,512], index: 3, kind: input, shape index: {}]
  %s4 = inlined_call_operand.vmem [shape: f32[2,512], index: 4, kind: input, shape index: {}]
  %s5 = inlined_call_operand.hbm [shape: f32[2,2,2,512], index: 5, kind: output, shape index: {}]
  %s6 = sld [smem:[#allocation0]]
  $region30: #{forward.23} parent=0
    _
  %s8 = ssub.s32 1, %s6
  %s9 = scalar_select 0, %s8, %s6
  $region1: #{forward.23} parent=0
    #allocation2 [shape = 'u8[16384]{0}', space=vmem, size = 0x4000, scoped, tag = 'output window, operand 0, single buffered']
    #allocation3 [shape = 's32[1]{0}', space=sflag, size = 0x4, scoped, tag = 'scoped memory for forward.23']
    %10 = vsyncpa [#allocation3], 0
    // Predicated region
    $region2: #{forward.23} parent=1 // pred_check
      _
    $region3: #{forward.23} parent=1 // pred_check_branch
      %12 = sbr.rel (0) target = $region5
    $region4: #{forward.23} parent=1 // pred_region
      _
    $region5: #{forward.23} parent=1 // pred_fallthru
      _
    // Predicated region
    $region6: #{forward.23} parent=1 // pred_check
      _
    $region7: #{forward.23} parent=1 // pred_check_branch
      %14 = sbr.rel (0) target = $region9
    $region8: #{forward.23} parent=1 // pred_region
      _
    $region9: #{forward.23} parent=1 // pred_fallthru
      _
    // Predicated region
    $region10: #{forward.23} parent=1 // pred_check
      _
    $region11: #{forward.23} parent=1 // pred_check_branch
      %16 = sbr.rel (0) target = $region13
    $region12: #{forward.23} parent=1 // pred_region
      _
    $region13: #{forward.23} parent=1 // pred_fallthru
      _
    // Predicated region
    $region14: #{forward.23} parent=1 // pred_check
      _
    $region15: #{forward.23} parent=1 // pred_check_branch
      %18 = sbr.rel (0) target = $region17
    $region16: #{forward.23} parent=1 // pred_region
      _
    $region17: #{forward.23} parent=1 // pred_fallthru
      _
    // Predicated region
    $region18: #{forward.23} parent=1 // pred_check
      _
    $region19: #{forward.23} parent=1 // pred_check_branch
      %20 = sbr.rel (0) target = $region21
    $region20: #{forward.23} parent=1 // pred_region
      _
    $region21: #{forward.23} parent=1 // pred_fallthru
      _
    %s21 = smul.u32 0, 2
    %v22 = vld [vmem:[%s1] sm:$0xff]
    %v23 = vld [vmem:[%s1 + $0x8] sm:$0xff]
    %v24 = vld [vmem:[%s1 + $0x10] sm:$0xff]
    %v25 = vld [vmem:[%s1 + $0x18] sm:$0xff]
    %v26 = vld [vmem:[%s1 + $0x20] sm:$0x1]
    %v27 = vld [vmem:[%s1 + $0x28] sm:$0x1]
    %v28 = vld [vmem:[%s1 + $0x30] sm:$0x1]
    %v29 = vld [vmem:[%s1 + $0x38] sm:$0x1]
    %v30 = vld [vmem:[%s2] sm:$0xff]
    %s31 = smul.u32 %s21, 4
    %s32 = smul.addr %s31, 4
    %s33 = scalar_lea.vmem %s0, %s32
    %v34 = vld [vmem:[%s33] sm:$0xff]
    %v35 = vld [vmem:[%s33 + $0x8] sm:$0xff]
    %v36 = vld [vmem:[%s33 + $0x10] sm:$0xff]
    %v37 = vld [vmem:[%s33 + $0x18] sm:$0xff]
    %v38 = vld [vmem:[%s33 + $0x40] sm:$0xff]
    %v39 = vld [vmem:[%s33 + $0x48] sm:$0xff]
    %v40 = vld [vmem:[%s33 + $0x50] sm:$0xff]
    %v41 = vld [vmem:[%s33 + $0x58] sm:$0xff]
    %v42 = vlaneseq
    %v43 = vshrl.u32 %v42, 7
    %v44 = vsub.s32 0, %v43
    %v45 = vrot.slane %v22, %v44
    %v46 = vlaneseq
    %v47 = vshrl.u32 %v46, 7
    %v48 = vsub.s32 0, %v47
    %v49 = vrot.slane %v23, %v48
    %v50 = vlaneseq
    %v51 = vshrl.u32 %v50, 7
    %v52 = vsub.s32 0, %v51
    %v53 = vrot.slane %v24, %v52
    %v54 = vlaneseq
    %v55 = vshrl.u32 %v54, 7
    %v56 = vsub.s32 0, %v55
    %v57 = vrot.slane %v25, %v56
    %v62 = vcombine.low %v45, %v49
    %v63 = vcombine.low %v53, %v57
    %v66 = vmul.f32 %v34, %v62
    %v67 = vmul.f32 %v35, %v63
    %v68 = vmul.f32 %v36, %v62
    %v69 = vmul.f32 %v37, %v63
    %v70 = vmul.f32 %v38, %v62
    %v71 = vmul.f32 %v39, %v63
    %v72 = vmul.f32 %v40, %v62
    %v73 = vmul.f32 %v41, %v63
    %v74 = vlaneseq
    %v75 = vshrl.u32 %v74, 7
    %v76 = vsub.s32 1, %v75
    %v77 = vrot.slane %v22, %v76
    %v78 = vlaneseq
    %v79 = vshrl.u32 %v78, 7
    %v80 = vsub.s32 1, %v79
    %v81 = vrot.slane %v23, %v80
    %v82 = vlaneseq
    %v83 = vshrl.u32 %v82, 7
    %v84 = vsub.s32 1, %v83
    %v85 = vrot.slane %v24, %v84
    %v86 = vlaneseq
    %v87 = vshrl.u32 %v86, 7
    %v88 = vsub.s32 1, %v87
    %v89 = vrot.slane %v25, %v88
    %v94 = vcombine.low %v77, %v81
    %v95 = vcombine.low %v85, %v89
    %v96 = vrot.slane %v94, 7
    %v97 = vrot.slane %v95, 7
    %v100 = vmul.f32 %v34, %v96
    %v101 = vmul.f32 %v35, %v97
    %v102 = vmul.f32 %v36, %v96
    %v103 = vmul.f32 %v37, %v97
    %v104 = vmul.f32 %v38, %v96
    %v105 = vmul.f32 %v39, %v97
    %v106 = vmul.f32 %v40, %v96
    %v107 = vmul.f32 %v41, %v97
    %v116 = vrot.slane %v100, 5
    %v117 = vrot.slane %v116, 4
    %v118 = vrot.slane %v101, 5
    %v119 = vrot.slane %v118, 4
    %v120 = vrot.slane %v102, 5
    %v121 = vrot.slane %v120, 4
    %v122 = vrot.slane %v103, 5
    %v123 = vrot.slane %v122, 4
    %v124 = vrot.slane %v104, 5
    %v125 = vrot.slane %v124, 4
    %v126 = vrot.slane %v105, 5
    %v127 = vrot.slane %v126, 4
    %v128 = vrot.slane %v106, 5
    %v129 = vrot.slane %v128, 4
    %v130 = vrot.slane %v107, 5
    %v131 = vrot.slane %v130, 4
    %v140 = vadd.f32 %v66, %v117
    %v141 = vadd.f32 %v67, %v119
    %v142 = vadd.f32 %v68, %v121
    %v143 = vadd.f32 %v69, %v123
    %v144 = vadd.f32 %v70, %v125
    %v145 = vadd.f32 %v71, %v127
    %v146 = vadd.f32 %v72, %v129
    %v147 = vadd.f32 %v73, %v131
    %v148 = vlaneseq
    %v149 = vshrl.u32 %v148, 7
    %v150 = vsub.s32 2, %v149
    %v151 = vrot.slane %v22, %v150
    %v152 = vlaneseq
    %v153 = vshrl.u32 %v152, 7
    %v154 = vsub.s32 2, %v153
    %v155 = vrot.slane %v23, %v154
    %v156 = vlaneseq
    %v157 = vshrl.u32 %v156, 7
    %v158 = vsub.s32 2, %v157
    %v159 = vrot.slane %v24, %v158
    %v160 = vlaneseq
    %v161 = vshrl.u32 %v160, 7
    %v162 = vsub.s32 2, %v161
    %v163 = vrot.slane %v25, %v162
    %v168 = vcombine.low %v151, %v155
    %v169 = vcombine.low %v159, %v163
    %v170 = vrot.slane %v168, 6
    %v171 = vrot.slane %v169, 6
    %v174 = vmul.f32 %v34, %v170
    %v175 = vmul.f32 %v35, %v171
    %v176 = vmul.f32 %v36, %v170
    %v177 = vmul.f32 %v37, %v171
    %v178 = vmul.f32 %v38, %v170
    %v179 = vmul.f32 %v39, %v171
    %v180 = vmul.f32 %v40, %v170
    %v181 = vmul.f32 %v41, %v171
    %v190 = vrot.slane %v174, 6
    %v191 = vrot.slane %v190, 4
    %v192 = vrot.slane %v175, 6
    %v193 = vrot.slane %v192, 4
    %v194 = vrot.slane %v176, 6
    %v195 = vrot.slane %v194, 4
    %v196 = vrot.slane %v177, 6
    %v197 = vrot.slane %v196, 4
    %v198 = vrot.slane %v178, 6
    %v199 = vrot.slane %v198, 4
    %v200 = vrot.slane %v179, 6
    %v201 = vrot.slane %v200, 4
    %v202 = vrot.slane %v180, 6
    %v203 = vrot.slane %v202, 4
    %v204 = vrot.slane %v181, 6
    %v205 = vrot.slane %v204, 4
    %v214 = vadd.f32 %v140, %v191
    %v215 = vadd.f32 %v141, %v193
    %v216 = vadd.f32 %v142, %v195
    %v217 = vadd.f32 %v143, %v197
    %v218 = vadd.f32 %v144, %v199
    %v219 = vadd.f32 %v145, %v201
    %v220 = vadd.f32 %v146, %v203
    %v221 = vadd.f32 %v147, %v205
    %s222 = sadd.s32 %s21, 1
    %s223 = smul.u32 %s222, 4
    %s224 = smul.addr %s223, 4
    %s225 = scalar_lea.vmem %s0, %s224
    %v226 = vld [vmem:[%s225] sm:$0xff]
    %v227 = vld [vmem:[%s225 + $0x8] sm:$0xff]
    %v228 = vld [vmem:[%s225 + $0x10] sm:$0xff]
    %v229 = vld [vmem:[%s225 + $0x18] sm:$0xff]
    %v230 = vld [vmem:[%s225 + $0x40] sm:$0xff]
    %v231 = vld [vmem:[%s225 + $0x48] sm:$0xff]
    %v232 = vld [vmem:[%s225 + $0x50] sm:$0xff]
    %v233 = vld [vmem:[%s225 + $0x58] sm:$0xff]
    %v234 = vlaneseq
    %v235 = vshrl.u32 %v234, 7
    %v236 = vsub.s32 3, %v235
    %v237 = vrot.slane %v22, %v236
    %v238 = vlaneseq
    %v239 = vshrl.u32 %v238, 7
    %v240 = vsub.s32 3, %v239
    %v241 = vrot.slane %v23, %v240
    %v242 = vlaneseq
    %v243 = vshrl.u32 %v242, 7
    %v244 = vsub.s32 3, %v243
    %v245 = vrot.slane %v24, %v244
    %v246 = vlaneseq
    %v247 = vshrl.u32 %v246, 7
    %v248 = vsub.s32 3, %v247
    %v249 = vrot.slane %v25, %v248
    %v254 = vcombine.low %v237, %v241
    %v255 = vcombine.low %v245, %v249
    %v258 = vmul.f32 %v226, %v254
    %v259 = vmul.f32 %v227, %v255
    %v260 = vmul.f32 %v228, %v254
    %v261 = vmul.f32 %v229, %v255
    %v262 = vmul.f32 %v230, %v254
    %v263 = vmul.f32 %v231, %v255
    %v264 = vmul.f32 %v232, %v254
    %v265 = vmul.f32 %v233, %v255
    %v266 = vadd.f32 %v214, %v258
    %v267 = vadd.f32 %v215, %v259
    %v268 = vadd.f32 %v216, %v260
    %v269 = vadd.f32 %v217, %v261
    %v270 = vadd.f32 %v218, %v262
    %v271 = vadd.f32 %v219, %v263
    %v272 = vadd.f32 %v220, %v264
    %v273 = vadd.f32 %v221, %v265
    %v274 = vlaneseq
    %v275 = vshrl.u32 %v274, 7
    %v276 = vsub.s32 4, %v275
    %v277 = vrot.slane %v22, %v276
    %v278 = vlaneseq
    %v279 = vshrl.u32 %v278, 7
    %v280 = vsub.s32 4, %v279
    %v281 = vrot.slane %v23, %v280
    %v282 = vlaneseq
    %v283 = vshrl.u32 %v282, 7
    %v284 = vsub.s32 4, %v283
    %v285 = vrot.slane %v24, %v284
    %v286 = vlaneseq
    %v287 = vshrl.u32 %v286, 7
    %v288 = vsub.s32 4, %v287
    %v289 = vrot.slane %v25, %v288
    %v294 = vcombine.low %v277, %v281
    %v295 = vcombine.low %v285, %v289
    %v296 = vrot.slane %v294, 7
    %v297 = vrot.slane %v295, 7
    %v300 = vmul.f32 %v226, %v296
    %v301 = vmul.f32 %v227, %v297
    %v302 = vmul.f32 %v228, %v296
    %v303 = vmul.f32 %v229, %v297
    %v304 = vmul.f32 %v230, %v296
    %v305 = vmul.f32 %v231, %v297
    %v306 = vmul.f32 %v232, %v296
    %v307 = vmul.f32 %v233, %v297
    %v316 = vrot.slane %v300, 5
    %v317 = vrot.slane %v316, 4
    %v318 = vrot.slane %v301, 5
    %v319 = vrot.slane %v318, 4
    %v320 = vrot.slane %v302, 5
    %v321 = vrot.slane %v320, 4
    %v322 = vrot.slane %v303, 5
    %v323 = vrot.slane %v322, 4
    %v324 = vrot.slane %v304, 5
    %v325 = vrot.slane %v324, 4
    %v326 = vrot.slane %v305, 5
    %v327 = vrot.slane %v326, 4
    %v328 = vrot.slane %v306, 5
    %v329 = vrot.slane %v328, 4
    %v330 = vrot.slane %v307, 5
    %v331 = vrot.slane %v330, 4
    %v340 = vadd.f32 %v266, %v317
    %v341 = vadd.f32 %v267, %v319
    %v342 = vadd.f32 %v268, %v321
    %v343 = vadd.f32 %v269, %v323
    %v344 = vadd.f32 %v270, %v325
    %v345 = vadd.f32 %v271, %v327
    %v346 = vadd.f32 %v272, %v329
    %v347 = vadd.f32 %v273, %v331
    %v348 = vlaneseq
    %v349 = vshrl.u32 %v348, 7
    %v350 = vsub.s32 5, %v349
    %v351 = vrot.slane %v22, %v350
    %v352 = vlaneseq
    %v353 = vshrl.u32 %v352, 7
    %v354 = vsub.s32 5, %v353
    %v355 = vrot.slane %v23, %v354
    %v356 = vlaneseq
    %v357 = vshrl.u32 %v356, 7
    %v358 = vsub.s32 5, %v357
    %v359 = vrot.slane %v24, %v358
    %v360 = vlaneseq
    %v361 = vshrl.u32 %v360, 7
    %v362 = vsub.s32 5, %v361
    %v363 = vrot.slane %v25, %v362
    %v368 = vcombine.low %v351, %v355
    %v369 = vcombine.low %v359, %v363
    %v370 = vrot.slane %v368, 6
    %v371 = vrot.slane %v369, 6
    %v374 = vmul.f32 %v226, %v370
    %v375 = vmul.f32 %v227, %v371
    %v376 = vmul.f32 %v228, %v370
    %v377 = vmul.f32 %v229, %v371
    %v378 = vmul.f32 %v230, %v370
    %v379 = vmul.f32 %v231, %v371
    %v380 = vmul.f32 %v232, %v370
    %v381 = vmul.f32 %v233, %v371
    %v390 = vrot.slane %v374, 6
    %v391 = vrot.slane %v390, 4
    %v392 = vrot.slane %v375, 6
    %v393 = vrot.slane %v392, 4
    %v394 = vrot.slane %v376, 6
    %v395 = vrot.slane %v394, 4
    %v396 = vrot.slane %v377, 6
    %v397 = vrot.slane %v396, 4
    %v398 = vrot.slane %v378, 6
    %v399 = vrot.slane %v398, 4
    %v400 = vrot.slane %v379, 6
    %v401 = vrot.slane %v400, 4
    %v402 = vrot.slane %v380, 6
    %v403 = vrot.slane %v402, 4
    %v404 = vrot.slane %v381, 6
    %v405 = vrot.slane %v404, 4
    %v414 = vadd.f32 %v340, %v391
    %v415 = vadd.f32 %v341, %v393
    %v416 = vadd.f32 %v342, %v395
    %v417 = vadd.f32 %v343, %v397
    %v418 = vadd.f32 %v344, %v399
    %v419 = vadd.f32 %v345, %v401
    %v420 = vadd.f32 %v346, %v403
    %v421 = vadd.f32 %v347, %v405
    %s422 = sadd.s32 %s21, 2
    %s423 = smul.u32 %s422, 4
    %s424 = smul.addr %s423, 4
    %s425 = scalar_lea.vmem %s0, %s424
    %v426 = vld [vmem:[%s425] sm:$0xff]
    %v427 = vld [vmem:[%s425 + $0x8] sm:$0xff]
    %v428 = vld [vmem:[%s425 + $0x10] sm:$0xff]
    %v429 = vld [vmem:[%s425 + $0x18] sm:$0xff]
    %v430 = vld [vmem:[%s425 + $0x40] sm:$0xff]
    %v431 = vld [vmem:[%s425 + $0x48] sm:$0xff]
    %v432 = vld [vmem:[%s425 + $0x50] sm:$0xff]
    %v433 = vld [vmem:[%s425 + $0x58] sm:$0xff]
    %v434 = vlaneseq
    %v435 = vshrl.u32 %v434, 7
    %v436 = vsub.s32 6, %v435
    %v437 = vrot.slane %v22, %v436
    %v438 = vlaneseq
    %v439 = vshrl.u32 %v438, 7
    %v440 = vsub.s32 6, %v439
    %v441 = vrot.slane %v23, %v440
    %v442 = vlaneseq
    %v443 = vshrl.u32 %v442, 7
    %v444 = vsub.s32 6, %v443
    %v445 = vrot.slane %v24, %v444
    %v446 = vlaneseq
    %v447 = vshrl.u32 %v446, 7
    %v448 = vsub.s32 6, %v447
    %v449 = vrot.slane %v25, %v448
    %v454 = vcombine.low %v437, %v441
    %v455 = vcombine.low %v445, %v449
    %v458 = vmul.f32 %v426, %v454
    %v459 = vmul.f32 %v427, %v455
    %v460 = vmul.f32 %v428, %v454
    %v461 = vmul.f32 %v429, %v455
    %v462 = vmul.f32 %v430, %v454
    %v463 = vmul.f32 %v431, %v455
    %v464 = vmul.f32 %v432, %v454
    %v465 = vmul.f32 %v433, %v455
    %v466 = vadd.f32 %v414, %v458
    %v467 = vadd.f32 %v415, %v459
    %v468 = vadd.f32 %v416, %v460
    %v469 = vadd.f32 %v417, %v461
    %v470 = vadd.f32 %v418, %v462
    %v471 = vadd.f32 %v419, %v463
    %v472 = vadd.f32 %v420, %v464
    %v473 = vadd.f32 %v421, %v465
    %v474 = vlaneseq
    %v475 = vshrl.u32 %v474, 7
    %v476 = vsub.s32 7, %v475
    %v477 = vrot.slane %v22, %v476
    %v478 = vlaneseq
    %v479 = vshrl.u32 %v478, 7
    %v480 = vsub.s32 7, %v479
    %v481 = vrot.slane %v23, %v480
    %v482 = vlaneseq
    %v483 = vshrl.u32 %v482, 7
    %v484 = vsub.s32 7, %v483
    %v485 = vrot.slane %v24, %v484
    %v486 = vlaneseq
    %v487 = vshrl.u32 %v486, 7
    %v488 = vsub.s32 7, %v487
    %v489 = vrot.slane %v25, %v488
    %v494 = vcombine.low %v477, %v481
    %v495 = vcombine.low %v485, %v489
    %v496 = vrot.slane %v494, 7
    %v497 = vrot.slane %v495, 7
    %v500 = vmul.f32 %v426, %v496
    %v501 = vmul.f32 %v427, %v497
    %v502 = vmul.f32 %v428, %v496
    %v503 = vmul.f32 %v429, %v497
    %v504 = vmul.f32 %v430, %v496
    %v505 = vmul.f32 %v431, %v497
    %v506 = vmul.f32 %v432, %v496
    %v507 = vmul.f32 %v433, %v497
    %v516 = vrot.slane %v500, 5
    %v517 = vrot.slane %v516, 4
    %v518 = vrot.slane %v501, 5
    %v519 = vrot.slane %v518, 4
    %v520 = vrot.slane %v502, 5
    %v521 = vrot.slane %v520, 4
    %v522 = vrot.slane %v503, 5
    %v523 = vrot.slane %v522, 4
    %v524 = vrot.slane %v504, 5
    %v525 = vrot.slane %v524, 4
    %v526 = vrot.slane %v505, 5
    %v527 = vrot.slane %v526, 4
    %v528 = vrot.slane %v506, 5
    %v529 = vrot.slane %v528, 4
    %v530 = vrot.slane %v507, 5
    %v531 = vrot.slane %v530, 4
    %v540 = vadd.f32 %v466, %v517
    %v541 = vadd.f32 %v467, %v519
    %v542 = vadd.f32 %v468, %v521
    %v543 = vadd.f32 %v469, %v523
    %v544 = vadd.f32 %v470, %v525
    %v545 = vadd.f32 %v471, %v527
    %v546 = vadd.f32 %v472, %v529
    %v547 = vadd.f32 %v473, %v531
    %v548 = vlaneseq
    %v549 = vshrl.u32 %v548, 7
    %v550 = vsub.s32 0, %v549
    %v551 = vrot.slane %v26, %v550
    %v552 = vlaneseq
    %v553 = vshrl.u32 %v552, 7
    %v554 = vsub.s32 0, %v553
    %v555 = vrot.slane %v27, %v554
    %v556 = vlaneseq
    %v557 = vshrl.u32 %v556, 7
    %v558 = vsub.s32 0, %v557
    %v559 = vrot.slane %v28, %v558
    %v560 = vlaneseq
    %v561 = vshrl.u32 %v560, 7
    %v562 = vsub.s32 0, %v561
    %v563 = vrot.slane %v29, %v562
    %v568 = vcombine.low %v551, %v555
    %v569 = vcombine.low %v559, %v563
    %v570 = vrot.slane %v568, 6
    %v571 = vrot.slane %v569, 6
    %v574 = vmul.f32 %v426, %v570
    %v575 = vmul.f32 %v427, %v571
    %v576 = vmul.f32 %v428, %v570
    %v577 = vmul.f32 %v429, %v571
    %v578 = vmul.f32 %v430, %v570
    %v579 = vmul.f32 %v431, %v571
    %v580 = vmul.f32 %v432, %v570
    %v581 = vmul.f32 %v433, %v571
    %v590 = vrot.slane %v574, 6
    %v591 = vrot.slane %v590, 4
    %v592 = vrot.slane %v575, 6
    %v593 = vrot.slane %v592, 4
    %v594 = vrot.slane %v576, 6
    %v595 = vrot.slane %v594, 4
    %v596 = vrot.slane %v577, 6
    %v597 = vrot.slane %v596, 4
    %v598 = vrot.slane %v578, 6
    %v599 = vrot.slane %v598, 4
    %v600 = vrot.slane %v579, 6
    %v601 = vrot.slane %v600, 4
    %v602 = vrot.slane %v580, 6
    %v603 = vrot.slane %v602, 4
    %v604 = vrot.slane %v581, 6
    %v605 = vrot.slane %v604, 4
    %v614 = vadd.f32 %v540, %v591
    %v615 = vadd.f32 %v541, %v593
    %v616 = vadd.f32 %v542, %v595
    %v617 = vadd.f32 %v543, %v597
    %v618 = vadd.f32 %v544, %v599
    %v619 = vadd.f32 %v545, %v601
    %v620 = vadd.f32 %v546, %v603
    %v621 = vadd.f32 %v547, %v605
    %v623 = vlaneseq
    %v624 = vshrl.u32 %v623, 7
    %v625 = vsub.s32 0, %v624
    %v626 = vrot.slane %v30, %v625
    %v627 = vlaneseq
    %v628 = vshrl.u32 %v627, 7
    %v629 = vsub.s32 2, %v628
    %v630 = vrot.slane %v30, %v629
    %v631 = vlaneseq
    %v632 = vshrl.u32 %v631, 7
    %v633 = vsub.s32 4, %v632
    %v634 = vrot.slane %v30, %v633
    %v635 = vlaneseq
    %v636 = vshrl.u32 %v635, 7
    %v637 = vsub.s32 6, %v636
    %v638 = vrot.slane %v30, %v637
    %v643 = vlaneseq
    %v644 = vshrl.u32 %v643, 7
    %v645 = vsub.s32 0, %v644
    %v646 = vrot.slane %v626, %v645
    %v647 = vlaneseq
    %v648 = vshrl.u32 %v647, 7
    %v649 = vsub.s32 0, %v648
    %v650 = vrot.slane %v630, %v649
    %v651 = vlaneseq
    %v652 = vshrl.u32 %v651, 7
    %v653 = vsub.s32 0, %v652
    %v654 = vrot.slane %v634, %v653
    %v655 = vlaneseq
    %v656 = vshrl.u32 %v655, 7
    %v657 = vsub.s32 0, %v656
    %v658 = vrot.slane %v638, %v657
    %v663 = vcombine.low %v646, %v650
    %v664 = vcombine.low %v654, %v658
    %v667 = vmul.f32 %v614, %v663
    %v668 = vmul.f32 %v615, %v664
    %v669 = vmul.f32 %v616, %v663
    %v670 = vmul.f32 %v617, %v664
    %v671 = vmul.f32 %v618, %v663
    %v672 = vmul.f32 %v619, %v664
    %v673 = vmul.f32 %v620, %v663
    %v674 = vmul.f32 %v621, %v664
    %v675 = vlaneseq
    %v676 = vshrl.u32 %v675, 7
    %v677 = vsub.s32 1, %v676
    %v678 = vrot.slane %v30, %v677
    %v679 = vlaneseq
    %v680 = vshrl.u32 %v679, 7
    %v681 = vsub.s32 3, %v680
    %v682 = vrot.slane %v30, %v681
    %v683 = vlaneseq
    %v684 = vshrl.u32 %v683, 7
    %v685 = vsub.s32 5, %v684
    %v686 = vrot.slane %v30, %v685
    %v687 = vlaneseq
    %v688 = vshrl.u32 %v687, 7
    %v689 = vsub.s32 7, %v688
    %v690 = vrot.slane %v30, %v689
    %v695 = vlaneseq
    %v696 = vshrl.u32 %v695, 7
    %v697 = vsub.s32 1, %v696
    %v698 = vrot.slane %v678, %v697
    %v699 = vlaneseq
    %v700 = vshrl.u32 %v699, 7
    %v701 = vsub.s32 1, %v700
    %v702 = vrot.slane %v682, %v701
    %v703 = vlaneseq
    %v704 = vshrl.u32 %v703, 7
    %v705 = vsub.s32 1, %v704
    %v706 = vrot.slane %v686, %v705
    %v707 = vlaneseq
    %v708 = vshrl.u32 %v707, 7
    %v709 = vsub.s32 1, %v708
    %v710 = vrot.slane %v690, %v709
    %v715 = vcombine.low %v698, %v702
    %v716 = vcombine.low %v706, %v710
    %v719 = vadd.f32 %v667, %v715
    %v720 = vadd.f32 %v668, %v716
    %v721 = vadd.f32 %v669, %v715
    %v722 = vadd.f32 %v670, %v716
    %v723 = vadd.f32 %v671, %v715
    %v724 = vadd.f32 %v672, %v716
    %v725 = vadd.f32 %v673, %v715
    %v726 = vadd.f32 %v674, %v716
    %v727 = vmax.f32 %v719, 0.0
    %v728 = vmax.f32 %v720, 0.0
    %v729 = vmax.f32 %v721, 0.0
    %v730 = vmax.f32 %v722, 0.0
    %v731 = vmax.f32 %v723, 0.0
    %v732 = vmax.f32 %v724, 0.0
    %v733 = vmax.f32 %v725, 0.0
    %v734 = vmax.f32 %v726, 0.0
    %v744 = vunpack.c.l.s4 1983009808
    %v745 = vunpack.c.0.s8 %v744
    %v746 = vlaneseq
    %v747 = vshrl.u32 %v746, 7
    %v748 = vsub.s32 %v745, %v747
    %v749 = vrot.slane %v727, %v748
    %v751 = vunpack.c.l.s4 1983009808
    %v752 = vunpack.c.0.s8 %v751
    %v753 = vlaneseq
    %v754 = vshrl.u32 %v753, 7
    %v755 = vsub.s32 %v752, %v754
    %v756 = vrot.slane %v728, %v755
    %v757 = vcombine.low %v749, %v756
    %v759 = vunpack.c.l.s4 1983009808
    %v760 = vunpack.c.0.s8 %v759
    %v761 = vlaneseq
    %v762 = vshrl.u32 %v761, 7
    %v763 = vsub.s32 %v760, %v762
    %v764 = vrot.slane %v729, %v763
    %v766 = vunpack.c.l.s4 1983009808
    %v767 = vunpack.c.0.s8 %v766
    %v768 = vlaneseq
    %v769 = vshrl.u32 %v768, 7
    %v770 = vsub.s32 %v767, %v769
    %v771 = vrot.slane %v730, %v770
    %v772 = vcombine.low %v764, %v771
    %v774 = vunpack.c.l.s4 1983009808
    %v775 = vunpack.c.0.s8 %v774
    %v776 = vlaneseq
    %v777 = vshrl.u32 %v776, 7
    %v778 = vsub.s32 %v775, %v777
    %v779 = vrot.slane %v731, %v778
    %v781 = vunpack.c.l.s4 1983009808
    %v782 = vunpack.c.0.s8 %v781
    %v783 = vlaneseq
    %v784 = vshrl.u32 %v783, 7
    %v785 = vsub.s32 %v782, %v784
    %v786 = vrot.slane %v732, %v785
    %v787 = vcombine.low %v779, %v786
    %v789 = vunpack.c.l.s4 1983009808
    %v790 = vunpack.c.0.s8 %v789
    %v791 = vlaneseq
    %v792 = vshrl.u32 %v791, 7
    %v793 = vsub.s32 %v790, %v792
    %v794 = vrot.slane %v733, %v793
    %v796 = vunpack.c.l.s4 1983009808
    %v797 = vunpack.c.0.s8 %v796
    %v798 = vlaneseq
    %v799 = vshrl.u32 %v798, 7
    %v800 = vsub.s32 %v797, %v799
    %v801 = vrot.slane %v734, %v800
    %v802 = vcombine.low %v794, %v801
    %v803 = vcombine.low %v757, %v772
    %v804 = vcombine.high %v757, %v772
    %v805 = vcombine.low %v787, %v802
    %v806 = vcombine.high %v787, %v802
    %v808 = vunpack.c.l.s4 1983009808
    %v809 = vunpack.c.0.s8 %v808
    %v810 = vlaneseq
    %v811 = vshrl.u32 %v810, 7
    %v812 = vsub.s32 %v809, %v811
    %v813 = vrot.slane %v803, %v812
    %v815 = vunpack.c.l.s4 1983009808
    %v816 = vunpack.c.0.s8 %v815
    %v817 = vlaneseq
    %v818 = vshrl.u32 %v817, 7
    %v819 = vsub.s32 %v816, %v818
    %v820 = vrot.slane %v804, %v819
    %v822 = vunpack.c.l.s4 1983009808
    %v823 = vunpack.c.0.s8 %v822
    %v824 = vlaneseq
    %v825 = vshrl.u32 %v824, 7
    %v826 = vsub.s32 %v823, %v825
    %v827 = vrot.slane %v805, %v826
    %v829 = vunpack.c.l.s4 1983009808
    %v830 = vunpack.c.0.s8 %v829
    %v831 = vlaneseq
    %v832 = vshrl.u32 %v831, 7
    %v833 = vsub.s32 %v830, %v832
    %v834 = vrot.slane %v806, %v833
    %v835 = vcombine.low %v813, %v827
    %v836 = vcombine.high %v813, %v827
    %v837 = vcombine.low %v820, %v834
    %v838 = vcombine.high %v820, %v834
    %v843 = vpack.c.bf16 %v835, %v835
    %v844 = vpack.c.bf16 %v836, %v836
    %v845 = vpack.c.bf16 %v837, %v837
    %v846 = vpack.c.bf16 %v838, %v838
    %v847 = vld [vmem:[%s3] sm:$0xff]
    %v848 = vld [vmem:[%s3 + $0x8] sm:$0xff]
    %v849 = vld [vmem:[%s3 + $0x10] sm:$0xff]
    %v850 = vld [vmem:[%s3 + $0x18] sm:$0xff]
    %v851 = vld [vmem:[%s3 + $0x20] sm:$0xff]
    %v852 = vld [vmem:[%s3 + $0x28] sm:$0xff]
    %v853 = vld [vmem:[%s3 + $0x30] sm:$0xff]
    %v854 = vld [vmem:[%s3 + $0x38] sm:$0xff]
    %v855 = vld [vmem:[%s3 + $0x40] sm:$0xff]
    %v856 = vld [vmem:[%s3 + $0x48] sm:$0xff]
    %v857 = vld [vmem:[%s3 + $0x50] sm:$0xff]
    %v858 = vld [vmem:[%s3 + $0x58] sm:$0xff]
    %v859 = vld [vmem:[%s3 + $0x60] sm:$0xff]
    %v860 = vld [vmem:[%s3 + $0x68] sm:$0xff]
    %v861 = vld [vmem:[%s3 + $0x70] sm:$0xff]
    %v862 = vld [vmem:[%s3 + $0x78] sm:$0xff]
    %v863 = vld [vmem:[%s3 + $0x80] sm:$0xff]
    %v864 = vld [vmem:[%s3 + $0x88] sm:$0xff]
    %v865 = vld [vmem:[%s3 + $0x90] sm:$0xff]
    %v866 = vld [vmem:[%s3 + $0x98] sm:$0xff]
    %v867 = vld [vmem:[%s3 + $0xa0] sm:$0xff]
    %v868 = vld [vmem:[%s3 + $0xa8] sm:$0xff]
    %v869 = vld [vmem:[%s3 + $0xb0] sm:$0xff]
    %v870 = vld [vmem:[%s3 + $0xb8] sm:$0xff]
    %v871 = vld [vmem:[%s3 + $0xc0] sm:$0xff]
    %v872 = vld [vmem:[%s3 + $0xc8] sm:$0xff]
    %v873 = vld [vmem:[%s3 + $0xd0] sm:$0xff]
    %v874 = vld [vmem:[%s3 + $0xd8] sm:$0xff]
    %v875 = vld [vmem:[%s3 + $0xe0] sm:$0xff]
    %v876 = vld [vmem:[%s3 + $0xe8] sm:$0xff]
    %v877 = vld [vmem:[%s3 + $0xf0] sm:$0xff]
    %v878 = vld [vmem:[%s3 + $0xf8] sm:$0xff]
    %v879 = vld [vmem:[%s3 + $0x100] sm:$0xff]
    %v880 = vld [vmem:[%s3 + $0x108] sm:$0xff]
    %v881 = vld [vmem:[%s3 + $0x110] sm:$0xff]
    %v882 = vld [vmem:[%s3 + $0x118] sm:$0xff]
    %v883 = vld [vmem:[%s3 + $0x120] sm:$0xff]
    %v884 = vld [vmem:[%s3 + $0x128] sm:$0xff]
    %v885 = vld [vmem:[%s3 + $0x130] sm:$0xff]
    %v886 = vld [vmem:[%s3 + $0x138] sm:$0xff]
    %v887 = vld [vmem:[%s3 + $0x140] sm:$0xff]
    %v888 = vld [vmem:[%s3 + $0x148] sm:$0xff]
    %v889 = vld [vmem:[%s3 + $0x150] sm:$0xff]
    %v890 = vld [vmem:[%s3 + $0x158] sm:$0xff]
    %v891 = vld [vmem:[%s3 + $0x160] sm:$0xff]
    %v892 = vld [vmem:[%s3 + $0x168] sm:$0xff]
    %v893 = vld [vmem:[%s3 + $0x170] sm:$0xff]
    %v894 = vld [vmem:[%s3 + $0x178] sm:$0xff]
    %v895 = vld [vmem:[%s3 + $0x180] sm:$0xff]
    %v896 = vld [vmem:[%s3 + $0x188] sm:$0xff]
    %v897 = vld [vmem:[%s3 + $0x190] sm:$0xff]
    %v898 = vld [vmem:[%s3 + $0x198] sm:$0xff]
    %v899 = vld [vmem:[%s3 + $0x1a0] sm:$0xff]
    %v900 = vld [vmem:[%s3 + $0x1a8] sm:$0xff]
    %v901 = vld [vmem:[%s3 + $0x1b0] sm:$0xff]
    %v902 = vld [vmem:[%s3 + $0x1b8] sm:$0xff]
    %v903 = vld [vmem:[%s3 + $0x1c0] sm:$0xff]
    %v904 = vld [vmem:[%s3 + $0x1c8] sm:$0xff]
    %v905 = vld [vmem:[%s3 + $0x1d0] sm:$0xff]
    %v906 = vld [vmem:[%s3 + $0x1d8] sm:$0xff]
    %v907 = vld [vmem:[%s3 + $0x1e0] sm:$0xff]
    %v908 = vld [vmem:[%s3 + $0x1e8] sm:$0xff]
    %v909 = vld [vmem:[%s3 + $0x1f0] sm:$0xff]
    %v910 = vld [vmem:[%s3 + $0x1f8] sm:$0xff]
    %v911 = vld [vmem:[%s3 + $0x200] sm:$0xff]
    %v912 = vld [vmem:[%s3 + $0x208] sm:$0xff]
    %v913 = vld [vmem:[%s3 + $0x210] sm:$0xff]
    %v914 = vld [vmem:[%s3 + $0x218] sm:$0xff]
    %v915 = vld [vmem:[%s3 + $0x220] sm:$0xff]
    %v916 = vld [vmem:[%s3 + $0x228] sm:$0xff]
    %v917 = vld [vmem:[%s3 + $0x230] sm:$0xff]
    %v918 = vld [vmem:[%s3 + $0x238] sm:$0xff]
    %v919 = vld [vmem:[%s3 + $0x240] sm:$0xff]
    %v920 = vld [vmem:[%s3 + $0x248] sm:$0xff]
    %v921 = vld [vmem:[%s3 + $0x250] sm:$0xff]
    %v922 = vld [vmem:[%s3 + $0x258] sm:$0xff]
    %v923 = vld [vmem:[%s3 + $0x260] sm:$0xff]
    %v924 = vld [vmem:[%s3 + $0x268] sm:$0xff]
    %v925 = vld [vmem:[%s3 + $0x270] sm:$0xff]
    %v926 = vld [vmem:[%s3 + $0x278] sm:$0xff]
    %v927 = vld [vmem:[%s3 + $0x280] sm:$0xff]
    %v928 = vld [vmem:[%s3 + $0x288] sm:$0xff]
    %v929 = vld [vmem:[%s3 + $0x290] sm:$0xff]
    %v930 = vld [vmem:[%s3 + $0x298] sm:$0xff]
    %v931 = vld [vmem:[%s3 + $0x2a0] sm:$0xff]
    %v932 = vld [vmem:[%s3 + $0x2a8] sm:$0xff]
    %v933 = vld [vmem:[%s3 + $0x2b0] sm:$0xff]
    %v934 = vld [vmem:[%s3 + $0x2b8] sm:$0xff]
    %v935 = vld [vmem:[%s3 + $0x2c0] sm:$0xff]
    %v936 = vld [vmem:[%s3 + $0x2c8] sm:$0xff]
    %v937 = vld [vmem:[%s3 + $0x2d0] sm:$0xff]
    %v938 = vld [vmem:[%s3 + $0x2d8] sm:$0xff]
    %v939 = vld [vmem:[%s3 + $0x2e0] sm:$0xff]
    %v940 = vld [vmem:[%s3 + $0x2e8] sm:$0xff]
    %v941 = vld [vmem:[%s3 + $0x2f0] sm:$0xff]
    %v942 = vld [vmem:[%s3 + $0x2f8] sm:$0xff]
    %v943 = vld [vmem:[%s3 + $0x300] sm:$0xff]
    %v944 = vld [vmem:[%s3 + $0x308] sm:$0xff]
    %v945 = vld [vmem:[%s3 + $0x310] sm:$0xff]
    %v946 = vld [vmem:[%s3 + $0x318] sm:$0xff]
    %v947 = vld [vmem:[%s3 + $0x320] sm:$0xff]
    %v948 = vld [vmem:[%s3 + $0x328] sm:$0xff]
    %v949 = vld [vmem:[%s3 + $0x330] sm:$0xff]
    %v950 = vld [vmem:[%s3 + $0x338] sm:$0xff]
    %v951 = vld [vmem:[%s3 + $0x340] sm:$0xff]
    %v952 = vld [vmem:[%s3 + $0x348] sm:$0xff]
    %v953 = vld [vmem:[%s3 + $0x350] sm:$0xff]
    %v954 = vld [vmem:[%s3 + $0x358] sm:$0xff]
    %v955 = vld [vmem:[%s3 + $0x360] sm:$0xff]
    %v956 = vld [vmem:[%s3 + $0x368] sm:$0xff]
    %v957 = vld [vmem:[%s3 + $0x370] sm:$0xff]
    %v958 = vld [vmem:[%s3 + $0x378] sm:$0xff]
    %v959 = vld [vmem:[%s3 + $0x380] sm:$0xff]
    %v960 = vld [vmem:[%s3 + $0x388] sm:$0xff]
    %v961 = vld [vmem:[%s3 + $0x390] sm:$0xff]
    %v962 = vld [vmem:[%s3 + $0x398] sm:$0xff]
    %v963 = vld [vmem:[%s3 + $0x3a0] sm:$0xff]
    %v964 = vld [vmem:[%s3 + $0x3a8] sm:$0xff]
    %v965 = vld [vmem:[%s3 + $0x3b0] sm:$0xff]
    %v966 = vld [vmem:[%s3 + $0x3b8] sm:$0xff]
    %v967 = vld [vmem:[%s3 + $0x3c0] sm:$0xff]
    %v968 = vld [vmem:[%s3 + $0x3c8] sm:$0xff]
    %v969 = vld [vmem:[%s3 + $0x3d0] sm:$0xff]
    %v970 = vld [vmem:[%s3 + $0x3d8] sm:$0xff]
    %v971 = vld [vmem:[%s3 + $0x3e0] sm:$0xff]
    %v972 = vld [vmem:[%s3 + $0x3e8] sm:$0xff]
    %v973 = vld [vmem:[%s3 + $0x3f0] sm:$0xff]
    %v974 = vld [vmem:[%s3 + $0x3f8] sm:$0xff]
    %v1103 = vunpack.c.l.b16 %v847
    %v1104 = vunpack.c.h.b16 %v847
    %v1105 = vunpack.c.l.b16 %v848
    %v1106 = vunpack.c.h.b16 %v848
    %v1107 = vunpack.c.l.b16 %v849
    %v1108 = vunpack.c.h.b16 %v849
    %v1109 = vunpack.c.l.b16 %v850
    %v1110 = vunpack.c.h.b16 %v850
    %v1111 = vunpack.c.l.b16 %v851
    %v1112 = vunpack.c.h.b16 %v851
    %v1113 = vunpack.c.l.b16 %v852
    %v1114 = vunpack.c.h.b16 %v852
    %v1115 = vunpack.c.l.b16 %v853
    %v1116 = vunpack.c.h.b16 %v853
    %v1117 = vunpack.c.l.b16 %v854
    %v1118 = vunpack.c.h.b16 %v854
    %v1119 = vunpack.c.l.b16 %v855
    %v1120 = vunpack.c.h.b16 %v855
    %v1121 = vunpack.c.l.b16 %v856
    %v1122 = vunpack.c.h.b16 %v856
    %v1123 = vunpack.c.l.b16 %v857
    %v1124 = vunpack.c.h.b16 %v857
    %v1125 = vunpack.c.l.b16 %v858
    %v1126 = vunpack.c.h.b16 %v858
    %v1127 = vunpack.c.l.b16 %v859
    %v1128 = vunpack.c.h.b16 %v859
    %v1129 = vunpack.c.l.b16 %v860
    %v1130 = vunpack.c.h.b16 %v860
    %v1131 = vunpack.c.l.b16 %v861
    %v1132 = vunpack.c.h.b16 %v861
    %v1133 = vunpack.c.l.b16 %v862
    %v1134 = vunpack.c.h.b16 %v862
    %v1135 = vunpack.c.l.b16 %v863
    %v1136 = vunpack.c.h.b16 %v863
    %v1137 = vunpack.c.l.b16 %v864
    %v1138 = vunpack.c.h.b16 %v864
    %v1139 = vunpack.c.l.b16 %v865
    %v1140 = vunpack.c.h.b16 %v865
    %v1141 = vunpack.c.l.b16 %v866
    %v1142 = vunpack.c.h.b16 %v866
    %v1143 = vunpack.c.l.b16 %v867
    %v1144 = vunpack.c.h.b16 %v867
    %v1145 = vunpack.c.l.b16 %v868
    %v1146 = vunpack.c.h.b16 %v868
    %v1147 = vunpack.c.l.b16 %v869
    %v1148 = vunpack.c.h.b16 %v869
    %v1149 = vunpack.c.l.b16 %v870
    %v1150 = vunpack.c.h.b16 %v870
    %v1151 = vunpack.c.l.b16 %v871
    %v1152 = vunpack.c.h.b16 %v871
    %v1153 = vunpack.c.l.b16 %v872
    %v1154 = vunpack.c.h.b16 %v872
    %v1155 = vunpack.c.l.b16 %v873
    %v1156 = vunpack.c.h.b16 %v873
    %v1157 = vunpack.c.l.b16 %v874
    %v1158 = vunpack.c.h.b16 %v874
    %v1159 = vunpack.c.l.b16 %v875
    %v1160 = vunpack.c.h.b16 %v875
    %v1161 = vunpack.c.l.b16 %v876
    %v1162 = vunpack.c.h.b16 %v876
    %v1163 = vunpack.c.l.b16 %v877
    %v1164 = vunpack.c.h.b16 %v877
    %v1165 = vunpack.c.l.b16 %v878
    %v1166 = vunpack.c.h.b16 %v878
    %v1167 = vunpack.c.l.b16 %v879
    %v1168 = vunpack.c.h.b16 %v879
    %v1169 = vunpack.c.l.b16 %v880
    %v1170 = vunpack.c.h.b16 %v880
    %v1171 = vunpack.c.l.b16 %v881
    %v1172 = vunpack.c.h.b16 %v881
    %v1173 = vunpack.c.l.b16 %v882
    %v1174 = vunpack.c.h.b16 %v882
    %v1175 = vunpack.c.l.b16 %v883
    %v1176 = vunpack.c.h.b16 %v883
    %v1177 = vunpack.c.l.b16 %v884
    %v1178 = vunpack.c.h.b16 %v884
    %v1179 = vunpack.c.l.b16 %v885
    %v1180 = vunpack.c.h.b16 %v885
    %v1181 = vunpack.c.l.b16 %v886
    %v1182 = vunpack.c.h.b16 %v886
    %v1183 = vunpack.c.l.b16 %v887
    %v1184 = vunpack.c.h.b16 %v887
    %v1185 = vunpack.c.l.b16 %v888
    %v1186 = vunpack.c.h.b16 %v888
    %v1187 = vunpack.c.l.b16 %v889
    %v1188 = vunpack.c.h.b16 %v889
    %v1189 = vunpack.c.l.b16 %v890
    %v1190 = vunpack.c.h.b16 %v890
    %v1191 = vunpack.c.l.b16 %v891
    %v1192 = vunpack.c.h.b16 %v891
    %v1193 = vunpack.c.l.b16 %v892
    %v1194 = vunpack.c.h.b16 %v892
    %v1195 = vunpack.c.l.b16 %v893
    %v1196 = vunpack.c.h.b16 %v893
    %v1197 = vunpack.c.l.b16 %v894
    %v1198 = vunpack.c.h.b16 %v894
    %v1199 = vunpack.c.l.b16 %v895
    %v1200 = vunpack.c.h.b16 %v895
    %v1201 = vunpack.c.l.b16 %v896
    %v1202 = vunpack.c.h.b16 %v896
    %v1203 = vunpack.c.l.b16 %v897
    %v1204 = vunpack.c.h.b16 %v897
    %v1205 = vunpack.c.l.b16 %v898
    %v1206 = vunpack.c.h.b16 %v898
    %v1207 = vunpack.c.l.b16 %v899
    %v1208 = vunpack.c.h.b16 %v899
    %v1209 = vunpack.c.l.b16 %v900
    %v1210 = vunpack.c.h.b16 %v900
    %v1211 = vunpack.c.l.b16 %v901
    %v1212 = vunpack.c.h.b16 %v901
    %v1213 = vunpack.c.l.b16 %v902
    %v1214 = vunpack.c.h.b16 %v902
    %v1215 = vunpack.c.l.b16 %v903
    %v1216 = vunpack.c.h.b16 %v903
    %v1217 = vunpack.c.l.b16 %v904
    %v1218 = vunpack.c.h.b16 %v904
    %v1219 = vunpack.c.l.b16 %v905
    %v1220 = vunpack.c.h.b16 %v905
    %v1221 = vunpack.c.l.b16 %v906
    %v1222 = vunpack.c.h.b16 %v906
    %v1223 = vunpack.c.l.b16 %v907
    %v1224 = vunpack.c.h.b16 %v907
    %v1225 = vunpack.c.l.b16 %v908
    %v1226 = vunpack.c.h.b16 %v908
    %v1227 = vunpack.c.l.b16 %v909
    %v1228 = vunpack.c.h.b16 %v909
    %v1229 = vunpack.c.l.b16 %v910
    %v1230 = vunpack.c.h.b16 %v910
    %v1231 = vunpack.c.l.b16 %v911
    %v1232 = vunpack.c.h.b16 %v911
    %v1233 = vunpack.c.l.b16 %v912
    %v1234 = vunpack.c.h.b16 %v912
    %v1235 = vunpack.c.l.b16 %v913
    %v1236 = vunpack.c.h.b16 %v913
    %v1237 = vunpack.c.l.b16 %v914
    %v1238 = vunpack.c.h.b16 %v914
    %v1239 = vunpack.c.l.b16 %v915
    %v1240 = vunpack.c.h.b16 %v915
    %v1241 = vunpack.c.l.b16 %v916
    %v1242 = vunpack.c.h.b16 %v916
    %v1243 = vunpack.c.l.b16 %v917
    %v1244 = vunpack.c.h.b16 %v917
    %v1245 = vunpack.c.l.b16 %v918
    %v1246 = vunpack.c.h.b16 %v918
    %v1247 = vunpack.c.l.b16 %v919
    %v1248 = vunpack.c.h.b16 %v919
    %v1249 = vunpack.c.l.b16 %v920
    %v1250 = vunpack.c.h.b16 %v920
    %v1251 = vunpack.c.l.b16 %v921
    %v1252 = vunpack.c.h.b16 %v921
    %v1253 = vunpack.c.l.b16 %v922
    %v1254 = vunpack.c.h.b16 %v922
    %v1255 = vunpack.c.l.b16 %v923
    %v1256 = vunpack.c.h.b16 %v923
    %v1257 = vunpack.c.l.b16 %v924
    %v1258 = vunpack.c.h.b16 %v924
    %v1259 = vunpack.c.l.b16 %v925
    %v1260 = vunpack.c.h.b16 %v925
    %v1261 = vunpack.c.l.b16 %v926
    %v1262 = vunpack.c.h.b16 %v926
    %v1263 = vunpack.c.l.b16 %v927
    %v1264 = vunpack.c.h.b16 %v927
    %v1265 = vunpack.c.l.b16 %v928
    %v1266 = vunpack.c.h.b16 %v928
    %v1267 = vunpack.c.l.b16 %v929
    %v1268 = vunpack.c.h.b16 %v929
    %v1269 = vunpack.c.l.b16 %v930
    %v1270 = vunpack.c.h.b16 %v930
    %v1271 = vunpack.c.l.b16 %v931
    %v1272 = vunpack.c.h.b16 %v931
    %v1273 = vunpack.c.l.b16 %v932
    %v1274 = vunpack.c.h.b16 %v932
    %v1275 = vunpack.c.l.b16 %v933
    %v1276 = vunpack.c.h.b16 %v933
    %v1277 = vunpack.c.l.b16 %v934
    %v1278 = vunpack.c.h.b16 %v934
    %v1279 = vunpack.c.l.b16 %v935
    %v1280 = vunpack.c.h.b16 %v935
    %v1281 = vunpack.c.l.b16 %v936
    %v1282 = vunpack.c.h.b16 %v936
    %v1283 = vunpack.c.l.b16 %v937
    %v1284 = vunpack.c.h.b16 %v937
    %v1285 = vunpack.c.l.b16 %v938
    %v1286 = vunpack.c.h.b16 %v938
    %v1287 = vunpack.c.l.b16 %v939
    %v1288 = vunpack.c.h.b16 %v939
    %v1289 = vunpack.c.l.b16 %v940
    %v1290 = vunpack.c.h.b16 %v940
    %v1291 = vunpack.c.l.b16 %v941
    %v1292 = vunpack.c.h.b16 %v941
    %v1293 = vunpack.c.l.b16 %v942
    %v1294 = vunpack.c.h.b16 %v942
    %v1295 = vunpack.c.l.b16 %v943
    %v1296 = vunpack.c.h.b16 %v943
    %v1297 = vunpack.c.l.b16 %v944
    %v1298 = vunpack.c.h.b16 %v944
    %v1299 = vunpack.c.l.b16 %v945
    %v1300 = vunpack.c.h.b16 %v945
    %v1301 = vunpack.c.l.b16 %v946
    %v1302 = vunpack.c.h.b16 %v946
    %v1303 = vunpack.c.l.b16 %v947
    %v1304 = vunpack.c.h.b16 %v947
    %v1305 = vunpack.c.l.b16 %v948
    %v1306 = vunpack.c.h.b16 %v948
    %v1307 = vunpack.c.l.b16 %v949
    %v1308 = vunpack.c.h.b16 %v949
    %v1309 = vunpack.c.l.b16 %v950
    %v1310 = vunpack.c.h.b16 %v950
    %v1311 = vunpack.c.l.b16 %v951
    %v1312 = vunpack.c.h.b16 %v951
    %v1313 = vunpack.c.l.b16 %v952
    %v1314 = vunpack.c.h.b16 %v952
    %v1315 = vunpack.c.l.b16 %v953
    %v1316 = vunpack.c.h.b16 %v953
    %v1317 = vunpack.c.l.b16 %v954
    %v1318 = vunpack.c.h.b16 %v954
    %v1319 = vunpack.c.l.b16 %v955
    %v1320 = vunpack.c.h.b16 %v955
    %v1321 = vunpack.c.l.b16 %v956
    %v1322 = vunpack.c.h.b16 %v956
    %v1323 = vunpack.c.l.b16 %v957
    %v1324 = vunpack.c.h.b16 %v957
    %v1325 = vunpack.c.l.b16 %v958
    %v1326 = vunpack.c.h.b16 %v958
    %v1327 = vunpack.c.l.b16 %v959
    %v1328 = vunpack.c.h.b16 %v959
    %v1329 = vunpack.c.l.b16 %v960
    %v1330 = vunpack.c.h.b16 %v960
    %v1331 = vunpack.c.l.b16 %v961
    %v1332 = vunpack.c.h.b16 %v961
    %v1333 = vunpack.c.l.b16 %v962
    %v1334 = vunpack.c.h.b16 %v962
    %v1335 = vunpack.c.l.b16 %v963
    %v1336 = vunpack.c.h.b16 %v963
    %v1337 = vunpack.c.l.b16 %v964
    %v1338 = vunpack.c.h.b16 %v964
    %v1339 = vunpack.c.l.b16 %v965
    %v1340 = vunpack.c.h.b16 %v965
    %v1341 = vunpack.c.l.b16 %v966
    %v1342 = vunpack.c.h.b16 %v966
    %v1343 = vunpack.c.l.b16 %v967
    %v1344 = vunpack.c.h.b16 %v967
    %v1345 = vunpack.c.l.b16 %v968
    %v1346 = vunpack.c.h.b16 %v968
    %v1347 = vunpack.c.l.b16 %v969
    %v1348 = vunpack.c.h.b16 %v969
    %v1349 = vunpack.c.l.b16 %v970
    %v1350 = vunpack.c.h.b16 %v970
    %v1351 = vunpack.c.l.b16 %v971
    %v1352 = vunpack.c.h.b16 %v971
    %v1353 = vunpack.c.l.b16 %v972
    %v1354 = vunpack.c.h.b16 %v972
    %v1355 = vunpack.c.l.b16 %v973
    %v1356 = vunpack.c.h.b16 %v973
    %v1357 = vunpack.c.l.b16 %v974
    %v1358 = vunpack.c.h.b16 %v974
    %v1359 = vpack.c.b16 %v1107, %v1103
    %v1360 = vpack.c.b16 %v1108, %v1104
    %v1361 = vpack.c.b16 %v1109, %v1105
    %v1362 = vpack.c.b16 %v1110, %v1106
    %v1363 = vpack.c.b16 %v1115, %v1111
    %v1364 = vpack.c.b16 %v1116, %v1112
    %v1365 = vpack.c.b16 %v1117, %v1113
    %v1366 = vpack.c.b16 %v1118, %v1114
    %v1367 = vpack.c.b16 %v1123, %v1119
    %v1368 = vpack.c.b16 %v1124, %v1120
    %v1369 = vpack.c.b16 %v1125, %v1121
    %v1370 = vpack.c.b16 %v1126, %v1122
    %v1371 = vpack.c.b16 %v1131, %v1127
    %v1372 = vpack.c.b16 %v1132, %v1128
    %v1373 = vpack.c.b16 %v1133, %v1129
    %v1374 = vpack.c.b16 %v1134, %v1130
    %v1375 = vpack.c.b16 %v1139, %v1135
    %v1376 = vpack.c.b16 %v1140, %v1136
    %v1377 = vpack.c.b16 %v1141, %v1137
    %v1378 = vpack.c.b16 %v1142, %v1138
    %v1379 = vpack.c.b16 %v1147, %v1143
    %v1380 = vpack.c.b16 %v1148, %v1144
    %v1381 = vpack.c.b16 %v1149, %v1145
    %v1382 = vpack.c.b16 %v1150, %v1146
    %v1383 = vpack.c.b16 %v1155, %v1151
    %v1384 = vpack.c.b16 %v1156, %v1152
    %v1385 = vpack.c.b16 %v1157, %v1153
    %v1386 = vpack.c.b16 %v1158, %v1154
    %v1387 = vpack.c.b16 %v1163, %v1159
    %v1388 = vpack.c.b16 %v1164, %v1160
    %v1389 = vpack.c.b16 %v1165, %v1161
    %v1390 = vpack.c.b16 %v1166, %v1162
    %v1391 = vpack.c.b16 %v1171, %v1167
    %v1392 = vpack.c.b16 %v1172, %v1168
    %v1393 = vpack.c.b16 %v1173, %v1169
    %v1394 = vpack.c.b16 %v1174, %v1170
    %v1395 = vpack.c.b16 %v1179, %v1175
    %v1396 = vpack.c.b16 %v1180, %v1176
    %v1397 = vpack.c.b16 %v1181, %v1177
    %v1398 = vpack.c.b16 %v1182, %v1178
    %v1399 = vpack.c.b16 %v1187, %v1183
    %v1400 = vpack.c.b16 %v1188, %v1184
    %v1401 = vpack.c.b16 %v1189, %v1185
    %v1402 = vpack.c.b16 %v1190, %v1186
    %v1403 = vpack.c.b16 %v1195, %v1191
    %v1404 = vpack.c.b16 %v1196, %v1192
    %v1405 = vpack.c.b16 %v1197, %v1193
    %v1406 = vpack.c.b16 %v1198, %v1194
    %v1407 = vpack.c.b16 %v1203, %v1199
    %v1408 = vpack.c.b16 %v1204, %v1200
    %v1409 = vpack.c.b16 %v1205, %v1201
    %v1410 = vpack.c.b16 %v1206, %v1202
    %v1411 = vpack.c.b16 %v1211, %v1207
    %v1412 = vpack.c.b16 %v1212, %v1208
    %v1413 = vpack.c.b16 %v1213, %v1209
    %v1414 = vpack.c.b16 %v1214, %v1210
    %v1415 = vpack.c.b16 %v1219, %v1215
    %v1416 = vpack.c.b16 %v1220, %v1216
    %v1417 = vpack.c.b16 %v1221, %v1217
    %v1418 = vpack.c.b16 %v1222, %v1218
    %v1419 = vpack.c.b16 %v1227, %v1223
    %v1420 = vpack.c.b16 %v1228, %v1224
    %v1421 = vpack.c.b16 %v1229, %v1225
    %v1422 = vpack.c.b16 %v1230, %v1226
    %v1423 = vpack.c.b16 %v1235, %v1231
    %v1424 = vpack.c.b16 %v1236, %v1232
    %v1425 = vpack.c.b16 %v1237, %v1233
    %v1426 = vpack.c.b16 %v1238, %v1234
    %v1427 = vpack.c.b16 %v1243, %v1239
    %v1428 = vpack.c.b16 %v1244, %v1240
    %v1429 = vpack.c.b16 %v1245, %v1241
    %v1430 = vpack.c.b16 %v1246, %v1242
    %v1431 = vpack.c.b16 %v1251, %v1247
    %v1432 = vpack.c.b16 %v1252, %v1248
    %v1433 = vpack.c.b16 %v1253, %v1249
    %v1434 = vpack.c.b16 %v1254, %v1250
    %v1435 = vpack.c.b16 %v1259, %v1255
    %v1436 = vpack.c.b16 %v1260, %v1256
    %v1437 = vpack.c.b16 %v1261, %v1257
    %v1438 = vpack.c.b16 %v1262, %v1258
    %v1439 = vpack.c.b16 %v1267, %v1263
    %v1440 = vpack.c.b16 %v1268, %v1264
    %v1441 = vpack.c.b16 %v1269, %v1265
    %v1442 = vpack.c.b16 %v1270, %v1266
    %v1443 = vpack.c.b16 %v1275, %v1271
    %v1444 = vpack.c.b16 %v1276, %v1272
    %v1445 = vpack.c.b16 %v1277, %v1273
    %v1446 = vpack.c.b16 %v1278, %v1274
    %v1447 = vpack.c.b16 %v1283, %v1279
    %v1448 = vpack.c.b16 %v1284, %v1280
    %v1449 = vpack.c.b16 %v1285, %v1281
    %v1450 = vpack.c.b16 %v1286, %v1282
    %v1451 = vpack.c.b16 %v1291, %v1287
    %v1452 = vpack.c.b16 %v1292, %v1288
    %v1453 = vpack.c.b16 %v1293, %v1289
    %v1454 = vpack.c.b16 %v1294, %v1290
    %v1455 = vpack.c.b16 %v1299, %v1295
    %v1456 = vpack.c.b16 %v1300, %v1296
    %v1457 = vpack.c.b16 %v1301, %v1297
    %v1458 = vpack.c.b16 %v1302, %v1298
    %v1459 = vpack.c.b16 %v1307, %v1303
    %v1460 = vpack.c.b16 %v1308, %v1304
    %v1461 = vpack.c.b16 %v1309, %v1305
    %v1462 = vpack.c.b16 %v1310, %v1306
    %v1463 = vpack.c.b16 %v1315, %v1311
    %v1464 = vpack.c.b16 %v1316, %v1312
    %v1465 = vpack.c.b16 %v1317, %v1313
    %v1466 = vpack.c.b16 %v1318, %v1314
    %v1467 = vpack.c.b16 %v1323, %v1319
    %v1468 = vpack.c.b16 %v1324, %v1320
    %v1469 = vpack.c.b16 %v1325, %v1321
    %v1470 = vpack.c.b16 %v1326, %v1322
    %v1471 = vpack.c.b16 %v1331, %v1327
    %v1472 = vpack.c.b16 %v1332, %v1328
    %v1473 = vpack.c.b16 %v1333, %v1329
    %v1474 = vpack.c.b16 %v1334, %v1330
    %v1475 = vpack.c.b16 %v1339, %v1335
    %v1476 = vpack.c.b16 %v1340, %v1336
    %v1477 = vpack.c.b16 %v1341, %v1337
    %v1478 = vpack.c.b16 %v1342, %v1338
    %v1479 = vpack.c.b16 %v1347, %v1343
    %v1480 = vpack.c.b16 %v1348, %v1344
    %v1481 = vpack.c.b16 %v1349, %v1345
    %v1482 = vpack.c.b16 %v1350, %v1346
    %v1483 = vpack.c.b16 %v1355, %v1351
    %v1484 = vpack.c.b16 %v1356, %v1352
    %v1485 = vpack.c.b16 %v1357, %v1353
    %v1486 = vpack.c.b16 %v1358, %v1354
    %1615 = vmatprep.subr.bf16.mxu0 %v1360
    %1616 = vmatpush1.bf16.msra.mxu0 %v1359
    %1617 = vmatprep.subr.bf16.mxu0 %v1364
    %1618 = vmatpush1.bf16.msra.mxu0 %v1363
    %1619 = vmatprep.subr.bf16.mxu0 %v1368
    %1620 = vmatpush1.bf16.msra.mxu0 %v1367
    %1621 = vmatprep.subr.bf16.mxu0 %v1372
    %1622 = vmatpush1.bf16.msra.mxu0 %v1371
    %1623 = vmatprep.subr.bf16.mxu0 %v1376
    %1624 = vmatpush1.bf16.msra.mxu0 %v1375
    %1625 = vmatprep.subr.bf16.mxu0 %v1380
    %1626 = vmatpush1.bf16.msra.mxu0 %v1379
    %1627 = vmatprep.subr.bf16.mxu0 %v1384
    %1628 = vmatpush1.bf16.msra.mxu0 %v1383
    %1629 = vmatprep.subr.bf16.mxu0 %v1388
    %1630 = vmatpush1.bf16.msra.mxu0 %v1387
    %1631 = vmatprep.subr.bf16.mxu0 %v1392
    %1632 = vmatpush1.bf16.msra.mxu0 %v1391
    %1633 = vmatprep.subr.bf16.mxu0 %v1396
    %1634 = vmatpush1.bf16.msra.mxu0 %v1395
    %1635 = vmatprep.subr.bf16.mxu0 %v1400
    %1636 = vmatpush1.bf16.msra.mxu0 %v1399
    %1637 = vmatprep.subr.bf16.mxu0 %v1404
    %1638 = vmatpush1.bf16.msra.mxu0 %v1403
    %1639 = vmatprep.subr.bf16.mxu0 %v1408
    %1640 = vmatpush1.bf16.msra.mxu0 %v1407
    %1641 = vmatprep.subr.bf16.mxu0 %v1412
    %1642 = vmatpush1.bf16.msra.mxu0 %v1411
    %1643 = vmatprep.subr.bf16.mxu0 %v1416
    %1644 = vmatpush1.bf16.msra.mxu0 %v1415
    %1645 = vmatprep.subr.bf16.mxu0 %v1420
    %1646 = vmatpush1.bf16.msra.mxu0 %v1419
    %1647 = vmatprep.mubr.bf16.mxu0 %v844
    %1648 = vmatmul.mubr.bf16.gmra.mrb[0].mxu0 %v843
    %v1649 = vpop.f32.mrb[0].mxu0
    %v1650 = vadd.f32 0.0, %v1649
    %v1651 = vpop.f32.mrb[0].mxu0
    %v1652 = vadd.f32 0.0, %v1651
    %v1653 = vpop.f32.mrb[0].mxu0
    %v1654 = vpop.f32.mrb[0].mxu0
    %1655 = vdwg.mxu0
    %1656 = vmatprep.subr.bf16.mxu0 %v1424
    %1657 = vmatpush1.bf16.msra.mxu0 %v1423
    %1658 = vmatprep.subr.bf16.mxu0 %v1428
    %1659 = vmatpush1.bf16.msra.mxu0 %v1427
    %1660 = vmatprep.subr.bf16.mxu0 %v1432
    %1661 = vmatpush1.bf16.msra.mxu0 %v1431
    %1662 = vmatprep.subr.bf16.mxu0 %v1436
    %1663 = vmatpush1.bf16.msra.mxu0 %v1435
    %1664 = vmatprep.subr.bf16.mxu0 %v1440
    %1665 = vmatpush1.bf16.msra.mxu0 %v1439
    %1666 = vmatprep.subr.bf16.mxu0 %v1444
    %1667 = vmatpush1.bf16.msra.mxu0 %v1443
    %1668 = vmatprep.subr.bf16.mxu0 %v1448
    %1669 = vmatpush1.bf16.msra.mxu0 %v1447
    %1670 = vmatprep.subr.bf16.mxu0 %v1452
    %1671 = vmatpush1.bf16.msra.mxu0 %v1451
    %1672 = vmatprep.subr.bf16.mxu0 %v1456
    %1673 = vmatpush1.bf16.msra.mxu0 %v1455
    %1674 = vmatprep.subr.bf16.mxu0 %v1460
    %1675 = vmatpush1.bf16.msra.mxu0 %v1459
    %1676 = vmatprep.subr.bf16.mxu0 %v1464
    %1677 = vmatpush1.bf16.msra.mxu0 %v1463
    %1678 = vmatprep.subr.bf16.mxu0 %v1468
    %1679 = vmatpush1.bf16.msra.mxu0 %v1467
    %1680 = vmatprep.subr.bf16.mxu0 %v1472
    %1681 = vmatpush1.bf16.msra.mxu0 %v1471
    %1682 = vmatprep.subr.bf16.mxu0 %v1476
    %1683 = vmatpush1.bf16.msra.mxu0 %v1475
    %1684 = vmatprep.subr.bf16.mxu0 %v1480
    %1685 = vmatpush1.bf16.msra.mxu0 %v1479
    %1686 = vmatprep.subr.bf16.mxu0 %v1484
    %1687 = vmatpush1.bf16.msra.mxu0 %v1483
    %1688 = vmatprep.mubr.bf16.mxu0 %v846
    %1689 = vmatmul.mubr.bf16.gmra.mrb[0].mxu0 %v845
    %v1690 = vpop.f32.mrb[0].mxu0
    %v1691 = vadd.f32 %v1650, %v1690
    %v1692 = vpop.f32.mrb[0].mxu0
    %v1693 = vadd.f32 %v1652, %v1692
    %v1694 = vpop.f32.mrb[0].mxu0
    %v1695 = vpop.f32.mrb[0].mxu0
    %1696 = vdwg.mxu0
    %1697 = vmatprep.subr.bf16.mxu0 %v1362
    %1698 = vmatpush1.bf16.msra.mxu0 %v1361
    %1699 = vmatprep.subr.bf16.mxu0 %v1366
    %1700 = vmatpush1.bf16.msra.mxu0 %v1365
    %1701 = vmatprep.subr.bf16.mxu0 %v1370
    %1702 = vmatpush1.bf16.msra.mxu0 %v1369
    %1703 = vmatprep.subr.bf16.mxu0 %v1374
    %1704 = vmatpush1.bf16.msra.mxu0 %v1373
    %1705 = vmatprep.subr.bf16.mxu0 %v1378
    %1706 = vmatpush1.bf16.msra.mxu0 %v1377
    %1707 = vmatprep.subr.bf16.mxu0 %v1382
    %1708 = vmatpush1.bf16.msra.mxu0 %v1381
    %1709 = vmatprep.subr.bf16.mxu0 %v1386
    %1710 = vmatpush1.bf16.msra.mxu0 %v1385
    %1711 = vmatprep.subr.bf16.mxu0 %v1390
    %1712 = vmatpush1.bf16.msra.mxu0 %v1389
    %1713 = vmatprep.subr.bf16.mxu0 %v1394
    %1714 = vmatpush1.bf16.msra.mxu0 %v1393
    %1715 = vmatprep.subr.bf16.mxu0 %v1398
    %1716 = vmatpush1.bf16.msra.mxu0 %v1397
    %1717 = vmatprep.subr.bf16.mxu0 %v1402
    %1718 = vmatpush1.bf16.msra.mxu0 %v1401
    %1719 = vmatprep.subr.bf16.mxu0 %v1406
    %1720 = vmatpush1.bf16.msra.mxu0 %v1405
    %1721 = vmatprep.subr.bf16.mxu0 %v1410
    %1722 = vmatpush1.bf16.msra.mxu0 %v1409
    %1723 = vmatprep.subr.bf16.mxu0 %v1414
    %1724 = vmatpush1.bf16.msra.mxu0 %v1413
    %1725 = vmatprep.subr.bf16.mxu0 %v1418
    %1726 = vmatpush1.bf16.msra.mxu0 %v1417
    %1727 = vmatprep.subr.bf16.mxu0 %v1422
    %1728 = vmatpush1.bf16.msra.mxu0 %v1421
    %1729 = vmatprep.mubr.bf16.mxu0 %v844
    %1730 = vmatmul.mubr.bf16.gmra.mrb[0].mxu0 %v843
    %v1731 = vpop.f32.mrb[0].mxu0
    %v1732 = vadd.f32 0.0, %v1731
    %v1733 = vpop.f32.mrb[0].mxu0
    %v1734 = vadd.f32 0.0, %v1733
    %v1735 = vpop.f32.mrb[0].mxu0
    %v1736 = vpop.f32.mrb[0].mxu0
    %1737 = vdwg.mxu0
    %1738 = vmatprep.subr.bf16.mxu0 %v1426
    %1739 = vmatpush1.bf16.msra.mxu0 %v1425
    %1740 = vmatprep.subr.bf16.mxu0 %v1430
    %1741 = vmatpush1.bf16.msra.mxu0 %v1429
    %1742 = vmatprep.subr.bf16.mxu0 %v1434
    %1743 = vmatpush1.bf16.msra.mxu0 %v1433
    %1744 = vmatprep.subr.bf16.mxu0 %v1438
    %1745 = vmatpush1.bf16.msra.mxu0 %v1437
    %1746 = vmatprep.subr.bf16.mxu0 %v1442
    %1747 = vmatpush1.bf16.msra.mxu0 %v1441
    %1748 = vmatprep.subr.bf16.mxu0 %v1446
    %1749 = vmatpush1.bf16.msra.mxu0 %v1445
    %1750 = vmatprep.subr.bf16.mxu0 %v1450
    %1751 = vmatpush1.bf16.msra.mxu0 %v1449
    %1752 = vmatprep.subr.bf16.mxu0 %v1454
    %1753 = vmatpush1.bf16.msra.mxu0 %v1453
    %1754 = vmatprep.subr.bf16.mxu0 %v1458
    %1755 = vmatpush1.bf16.msra.mxu0 %v1457
    %1756 = vmatprep.subr.bf16.mxu0 %v1462
    %1757 = vmatpush1.bf16.msra.mxu0 %v1461
    %1758 = vmatprep.subr.bf16.mxu0 %v1466
    %1759 = vmatpush1.bf16.msra.mxu0 %v1465
    %1760 = vmatprep.subr.bf16.mxu0 %v1470
    %1761 = vmatpush1.bf16.msra.mxu0 %v1469
    %1762 = vmatprep.subr.bf16.mxu0 %v1474
    %1763 = vmatpush1.bf16.msra.mxu0 %v1473
    %1764 = vmatprep.subr.bf16.mxu0 %v1478
    %1765 = vmatpush1.bf16.msra.mxu0 %v1477
    %1766 = vmatprep.subr.bf16.mxu0 %v1482
    %1767 = vmatpush1.bf16.msra.mxu0 %v1481
    %1768 = vmatprep.subr.bf16.mxu0 %v1486
    %1769 = vmatpush1.bf16.msra.mxu0 %v1485
    %1770 = vmatprep.mubr.bf16.mxu0 %v846
    %1771 = vmatmul.mubr.bf16.gmra.mrb[0].mxu0 %v845
    %v1772 = vpop.f32.mrb[0].mxu0
    %v1773 = vadd.f32 %v1732, %v1772
    %v1774 = vpop.f32.mrb[0].mxu0
    %v1775 = vadd.f32 %v1734, %v1774
    %v1776 = vpop.f32.mrb[0].mxu0
    %v1777 = vpop.f32.mrb[0].mxu0
    %1778 = vdwg.mxu0
    %v1779 = vld [vmem:[%s4] sm:$0xff]
    %v1781 = vlaneseq
    %v1782 = vshrl.u32 %v1781, 7
    %v1783 = vsub.s32 0, %v1782
    %v1784 = vrot.slane %v1779, %v1783
    %v1785 = vlaneseq
    %v1786 = vshrl.u32 %v1785, 7
    %v1787 = vsub.s32 2, %v1786
    %v1788 = vrot.slane %v1779, %v1787
    %v1789 = vlaneseq
    %v1790 = vshrl.u32 %v1789, 7
    %v1791 = vsub.s32 4, %v1790
    %v1792 = vrot.slane %v1779, %v1791
    %v1793 = vlaneseq
    %v1794 = vshrl.u32 %v1793, 7
    %v1795 = vsub.s32 6, %v1794
    %v1796 = vrot.slane %v1779, %v1795
    %v1801 = vlaneseq
    %v1802 = vshrl.u32 %v1801, 7
    %v1803 = vsub.s32 0, %v1802
    %v1804 = vrot.slane %v1784, %v1803
    %v1805 = vlaneseq
    %v1806 = vshrl.u32 %v1805, 7
    %v1807 = vsub.s32 0, %v1806
    %v1808 = vrot.slane %v1788, %v1807
    %v1809 = vlaneseq
    %v1810 = vshrl.u32 %v1809, 7
    %v1811 = vsub.s32 0, %v1810
    %v1812 = vrot.slane %v1792, %v1811
    %v1813 = vlaneseq
    %v1814 = vshrl.u32 %v1813, 7
    %v1815 = vsub.s32 0, %v1814
    %v1816 = vrot.slane %v1796, %v1815
    %v1817 = vmul.f32 %v1691, %v1804
    %v1818 = vmul.f32 %v1693, %v1808
    %v1819 = vmul.f32 %v1773, %v1812
    %v1820 = vmul.f32 %v1775, %v1816
    %v1821 = vlaneseq
    %v1822 = vshrl.u32 %v1821, 7
    %v1823 = vsub.s32 1, %v1822
    %v1824 = vrot.slane %v1779, %v1823
    %v1825 = vlaneseq
    %v1826 = vshrl.u32 %v1825, 7
    %v1827 = vsub.s32 3, %v1826
    %v1828 = vrot.slane %v1779, %v1827
    %v1829 = vlaneseq
    %v1830 = vshrl.u32 %v1829, 7
    %v1831 = vsub.s32 5, %v1830
    %v1832 = vrot.slane %v1779, %v1831
    %v1833 = vlaneseq
    %v1834 = vshrl.u32 %v1833, 7
    %v1835 = vsub.s32 7, %v1834
    %v1836 = vrot.slane %v1779, %v1835
    %v1841 = vlaneseq
    %v1842 = vshrl.u32 %v1841, 7
    %v1843 = vsub.s32 1, %v1842
    %v1844 = vrot.slane %v1824, %v1843
    %v1845 = vlaneseq
    %v1846 = vshrl.u32 %v1845, 7
    %v1847 = vsub.s32 1, %v1846
    %v1848 = vrot.slane %v1828, %v1847
    %v1849 = vlaneseq
    %v1850 = vshrl.u32 %v1849, 7
    %v1851 = vsub.s32 1, %v1850
    %v1852 = vrot.slane %v1832, %v1851
    %v1853 = vlaneseq
    %v1854 = vshrl.u32 %v1853, 7
    %v1855 = vsub.s32 1, %v1854
    %v1856 = vrot.slane %v1836, %v1855
    %v1857 = vadd.f32 %v1817, %v1844
    %v1858 = vadd.f32 %v1818, %v1848
    %v1859 = vadd.f32 %v1819, %v1852
    %v1860 = vadd.f32 %v1820, %v1856
    %v1861 = vmax.f32 %v1857, 0.0
    %v1862 = vmax.f32 %v1858, 0.0
    %v1863 = vmax.f32 %v1859, 0.0
    %v1864 = vmax.f32 %v1860, 0.0
    %v1869 = vcombine.low %v1861, %v1862
    %v1870 = vcombine.high %v1861, %v1862
    %v1871 = vcombine.low %v1863, %v1864
    %v1872 = vcombine.high %v1863, %v1864
    %v1874 = vunpack.c.l.s4 1983009808
    %v1875 = vunpack.c.0.s8 %v1874
    %v1876 = vlaneseq
    %v1877 = vshrl.u32 %v1876, 7
    %v1878 = vsub.s32 %v1875, %v1877
    %v1879 = vrot.slane %v1869, %v1878
    %v1881 = vunpack.c.l.s4 1983009808
    %v1882 = vunpack.c.0.s8 %v1881
    %v1883 = vlaneseq
    %v1884 = vshrl.u32 %v1883, 7
    %v1885 = vsub.s32 %v1882, %v1884
    %v1886 = vrot.slane %v1870, %v1885
    %v1888 = vunpack.c.l.s4 1983009808
    %v1889 = vunpack.c.0.s8 %v1888
    %v1890 = vlaneseq
    %v1891 = vshrl.u32 %v1890, 7
    %v1892 = vsub.s32 %v1889, %v1891
    %v1893 = vrot.slane %v1871, %v1892
    %v1895 = vunpack.c.l.s4 1983009808
    %v1896 = vunpack.c.0.s8 %v1895
    %v1897 = vlaneseq
    %v1898 = vshrl.u32 %v1897, 7
    %v1899 = vsub.s32 %v1896, %v1898
    %v1900 = vrot.slane %v1872, %v1899
    %v1901 = vcombine.low %v1879, %v1893
    %v1902 = vcombine.high %v1879, %v1893
    %v1903 = vcombine.low %v1886, %v1900
    %v1904 = vcombine.high %v1886, %v1900
    %1909 = vst [vmem:[#allocation2] sm:$0xff] %v1901
    %1910 = vst [vmem:[#allocation2 + $0x8] sm:$0xff] %v1902
    %1911 = vst [vmem:[#allocation2 + $0x10] sm:$0xff] %v1903
    %1912 = vst [vmem:[#allocation2 + $0x18] sm:$0xff] %v1904
    // Predicated region
    $region22: #{forward.23} parent=1 // pred_check
      _
    $region23: #{forward.23} parent=1 // pred_check_branch
      %1914 = sbr.rel (0) target = $region25
    $region24: #{forward.23} parent=1 // pred_region
      %s1916 = ssub.s32 512, 512
      %1917 = vsyncadd [#allocation3], %s1916
      %s1918 = sshll.u32 [#allocation2], 4
      %s1919 = int_to_ptr.vmem [resolvable:$true] %s1918
      %1924 = dma.vmem_to_hbm [thread:$0]  %s1919, 512, %s5, [#allocation3], 128, 128, 8
    $region25: #{forward.23} parent=1 // pred_fallthru
      _
    // Predicated region
    $region26: #{forward.23} parent=1 // pred_check
      _
    $region27: #{forward.23} parent=1 // pred_check_branch
      %1926 = sbr.rel (0) target = $region29
    $region28: #{forward.23} parent=1 // pred_region
      %1927 = dma.done [#allocation3], 512
    $region29: #{forward.23} parent=1 // pred_fallthru
      _
    %1928 = vsyncpa [#allocation3], 1

</llo_original>
